<compile_context>
chip_gen: v7x
topology: tpu7x:2x2x1
jax: 0.10.0
libtpu: 0.0.40
codegen_flags: <defaults>
</compile_context>

<pallas_src>
import math
from functools import partial

import jax
import jax.numpy as jnp
from jax import lax
from jax.experimental import pallas as pl
from jax.experimental.pallas import tpu as pltpu

_VMEM_LIMIT = 64 * 1024 * 1024
_UNROLL_MAX_T = 32          # fully unroll the time loop up to this length


# ------------------------- hoisted input projection -------------------------

def input_projection(inputs, weights, bias):
    """preact = sum_j inputs[j] @ weights[j] + bias.

    inputs[j]:  (T, B, D_j) time-major activations
    weights[j]: (D_j, 8H)   fused input weights (both directions, gates i,f,g,o)
    bias:       (1, 8H)     combined b_ih + b_hh for both directions
    returns     (T, B, 8H)  f32 pre-activations
    """
    T, B = inputs[0].shape[:2]
    G = weights[0].shape[-1]
    TB = T * B
    xs2d = [x.reshape(TB, x.shape[-1]) for x in inputs]
    n = len(xs2d)

    # sublane-aligned row tile
    if TB <= 512:
        row_tile = TB
    else:
        row_tile = 512
    grid = (pl.cdiv(TB, row_tile),)

    def kernel(*refs):
        x_refs = refs[:n]
        w_refs = refs[n:2 * n]
        b_ref = refs[2 * n]
        o_ref = refs[2 * n + 1]
        acc = jnp.dot(x_refs[0][...], w_refs[0][...],
                      preferred_element_type=jnp.float32) + b_ref[...]
        for j in range(1, n):
            acc = acc + jnp.dot(x_refs[j][...], w_refs[j][...],
                                preferred_element_type=jnp.float32)
        o_ref[...] = acc

    in_specs = (
        [pl.BlockSpec((row_tile, x.shape[1]), lambda i: (i, 0)) for x in xs2d]
        + [pl.BlockSpec(w.shape, lambda i: (0, 0)) for w in weights]
        + [pl.BlockSpec((1, G), lambda i: (0, 0))]
    )

    out = pl.pallas_call(
        kernel,
        out_shape=jax.ShapeDtypeStruct((TB, G), jnp.float32),
        grid=grid,
        in_specs=in_specs,
        out_specs=pl.BlockSpec((row_tile, G), lambda i: (i, 0)),
        compiler_params=pltpu.CompilerParams(
            dimension_semantics=("parallel",),
            vmem_limit_bytes=_VMEM_LIMIT),
    )(*xs2d, *weights, bias)
    return out.reshape(T, B, G)


# ------------------------- recurrent (serial) kernel -------------------------

def _bilstm_recurrent_kernel(pre_ref, whh_f_ref, whh_b_ref, yf_ref, yb_ref):
    """Both directions of one BiLSTM layer, interleaved in a single time loop.

    pre_ref:  (T, B, 8H)  pre-activations: [:, :, :4H] fwd, [:, :, 4H:] bwd
    whh_*:    (H, 4H)     fused recurrent weights (gate order i, f, g, o)
    yf_ref:   (T, B, H)   forward hidden states
    yb_ref:   (T, B, H)   backward hidden states
    """
    T, B, _ = pre_ref.shape
    H = whh_f_ref.shape[0]
    G = 4 * H

    # Load recurrent weights ONCE (hoisted out of the time loop).
    whh_f = whh_f_ref[...]
    whh_b = whh_b_ref[...]

    def step(pre, h, c, whh):
        z = pre + jnp.dot(h, whh, preferred_element_type=jnp.float32)
        i = jax.nn.sigmoid(z[:, 0 * H:1 * H])
        f = jax.nn.sigmoid(z[:, 1 * H:2 * H])
        g = jnp.tanh(z[:, 2 * H:3 * H])
        o = jax.nn.sigmoid(z[:, 3 * H:4 * H])
        c_new = f * c + i * g
        h_new = o * jnp.tanh(c_new)
        return h_new, c_new

    zeros = jnp.zeros((B, H), jnp.float32)

    def body(t, carry):
        hf, cf, hb, cb = carry
        tb = T - 1 - t
        row_f = pre_ref[t]    # (B, 8H)
        row_b = pre_ref[tb]   # (B, 8H)
        # two independent chains -> LLO can overlap MXU/EUP latency
        hf, cf = step(row_f[:, :G], hf, cf, whh_f)
        hb, cb = step(row_b[:, G:], hb, cb, whh_b)
        yf_ref[t] = hf
        yb_ref[tb] = hb
        return (hf, cf, hb, cb)

    lax.fori_loop(0, T, body, (zeros, zeros, zeros, zeros),
                  unroll=True if T <= _UNROLL_MAX_T else False)


def bilstm_recurrent(preact, whh_f, whh_b):
    T, B, _ = preact.shape
    H = whh_f.shape[0]
    return pl.pallas_call(
        _bilstm_recurrent_kernel,
        out_shape=(jax.ShapeDtypeStruct((T, B, H), jnp.float32),
                   jax.ShapeDtypeStruct((T, B, H), jnp.float32)),
        in_specs=[pl.BlockSpec(memory_space=pltpu.MemorySpace.VMEM)] * 3,
        out_specs=(pl.BlockSpec(memory_space=pltpu.MemorySpace.VMEM),
                   pl.BlockSpec(memory_space=pltpu.MemorySpace.VMEM)),
        compiler_params=pltpu.CompilerParams(vmem_limit_bytes=_VMEM_LIMIT),
    )(preact, whh_f, whh_b)


# --------------------------- StackedBRNN forward ----------------------------

@partial(jax.jit, static_argnames=("concat_layers", "do_residual"))
def stacked_brnn_forward(x, x_mask, packed_params,
                         concat_layers=False, do_residual=False):
    """Mirrors StackedBRNN.forward in eval mode.

    x: (batch, seq, input_size), x_mask: (batch, seq) -> (batch, seq, 2*hidden)
    """
    # x = x * x_mask.unsqueeze(2)  -- left to XLA (fused, no extra kernel)
    x = x * x_mask.astype(x.dtype)[:, :, None]
    x_tm = jnp.transpose(x, (1, 0, 2))        # time-major (T, B, D)

    layer_inputs = (x_tm,)
    outs = []
    for i, p in enumerate(packed_params):
        preact = input_projection(list(layer_inputs), p["w_in"], p["bias"])
        yf, yb = bilstm_recurrent(preact, p["w_hh_f"], p["w_hh_b"])
        if do_residual and i > 0:
            pf, pb = layer_inputs
            yf, yb = yf + pf, yb + pb
        outs.append((yf, yb))
        layer_inputs = (yf, yb)

    def to_batch_major(pair):
        yf, yb = pair
        # single concat + transpose, only at the API boundary
        return jnp.transpose(jnp.concatenate([yf, yb], axis=-1), (1, 0, 2))

    if concat_layers:
        return jnp.concatenate([to_batch_major(o) for o in outs], axis=2)
    return to_batch_major(outs[-1])


# ----------------------------- parameter setup ------------------------------

def init_params(key, input_size, hidden_size, num_layers):
    """PyTorch-nn.LSTM-shaped params, uniform(-1/sqrt(H), 1/sqrt(H)) init."""
    params = []
    k = 1.0 / math.sqrt(hidden_size)
    in_size = input_size
    for i in range(num_layers):
        if i > 0:
            in_size = 2 * hidden_size
        keys = jax.random.split(jax.random.fold_in(key, i), 8)

        def u(kk, shape):
            return jax.random.uniform(kk, shape, jnp.float32, -k, k)

        params.append(dict(
            w_ih_f=u(keys[0], (4 * hidden_size, in_size)),
            w_hh_f=u(keys[1], (4 * hidden_size, hidden_size)),
            b_ih_f=u(keys[2], (4 * hidden_size,)),
            b_hh_f=u(keys[3], (4 * hidden_size,)),
            w_ih_b=u(keys[4], (4 * hidden_size, in_size)),
            w_hh_b=u(keys[5], (4 * hidden_size, hidden_size)),
            b_ih_b=u(keys[6], (4 * hidden_size,)),
            b_hh_b=u(keys[7], (4 * hidden_size,)),
        ))
    return params


def pack_params(params, hidden_size):
    """Convert PyTorch-shaped per-layer params to the fused kernel format."""
    H = hidden_size
    packed = []
    for i, p in enumerate(params):
        wih_f = p["w_ih_f"].T            # (Din, 4H), gate cols [i|f|g|o]
        wih_b = p["w_ih_b"].T
        bias = jnp.concatenate([p["b_ih_f"] + p["b_hh_f"],
                                p["b_ih_b"] + p["b_hh_b"]])[None, :]  # (1, 8H)
        if i == 0:
            w_in = [jnp.concatenate([wih_f, wih_b], axis=1)]          # (D, 8H)
        else:
            # previous layer feeds (yf, yb) separately -> split the 2H rows
            w_in = [jnp.concatenate([wih_f[:H], wih_b[:H]], axis=1),   # from yf
                    jnp.concatenate([wih_f[H:], wih_b[H:]], axis=1)]   # from yb
        packed.append(dict(
            w_in=w_in,
            bias=bias,
            w_hh_f=p["w_hh_f"].T,        # (H, 4H)
            w_hh_b=p["w_hh_b"].T,
        ))
    return packed


# ------------------------------ pure-JAX check -------------------------------

def _lstm_dir_ref(x, w_ih, w_hh, b_ih, b_hh, reverse):
    H = w_hh.shape[1]
    Wi, Wh = w_ih.T, w_hh.T
    b = b_ih + b_hh
    B = x.shape[1]

    def cell(carry, xt):
        h, c = carry
        z = xt @ Wi + h @ Wh + b
        i = jax.nn.sigmoid(z[:, :H])
        f = jax.nn.sigmoid(z[:, H:2 * H])
        g = jnp.tanh(z[:, 2 * H:3 * H])
        o = jax.nn.sigmoid(z[:, 3 * H:])
        c = f * c + i * g
        h = o * jnp.tanh(c)
        return (h, c), h

    xs = x[::-1] if reverse else x
    _, hs = lax.scan(cell, (jnp.zeros((B, H)), jnp.zeros((B, H))), xs)
    return hs[::-1] if reverse else hs


def stacked_brnn_ref(x, x_mask, params):
    h = (x * x_mask.astype(x.dtype)[:, :, None]).transpose(1, 0, 2)
    for p in params:
        yf = _lstm_dir_ref(h, p["w_ih_f"], p["w_hh_f"], p["b_ih_f"], p["b_hh_f"], False)
        yb = _lstm_dir_ref(h, p["w_ih_b"], p["w_hh_b"], p["b_ih_b"], p["b_hh_b"], True)
        h = jnp.concatenate([yf, yb], axis=-1)
    return jnp.transpose(h, (1, 0, 2))


# ---------------------------------- main -------------------------------------

if __name__ == "__main__":
    # full-f32 matmuls everywhere so the reference comparison is tight
    jax.config.update("jax_default_matmul_precision", "highest")

    B, T, D, H, L = 2, 8, 16, 32, 2   # batch, seq, input_size, hidden, layers

    key = jax.random.PRNGKey(0)
    kx, kp = jax.random.split(key, 2)
    x = jax.random.normal(kx, (B, T, D), dtype=jnp.float32)
    lengths = jnp.array([T, 5])
    # mask is 1.0 on valid positions (the module multiplies the input by it)
    x_mask = (jnp.arange(T)[None, :] < lengths[:, None]).astype(jnp.float32)

    params = init_params(kp, D, H, L)
    kernel_params = pack_params(params, H)

    out = stacked_brnn_forward(x, x_mask, kernel_params)
    out = jax.block_until_ready(out)
    assert out.shape == (B, T, 2 * H), out.shape

    ref = stacked_brnn_ref(x, x_mask, params)
    max_err = float(jnp.max(jnp.abs(out - ref)))
    if max_err < 1e-3:   # expected ~1e-6 with f32 matmul precision
        print("KERNEL_OK")
    else:
        print(f"MISMATCH max_err={max_err}")
</pallas_src>

<mosaic_0001>
module attributes {stable_mosaic.version = 11 : i64} {
  func.func @kernel(%arg0: i32, %arg1: memref<16x16xf32, #tpu.memory_space<vmem>>, %arg2: memref<16x256xf32, #tpu.memory_space<vmem>>, %arg3: memref<1x256xf32, #tpu.memory_space<vmem>>, %arg4: memref<16x256xf32, #tpu.memory_space<vmem>>) attributes {dimension_semantics = [#tpu.dimension_semantics<parallel>], iteration_bounds = array<i64: 1>, scalar_prefetch = 0 : i64, scratch_operands = 0 : i64, tpu.core_type = #tpu.core_type<tc>, window_params = [{transform_indices = @transform_0, window_bounds = array<i64: 16, 16>}, {pipeline_mode = #tpu.pipeline_mode<synchronous>, transform_indices = @transform_1, window_bounds = array<i64: 16, 256>}, {pipeline_mode = #tpu.pipeline_mode<synchronous>, transform_indices = @transform_2, window_bounds = array<i64: 1, 256>}, {transform_indices = @transform_3, window_bounds = array<i64: 16, 256>}]} {
    %c0 = arith.constant 0 : index
    %c0_0 = arith.constant 0 : index
    %0 = vector.load %arg1[%c0, %c0_0] : memref<16x16xf32, #tpu.memory_space<vmem>>, vector<16x16xf32>
    %c0_1 = arith.constant 0 : index
    %c0_2 = arith.constant 0 : index
    %1 = vector.load %arg2[%c0_1, %c0_2] : memref<16x256xf32, #tpu.memory_space<vmem>>, vector<16x256xf32>
    %cst = arith.constant dense<0.000000e+00> : vector<16x256xf32>
    %2 = tpu.matmul %0, %1, %cst {dimension_numbers = #tpu.dot_dimension_numbers<[1], [0], [0], [1], [0, 0, 1, 1], [], []>, precision = #tpu.contract_precision<fp32>} : vector<16x16xf32>, vector<16x256xf32>, vector<16x256xf32> -> vector<16x256xf32>
    %c0_3 = arith.constant 0 : index
    %c0_4 = arith.constant 0 : index
    %3 = vector.load %arg3[%c0_3, %c0_4] : memref<1x256xf32, #tpu.memory_space<vmem>>, vector<1x256xf32>
    %4 = vector.broadcast %3 : vector<1x256xf32> to vector<16x256xf32>
    %5 = arith.addf %2, %4 : vector<16x256xf32>
    %c0_5 = arith.constant 0 : index
    %c0_6 = arith.constant 0 : index
    %6 = vector.load %arg4[%c0_5, %c0_6] : memref<16x256xf32, #tpu.memory_space<vmem>>, vector<16x256xf32>
    tpu.vector_store %arg4[%c0_5, %c0_6], %5 {strides = array<i32>} : memref<16x256xf32, #tpu.memory_space<vmem>>, vector<16x256xf32>,
    return
  }
  func.func @transform_0(%arg0: i32) -> (i32, i32) {
    %c0_i32 = arith.constant 0 : i32
    %c0_i32_0 = arith.constant 0 : i32
    return %arg0, %c0_i32 : i32, i32
  }
  func.func @transform_1(%arg0: i32) -> (i32, i32) {
    %c0_i32 = arith.constant 0 : i32
    %c0_i32_0 = arith.constant 0 : i32
    %c0_i32_1 = arith.constant 0 : i32
    return %c0_i32, %c0_i32_0 : i32, i32
  }
  func.func @transform_2(%arg0: i32) -> (i32, i32) {
    %c0_i32 = arith.constant 0 : i32
    %c0_i32_0 = arith.constant 0 : i32
    %c0_i32_1 = arith.constant 0 : i32
    return %c0_i32, %c0_i32_0 : i32, i32
  }
  func.func @transform_3(%arg0: i32) -> (i32, i32) {
    %c0_i32 = arith.constant 0 : i32
    %c0_i32_0 = arith.constant 0 : i32
    return %arg0, %c0_i32 : i32, i32
  }
}

module attributes {stable_mosaic.version = 11 : i64} {
  func.func @kernel(%arg0: i32, %arg1: memref<16x32xf32, #tpu.memory_space<vmem>>, %arg2: memref<16x32xf32, #tpu.memory_space<vmem>>, %arg3: memref<32x256xf32, #tpu.memory_space<vmem>>, %arg4: memref<32x256xf32, #tpu.memory_space<vmem>>, %arg5: memref<1x256xf32, #tpu.memory_space<vmem>>, %arg6: memref<16x256xf32, #tpu.memory_space<vmem>>) attributes {dimension_semantics = [#tpu.dimension_semantics<parallel>], iteration_bounds = array<i64: 1>, scalar_prefetch = 0 : i64, scratch_operands = 0 : i64, tpu.core_type = #tpu.core_type<tc>, window_params = [{transform_indices = @transform_0, window_bounds = array<i64: 16, 32>}, {transform_indices = @transform_1, window_bounds = array<i64: 16, 32>}, {pipeline_mode = #tpu.pipeline_mode<synchronous>, transform_indices = @transform_2, window_bounds = array<i64: 32, 256>}, {pipeline_mode = #tpu.pipeline_mode<synchronous>, transform_indices = @transform_3, window_bounds = array<i64: 32, 256>}, {pipeline_mode = #tpu.pipeline_mode<synchronous>, transform_indices = @transform_4, window_bounds = array<i64: 1, 256>}, {transform_indices = @transform_5, window_bounds = array<i64: 16, 256>}]} {
    %c0 = arith.constant 0 : index
    %c0_0 = arith.constant 0 : index
    %0 = vector.load %arg1[%c0, %c0_0] : memref<16x32xf32, #tpu.memory_space<vmem>>, vector<16x32xf32>
    %c0_1 = arith.constant 0 : index
    %c0_2 = arith.constant 0 : index
    %1 = vector.load %arg3[%c0_1, %c0_2] : memref<32x256xf32, #tpu.memory_space<vmem>>, vector<32x256xf32>
    %cst = arith.constant dense<0.000000e+00> : vector<16x256xf32>
    %2 = tpu.matmul %0, %1, %cst {dimension_numbers = #tpu.dot_dimension_numbers<[1], [0], [0], [1], [0, 0, 1, 1], [], []>, precision = #tpu.contract_precision<fp32>} : vector<16x32xf32>, vector<32x256xf32>, vector<16x256xf32> -> vector<16x256xf32>
    %c0_3 = arith.constant 0 : index
    %c0_4 = arith.constant 0 : index
    %3 = vector.load %arg5[%c0_3, %c0_4] : memref<1x256xf32, #tpu.memory_space<vmem>>, vector<1x256xf32>
    %4 = vector.broadcast %3 : vector<1x256xf32> to vector<16x256xf32>
    %5 = arith.addf %2, %4 : vector<16x256xf32>
    %c0_5 = arith.constant 0 : index
    %c0_6 = arith.constant 0 : index
    %6 = vector.load %arg2[%c0_5, %c0_6] : memref<16x32xf32, #tpu.memory_space<vmem>>, vector<16x32xf32>
    %c0_7 = arith.constant 0 : index
    %c0_8 = arith.constant 0 : index
    %7 = vector.load %arg4[%c0_7, %c0_8] : memref<32x256xf32, #tpu.memory_space<vmem>>, vector<32x256xf32>
    %cst_9 = arith.constant dense<0.000000e+00> : vector<16x256xf32>
    %8 = tpu.matmul %6, %7, %cst_9 {dimension_numbers = #tpu.dot_dimension_numbers<[1], [0], [0], [1], [0, 0, 1, 1], [], []>, precision = #tpu.contract_precision<fp32>} : vector<16x32xf32>, vector<32x256xf32>, vector<16x256xf32> -> vector<16x256xf32>
    %9 = arith.addf %5, %8 : vector<16x256xf32>
    %c0_10 = arith.constant 0 : index
    %c0_11 = arith.constant 0 : index
    %10 = vector.load %arg6[%c0_10, %c0_11] : memref<16x256xf32, #tpu.memory_space<vmem>>, vector<16x256xf32>
    tpu.vector_store %arg6[%c0_10, %c0_11], %9 {strides = array<i32>} : memref<16x256xf32, #tpu.memory_space<vmem>>, vector<16x256xf32>,
    return
  }
  func.func @transform_0(%arg0: i32) -> (i32, i32) {
    %c0_i32 = arith.constant 0 : i32
    %c0_i32_0 = arith.constant 0 : i32
    return %arg0, %c0_i32 : i32, i32
  }
  func.func @transform_1(%arg0: i32) -> (i32, i32) {
    %c0_i32 = arith.constant 0 : i32
    %c0_i32_0 = arith.constant 0 : i32
    return %arg0, %c0_i32 : i32, i32
  }
  func.func @transform_2(%arg0: i32) -> (i32, i32) {
    %c0_i32 = arith.constant 0 : i32
    %c0_i32_0 = arith.constant 0 : i32
    %c0_i32_1 = arith.constant 0 : i32
    return %c0_i32, %c0_i32_0 : i32, i32
  }
  func.func @transform_3(%arg0: i32) -> (i32, i32) {
    %c0_i32 = arith.constant 0 : i32
    %c0_i32_0 = arith.constant 0 : i32
    %c0_i32_1 = arith.constant 0 : i32
    return %c0_i32, %c0_i32_0 : i32, i32
  }
  func.func @transform_4(%arg0: i32) -> (i32, i32) {
    %c0_i32 = arith.constant 0 : i32
    %c0_i32_0 = arith.constant 0 : i32
    %c0_i32_1 = arith.constant 0 : i32
    return %c0_i32, %c0_i32_0 : i32, i32
  }
  func.func @transform_5(%arg0: i32) -> (i32, i32) {
    %c0_i32 = arith.constant 0 : i32
    %c0_i32_0 = arith.constant 0 : i32
    return %arg0, %c0_i32 : i32, i32
  }
}

module attributes {stable_mosaic.version = 11 : i64} {
  func.func @_bilstm_recurrent_kernel(%arg0: memref<8x2x256xf32, #tpu.memory_space<vmem>>, %arg1: memref<32x128xf32, #tpu.memory_space<vmem>>, %arg2: memref<32x128xf32, #tpu.memory_space<vmem>>, %arg3: memref<8x2x32xf32, #tpu.memory_space<vmem>>, %arg4: memref<8x2x32xf32, #tpu.memory_space<vmem>>) attributes {dimension_semantics = [], scalar_prefetch = 0 : i64, scratch_operands = 0 : i64, tpu.core_type = #tpu.core_type<tc>} {
    %c0 = arith.constant 0 : index
    %c0_0 = arith.constant 0 : index
    %0 = vector.load %arg1[%c0, %c0_0] : memref<32x128xf32, #tpu.memory_space<vmem>>, vector<32x128xf32>
    %c0_1 = arith.constant 0 : index
    %c0_2 = arith.constant 0 : index
    %1 = vector.load %arg2[%c0_1, %c0_2] : memref<32x128xf32, #tpu.memory_space<vmem>>, vector<32x128xf32>
    %cst = arith.constant 0.000000e+00 : f32
    %2 = vector.broadcast %cst : f32 to vector<2x32xf32>
    %c0_i32 = arith.constant 0 : i32
    %c7_i32 = arith.constant 7 : i32
    %3 = arith.subi %c7_i32, %c0_i32 : i32
    %4 = arith.index_cast %c0_i32 : i32 to index
    %c0_3 = arith.constant 0 : index
    %c0_4 = arith.constant 0 : index
    %5 = vector.load %arg0[%4, %c0_3, %c0_4] : memref<8x2x256xf32, #tpu.memory_space<vmem>>, vector<1x2x256xf32>
    %6 = vector.shape_cast %5 : vector<1x2x256xf32> to vector<2x256xf32>
    %7 = arith.index_cast %3 : i32 to index
    %c0_5 = arith.constant 0 : index
    %c0_6 = arith.constant 0 : index
    %8 = vector.load %arg0[%7, %c0_5, %c0_6] : memref<8x2x256xf32, #tpu.memory_space<vmem>>, vector<1x2x256xf32>
    %9 = vector.shape_cast %8 : vector<1x2x256xf32> to vector<2x256xf32>
    %10 = vector.extract_strided_slice %6 {offsets = [0, 0], sizes = [2, 128], strides = [1, 1]} : vector<2x256xf32> to vector<2x128xf32>
    %cst_7 = arith.constant dense<0.000000e+00> : vector<2x128xf32>
    %11 = tpu.matmul %2, %0, %cst_7 {dimension_numbers = #tpu.dot_dimension_numbers<[1], [0], [0], [1], [0, 0, 1, 1], [], []>, precision = #tpu.contract_precision<fp32>} : vector<2x32xf32>, vector<32x128xf32>, vector<2x128xf32> -> vector<2x128xf32>
    %12 = arith.addf %10, %11 : vector<2x128xf32>
    %13 = vector.extract_strided_slice %12 {offsets = [0, 0], sizes = [2, 32], strides = [1, 1]} : vector<2x128xf32> to vector<2x32xf32>
    %14 = arith.negf %13 : vector<2x32xf32>
    %15 = math.exp %14 : vector<2x32xf32>
    %cst_8 = arith.constant 1.000000e+00 : f32
    %16 = vector.broadcast %cst_8 : f32 to vector<2x32xf32>
    %17 = arith.addf %16, %15 : vector<2x32xf32>
    %18 = arith.divf %16, %17 : vector<2x32xf32>
    %19 = vector.extract_strided_slice %12 {offsets = [0, 32], sizes = [2, 32], strides = [1, 1]} : vector<2x128xf32> to vector<2x32xf32>
    %20 = arith.negf %19 : vector<2x32xf32>
    %21 = math.exp %20 : vector<2x32xf32>
    %cst_9 = arith.constant 1.000000e+00 : f32
    %22 = vector.broadcast %cst_9 : f32 to vector<2x32xf32>
    %23 = arith.addf %22, %21 : vector<2x32xf32>
    %24 = arith.divf %22, %23 : vector<2x32xf32>
    %25 = vector.extract_strided_slice %12 {offsets = [0, 64], sizes = [2, 32], strides = [1, 1]} : vector<2x128xf32> to vector<2x32xf32>
    %26 = math.tanh %25 : vector<2x32xf32>
    %27 = vector.extract_strided_slice %12 {offsets = [0, 96], sizes = [2, 32], strides = [1, 1]} : vector<2x128xf32> to vector<2x32xf32>
    %28 = arith.negf %27 : vector<2x32xf32>
    %29 = math.exp %28 : vector<2x32xf32>
    %cst_10 = arith.constant 1.000000e+00 : f32
    %30 = vector.broadcast %cst_10 : f32 to vector<2x32xf32>
    %31 = arith.addf %30, %29 : vector<2x32xf32>
    %32 = arith.divf %30, %31 : vector<2x32xf32>
    %33 = arith.mulf %24, %2 : vector<2x32xf32>
    %34 = arith.mulf %18, %26 : vector<2x32xf32>
    %35 = arith.addf %33, %34 : vector<2x32xf32>
    %36 = math.tanh %35 : vector<2x32xf32>
    %37 = arith.mulf %32, %36 : vector<2x32xf32>
    %38 = vector.extract_strided_slice %9 {offsets = [0, 128], sizes = [2, 128], strides = [1, 1]} : vector<2x256xf32> to vector<2x128xf32>
    %cst_11 = arith.constant dense<0.000000e+00> : vector<2x128xf32>
    %39 = tpu.matmul %2, %1, %cst_11 {dimension_numbers = #tpu.dot_dimension_numbers<[1], [0], [0], [1], [0, 0, 1, 1], [], []>, precision = #tpu.contract_precision<fp32>} : vector<2x32xf32>, vector<32x128xf32>, vector<2x128xf32> -> vector<2x128xf32>
    %40 = arith.addf %38, %39 : vector<2x128xf32>
    %41 = vector.extract_strided_slice %40 {offsets = [0, 0], sizes = [2, 32], strides = [1, 1]} : vector<2x128xf32> to vector<2x32xf32>
    %42 = arith.negf %41 : vector<2x32xf32>
    %43 = math.exp %42 : vector<2x32xf32>
    %cst_12 = arith.constant 1.000000e+00 : f32
    %44 = vector.broadcast %cst_12 : f32 to vector<2x32xf32>
    %45 = arith.addf %44, %43 : vector<2x32xf32>
    %46 = arith.divf %44, %45 : vector<2x32xf32>
    %47 = vector.extract_strided_slice %40 {offsets = [0, 32], sizes = [2, 32], strides = [1, 1]} : vector<2x128xf32> to vector<2x32xf32>
    %48 = arith.negf %47 : vector<2x32xf32>
    %49 = math.exp %48 : vector<2x32xf32>
    %cst_13 = arith.constant 1.000000e+00 : f32
    %50 = vector.broadcast %cst_13 : f32 to vector<2x32xf32>
    %51 = arith.addf %50, %49 : vector<2x32xf32>
    %52 = arith.divf %50, %51 : vector<2x32xf32>
    %53 = vector.extract_strided_slice %40 {offsets = [0, 64], sizes = [2, 32], strides = [1, 1]} : vector<2x128xf32> to vector<2x32xf32>
    %54 = math.tanh %53 : vector<2x32xf32>
    %55 = vector.extract_strided_slice %40 {offsets = [0, 96], sizes = [2, 32], strides = [1, 1]} : vector<2x128xf32> to vector<2x32xf32>
    %56 = arith.negf %55 : vector<2x32xf32>
    %57 = math.exp %56 : vector<2x32xf32>
    %cst_14 = arith.constant 1.000000e+00 : f32
    %58 = vector.broadcast %cst_14 : f32 to vector<2x32xf32>
    %59 = arith.addf %58, %57 : vector<2x32xf32>
    %60 = arith.divf %58, %59 : vector<2x32xf32>
    %61 = arith.mulf %52, %2 : vector<2x32xf32>
    %62 = arith.mulf %46, %54 : vector<2x32xf32>
    %63 = arith.addf %61, %62 : vector<2x32xf32>
    %64 = math.tanh %63 : vector<2x32xf32>
    %65 = arith.mulf %60, %64 : vector<2x32xf32>
    %66 = arith.index_cast %c0_i32 : i32 to index
    %c0_15 = arith.constant 0 : index
    %c0_16 = arith.constant 0 : index
    %67 = vector.load %arg3[%66, %c0_15, %c0_16] : memref<8x2x32xf32, #tpu.memory_space<vmem>>, vector<1x2x32xf32>
    %68 = vector.shape_cast %67 : vector<1x2x32xf32> to vector<2x32xf32>
    %69 = vector.shape_cast %37 : vector<2x32xf32> to vector<1x2x32xf32>
    tpu.vector_store %arg3[%66, %c0_15, %c0_16], %69 {strides = array<i32>} : memref<8x2x32xf32, #tpu.memory_space<vmem>>, vector<1x2x32xf32>,
    %70 = arith.index_cast %3 : i32 to index
    %c0_17 = arith.constant 0 : index
    %c0_18 = arith.constant 0 : index
    %71 = vector.load %arg4[%70, %c0_17, %c0_18] : memref<8x2x32xf32, #tpu.memory_space<vmem>>, vector<1x2x32xf32>
    %72 = vector.shape_cast %71 : vector<1x2x32xf32> to vector<2x32xf32>
    %73 = vector.shape_cast %65 : vector<2x32xf32> to vector<1x2x32xf32>
    tpu.vector_store %arg4[%70, %c0_17, %c0_18], %73 {strides = array<i32>} : memref<8x2x32xf32, #tpu.memory_space<vmem>>, vector<1x2x32xf32>,
    %c1_i32 = arith.constant 1 : i32
    %c7_i32_19 = arith.constant 7 : i32
    %74 = arith.subi %c7_i32_19, %c1_i32 : i32
    %75 = arith.index_cast %c1_i32 : i32 to index
    %c0_20 = arith.constant 0 : index
    %c0_21 = arith.constant 0 : index
    %76 = vector.load %arg0[%75, %c0_20, %c0_21] : memref<8x2x256xf32, #tpu.memory_space<vmem>>, vector<1x2x256xf32>
    %77 = vector.shape_cast %76 : vector<1x2x256xf32> to vector<2x256xf32>
    %78 = arith.index_cast %74 : i32 to index
    %c0_22 = arith.constant 0 : index
    %c0_23 = arith.constant 0 : index
    %79 = vector.load %arg0[%78, %c0_22, %c0_23] : memref<8x2x256xf32, #tpu.memory_space<vmem>>, vector<1x2x256xf32>
    %80 = vector.shape_cast %79 : vector<1x2x256xf32> to vector<2x256xf32>
    %81 = vector.extract_strided_slice %77 {offsets = [0, 0], sizes = [2, 128], strides = [1, 1]} : vector<2x256xf32> to vector<2x128xf32>
    %cst_24 = arith.constant dense<0.000000e+00> : vector<2x128xf32>
    %82 = tpu.matmul %37, %0, %cst_24 {dimension_numbers = #tpu.dot_dimension_numbers<[1], [0], [0], [1], [0, 0, 1, 1], [], []>, precision = #tpu.contract_precision<fp32>} : vector<2x32xf32>, vector<32x128xf32>, vector<2x128xf32> -> vector<2x128xf32>
    %83 = arith.addf %81, %82 : vector<2x128xf32>
    %84 = vector.extract_strided_slice %83 {offsets = [0, 0], sizes = [2, 32], strides = [1, 1]} : vector<2x128xf32> to vector<2x32xf32>
    %85 = arith.negf %84 : vector<2x32xf32>
    %86 = math.exp %85 : vector<2x32xf32>
    %cst_25 = arith.constant 1.000000e+00 : f32
    %87 = vector.broadcast %cst_25 : f32 to vector<2x32xf32>
    %88 = arith.addf %87, %86 : vector<2x32xf32>
    %89 = arith.divf %87, %88 : vector<2x32xf32>
    %90 = vector.extract_strided_slice %83 {offsets = [0, 32], sizes = [2, 32], strides = [1, 1]} : vector<2x128xf32> to vector<2x32xf32>
    %91 = arith.negf %90 : vector<2x32xf32>
    %92 = math.exp %91 : vector<2x32xf32>
    %cst_26 = arith.constant 1.000000e+00 : f32
    %93 = vector.broadcast %cst_26 : f32 to vector<2x32xf32>
    %94 = arith.addf %93, %92 : vector<2x32xf32>
    %95 = arith.divf %93, %94 : vector<2x32xf32>
    %96 = vector.extract_strided_slice %83 {offsets = [0, 64], sizes = [2, 32], strides = [1, 1]} : vector<2x128xf32> to vector<2x32xf32>
    %97 = math.tanh %96 : vector<2x32xf32>
    %98 = vector.extract_strided_slice %83 {offsets = [0, 96], sizes = [2, 32], strides = [1, 1]} : vector<2x128xf32> to vector<2x32xf32>
    %99 = arith.negf %98 : vector<2x32xf32>
    %100 = math.exp %99 : vector<2x32xf32>
    %cst_27 = arith.constant 1.000000e+00 : f32
    %101 = vector.broadcast %cst_27 : f32 to vector<2x32xf32>
    %102 = arith.addf %101, %100 : vector<2x32xf32>
    %103 = arith.divf %101, %102 : vector<2x32xf32>
    %104 = arith.mulf %95, %35 : vector<2x32xf32>
    %105 = arith.mulf %89, %97 : vector<2x32xf32>
    %106 = arith.addf %104, %105 : vector<2x32xf32>
    %107 = math.tanh %106 : vector<2x32xf32>
    %108 = arith.mulf %103, %107 : vector<2x32xf32>
    %109 = vector.extract_strided_slice %80 {offsets = [0, 128], sizes = [2, 128], strides = [1, 1]} : vector<2x256xf32> to vector<2x128xf32>
    %cst_28 = arith.constant dense<0.000000e+00> : vector<2x128xf32>
    %110 = tpu.matmul %65, %1, %cst_28 {dimension_numbers = #tpu.dot_dimension_numbers<[1], [0], [0], [1], [0, 0, 1, 1], [], []>, precision = #tpu.contract_precision<fp32>} : vector<2x32xf32>, vector<32x128xf32>, vector<2x128xf32> -> vector<2x128xf32>
    %111 = arith.addf %109, %110 : vector<2x128xf32>
    %112 = vector.extract_strided_slice %111 {offsets = [0, 0], sizes = [2, 32], strides = [1, 1]} : vector<2x128xf32> to vector<2x32xf32>
    %113 = arith.negf %112 : vector<2x32xf32>
    %114 = math.exp %113 : vector<2x32xf32>
    %cst_29 = arith.constant 1.000000e+00 : f32
    %115 = vector.broadcast %cst_29 : f32 to vector<2x32xf32>
    %116 = arith.addf %115, %114 : vector<2x32xf32>
    %117 = arith.divf %115, %116 : vector<2x32xf32>
    %118 = vector.extract_strided_slice %111 {offsets = [0, 32], sizes = [2, 32], strides = [1, 1]} : vector<2x128xf32> to vector<2x32xf32>
    %119 = arith.negf %118 : vector<2x32xf32>
    %120 = math.exp %119 : vector<2x32xf32>
    %cst_30 = arith.constant 1.000000e+00 : f32
    %121 = vector.broadcast %cst_30 : f32 to vector<2x32xf32>
    %122 = arith.addf %121, %120 : vector<2x32xf32>
    %123 = arith.divf %121, %122 : vector<2x32xf32>
    %124 = vector.extract_strided_slice %111 {offsets = [0, 64], sizes = [2, 32], strides = [1, 1]} : vector<2x128xf32> to vector<2x32xf32>
    %125 = math.tanh %124 : vector<2x32xf32>
    %126 = vector.extract_strided_slice %111 {offsets = [0, 96], sizes = [2, 32], strides = [1, 1]} : vector<2x128xf32> to vector<2x32xf32>
    %127 = arith.negf %126 : vector<2x32xf32>
    %128 = math.exp %127 : vector<2x32xf32>
    %cst_31 = arith.constant 1.000000e+00 : f32
    %129 = vector.broadcast %cst_31 : f32 to vector<2x32xf32>
    %130 = arith.addf %129, %128 : vector<2x32xf32>
    %131 = arith.divf %129, %130 : vector<2x32xf32>
    %132 = arith.mulf %123, %63 : vector<2x32xf32>
    %133 = arith.mulf %117, %125 : vector<2x32xf32>
    %134 = arith.addf %132, %133 : vector<2x32xf32>
    %135 = math.tanh %134 : vector<2x32xf32>
    %136 = arith.mulf %131, %135 : vector<2x32xf32>
    %137 = arith.index_cast %c1_i32 : i32 to index
    %c0_32 = arith.constant 0 : index
    %c0_33 = arith.constant 0 : index
    %138 = vector.load %arg3[%137, %c0_32, %c0_33] : memref<8x2x32xf32, #tpu.memory_space<vmem>>, vector<1x2x32xf32>
    %139 = vector.shape_cast %138 : vector<1x2x32xf32> to vector<2x32xf32>
    %140 = vector.shape_cast %108 : vector<2x32xf32> to vector<1x2x32xf32>
    tpu.vector_store %arg3[%137, %c0_32, %c0_33], %140 {strides = array<i32>} : memref<8x2x32xf32, #tpu.memory_space<vmem>>, vector<1x2x32xf32>,
    %141 = arith.index_cast %74 : i32 to index
    %c0_34 = arith.constant 0 : index
    %c0_35 = arith.constant 0 : index
    %142 = vector.load %arg4[%141, %c0_34, %c0_35] : memref<8x2x32xf32, #tpu.memory_space<vmem>>, vector<1x2x32xf32>
    %143 = vector.shape_cast %142 : vector<1x2x32xf32> to vector<2x32xf32>
    %144 = vector.shape_cast %136 : vector<2x32xf32> to vector<1x2x32xf32>
    tpu.vector_store %arg4[%141, %c0_34, %c0_35], %144 {strides = array<i32>} : memref<8x2x32xf32, #tpu.memory_space<vmem>>, vector<1x2x32xf32>,
    %c2_i32 = arith.constant 2 : i32
    %c7_i32_36 = arith.constant 7 : i32
    %145 = arith.subi %c7_i32_36, %c2_i32 : i32
    %146 = arith.index_cast %c2_i32 : i32 to index
    %c0_37 = arith.constant 0 : index
    %c0_38 = arith.constant 0 : index
    %147 = vector.load %arg0[%146, %c0_37, %c0_38] : memref<8x2x256xf32, #tpu.memory_space<vmem>>, vector<1x2x256xf32>
    %148 = vector.shape_cast %147 : vector<1x2x256xf32> to vector<2x256xf32>
    %149 = arith.index_cast %145 : i32 to index
    %c0_39 = arith.constant 0 : index
    %c0_40 = arith.constant 0 : index
    %150 = vector.load %arg0[%149, %c0_39, %c0_40] : memref<8x2x256xf32, #tpu.memory_space<vmem>>, vector<1x2x256xf32>
    %151 = vector.shape_cast %150 : vector<1x2x256xf32> to vector<2x256xf32>
    %152 = vector.extract_strided_slice %148 {offsets = [0, 0], sizes = [2, 128], strides = [1, 1]} : vector<2x256xf32> to vector<2x128xf32>
    %cst_41 = arith.constant dense<0.000000e+00> : vector<2x128xf32>
    %153 = tpu.matmul %108, %0, %cst_41 {dimension_numbers = #tpu.dot_dimension_numbers<[1], [0], [0], [1], [0, 0, 1, 1], [], []>, precision = #tpu.contract_precision<fp32>} : vector<2x32xf32>, vector<32x128xf32>, vector<2x128xf32> -> vector<2x128xf32>
    %154 = arith.addf %152, %153 : vector<2x128xf32>
    %155 = vector.extract_strided_slice %154 {offsets = [0, 0], sizes = [2, 32], strides = [1, 1]} : vector<2x128xf32> to vector<2x32xf32>
    %156 = arith.negf %155 : vector<2x32xf32>
    %157 = math.exp %156 : vector<2x32xf32>
    %cst_42 = arith.constant 1.000000e+00 : f32
    %158 = vector.broadcast %cst_42 : f32 to vector<2x32xf32>
    %159 = arith.addf %158, %157 : vector<2x32xf32>
    %160 = arith.divf %158, %159 : vector<2x32xf32>
    %161 = vector.extract_strided_slice %154 {offsets = [0, 32], sizes = [2, 32], strides = [1, 1]} : vector<2x128xf32> to vector<2x32xf32>
    %162 = arith.negf %161 : vector<2x32xf32>
    %163 = math.exp %162 : vector<2x32xf32>
    %cst_43 = arith.constant 1.000000e+00 : f32
    %164 = vector.broadcast %cst_43 : f32 to vector<2x32xf32>
    %165 = arith.addf %164, %163 : vector<2x32xf32>
    %166 = arith.divf %164, %165 : vector<2x32xf32>
    %167 = vector.extract_strided_slice %154 {offsets = [0, 64], sizes = [2, 32], strides = [1, 1]} : vector<2x128xf32> to vector<2x32xf32>
    %168 = math.tanh %167 : vector<2x32xf32>
    %169 = vector.extract_strided_slice %154 {offsets = [0, 96], sizes = [2, 32], strides = [1, 1]} : vector<2x128xf32> to vector<2x32xf32>
    %170 = arith.negf %169 : vector<2x32xf32>
    %171 = math.exp %170 : vector<2x32xf32>
    %cst_44 = arith.constant 1.000000e+00 : f32
    %172 = vector.broadcast %cst_44 : f32 to vector<2x32xf32>
    %173 = arith.addf %172, %171 : vector<2x32xf32>
    %174 = arith.divf %172, %173 : vector<2x32xf32>
    %175 = arith.mulf %166, %106 : vector<2x32xf32>
    %176 = arith.mulf %160, %168 : vector<2x32xf32>
    %177 = arith.addf %175, %176 : vector<2x32xf32>
    %178 = math.tanh %177 : vector<2x32xf32>
    %179 = arith.mulf %174, %178 : vector<2x32xf32>
    %180 = vector.extract_strided_slice %151 {offsets = [0, 128], sizes = [2, 128], strides = [1, 1]} : vector<2x256xf32> to vector<2x128xf32>
    %cst_45 = arith.constant dense<0.000000e+00> : vector<2x128xf32>
    %181 = tpu.matmul %136, %1, %cst_45 {dimension_numbers = #tpu.dot_dimension_numbers<[1], [0], [0], [1], [0, 0, 1, 1], [], []>, precision = #tpu.contract_precision<fp32>} : vector<2x32xf32>, vector<32x128xf32>, vector<2x128xf32> -> vector<2x128xf32>
    %182 = arith.addf %180, %181 : vector<2x128xf32>
    %183 = vector.extract_strided_slice %182 {offsets = [0, 0], sizes = [2, 32], strides = [1, 1]} : vector<2x128xf32> to vector<2x32xf32>
    %184 = arith.negf %183 : vector<2x32xf32>
    %185 = math.exp %184 : vector<2x32xf32>
    %cst_46 = arith.constant 1.000000e+00 : f32
    %186 = vector.broadcast %cst_46 : f32 to vector<2x32xf32>
    %187 = arith.addf %186, %185 : vector<2x32xf32>
    %188 = arith.divf %186, %187 : vector<2x32xf32>
    %189 = vector.extract_strided_slice %182 {offsets = [0, 32], sizes = [2, 32], strides = [1, 1]} : vector<2x128xf32> to vector<2x32xf32>
    %190 = arith.negf %189 : vector<2x32xf32>
    %191 = math.exp %190 : vector<2x32xf32>
    %cst_47 = arith.constant 1.000000e+00 : f32
    %192 = vector.broadcast %cst_47 : f32 to vector<2x32xf32>
    %193 = arith.addf %192, %191 : vector<2x32xf32>
    %194 = arith.divf %192, %193 : vector<2x32xf32>
    %195 = vector.extract_strided_slice %182 {offsets = [0, 64], sizes = [2, 32], strides = [1, 1]} : vector<2x128xf32> to vector<2x32xf32>
    %196 = math.tanh %195 : vector<2x32xf32>
    %197 = vector.extract_strided_slice %182 {offsets = [0, 96], sizes = [2, 32], strides = [1, 1]} : vector<2x128xf32> to vector<2x32xf32>
    %198 = arith.negf %197 : vector<2x32xf32>
    %199 = math.exp %198 : vector<2x32xf32>
    %cst_48 = arith.constant 1.000000e+00 : f32
    %200 = vector.broadcast %cst_48 : f32 to vector<2x32xf32>
    %201 = arith.addf %200, %199 : vector<2x32xf32>
    %202 = arith.divf %200, %201 : vector<2x32xf32>
    %203 = arith.mulf %194, %134 : vector<2x32xf32>
    %204 = arith.mulf %188, %196 : vector<2x32xf32>
    %205 = arith.addf %203, %204 : vector<2x32xf32>
    %206 = math.tanh %205 : vector<2x32xf32>
    %207 = arith.mulf %202, %206 : vector<2x32xf32>
    %208 = arith.index_cast %c2_i32 : i32 to index
    %c0_49 = arith.constant 0 : index
    %c0_50 = arith.constant 0 : index
    %209 = vector.load %arg3[%208, %c0_49, %c0_50] : memref<8x2x32xf32, #tpu.memory_space<vmem>>, vector<1x2x32xf32>
    %210 = vector.shape_cast %209 : vector<1x2x32xf32> to vector<2x32xf32>
    %211 = vector.shape_cast %179 : vector<2x32xf32> to vector<1x2x32xf32>
    tpu.vector_store %arg3[%208, %c0_49, %c0_50], %211 {strides = array<i32>} : memref<8x2x32xf32, #tpu.memory_space<vmem>>, vector<1x2x32xf32>,
    %212 = arith.index_cast %145 : i32 to index
    %c0_51 = arith.constant 0 : index
    %c0_52 = arith.constant 0 : index
    %213 = vector.load %arg4[%212, %c0_51, %c0_52] : memref<8x2x32xf32, #tpu.memory_space<vmem>>, vector<1x2x32xf32>
    %214 = vector.shape_cast %213 : vector<1x2x32xf32> to vector<2x32xf32>
    %215 = vector.shape_cast %207 : vector<2x32xf32> to vector<1x2x32xf32>
    tpu.vector_store %arg4[%212, %c0_51, %c0_52], %215 {strides = array<i32>} : memref<8x2x32xf32, #tpu.memory_space<vmem>>, vector<1x2x32xf32>,
    %c3_i32 = arith.constant 3 : i32
    %c7_i32_53 = arith.constant 7 : i32
    %216 = arith.subi %c7_i32_53, %c3_i32 : i32
    %217 = arith.index_cast %c3_i32 : i32 to index
    %c0_54 = arith.constant 0 : index
    %c0_55 = arith.constant 0 : index
    %218 = vector.load %arg0[%217, %c0_54, %c0_55] : memref<8x2x256xf32, #tpu.memory_space<vmem>>, vector<1x2x256xf32>
    %219 = vector.shape_cast %218 : vector<1x2x256xf32> to vector<2x256xf32>
    %220 = arith.index_cast %216 : i32 to index
    %c0_56 = arith.constant 0 : index
    %c0_57 = arith.constant 0 : index
    %221 = vector.load %arg0[%220, %c0_56, %c0_57] : memref<8x2x256xf32, #tpu.memory_space<vmem>>, vector<1x2x256xf32>
    %222 = vector.shape_cast %221 : vector<1x2x256xf32> to vector<2x256xf32>
    %223 = vector.extract_strided_slice %219 {offsets = [0, 0], sizes = [2, 128], strides = [1, 1]} : vector<2x256xf32> to vector<2x128xf32>
    %cst_58 = arith.constant dense<0.000000e+00> : vector<2x128xf32>
    %224 = tpu.matmul %179, %0, %cst_58 {dimension_numbers = #tpu.dot_dimension_numbers<[1], [0], [0], [1], [0, 0, 1, 1], [], []>, precision = #tpu.contract_precision<fp32>} : vector<2x32xf32>, vector<32x128xf32>, vector<2x128xf32> -> vector<2x128xf32>
    %225 = arith.addf %223, %224 : vector<2x128xf32>
    %226 = vector.extract_strided_slice %225 {offsets = [0, 0], sizes = [2, 32], strides = [1, 1]} : vector<2x128xf32> to vector<2x32xf32>
    %227 = arith.negf %226 : vector<2x32xf32>
    %228 = math.exp %227 : vector<2x32xf32>
    %cst_59 = arith.constant 1.000000e+00 : f32
    %229 = vector.broadcast %cst_59 : f32 to vector<2x32xf32>
    %230 = arith.addf %229, %228 : vector<2x32xf32>
    %231 = arith.divf %229, %230 : vector<2x32xf32>
    %232 = vector.extract_strided_slice %225 {offsets = [0, 32], sizes = [2, 32], strides = [1, 1]} : vector<2x128xf32> to vector<2x32xf32>
    %233 = arith.negf %232 : vector<2x32xf32>
    %234 = math.exp %233 : vector<2x32xf32>
    %cst_60 = arith.constant 1.000000e+00 : f32
    %235 = vector.broadcast %cst_60 : f32 to vector<2x32xf32>
    %236 = arith.addf %235, %234 : vector<2x32xf32>
    %237 = arith.divf %235, %236 : vector<2x32xf32>
    %238 = vector.extract_strided_slice %225 {offsets = [0, 64], sizes = [2, 32], strides = [1, 1]} : vector<2x128xf32> to vector<2x32xf32>
    %239 = math.tanh %238 : vector<2x32xf32>
    %240 = vector.extract_strided_slice %225 {offsets = [0, 96], sizes = [2, 32], strides = [1, 1]} : vector<2x128xf32> to vector<2x32xf32>
    %241 = arith.negf %240 : vector<2x32xf32>
    %242 = math.exp %241 : vector<2x32xf32>
    %cst_61 = arith.constant 1.000000e+00 : f32
    %243 = vector.broadcast %cst_61 : f32 to vector<2x32xf32>
    %244 = arith.addf %243, %242 : vector<2x32xf32>
    %245 = arith.divf %243, %244 : vector<2x32xf32>
    %246 = arith.mulf %237, %177 : vector<2x32xf32>
    %247 = arith.mulf %231, %239 : vector<2x32xf32>
    %248 = arith.addf %246, %247 : vector<2x32xf32>
    %249 = math.tanh %248 : vector<2x32xf32>
    %250 = arith.mulf %245, %249 : vector<2x32xf32>
    %251 = vector.extract_strided_slice %222 {offsets = [0, 128], sizes = [2, 128], strides = [1, 1]} : vector<2x256xf32> to vector<2x128xf32>
    %cst_62 = arith.constant dense<0.000000e+00> : vector<2x128xf32>
    %252 = tpu.matmul %207, %1, %cst_62 {dimension_numbers = #tpu.dot_dimension_numbers<[1], [0], [0], [1], [0, 0, 1, 1], [], []>, precision = #tpu.contract_precision<fp32>} : vector<2x32xf32>, vector<32x128xf32>, vector<2x128xf32> -> vector<2x128xf32>
    %253 = arith.addf %251, %252 : vector<2x128xf32>
    %254 = vector.extract_strided_slice %253 {offsets = [0, 0], sizes = [2, 32], strides = [1, 1]} : vector<2x128xf32> to vector<2x32xf32>
    %255 = arith.negf %254 : vector<2x32xf32>
    %256 = math.exp %255 : vector<2x32xf32>
    %cst_63 = arith.constant 1.000000e+00 : f32
    %257 = vector.broadcast %cst_63 : f32 to vector<2x32xf32>
    %258 = arith.addf %257, %256 : vector<2x32xf32>
    %259 = arith.divf %257, %258 : vector<2x32xf32>
    %260 = vector.extract_strided_slice %253 {offsets = [0, 32], sizes = [2, 32], strides = [1, 1]} : vector<2x128xf32> to vector<2x32xf32>
    %261 = arith.negf %260 : vector<2x32xf32>
    %262 = math.exp %261 : vector<2x32xf32>
    %cst_64 = arith.constant 1.000000e+00 : f32
    %263 = vector.broadcast %cst_64 : f32 to vector<2x32xf32>
    %264 = arith.addf %263, %262 : vector<2x32xf32>
    %265 = arith.divf %263, %264 : vector<2x32xf32>
    %266 = vector.extract_strided_slice %253 {offsets = [0, 64], sizes = [2, 32], strides = [1, 1]} : vector<2x128xf32> to vector<2x32xf32>
    %267 = math.tanh %266 : vector<2x32xf32>
    %268 = vector.extract_strided_slice %253 {offsets = [0, 96], sizes = [2, 32], strides = [1, 1]} : vector<2x128xf32> to vector<2x32xf32>
    %269 = arith.negf %268 : vector<2x32xf32>
    %270 = math.exp %269 : vector<2x32xf32>
    %cst_65 = arith.constant 1.000000e+00 : f32
    %271 = vector.broadcast %cst_65 : f32 to vector<2x32xf32>
    %272 = arith.addf %271, %270 : vector<2x32xf32>
    %273 = arith.divf %271, %272 : vector<2x32xf32>
    %274 = arith.mulf %265, %205 : vector<2x32xf32>
    %275 = arith.mulf %259, %267 : vector<2x32xf32>
    %276 = arith.addf %274, %275 : vector<2x32xf32>
    %277 = math.tanh %276 : vector<2x32xf32>
    %278 = arith.mulf %273, %277 : vector<2x32xf32>
    %279 = arith.index_cast %c3_i32 : i32 to index
    %c0_66 = arith.constant 0 : index
    %c0_67 = arith.constant 0 : index
    %280 = vector.load %arg3[%279, %c0_66, %c0_67] : memref<8x2x32xf32, #tpu.memory_space<vmem>>, vector<1x2x32xf32>
    %281 = vector.shape_cast %280 : vector<1x2x32xf32> to vector<2x32xf32>
    %282 = vector.shape_cast %250 : vector<2x32xf32> to vector<1x2x32xf32>
    tpu.vector_store %arg3[%279, %c0_66, %c0_67], %282 {strides = array<i32>} : memref<8x2x32xf32, #tpu.memory_space<vmem>>, vector<1x2x32xf32>,
    %283 = arith.index_cast %216 : i32 to index
    %c0_68 = arith.constant 0 : index
    %c0_69 = arith.constant 0 : index
    %284 = vector.load %arg4[%283, %c0_68, %c0_69] : memref<8x2x32xf32, #tpu.memory_space<vmem>>, vector<1x2x32xf32>
    %285 = vector.shape_cast %284 : vector<1x2x32xf32> to vector<2x32xf32>
    %286 = vector.shape_cast %278 : vector<2x32xf32> to vector<1x2x32xf32>
    tpu.vector_store %arg4[%283, %c0_68, %c0_69], %286 {strides = array<i32>} : memref<8x2x32xf32, #tpu.memory_space<vmem>>, vector<1x2x32xf32>,
    %c4_i32 = arith.constant 4 : i32
    %c7_i32_70 = arith.constant 7 : i32
    %287 = arith.subi %c7_i32_70, %c4_i32 : i32
    %288 = arith.index_cast %c4_i32 : i32 to index
    %c0_71 = arith.constant 0 : index
    %c0_72 = arith.constant 0 : index
    %289 = vector.load %arg0[%288, %c0_71, %c0_72] : memref<8x2x256xf32, #tpu.memory_space<vmem>>, vector<1x2x256xf32>
    %290 = vector.shape_cast %289 : vector<1x2x256xf32> to vector<2x256xf32>
    %291 = arith.index_cast %287 : i32 to index
    %c0_73 = arith.constant 0 : index
    %c0_74 = arith.constant 0 : index
    %292 = vector.load %arg0[%291, %c0_73, %c0_74] : memref<8x2x256xf32, #tpu.memory_space<vmem>>, vector<1x2x256xf32>
    %293 = vector.shape_cast %292 : vector<1x2x256xf32> to vector<2x256xf32>
    %294 = vector.extract_strided_slice %290 {offsets = [0, 0], sizes = [2, 128], strides = [1, 1]} : vector<2x256xf32> to vector<2x128xf32>
    %cst_75 = arith.constant dense<0.000000e+00> : vector<2x128xf32>
    %295 = tpu.matmul %250, %0, %cst_75 {dimension_numbers = #tpu.dot_dimension_numbers<[1], [0], [0], [1], [0, 0, 1, 1], [], []>, precision = #tpu.contract_precision<fp32>} : vector<2x32xf32>, vector<32x128xf32>, vector<2x128xf32> -> vector<2x128xf32>
    %296 = arith.addf %294, %295 : vector<2x128xf32>
    %297 = vector.extract_strided_slice %296 {offsets = [0, 0], sizes = [2, 32], strides = [1, 1]} : vector<2x128xf32> to vector<2x32xf32>
    %298 = arith.negf %297 : vector<2x32xf32>
    %299 = math.exp %298 : vector<2x32xf32>
    %cst_76 = arith.constant 1.000000e+00 : f32
    %300 = vector.broadcast %cst_76 : f32 to vector<2x32xf32>
    %301 = arith.addf %300, %299 : vector<2x32xf32>
    %302 = arith.divf %300, %301 : vector<2x32xf32>
    %303 = vector.extract_strided_slice %296 {offsets = [0, 32], sizes = [2, 32], strides = [1, 1]} : vector<2x128xf32> to vector<2x32xf32>
    %304 = arith.negf %303 : vector<2x32xf32>
    %305 = math.exp %304 : vector<2x32xf32>
    %cst_77 = arith.constant 1.000000e+00 : f32
    %306 = vector.broadcast %cst_77 : f32 to vector<2x32xf32>
    %307 = arith.addf %306, %305 : vector<2x32xf32>
    %308 = arith.divf %306, %307 : vector<2x32xf32>
    %309 = vector.extract_strided_slice %296 {offsets = [0, 64], sizes = [2, 32], strides = [1, 1]} : vector<2x128xf32> to vector<2x32xf32>
    %310 = math.tanh %309 : vector<2x32xf32>
    %311 = vector.extract_strided_slice %296 {offsets = [0, 96], sizes = [2, 32], strides = [1, 1]} : vector<2x128xf32> to vector<2x32xf32>
    %312 = arith.negf %311 : vector<2x32xf32>
    %313 = math.exp %312 : vector<2x32xf32>
    %cst_78 = arith.constant 1.000000e+00 : f32
    %314 = vector.broadcast %cst_78 : f32 to vector<2x32xf32>
    %315 = arith.addf %314, %313 : vector<2x32xf32>
    %316 = arith.divf %314, %315 : vector<2x32xf32>
    %317 = arith.mulf %308, %248 : vector<2x32xf32>
    %318 = arith.mulf %302, %310 : vector<2x32xf32>
    %319 = arith.addf %317, %318 : vector<2x32xf32>
    %320 = math.tanh %319 : vector<2x32xf32>
    %321 = arith.mulf %316, %320 : vector<2x32xf32>
    %322 = vector.extract_strided_slice %293 {offsets = [0, 128], sizes = [2, 128], strides = [1, 1]} : vector<2x256xf32> to vector<2x128xf32>
    %cst_79 = arith.constant dense<0.000000e+00> : vector<2x128xf32>
    %323 = tpu.matmul %278, %1, %cst_79 {dimension_numbers = #tpu.dot_dimension_numbers<[1], [0], [0], [1], [0, 0, 1, 1], [], []>, precision = #tpu.contract_precision<fp32>} : vector<2x32xf32>, vector<32x128xf32>, vector<2x128xf32> -> vector<2x128xf32>
    %324 = arith.addf %322, %323 : vector<2x128xf32>
    %325 = vector.extract_strided_slice %324 {offsets = [0, 0], sizes = [2, 32], strides = [1, 1]} : vector<2x128xf32> to vector<2x32xf32>
    %326 = arith.negf %325 : vector<2x32xf32>
    %327 = math.exp %326 : vector<2x32xf32>
    %cst_80 = arith.constant 1.000000e+00 : f32
    %328 = vector.broadcast %cst_80 : f32 to vector<2x32xf32>
    %329 = arith.addf %328, %327 : vector<2x32xf32>
    %330 = arith.divf %328, %329 : vector<2x32xf32>
    %331 = vector.extract_strided_slice %324 {offsets = [0, 32], sizes = [2, 32], strides = [1, 1]} : vector<2x128xf32> to vector<2x32xf32>
    %332 = arith.negf %331 : vector<2x32xf32>
    %333 = math.exp %332 : vector<2x32xf32>
    %cst_81 = arith.constant 1.000000e+00 : f32
    %334 = vector.broadcast %cst_81 : f32 to vector<2x32xf32>
    %335 = arith.addf %334, %333 : vector<2x32xf32>
    %336 = arith.divf %334, %335 : vector<2x32xf32>
    %337 = vector.extract_strided_slice %324 {offsets = [0, 64], sizes = [2, 32], strides = [1, 1]} : vector<2x128xf32> to vector<2x32xf32>
    %338 = math.tanh %337 : vector<2x32xf32>
    %339 = vector.extract_strided_slice %324 {offsets = [0, 96], sizes = [2, 32], strides = [1, 1]} : vector<2x128xf32> to vector<2x32xf32>
    %340 = arith.negf %339 : vector<2x32xf32>
    %341 = math.exp %340 : vector<2x32xf32>
    %cst_82 = arith.constant 1.000000e+00 : f32
    %342 = vector.broadcast %cst_82 : f32 to vector<2x32xf32>
    %343 = arith.addf %342, %341 : vector<2x32xf32>
    %344 = arith.divf %342, %343 : vector<2x32xf32>
    %345 = arith.mulf %336, %276 : vector<2x32xf32>
    %346 = arith.mulf %330, %338 : vector<2x32xf32>
    %347 = arith.addf %345, %346 : vector<2x32xf32>
    %348 = math.tanh %347 : vector<2x32xf32>
    %349 = arith.mulf %344, %348 : vector<2x32xf32>
    %350 = arith.index_cast %c4_i32 : i32 to index
    %c0_83 = arith.constant 0 : index
    %c0_84 = arith.constant 0 : index
    %351 = vector.load %arg3[%350, %c0_83, %c0_84] : memref<8x2x32xf32, #tpu.memory_space<vmem>>, vector<1x2x32xf32>
    %352 = vector.shape_cast %351 : vector<1x2x32xf32> to vector<2x32xf32>
    %353 = vector.shape_cast %321 : vector<2x32xf32> to vector<1x2x32xf32>
    tpu.vector_store %arg3[%350, %c0_83, %c0_84], %353 {strides = array<i32>} : memref<8x2x32xf32, #tpu.memory_space<vmem>>, vector<1x2x32xf32>,
    %354 = arith.index_cast %287 : i32 to index
    %c0_85 = arith.constant 0 : index
    %c0_86 = arith.constant 0 : index
    %355 = vector.load %arg4[%354, %c0_85, %c0_86] : memref<8x2x32xf32, #tpu.memory_space<vmem>>, vector<1x2x32xf32>
    %356 = vector.shape_cast %355 : vector<1x2x32xf32> to vector<2x32xf32>
    %357 = vector.shape_cast %349 : vector<2x32xf32> to vector<1x2x32xf32>
    tpu.vector_store %arg4[%354, %c0_85, %c0_86], %357 {strides = array<i32>} : memref<8x2x32xf32, #tpu.memory_space<vmem>>, vector<1x2x32xf32>,
    %c5_i32 = arith.constant 5 : i32
    %c7_i32_87 = arith.constant 7 : i32
    %358 = arith.subi %c7_i32_87, %c5_i32 : i32
    %359 = arith.index_cast %c5_i32 : i32 to index
    %c0_88 = arith.constant 0 : index
    %c0_89 = arith.constant 0 : index
    %360 = vector.load %arg0[%359, %c0_88, %c0_89] : memref<8x2x256xf32, #tpu.memory_space<vmem>>, vector<1x2x256xf32>
    %361 = vector.shape_cast %360 : vector<1x2x256xf32> to vector<2x256xf32>
    %362 = arith.index_cast %358 : i32 to index
    %c0_90 = arith.constant 0 : index
    %c0_91 = arith.constant 0 : index
    %363 = vector.load %arg0[%362, %c0_90, %c0_91] : memref<8x2x256xf32, #tpu.memory_space<vmem>>, vector<1x2x256xf32>
    %364 = vector.shape_cast %363 : vector<1x2x256xf32> to vector<2x256xf32>
    %365 = vector.extract_strided_slice %361 {offsets = [0, 0], sizes = [2, 128], strides = [1, 1]} : vector<2x256xf32> to vector<2x128xf32>
    %cst_92 = arith.constant dense<0.000000e+00> : vector<2x128xf32>
    %366 = tpu.matmul %321, %0, %cst_92 {dimension_numbers = #tpu.dot_dimension_numbers<[1], [0], [0], [1], [0, 0, 1, 1], [], []>, precision = #tpu.contract_precision<fp32>} : vector<2x32xf32>, vector<32x128xf32>, vector<2x128xf32> -> vector<2x128xf32>
    %367 = arith.addf %365, %366 : vector<2x128xf32>
    %368 = vector.extract_strided_slice %367 {offsets = [0, 0], sizes = [2, 32], strides = [1, 1]} : vector<2x128xf32> to vector<2x32xf32>
    %369 = arith.negf %368 : vector<2x32xf32>
    %370 = math.exp %369 : vector<2x32xf32>
    %cst_93 = arith.constant 1.000000e+00 : f32
    %371 = vector.broadcast %cst_93 : f32 to vector<2x32xf32>
    %372 = arith.addf %371, %370 : vector<2x32xf32>
    %373 = arith.divf %371, %372 : vector<2x32xf32>
    %374 = vector.extract_strided_slice %367 {offsets = [0, 32], sizes = [2, 32], strides = [1, 1]} : vector<2x128xf32> to vector<2x32xf32>
    %375 = arith.negf %374 : vector<2x32xf32>
    %376 = math.exp %375 : vector<2x32xf32>
    %cst_94 = arith.constant 1.000000e+00 : f32
    %377 = vector.broadcast %cst_94 : f32 to vector<2x32xf32>
    %378 = arith.addf %377, %376 : vector<2x32xf32>
    %379 = arith.divf %377, %378 : vector<2x32xf32>
    %380 = vector.extract_strided_slice %367 {offsets = [0, 64], sizes = [2, 32], strides = [1, 1]} : vector<2x128xf32> to vector<2x32xf32>
    %381 = math.tanh %380 : vector<2x32xf32>
    %382 = vector.extract_strided_slice %367 {offsets = [0, 96], sizes = [2, 32], strides = [1, 1]} : vector<2x128xf32> to vector<2x32xf32>
    %383 = arith.negf %382 : vector<2x32xf32>
    %384 = math.exp %383 : vector<2x32xf32>
    %cst_95 = arith.constant 1.000000e+00 : f32
    %385 = vector.broadcast %cst_95 : f32 to vector<2x32xf32>
    %386 = arith.addf %385, %384 : vector<2x32xf32>
    %387 = arith.divf %385, %386 : vector<2x32xf32>
    %388 = arith.mulf %379, %319 : vector<2x32xf32>
    %389 = arith.mulf %373, %381 : vector<2x32xf32>
    %390 = arith.addf %388, %389 : vector<2x32xf32>
    %391 = math.tanh %390 : vector<2x32xf32>
    %392 = arith.mulf %387, %391 : vector<2x32xf32>
    %393 = vector.extract_strided_slice %364 {offsets = [0, 128], sizes = [2, 128], strides = [1, 1]} : vector<2x256xf32> to vector<2x128xf32>
    %cst_96 = arith.constant dense<0.000000e+00> : vector<2x128xf32>
    %394 = tpu.matmul %349, %1, %cst_96 {dimension_numbers = #tpu.dot_dimension_numbers<[1], [0], [0], [1], [0, 0, 1, 1], [], []>, precision = #tpu.contract_precision<fp32>} : vector<2x32xf32>, vector<32x128xf32>, vector<2x128xf32> -> vector<2x128xf32>
    %395 = arith.addf %393, %394 : vector<2x128xf32>
    %396 = vector.extract_strided_slice %395 {offsets = [0, 0], sizes = [2, 32], strides = [1, 1]} : vector<2x128xf32> to vector<2x32xf32>
    %397 = arith.negf %396 : vector<2x32xf32>
    %398 = math.exp %397 : vector<2x32xf32>
    %cst_97 = arith.constant 1.000000e+00 : f32
    %399 = vector.broadcast %cst_97 : f32 to vector<2x32xf32>
    %400 = arith.addf %399, %398 : vector<2x32xf32>
    %401 = arith.divf %399, %400 : vector<2x32xf32>
    %402 = vector.extract_strided_slice %395 {offsets = [0, 32], sizes = [2, 32], strides = [1, 1]} : vector<2x128xf32> to vector<2x32xf32>
    %403 = arith.negf %402 : vector<2x32xf32>
    %404 = math.exp %403 : vector<2x32xf32>
    %cst_98 = arith.constant 1.000000e+00 : f32
    %405 = vector.broadcast %cst_98 : f32 to vector<2x32xf32>
    %406 = arith.addf %405, %404 : vector<2x32xf32>
    %407 = arith.divf %405, %406 : vector<2x32xf32>
    %408 = vector.extract_strided_slice %395 {offsets = [0, 64], sizes = [2, 32], strides = [1, 1]} : vector<2x128xf32> to vector<2x32xf32>
    %409 = math.tanh %408 : vector<2x32xf32>
    %410 = vector.extract_strided_slice %395 {offsets = [0, 96], sizes = [2, 32], strides = [1, 1]} : vector<2x128xf32> to vector<2x32xf32>
    %411 = arith.negf %410 : vector<2x32xf32>
    %412 = math.exp %411 : vector<2x32xf32>
    %cst_99 = arith.constant 1.000000e+00 : f32
    %413 = vector.broadcast %cst_99 : f32 to vector<2x32xf32>
    %414 = arith.addf %413, %412 : vector<2x32xf32>
    %415 = arith.divf %413, %414 : vector<2x32xf32>
    %416 = arith.mulf %407, %347 : vector<2x32xf32>
    %417 = arith.mulf %401, %409 : vector<2x32xf32>
    %418 = arith.addf %416, %417 : vector<2x32xf32>
    %419 = math.tanh %418 : vector<2x32xf32>
    %420 = arith.mulf %415, %419 : vector<2x32xf32>
    %421 = arith.index_cast %c5_i32 : i32 to index
    %c0_100 = arith.constant 0 : index
    %c0_101 = arith.constant 0 : index
    %422 = vector.load %arg3[%421, %c0_100, %c0_101] : memref<8x2x32xf32, #tpu.memory_space<vmem>>, vector<1x2x32xf32>
    %423 = vector.shape_cast %422 : vector<1x2x32xf32> to vector<2x32xf32>
    %424 = vector.shape_cast %392 : vector<2x32xf32> to vector<1x2x32xf32>
    tpu.vector_store %arg3[%421, %c0_100, %c0_101], %424 {strides = array<i32>} : memref<8x2x32xf32, #tpu.memory_space<vmem>>, vector<1x2x32xf32>,
    %425 = arith.index_cast %358 : i32 to index
    %c0_102 = arith.constant 0 : index
    %c0_103 = arith.constant 0 : index
    %426 = vector.load %arg4[%425, %c0_102, %c0_103] : memref<8x2x32xf32, #tpu.memory_space<vmem>>, vector<1x2x32xf32>
    %427 = vector.shape_cast %426 : vector<1x2x32xf32> to vector<2x32xf32>
    %428 = vector.shape_cast %420 : vector<2x32xf32> to vector<1x2x32xf32>
    tpu.vector_store %arg4[%425, %c0_102, %c0_103], %428 {strides = array<i32>} : memref<8x2x32xf32, #tpu.memory_space<vmem>>, vector<1x2x32xf32>,
    %c6_i32 = arith.constant 6 : i32
    %c7_i32_104 = arith.constant 7 : i32
    %429 = arith.subi %c7_i32_104, %c6_i32 : i32
    %430 = arith.index_cast %c6_i32 : i32 to index
    %c0_105 = arith.constant 0 : index
    %c0_106 = arith.constant 0 : index
    %431 = vector.load %arg0[%430, %c0_105, %c0_106] : memref<8x2x256xf32, #tpu.memory_space<vmem>>, vector<1x2x256xf32>
    %432 = vector.shape_cast %431 : vector<1x2x256xf32> to vector<2x256xf32>
    %433 = arith.index_cast %429 : i32 to index
    %c0_107 = arith.constant 0 : index
    %c0_108 = arith.constant 0 : index
    %434 = vector.load %arg0[%433, %c0_107, %c0_108] : memref<8x2x256xf32, #tpu.memory_space<vmem>>, vector<1x2x256xf32>
    %435 = vector.shape_cast %434 : vector<1x2x256xf32> to vector<2x256xf32>
    %436 = vector.extract_strided_slice %432 {offsets = [0, 0], sizes = [2, 128], strides = [1, 1]} : vector<2x256xf32> to vector<2x128xf32>
    %cst_109 = arith.constant dense<0.000000e+00> : vector<2x128xf32>
    %437 = tpu.matmul %392, %0, %cst_109 {dimension_numbers = #tpu.dot_dimension_numbers<[1], [0], [0], [1], [0, 0, 1, 1], [], []>, precision = #tpu.contract_precision<fp32>} : vector<2x32xf32>, vector<32x128xf32>, vector<2x128xf32> -> vector<2x128xf32>
    %438 = arith.addf %436, %437 : vector<2x128xf32>
    %439 = vector.extract_strided_slice %438 {offsets = [0, 0], sizes = [2, 32], strides = [1, 1]} : vector<2x128xf32> to vector<2x32xf32>
    %440 = arith.negf %439 : vector<2x32xf32>
    %441 = math.exp %440 : vector<2x32xf32>
    %cst_110 = arith.constant 1.000000e+00 : f32
    %442 = vector.broadcast %cst_110 : f32 to vector<2x32xf32>
    %443 = arith.addf %442, %441 : vector<2x32xf32>
    %444 = arith.divf %442, %443 : vector<2x32xf32>
    %445 = vector.extract_strided_slice %438 {offsets = [0, 32], sizes = [2, 32], strides = [1, 1]} : vector<2x128xf32> to vector<2x32xf32>
    %446 = arith.negf %445 : vector<2x32xf32>
    %447 = math.exp %446 : vector<2x32xf32>
    %cst_111 = arith.constant 1.000000e+00 : f32
    %448 = vector.broadcast %cst_111 : f32 to vector<2x32xf32>
    %449 = arith.addf %448, %447 : vector<2x32xf32>
    %450 = arith.divf %448, %449 : vector<2x32xf32>
    %451 = vector.extract_strided_slice %438 {offsets = [0, 64], sizes = [2, 32], strides = [1, 1]} : vector<2x128xf32> to vector<2x32xf32>
    %452 = math.tanh %451 : vector<2x32xf32>
    %453 = vector.extract_strided_slice %438 {offsets = [0, 96], sizes = [2, 32], strides = [1, 1]} : vector<2x128xf32> to vector<2x32xf32>
    %454 = arith.negf %453 : vector<2x32xf32>
    %455 = math.exp %454 : vector<2x32xf32>
    %cst_112 = arith.constant 1.000000e+00 : f32
    %456 = vector.broadcast %cst_112 : f32 to vector<2x32xf32>
    %457 = arith.addf %456, %455 : vector<2x32xf32>
    %458 = arith.divf %456, %457 : vector<2x32xf32>
    %459 = arith.mulf %450, %390 : vector<2x32xf32>
    %460 = arith.mulf %444, %452 : vector<2x32xf32>
    %461 = arith.addf %459, %460 : vector<2x32xf32>
    %462 = math.tanh %461 : vector<2x32xf32>
    %463 = arith.mulf %458, %462 : vector<2x32xf32>
    %464 = vector.extract_strided_slice %435 {offsets = [0, 128], sizes = [2, 128], strides = [1, 1]} : vector<2x256xf32> to vector<2x128xf32>
    %cst_113 = arith.constant dense<0.000000e+00> : vector<2x128xf32>
    %465 = tpu.matmul %420, %1, %cst_113 {dimension_numbers = #tpu.dot_dimension_numbers<[1], [0], [0], [1], [0, 0, 1, 1], [], []>, precision = #tpu.contract_precision<fp32>} : vector<2x32xf32>, vector<32x128xf32>, vector<2x128xf32> -> vector<2x128xf32>
    %466 = arith.addf %464, %465 : vector<2x128xf32>
    %467 = vector.extract_strided_slice %466 {offsets = [0, 0], sizes = [2, 32], strides = [1, 1]} : vector<2x128xf32> to vector<2x32xf32>
    %468 = arith.negf %467 : vector<2x32xf32>
    %469 = math.exp %468 : vector<2x32xf32>
    %cst_114 = arith.constant 1.000000e+00 : f32
    %470 = vector.broadcast %cst_114 : f32 to vector<2x32xf32>
    %471 = arith.addf %470, %469 : vector<2x32xf32>
    %472 = arith.divf %470, %471 : vector<2x32xf32>
    %473 = vector.extract_strided_slice %466 {offsets = [0, 32], sizes = [2, 32], strides = [1, 1]} : vector<2x128xf32> to vector<2x32xf32>
    %474 = arith.negf %473 : vector<2x32xf32>
    %475 = math.exp %474 : vector<2x32xf32>
    %cst_115 = arith.constant 1.000000e+00 : f32
    %476 = vector.broadcast %cst_115 : f32 to vector<2x32xf32>
    %477 = arith.addf %476, %475 : vector<2x32xf32>
    %478 = arith.divf %476, %477 : vector<2x32xf32>
    %479 = vector.extract_strided_slice %466 {offsets = [0, 64], sizes = [2, 32], strides = [1, 1]} : vector<2x128xf32> to vector<2x32xf32>
    %480 = math.tanh %479 : vector<2x32xf32>
    %481 = vector.extract_strided_slice %466 {offsets = [0, 96], sizes = [2, 32], strides = [1, 1]} : vector<2x128xf32> to vector<2x32xf32>
    %482 = arith.negf %481 : vector<2x32xf32>
    %483 = math.exp %482 : vector<2x32xf32>
    %cst_116 = arith.constant 1.000000e+00 : f32
    %484 = vector.broadcast %cst_116 : f32 to vector<2x32xf32>
    %485 = arith.addf %484, %483 : vector<2x32xf32>
    %486 = arith.divf %484, %485 : vector<2x32xf32>
    %487 = arith.mulf %478, %418 : vector<2x32xf32>
    %488 = arith.mulf %472, %480 : vector<2x32xf32>
    %489 = arith.addf %487, %488 : vector<2x32xf32>
    %490 = math.tanh %489 : vector<2x32xf32>
    %491 = arith.mulf %486, %490 : vector<2x32xf32>
    %492 = arith.index_cast %c6_i32 : i32 to index
    %c0_117 = arith.constant 0 : index
    %c0_118 = arith.constant 0 : index
    %493 = vector.load %arg3[%492, %c0_117, %c0_118] : memref<8x2x32xf32, #tpu.memory_space<vmem>>, vector<1x2x32xf32>
    %494 = vector.shape_cast %493 : vector<1x2x32xf32> to vector<2x32xf32>
    %495 = vector.shape_cast %463 : vector<2x32xf32> to vector<1x2x32xf32>
    tpu.vector_store %arg3[%492, %c0_117, %c0_118], %495 {strides = array<i32>} : memref<8x2x32xf32, #tpu.memory_space<vmem>>, vector<1x2x32xf32>,
    %496 = arith.index_cast %429 : i32 to index
    %c0_119 = arith.constant 0 : index
    %c0_120 = arith.constant 0 : index
    %497 = vector.load %arg4[%496, %c0_119, %c0_120] : memref<8x2x32xf32, #tpu.memory_space<vmem>>, vector<1x2x32xf32>
    %498 = vector.shape_cast %497 : vector<1x2x32xf32> to vector<2x32xf32>
    %499 = vector.shape_cast %491 : vector<2x32xf32> to vector<1x2x32xf32>
    tpu.vector_store %arg4[%496, %c0_119, %c0_120], %499 {strides = array<i32>} : memref<8x2x32xf32, #tpu.memory_space<vmem>>, vector<1x2x32xf32>,
    %c7_i32_121 = arith.constant 7 : i32
    %c7_i32_122 = arith.constant 7 : i32
    %500 = arith.subi %c7_i32_122, %c7_i32_121 : i32
    %501 = arith.index_cast %c7_i32_121 : i32 to index
    %c0_123 = arith.constant 0 : index
    %c0_124 = arith.constant 0 : index
    %502 = vector.load %arg0[%501, %c0_123, %c0_124] : memref<8x2x256xf32, #tpu.memory_space<vmem>>, vector<1x2x256xf32>
    %503 = vector.shape_cast %502 : vector<1x2x256xf32> to vector<2x256xf32>
    %504 = arith.index_cast %500 : i32 to index
    %c0_125 = arith.constant 0 : index
    %c0_126 = arith.constant 0 : index
    %505 = vector.load %arg0[%504, %c0_125, %c0_126] : memref<8x2x256xf32, #tpu.memory_space<vmem>>, vector<1x2x256xf32>
    %506 = vector.shape_cast %505 : vector<1x2x256xf32> to vector<2x256xf32>
    %507 = vector.extract_strided_slice %503 {offsets = [0, 0], sizes = [2, 128], strides = [1, 1]} : vector<2x256xf32> to vector<2x128xf32>
    %cst_127 = arith.constant dense<0.000000e+00> : vector<2x128xf32>
    %508 = tpu.matmul %463, %0, %cst_127 {dimension_numbers = #tpu.dot_dimension_numbers<[1], [0], [0], [1], [0, 0, 1, 1], [], []>, precision = #tpu.contract_precision<fp32>} : vector<2x32xf32>, vector<32x128xf32>, vector<2x128xf32> -> vector<2x128xf32>
    %509 = arith.addf %507, %508 : vector<2x128xf32>
    %510 = vector.extract_strided_slice %509 {offsets = [0, 0], sizes = [2, 32], strides = [1, 1]} : vector<2x128xf32> to vector<2x32xf32>
    %511 = arith.negf %510 : vector<2x32xf32>
    %512 = math.exp %511 : vector<2x32xf32>
    %cst_128 = arith.constant 1.000000e+00 : f32
    %513 = vector.broadcast %cst_128 : f32 to vector<2x32xf32>
    %514 = arith.addf %513, %512 : vector<2x32xf32>
    %515 = arith.divf %513, %514 : vector<2x32xf32>
    %516 = vector.extract_strided_slice %509 {offsets = [0, 32], sizes = [2, 32], strides = [1, 1]} : vector<2x128xf32> to vector<2x32xf32>
    %517 = arith.negf %516 : vector<2x32xf32>
    %518 = math.exp %517 : vector<2x32xf32>
    %cst_129 = arith.constant 1.000000e+00 : f32
    %519 = vector.broadcast %cst_129 : f32 to vector<2x32xf32>
    %520 = arith.addf %519, %518 : vector<2x32xf32>
    %521 = arith.divf %519, %520 : vector<2x32xf32>
    %522 = vector.extract_strided_slice %509 {offsets = [0, 64], sizes = [2, 32], strides = [1, 1]} : vector<2x128xf32> to vector<2x32xf32>
    %523 = math.tanh %522 : vector<2x32xf32>
    %524 = vector.extract_strided_slice %509 {offsets = [0, 96], sizes = [2, 32], strides = [1, 1]} : vector<2x128xf32> to vector<2x32xf32>
    %525 = arith.negf %524 : vector<2x32xf32>
    %526 = math.exp %525 : vector<2x32xf32>
    %cst_130 = arith.constant 1.000000e+00 : f32
    %527 = vector.broadcast %cst_130 : f32 to vector<2x32xf32>
    %528 = arith.addf %527, %526 : vector<2x32xf32>
    %529 = arith.divf %527, %528 : vector<2x32xf32>
    %530 = arith.mulf %521, %461 : vector<2x32xf32>
    %531 = arith.mulf %515, %523 : vector<2x32xf32>
    %532 = arith.addf %530, %531 : vector<2x32xf32>
    %533 = math.tanh %532 : vector<2x32xf32>
    %534 = arith.mulf %529, %533 : vector<2x32xf32>
    %535 = vector.extract_strided_slice %506 {offsets = [0, 128], sizes = [2, 128], strides = [1, 1]} : vector<2x256xf32> to vector<2x128xf32>
    %cst_131 = arith.constant dense<0.000000e+00> : vector<2x128xf32>
    %536 = tpu.matmul %491, %1, %cst_131 {dimension_numbers = #tpu.dot_dimension_numbers<[1], [0], [0], [1], [0, 0, 1, 1], [], []>, precision = #tpu.contract_precision<fp32>} : vector<2x32xf32>, vector<32x128xf32>, vector<2x128xf32> -> vector<2x128xf32>
    %537 = arith.addf %535, %536 : vector<2x128xf32>
    %538 = vector.extract_strided_slice %537 {offsets = [0, 0], sizes = [2, 32], strides = [1, 1]} : vector<2x128xf32> to vector<2x32xf32>
    %539 = arith.negf %538 : vector<2x32xf32>
    %540 = math.exp %539 : vector<2x32xf32>
    %cst_132 = arith.constant 1.000000e+00 : f32
    %541 = vector.broadcast %cst_132 : f32 to vector<2x32xf32>
    %542 = arith.addf %541, %540 : vector<2x32xf32>
    %543 = arith.divf %541, %542 : vector<2x32xf32>
    %544 = vector.extract_strided_slice %537 {offsets = [0, 32], sizes = [2, 32], strides = [1, 1]} : vector<2x128xf32> to vector<2x32xf32>
    %545 = arith.negf %544 : vector<2x32xf32>
    %546 = math.exp %545 : vector<2x32xf32>
    %cst_133 = arith.constant 1.000000e+00 : f32
    %547 = vector.broadcast %cst_133 : f32 to vector<2x32xf32>
    %548 = arith.addf %547, %546 : vector<2x32xf32>
    %549 = arith.divf %547, %548 : vector<2x32xf32>
    %550 = vector.extract_strided_slice %537 {offsets = [0, 64], sizes = [2, 32], strides = [1, 1]} : vector<2x128xf32> to vector<2x32xf32>
    %551 = math.tanh %550 : vector<2x32xf32>
    %552 = vector.extract_strided_slice %537 {offsets = [0, 96], sizes = [2, 32], strides = [1, 1]} : vector<2x128xf32> to vector<2x32xf32>
    %553 = arith.negf %552 : vector<2x32xf32>
    %554 = math.exp %553 : vector<2x32xf32>
    %cst_134 = arith.constant 1.000000e+00 : f32
    %555 = vector.broadcast %cst_134 : f32 to vector<2x32xf32>
    %556 = arith.addf %555, %554 : vector<2x32xf32>
    %557 = arith.divf %555, %556 : vector<2x32xf32>
    %558 = arith.mulf %549, %489 : vector<2x32xf32>
    %559 = arith.mulf %543, %551 : vector<2x32xf32>
    %560 = arith.addf %558, %559 : vector<2x32xf32>
    %561 = math.tanh %560 : vector<2x32xf32>
    %562 = arith.mulf %557, %561 : vector<2x32xf32>
    %563 = arith.index_cast %c7_i32_121 : i32 to index
    %c0_135 = arith.constant 0 : index
    %c0_136 = arith.constant 0 : index
    %564 = vector.load %arg3[%563, %c0_135, %c0_136] : memref<8x2x32xf32, #tpu.memory_space<vmem>>, vector<1x2x32xf32>
    %565 = vector.shape_cast %564 : vector<1x2x32xf32> to vector<2x32xf32>
    %566 = vector.shape_cast %534 : vector<2x32xf32> to vector<1x2x32xf32>
    tpu.vector_store %arg3[%563, %c0_135, %c0_136], %566 {strides = array<i32>} : memref<8x2x32xf32, #tpu.memory_space<vmem>>, vector<1x2x32xf32>,
    %567 = arith.index_cast %500 : i32 to index
    %c0_137 = arith.constant 0 : index
    %c0_138 = arith.constant 0 : index
    %568 = vector.load %arg4[%567, %c0_137, %c0_138] : memref<8x2x32xf32, #tpu.memory_space<vmem>>, vector<1x2x32xf32>
    %569 = vector.shape_cast %568 : vector<1x2x32xf32> to vector<2x32xf32>
    %570 = vector.shape_cast %562 : vector<2x32xf32> to vector<1x2x32xf32>
    tpu.vector_store %arg4[%567, %c0_137, %c0_138], %570 {strides = array<i32>} : memref<8x2x32xf32, #tpu.memory_space<vmem>>, vector<1x2x32xf32>,
    %c8_i32 = arith.constant 8 : i32
    return
  }
}

</mosaic_0001>

<llo_original>
// kernel: stacked_brnn_forward.4
$region0: #{stacked_brnn_forward.4}
  #allocation0 [shape = 'u32[]', space=smem, size = 0x4, offset = 0x4, fixed_abs, tag = 'smem constant byte address 0x4 - core index']
  #allocation1 [shape = 'u32[144,128]{1,0:T(1,128)}', space=vmem, size = 0x12000, scoped, tag = 'internal scratch']
  %s0 = inlined_call_operand.hbm [shape: f32[16,16], index: 0, kind: input, shape index: {}]
  %s1 = inlined_call_operand.hbm [shape: f32[16,256], index: 1, kind: input, shape index: {}]
  %s2 = inlined_call_operand.hbm [shape: f32[1,256], index: 2, kind: input, shape index: {}]
  %s3 = inlined_call_operand.hbm [shape: f32[16,256], index: 3, kind: output, shape index: {}]
  %s4 = sld [smem:[#allocation0]]
  $region34: #{stacked_brnn_forward.4} parent=0
    _
  %s6 = ssub.s32 1, %s4
  %s7 = scalar_select 0, %s6, %s4
  $region1: #{stacked_brnn_forward.4} parent=0
    #allocation2 [shape = 'u8[8192]{0}', space=vmem, size = 0x2000, scoped, tag = 'input window, operand 0, single buffered']
    #allocation3 [shape = 's32[1]{0}', space=sflag, size = 0x4, scoped, tag = 'scoped memory for stacked_brnn_forward.4']
    #allocation4 [shape = 's32[1]{0}', space=sflag, size = 0x4, scoped, tag = 'scoped memory for stacked_brnn_forward.4']
    #allocation5 [shape = 'u8[16384]{0}', space=vmem, size = 0x4000, scoped, tag = 'input window, operand 1, single buffered']
    #allocation6 [shape = 's32[1]{0}', space=sflag, size = 0x4, scoped, tag = 'scoped memory for stacked_brnn_forward.4']
    #allocation7 [shape = 'u8[1024]{0}', space=vmem, size = 0x400, scoped, tag = 'input window, operand 2, single buffered']
    #allocation8 [shape = 'u8[16384]{0}', space=vmem, size = 0x4000, scoped, tag = 'output window, operand 0, single buffered']
    %8 = vsyncpa [#allocation3], 0
    %9 = vsyncpa [#allocation6], 0
    %10 = vsyncpa [#allocation4], 0
    // Predicated region
    $region2: #{stacked_brnn_forward.4} parent=1 // pred_check
      _
    $region3: #{stacked_brnn_forward.4} parent=1 // pred_check_branch
      %12 = sbr.rel (0) target = $region5
    $region4: #{stacked_brnn_forward.4} parent=1 // pred_region
      %s14 = ssub.s32 256, 256
      %15 = vsyncadd [#allocation3], %s14
      %s16 = sshll.u32 [#allocation2], 4
      %s17 = int_to_ptr.vmem [resolvable:$true] %s16
      %22 = dma.hbm_to_vmem [thread:$0]  %s0, 256, %s17, [#allocation3], 128, 128, 8
    $region5: #{stacked_brnn_forward.4} parent=1 // pred_fallthru
      _
    // Predicated region
    $region6: #{stacked_brnn_forward.4} parent=1 // pred_check
      _
    $region7: #{stacked_brnn_forward.4} parent=1 // pred_check_branch
      %24 = sbr.rel (0) target = $region9
    $region8: #{stacked_brnn_forward.4} parent=1 // pred_region
      %s26 = ssub.s32 512, 512
      %27 = vsyncadd [#allocation6], %s26
      %s28 = sshll.u32 [#allocation5], 4
      %s29 = int_to_ptr.vmem [resolvable:$true] %s28
      %34 = dma.hbm_to_vmem [thread:$0]  %s1, 512, %s29, [#allocation6], 256, 256, 16
    $region9: #{stacked_brnn_forward.4} parent=1 // pred_fallthru
      _
    // Predicated region
    $region10: #{stacked_brnn_forward.4} parent=1 // pred_check
      _
    $region11: #{stacked_brnn_forward.4} parent=1 // pred_check_branch
      %36 = sbr.rel (0) target = $region13
    $region12: #{stacked_brnn_forward.4} parent=1 // pred_region
      %s38 = ssub.s32 32, 32
      %39 = vsyncadd [#allocation6], %s38
      %s41 = sshll.u32 [#allocation7], 4
      %s42 = int_to_ptr.vmem [resolvable:$true] %s41
      %44 = dma.hbm_to_vmem [thread:$0]  %s2, 32, %s42, [#allocation6]
    $region13: #{stacked_brnn_forward.4} parent=1 // pred_fallthru
      _
    // Predicated region
    $region14: #{stacked_brnn_forward.4} parent=1 // pred_check
      _
    $region15: #{stacked_brnn_forward.4} parent=1 // pred_check_branch
      %46 = sbr.rel (0) target = $region17
    $region16: #{stacked_brnn_forward.4} parent=1 // pred_region
      %47 = dma.done [#allocation3], 256
    $region17: #{stacked_brnn_forward.4} parent=1 // pred_fallthru
      _
    // Predicated region
    $region18: #{stacked_brnn_forward.4} parent=1 // pred_check
      _
    $region19: #{stacked_brnn_forward.4} parent=1 // pred_check_branch
      %49 = sbr.rel (0) target = $region21
    $region20: #{stacked_brnn_forward.4} parent=1 // pred_region
      %50 = dma.done [#allocation6], 512
    $region21: #{stacked_brnn_forward.4} parent=1 // pred_fallthru
      _
    // Predicated region
    $region22: #{stacked_brnn_forward.4} parent=1 // pred_check
      _
    $region23: #{stacked_brnn_forward.4} parent=1 // pred_check_branch
      %52 = sbr.rel (0) target = $region25
    $region24: #{stacked_brnn_forward.4} parent=1 // pred_region
      %53 = dma.done [#allocation6], 32
    $region25: #{stacked_brnn_forward.4} parent=1 // pred_fallthru
      _
    %v54 = vld [vmem:[#allocation2] sm:$0xff]
    %v55 = vld [vmem:[#allocation2 + $0x8] sm:$0xff]
    %v56 = vld [vmem:[#allocation5] sm:$0xff]
    %v57 = vld [vmem:[#allocation5 + $0x8] sm:$0xff]
    %v58 = vld [vmem:[#allocation5 + $0x10] sm:$0xff]
    %v59 = vld [vmem:[#allocation5 + $0x18] sm:$0xff]
    %v60 = vld [vmem:[#allocation7] sm:$0x3]
    %v62 = vlaneseq
    %v63 = vshrl.u32 %v62, 7
    %v64 = vsub.s32 0, %v63
    %v65 = vrot.slane %v60, %v64
    %v66 = vlaneseq
    %v67 = vshrl.u32 %v66, 7
    %v68 = vsub.s32 1, %v67
    %v69 = vrot.slane %v60, %v68
    %vm72 = vcmask 130048
    %v74 = vsel %vm72, %v54, 0
    %v77 = vsel %vm72, %v55, 0
    %v79 = vand.u32 %v57, 4294901760
    %80 = vmatprep.subr.mxu0 %v79
    %v81 = vand.u32 %v56, 4294901760
    %82 = vmatpush1.msra.mxu0 %v81
    %v83 = vand.u32 %v59, 4294901760
    %84 = vmatprep.subr.mxu0 %v83
    %v85 = vand.u32 %v58, 4294901760
    %86 = vmatpush1.msra.mxu0 %v85
    %87 = vmatprep.subr.mxu0 0.0
    %88 = vmatpush1.msra.mxu0 0.0
    %89 = vmatprep.subr.mxu0 0.0
    %90 = vmatpush1.msra.mxu0 0.0
    %91 = vmatprep.subr.mxu0 0.0
    %92 = vmatpush1.msra.mxu0 0.0
    %93 = vmatprep.subr.mxu0 0.0
    %94 = vmatpush1.msra.mxu0 0.0
    %95 = vmatprep.subr.mxu0 0.0
    %96 = vmatpush1.msra.mxu0 0.0
    %97 = vmatprep.subr.mxu0 0.0
    %98 = vmatpush1.msra.mxu0 0.0
    %99 = vmatprep.subr.mxu0 0.0
    %100 = vmatpush1.msra.mxu0 0.0
    %101 = vmatprep.subr.mxu0 0.0
    %102 = vmatpush1.msra.mxu0 0.0
    %103 = vmatprep.subr.mxu0 0.0
    %104 = vmatpush1.msra.mxu0 0.0
    %105 = vmatprep.subr.mxu0 0.0
    %106 = vmatpush1.msra.mxu0 0.0
    %107 = vmatprep.subr.mxu0 0.0
    %108 = vmatpush1.msra.mxu0 0.0
    %109 = vmatprep.subr.mxu0 0.0
    %110 = vmatpush1.msra.mxu0 0.0
    %111 = vmatprep.subr.mxu0 0.0
    %112 = vmatpush1.msra.mxu0 0.0
    %113 = vmatprep.subr.mxu0 0.0
    %114 = vmatpush1.msra.mxu0 0.0
    %115 = vmatprep.subr.mxu0 0.0
    %116 = vmatpush1.msra.mxu0 0.0
    %117 = vmatprep.subr.mxu0 0.0
    %118 = vmatpush1.msra.mxu0 0.0
    %119 = vmatprep.subr.mxu0 0.0
    %120 = vmatpush1.msra.mxu0 0.0
    %121 = vmatprep.subr.mxu0 0.0
    %122 = vmatpush1.msra.mxu0 0.0
    %123 = vmatprep.subr.mxu0 0.0
    %124 = vmatpush1.msra.mxu0 0.0
    %125 = vmatprep.subr.mxu0 0.0
    %126 = vmatpush1.msra.mxu0 0.0
    %127 = vmatprep.subr.mxu0 0.0
    %128 = vmatpush1.msra.mxu0 0.0
    %129 = vmatprep.subr.mxu0 0.0
    %130 = vmatpush1.msra.mxu0 0.0
    %131 = vmatprep.subr.mxu0 0.0
    %132 = vmatpush1.msra.mxu0 0.0
    %133 = vmatprep.subr.mxu0 0.0
    %134 = vmatpush1.msra.mxu0 0.0
    %135 = vmatprep.subr.mxu0 0.0
    %136 = vmatpush1.msra.mxu0 0.0
    %137 = vmatprep.subr.mxu0 0.0
    %138 = vmatpush1.msra.mxu0 0.0
    %139 = vmatprep.subr.mxu0 0.0
    %140 = vmatpush1.msra.mxu0 0.0
    %141 = vmatprep.subr.mxu0 0.0
    %142 = vmatpush1.msra.mxu0 0.0
    %143 = vmatprep.subr.mxu0 0.0
    %144 = vmatpush1.msra.mxu0 0.0
    %145 = vmatprep.subr.mxu0 0.0
    %146 = vmatpush1.msra.mxu0 0.0
    %147 = vmatprep.mubr.f32.mxu0 0.0
    %v148 = vand.u32 %v74, 4294901760
    %v149 = vsub.f32 %v74, %v148
    %v150 = vand.u32 %v149, 4294901760
    %v151 = vsub.f32 %v149, %v150
    %v152 = vand.u32 %v151, 4294901760
    %153 = vmatmul.mubr.f32.gmra.mrb[0].mxu0 %v152
    %v154 = vpop.f32.mrb[0].mxu0
    %v155 = vadd.f32 %v65, %v154
    %v156 = vpop.f32.mrb[0].mxu0
    %v157 = vadd.f32 %v69, %v156
    %158 = vmatprep.mubr.f32.mxu0 0.0
    %v159 = vand.u32 %v77, 4294901760
    %v160 = vsub.f32 %v77, %v159
    %v161 = vand.u32 %v160, 4294901760
    %v162 = vsub.f32 %v160, %v161
    %v163 = vand.u32 %v162, 4294901760
    %164 = vmatmul.mubr.f32.gmra.mrb[0].mxu0 %v163
    %v165 = vpop.f32.mrb[0].mxu0
    %v166 = vadd.f32 %v65, %v165
    %v167 = vpop.f32.mrb[0].mxu0
    %v168 = vadd.f32 %v69, %v167
    %169 = vdwg.mxu0
    %v170 = vand.u32 %v57, 4294901760
    %v171 = vsub.f32 %v57, %v170
    %v172 = vand.u32 %v171, 4294901760
    %v173 = vsub.f32 %v171, %v172
    %v174 = vand.u32 %v173, 4294901760
    %175 = vmatprep.subr.mxu0 %v174
    %v176 = vand.u32 %v56, 4294901760
    %v177 = vsub.f32 %v56, %v176
    %v178 = vand.u32 %v177, 4294901760
    %v179 = vsub.f32 %v177, %v178
    %v180 = vand.u32 %v179, 4294901760
    %181 = vmatpush1.msra.mxu0 %v180
    %v182 = vand.u32 %v59, 4294901760
    %v183 = vsub.f32 %v59, %v182
    %v184 = vand.u32 %v183, 4294901760
    %v185 = vsub.f32 %v183, %v184
    %v186 = vand.u32 %v185, 4294901760
    %187 = vmatprep.subr.mxu0 %v186
    %v188 = vand.u32 %v58, 4294901760
    %v189 = vsub.f32 %v58, %v188
    %v190 = vand.u32 %v189, 4294901760
    %v191 = vsub.f32 %v189, %v190
    %v192 = vand.u32 %v191, 4294901760
    %193 = vmatpush1.msra.mxu0 %v192
    %194 = vmatprep.subr.mxu0 0.0
    %195 = vmatpush1.msra.mxu0 0.0
    %196 = vmatprep.subr.mxu0 0.0
    %197 = vmatpush1.msra.mxu0 0.0
    %198 = vmatprep.subr.mxu0 0.0
    %199 = vmatpush1.msra.mxu0 0.0
    %200 = vmatprep.subr.mxu0 0.0
    %201 = vmatpush1.msra.mxu0 0.0
    %202 = vmatprep.subr.mxu0 0.0
    %203 = vmatpush1.msra.mxu0 0.0
    %204 = vmatprep.subr.mxu0 0.0
    %205 = vmatpush1.msra.mxu0 0.0
    %206 = vmatprep.subr.mxu0 0.0
    %207 = vmatpush1.msra.mxu0 0.0
    %208 = vmatprep.subr.mxu0 0.0
    %209 = vmatpush1.msra.mxu0 0.0
    %210 = vmatprep.subr.mxu0 0.0
    %211 = vmatpush1.msra.mxu0 0.0
    %212 = vmatprep.subr.mxu0 0.0
    %213 = vmatpush1.msra.mxu0 0.0
    %214 = vmatprep.subr.mxu0 0.0
    %215 = vmatpush1.msra.mxu0 0.0
    %216 = vmatprep.subr.mxu0 0.0
    %217 = vmatpush1.msra.mxu0 0.0
    %218 = vmatprep.subr.mxu0 0.0
    %219 = vmatpush1.msra.mxu0 0.0
    %220 = vmatprep.subr.mxu0 0.0
    %221 = vmatpush1.msra.mxu0 0.0
    %222 = vmatprep.subr.mxu0 0.0
    %223 = vmatpush1.msra.mxu0 0.0
    %224 = vmatprep.subr.mxu0 0.0
    %225 = vmatpush1.msra.mxu0 0.0
    %226 = vmatprep.subr.mxu0 0.0
    %227 = vmatpush1.msra.mxu0 0.0
    %228 = vmatprep.subr.mxu0 0.0
    %229 = vmatpush1.msra.mxu0 0.0
    %230 = vmatprep.subr.mxu0 0.0
    %231 = vmatpush1.msra.mxu0 0.0
    %232 = vmatprep.subr.mxu0 0.0
    %233 = vmatpush1.msra.mxu0 0.0
    %234 = vmatprep.subr.mxu0 0.0
    %235 = vmatpush1.msra.mxu0 0.0
    %236 = vmatprep.subr.mxu0 0.0
    %237 = vmatpush1.msra.mxu0 0.0
    %238 = vmatprep.subr.mxu0 0.0
    %239 = vmatpush1.msra.mxu0 0.0
    %240 = vmatprep.subr.mxu0 0.0
    %241 = vmatpush1.msra.mxu0 0.0
    %242 = vmatprep.subr.mxu0 0.0
    %243 = vmatpush1.msra.mxu0 0.0
    %244 = vmatprep.subr.mxu0 0.0
    %245 = vmatpush1.msra.mxu0 0.0
    %246 = vmatprep.subr.mxu0 0.0
    %247 = vmatpush1.msra.mxu0 0.0
    %248 = vmatprep.subr.mxu0 0.0
    %249 = vmatpush1.msra.mxu0 0.0
    %250 = vmatprep.subr.mxu0 0.0
    %251 = vmatpush1.msra.mxu0 0.0
    %252 = vmatprep.subr.mxu0 0.0
    %253 = vmatpush1.msra.mxu0 0.0
    %254 = vmatprep.mubr.f32.mxu0 0.0
    %v255 = vand.u32 %v74, 4294901760
    %256 = vmatmul.mubr.f32.gmra.mrb[0].mxu0 %v255
    %v257 = vpop.f32.mrb[0].mxu0
    %v258 = vadd.f32 %v155, %v257
    %v259 = vpop.f32.mrb[0].mxu0
    %v260 = vadd.f32 %v157, %v259
    %261 = vmatprep.mubr.f32.mxu0 0.0
    %v262 = vand.u32 %v77, 4294901760
    %263 = vmatmul.mubr.f32.gmra.mrb[0].mxu0 %v262
    %v264 = vpop.f32.mrb[0].mxu0
    %v265 = vadd.f32 %v166, %v264
    %v266 = vpop.f32.mrb[0].mxu0
    %v267 = vadd.f32 %v168, %v266
    %268 = vdwg.mxu0
    %v269 = vand.u32 %v57, 4294901760
    %v270 = vsub.f32 %v57, %v269
    %271 = vmatprep.subr.mxu0 %v270
    %v272 = vand.u32 %v56, 4294901760
    %v273 = vsub.f32 %v56, %v272
    %274 = vmatpush1.msra.mxu0 %v273
    %v275 = vand.u32 %v59, 4294901760
    %v276 = vsub.f32 %v59, %v275
    %277 = vmatprep.subr.mxu0 %v276
    %v278 = vand.u32 %v58, 4294901760
    %v279 = vsub.f32 %v58, %v278
    %280 = vmatpush1.msra.mxu0 %v279
    %281 = vmatprep.subr.mxu0 0.0
    %282 = vmatpush1.msra.mxu0 0.0
    %283 = vmatprep.subr.mxu0 0.0
    %284 = vmatpush1.msra.mxu0 0.0
    %285 = vmatprep.subr.mxu0 0.0
    %286 = vmatpush1.msra.mxu0 0.0
    %287 = vmatprep.subr.mxu0 0.0
    %288 = vmatpush1.msra.mxu0 0.0
    %289 = vmatprep.subr.mxu0 0.0
    %290 = vmatpush1.msra.mxu0 0.0
    %291 = vmatprep.subr.mxu0 0.0
    %292 = vmatpush1.msra.mxu0 0.0
    %293 = vmatprep.subr.mxu0 0.0
    %294 = vmatpush1.msra.mxu0 0.0
    %295 = vmatprep.subr.mxu0 0.0
    %296 = vmatpush1.msra.mxu0 0.0
    %297 = vmatprep.subr.mxu0 0.0
    %298 = vmatpush1.msra.mxu0 0.0
    %299 = vmatprep.subr.mxu0 0.0
    %300 = vmatpush1.msra.mxu0 0.0
    %301 = vmatprep.subr.mxu0 0.0
    %302 = vmatpush1.msra.mxu0 0.0
    %303 = vmatprep.subr.mxu0 0.0
    %304 = vmatpush1.msra.mxu0 0.0
    %305 = vmatprep.subr.mxu0 0.0
    %306 = vmatpush1.msra.mxu0 0.0
    %307 = vmatprep.subr.mxu0 0.0
    %308 = vmatpush1.msra.mxu0 0.0
    %309 = vmatprep.subr.mxu0 0.0
    %310 = vmatpush1.msra.mxu0 0.0
    %311 = vmatprep.subr.mxu0 0.0
    %312 = vmatpush1.msra.mxu0 0.0
    %313 = vmatprep.subr.mxu0 0.0
    %314 = vmatpush1.msra.mxu0 0.0
    %315 = vmatprep.subr.mxu0 0.0
    %316 = vmatpush1.msra.mxu0 0.0
    %317 = vmatprep.subr.mxu0 0.0
    %318 = vmatpush1.msra.mxu0 0.0
    %319 = vmatprep.subr.mxu0 0.0
    %320 = vmatpush1.msra.mxu0 0.0
    %321 = vmatprep.subr.mxu0 0.0
    %322 = vmatpush1.msra.mxu0 0.0
    %323 = vmatprep.subr.mxu0 0.0
    %324 = vmatpush1.msra.mxu0 0.0
    %325 = vmatprep.subr.mxu0 0.0
    %326 = vmatpush1.msra.mxu0 0.0
    %327 = vmatprep.subr.mxu0 0.0
    %328 = vmatpush1.msra.mxu0 0.0
    %329 = vmatprep.subr.mxu0 0.0
    %330 = vmatpush1.msra.mxu0 0.0
    %331 = vmatprep.subr.mxu0 0.0
    %332 = vmatpush1.msra.mxu0 0.0
    %333 = vmatprep.subr.mxu0 0.0
    %334 = vmatpush1.msra.mxu0 0.0
    %335 = vmatprep.subr.mxu0 0.0
    %336 = vmatpush1.msra.mxu0 0.0
    %337 = vmatprep.subr.mxu0 0.0
    %338 = vmatpush1.msra.mxu0 0.0
    %339 = vmatprep.subr.mxu0 0.0
    %340 = vmatpush1.msra.mxu0 0.0
    %341 = vmatprep.mubr.f32.mxu0 0.0
    %v342 = vand.u32 %v74, 4294901760
    %v343 = vsub.f32 %v74, %v342
    %344 = vmatmul.mubr.f32.gmra.mrb[0].mxu0 %v343
    %v345 = vpop.f32.mrb[0].mxu0
    %v346 = vadd.f32 %v258, %v345
    %v347 = vpop.f32.mrb[0].mxu0
    %v348 = vadd.f32 %v260, %v347
    %349 = vmatprep.mubr.f32.mxu0 0.0
    %v350 = vand.u32 %v77, 4294901760
    %v351 = vsub.f32 %v77, %v350
    %352 = vmatmul.mubr.f32.gmra.mrb[0].mxu0 %v351
    %v353 = vpop.f32.mrb[0].mxu0
    %v354 = vadd.f32 %v265, %v353
    %v355 = vpop.f32.mrb[0].mxu0
    %v356 = vadd.f32 %v267, %v355
    %357 = vdwg.mxu0
    %v358 = vand.u32 %v57, 4294901760
    %359 = vmatprep.subr.mxu0 %v358
    %v360 = vand.u32 %v56, 4294901760
    %361 = vmatpush1.msra.mxu0 %v360
    %v362 = vand.u32 %v59, 4294901760
    %363 = vmatprep.subr.mxu0 %v362
    %v364 = vand.u32 %v58, 4294901760
    %365 = vmatpush1.msra.mxu0 %v364
    %366 = vmatprep.subr.mxu0 0.0
    %367 = vmatpush1.msra.mxu0 0.0
    %368 = vmatprep.subr.mxu0 0.0
    %369 = vmatpush1.msra.mxu0 0.0
    %370 = vmatprep.subr.mxu0 0.0
    %371 = vmatpush1.msra.mxu0 0.0
    %372 = vmatprep.subr.mxu0 0.0
    %373 = vmatpush1.msra.mxu0 0.0
    %374 = vmatprep.subr.mxu0 0.0
    %375 = vmatpush1.msra.mxu0 0.0
    %376 = vmatprep.subr.mxu0 0.0
    %377 = vmatpush1.msra.mxu0 0.0
    %378 = vmatprep.subr.mxu0 0.0
    %379 = vmatpush1.msra.mxu0 0.0
    %380 = vmatprep.subr.mxu0 0.0
    %381 = vmatpush1.msra.mxu0 0.0
    %382 = vmatprep.subr.mxu0 0.0
    %383 = vmatpush1.msra.mxu0 0.0
    %384 = vmatprep.subr.mxu0 0.0
    %385 = vmatpush1.msra.mxu0 0.0
    %386 = vmatprep.subr.mxu0 0.0
    %387 = vmatpush1.msra.mxu0 0.0
    %388 = vmatprep.subr.mxu0 0.0
    %389 = vmatpush1.msra.mxu0 0.0
    %390 = vmatprep.subr.mxu0 0.0
    %391 = vmatpush1.msra.mxu0 0.0
    %392 = vmatprep.subr.mxu0 0.0
    %393 = vmatpush1.msra.mxu0 0.0
    %394 = vmatprep.subr.mxu0 0.0
    %395 = vmatpush1.msra.mxu0 0.0
    %396 = vmatprep.subr.mxu0 0.0
    %397 = vmatpush1.msra.mxu0 0.0
    %398 = vmatprep.subr.mxu0 0.0
    %399 = vmatpush1.msra.mxu0 0.0
    %400 = vmatprep.subr.mxu0 0.0
    %401 = vmatpush1.msra.mxu0 0.0
    %402 = vmatprep.subr.mxu0 0.0
    %403 = vmatpush1.msra.mxu0 0.0
    %404 = vmatprep.subr.mxu0 0.0
    %405 = vmatpush1.msra.mxu0 0.0
    %406 = vmatprep.subr.mxu0 0.0
    %407 = vmatpush1.msra.mxu0 0.0
    %408 = vmatprep.subr.mxu0 0.0
    %409 = vmatpush1.msra.mxu0 0.0
    %410 = vmatprep.subr.mxu0 0.0
    %411 = vmatpush1.msra.mxu0 0.0
    %412 = vmatprep.subr.mxu0 0.0
    %413 = vmatpush1.msra.mxu0 0.0
    %414 = vmatprep.subr.mxu0 0.0
    %415 = vmatpush1.msra.mxu0 0.0
    %416 = vmatprep.subr.mxu0 0.0
    %417 = vmatpush1.msra.mxu0 0.0
    %418 = vmatprep.subr.mxu0 0.0
    %419 = vmatpush1.msra.mxu0 0.0
    %420 = vmatprep.subr.mxu0 0.0
    %421 = vmatpush1.msra.mxu0 0.0
    %422 = vmatprep.subr.mxu0 0.0
    %423 = vmatpush1.msra.mxu0 0.0
    %424 = vmatprep.subr.mxu0 0.0
    %425 = vmatpush1.msra.mxu0 0.0
    %426 = vmatprep.mubr.f32.mxu0 0.0
    %v427 = vand.u32 %v74, 4294901760
    %v428 = vsub.f32 %v74, %v427
    %v429 = vand.u32 %v428, 4294901760
    %430 = vmatmul.mubr.f32.gmra.mrb[0].mxu0 %v429
    %v431 = vpop.f32.mrb[0].mxu0
    %v432 = vadd.f32 %v346, %v431
    %v433 = vpop.f32.mrb[0].mxu0
    %v434 = vadd.f32 %v348, %v433
    %435 = vmatprep.mubr.f32.mxu0 0.0
    %v436 = vand.u32 %v77, 4294901760
    %v437 = vsub.f32 %v77, %v436
    %v438 = vand.u32 %v437, 4294901760
    %439 = vmatmul.mubr.f32.gmra.mrb[0].mxu0 %v438
    %v440 = vpop.f32.mrb[0].mxu0
    %v441 = vadd.f32 %v354, %v440
    %v442 = vpop.f32.mrb[0].mxu0
    %v443 = vadd.f32 %v356, %v442
    %444 = vdwg.mxu0
    %v445 = vand.u32 %v57, 4294901760
    %v446 = vsub.f32 %v57, %v445
    %v447 = vand.u32 %v446, 4294901760
    %448 = vmatprep.subr.mxu0 %v447
    %v449 = vand.u32 %v56, 4294901760
    %v450 = vsub.f32 %v56, %v449
    %v451 = vand.u32 %v450, 4294901760
    %452 = vmatpush1.msra.mxu0 %v451
    %v453 = vand.u32 %v59, 4294901760
    %v454 = vsub.f32 %v59, %v453
    %v455 = vand.u32 %v454, 4294901760
    %456 = vmatprep.subr.mxu0 %v455
    %v457 = vand.u32 %v58, 4294901760
    %v458 = vsub.f32 %v58, %v457
    %v459 = vand.u32 %v458, 4294901760
    %460 = vmatpush1.msra.mxu0 %v459
    %461 = vmatprep.subr.mxu0 0.0
    %462 = vmatpush1.msra.mxu0 0.0
    %463 = vmatprep.subr.mxu0 0.0
    %464 = vmatpush1.msra.mxu0 0.0
    %465 = vmatprep.subr.mxu0 0.0
    %466 = vmatpush1.msra.mxu0 0.0
    %467 = vmatprep.subr.mxu0 0.0
    %468 = vmatpush1.msra.mxu0 0.0
    %469 = vmatprep.subr.mxu0 0.0
    %470 = vmatpush1.msra.mxu0 0.0
    %471 = vmatprep.subr.mxu0 0.0
    %472 = vmatpush1.msra.mxu0 0.0
    %473 = vmatprep.subr.mxu0 0.0
    %474 = vmatpush1.msra.mxu0 0.0
    %475 = vmatprep.subr.mxu0 0.0
    %476 = vmatpush1.msra.mxu0 0.0
    %477 = vmatprep.subr.mxu0 0.0
    %478 = vmatpush1.msra.mxu0 0.0
    %479 = vmatprep.subr.mxu0 0.0
    %480 = vmatpush1.msra.mxu0 0.0
    %481 = vmatprep.subr.mxu0 0.0
    %482 = vmatpush1.msra.mxu0 0.0
    %483 = vmatprep.subr.mxu0 0.0
    %484 = vmatpush1.msra.mxu0 0.0
    %485 = vmatprep.subr.mxu0 0.0
    %486 = vmatpush1.msra.mxu0 0.0
    %487 = vmatprep.subr.mxu0 0.0
    %488 = vmatpush1.msra.mxu0 0.0
    %489 = vmatprep.subr.mxu0 0.0
    %490 = vmatpush1.msra.mxu0 0.0
    %491 = vmatprep.subr.mxu0 0.0
    %492 = vmatpush1.msra.mxu0 0.0
    %493 = vmatprep.subr.mxu0 0.0
    %494 = vmatpush1.msra.mxu0 0.0
    %495 = vmatprep.subr.mxu0 0.0
    %496 = vmatpush1.msra.mxu0 0.0
    %497 = vmatprep.subr.mxu0 0.0
    %498 = vmatpush1.msra.mxu0 0.0
    %499 = vmatprep.subr.mxu0 0.0
    %500 = vmatpush1.msra.mxu0 0.0
    %501 = vmatprep.subr.mxu0 0.0
    %502 = vmatpush1.msra.mxu0 0.0
    %503 = vmatprep.subr.mxu0 0.0
    %504 = vmatpush1.msra.mxu0 0.0
    %505 = vmatprep.subr.mxu0 0.0
    %506 = vmatpush1.msra.mxu0 0.0
    %507 = vmatprep.subr.mxu0 0.0
    %508 = vmatpush1.msra.mxu0 0.0
    %509 = vmatprep.subr.mxu0 0.0
    %510 = vmatpush1.msra.mxu0 0.0
    %511 = vmatprep.subr.mxu0 0.0
    %512 = vmatpush1.msra.mxu0 0.0
    %513 = vmatprep.subr.mxu0 0.0
    %514 = vmatpush1.msra.mxu0 0.0
    %515 = vmatprep.subr.mxu0 0.0
    %516 = vmatpush1.msra.mxu0 0.0
    %517 = vmatprep.subr.mxu0 0.0
    %518 = vmatpush1.msra.mxu0 0.0
    %519 = vmatprep.subr.mxu0 0.0
    %520 = vmatpush1.msra.mxu0 0.0
    %521 = vmatprep.mubr.f32.mxu0 0.0
    %v522 = vand.u32 %v74, 4294901760
    %523 = vmatmul.mubr.f32.gmra.mrb[0].mxu0 %v522
    %v524 = vpop.f32.mrb[0].mxu0
    %v525 = vadd.f32 %v432, %v524
    %v526 = vpop.f32.mrb[0].mxu0
    %v527 = vadd.f32 %v434, %v526
    %528 = vmatprep.mubr.f32.mxu0 0.0
    %v529 = vand.u32 %v77, 4294901760
    %530 = vmatmul.mubr.f32.gmra.mrb[0].mxu0 %v529
    %v531 = vpop.f32.mrb[0].mxu0
    %v532 = vadd.f32 %v441, %v531
    %v533 = vpop.f32.mrb[0].mxu0
    %v534 = vadd.f32 %v443, %v533
    %535 = vdwg.mxu0
    %v536 = vand.u32 %v57, 4294901760
    %537 = vmatprep.subr.mxu0 %v536
    %v538 = vand.u32 %v56, 4294901760
    %539 = vmatpush1.msra.mxu0 %v538
    %v540 = vand.u32 %v59, 4294901760
    %541 = vmatprep.subr.mxu0 %v540
    %v542 = vand.u32 %v58, 4294901760
    %543 = vmatpush1.msra.mxu0 %v542
    %544 = vmatprep.subr.mxu0 0.0
    %545 = vmatpush1.msra.mxu0 0.0
    %546 = vmatprep.subr.mxu0 0.0
    %547 = vmatpush1.msra.mxu0 0.0
    %548 = vmatprep.subr.mxu0 0.0
    %549 = vmatpush1.msra.mxu0 0.0
    %550 = vmatprep.subr.mxu0 0.0
    %551 = vmatpush1.msra.mxu0 0.0
    %552 = vmatprep.subr.mxu0 0.0
    %553 = vmatpush1.msra.mxu0 0.0
    %554 = vmatprep.subr.mxu0 0.0
    %555 = vmatpush1.msra.mxu0 0.0
    %556 = vmatprep.subr.mxu0 0.0
    %557 = vmatpush1.msra.mxu0 0.0
    %558 = vmatprep.subr.mxu0 0.0
    %559 = vmatpush1.msra.mxu0 0.0
    %560 = vmatprep.subr.mxu0 0.0
    %561 = vmatpush1.msra.mxu0 0.0
    %562 = vmatprep.subr.mxu0 0.0
    %563 = vmatpush1.msra.mxu0 0.0
    %564 = vmatprep.subr.mxu0 0.0
    %565 = vmatpush1.msra.mxu0 0.0
    %566 = vmatprep.subr.mxu0 0.0
    %567 = vmatpush1.msra.mxu0 0.0
    %568 = vmatprep.subr.mxu0 0.0
    %569 = vmatpush1.msra.mxu0 0.0
    %570 = vmatprep.subr.mxu0 0.0
    %571 = vmatpush1.msra.mxu0 0.0
    %572 = vmatprep.subr.mxu0 0.0
    %573 = vmatpush1.msra.mxu0 0.0
    %574 = vmatprep.subr.mxu0 0.0
    %575 = vmatpush1.msra.mxu0 0.0
    %576 = vmatprep.subr.mxu0 0.0
    %577 = vmatpush1.msra.mxu0 0.0
    %578 = vmatprep.subr.mxu0 0.0
    %579 = vmatpush1.msra.mxu0 0.0
    %580 = vmatprep.subr.mxu0 0.0
    %581 = vmatpush1.msra.mxu0 0.0
    %582 = vmatprep.subr.mxu0 0.0
    %583 = vmatpush1.msra.mxu0 0.0
    %584 = vmatprep.subr.mxu0 0.0
    %585 = vmatpush1.msra.mxu0 0.0
    %586 = vmatprep.subr.mxu0 0.0
    %587 = vmatpush1.msra.mxu0 0.0
    %588 = vmatprep.subr.mxu0 0.0
    %589 = vmatpush1.msra.mxu0 0.0
    %590 = vmatprep.subr.mxu0 0.0
    %591 = vmatpush1.msra.mxu0 0.0
    %592 = vmatprep.subr.mxu0 0.0
    %593 = vmatpush1.msra.mxu0 0.0
    %594 = vmatprep.subr.mxu0 0.0
    %595 = vmatpush1.msra.mxu0 0.0
    %596 = vmatprep.subr.mxu0 0.0
    %597 = vmatpush1.msra.mxu0 0.0
    %598 = vmatprep.subr.mxu0 0.0
    %599 = vmatpush1.msra.mxu0 0.0
    %600 = vmatprep.subr.mxu0 0.0
    %601 = vmatpush1.msra.mxu0 0.0
    %602 = vmatprep.subr.mxu0 0.0
    %603 = vmatpush1.msra.mxu0 0.0
    %604 = vmatprep.mubr.f32.mxu0 0.0
    %v605 = vand.u32 %v74, 4294901760
    %606 = vmatmul.mubr.f32.gmra.mrb[0].mxu0 %v605
    %v607 = vpop.f32.mrb[0].mxu0
    %v608 = vadd.f32 %v525, %v607
    %v609 = vpop.f32.mrb[0].mxu0
    %v610 = vadd.f32 %v527, %v609
    %611 = vmatprep.mubr.f32.mxu0 0.0
    %v612 = vand.u32 %v77, 4294901760
    %613 = vmatmul.mubr.f32.gmra.mrb[0].mxu0 %v612
    %v614 = vpop.f32.mrb[0].mxu0
    %v615 = vadd.f32 %v532, %v614
    %v616 = vpop.f32.mrb[0].mxu0
    %v617 = vadd.f32 %v534, %v616
    %618 = vdwg.mxu0
    %619 = vst [vmem:[#allocation8] sm:$0xff] %v608
    %620 = vst [vmem:[#allocation8 + $0x8] sm:$0xff] %v610
    %621 = vst [vmem:[#allocation8 + $0x10] sm:$0xff] %v615
    %622 = vst [vmem:[#allocation8 + $0x18] sm:$0xff] %v617
    // Predicated region
    $region26: #{stacked_brnn_forward.4} parent=1 // pred_check
      _
    $region27: #{stacked_brnn_forward.4} parent=1 // pred_check_branch
      %624 = sbr.rel (0) target = $region29
    $region28: #{stacked_brnn_forward.4} parent=1 // pred_region
      %s626 = ssub.s32 512, 512
      %627 = vsyncadd [#allocation4], %s626
      %s628 = sshll.u32 [#allocation8], 4
      %s629 = int_to_ptr.vmem [resolvable:$true] %s628
      %634 = dma.vmem_to_hbm [thread:$0]  %s629, 512, %s3, [#allocation4], 256, 256, 16
    $region29: #{stacked_brnn_forward.4} parent=1 // pred_fallthru
      _
    // Predicated region
    $region30: #{stacked_brnn_forward.4} parent=1 // pred_check
      _
    $region31: #{stacked_brnn_forward.4} parent=1 // pred_check_branch
      %636 = sbr.rel (0) target = $region33
    $region32: #{stacked_brnn_forward.4} parent=1 // pred_region
      %637 = dma.done [#allocation4], 512
    $region33: #{stacked_brnn_forward.4} parent=1 // pred_fallthru
      _
    %638 = vsyncpa [#allocation3], 1
    %639 = vsyncpa [#allocation6], 1
    %640 = vsyncpa [#allocation4], 1

// kernel: stacked_brnn_forward.6
$region0: #{stacked_brnn_forward.6}
  #allocation0 [shape = 'u32[]', space=smem, size = 0x4, offset = 0x4, fixed_abs, tag = 'smem constant byte address 0x4 - core index']
  #allocation1 [shape = 'u32[144,128]{1,0:T(1,128)}', space=vmem, size = 0x12000, scoped, tag = 'internal scratch']
  %s0 = inlined_call_operand.hbm [shape: f32[16,32], index: 0, kind: input, shape index: {}]
  %s1 = inlined_call_operand.hbm [shape: f32[16,32], index: 1, kind: input, shape index: {}]
  %s2 = inlined_call_operand.hbm [shape: f32[32,256], index: 2, kind: input, shape index: {}]
  %s3 = inlined_call_operand.hbm [shape: f32[32,256], index: 3, kind: input, shape index: {}]
  %s4 = inlined_call_operand.hbm [shape: f32[1,256], index: 4, kind: input, shape index: {}]
  %s5 = inlined_call_operand.hbm [shape: f32[16,256], index: 5, kind: output, shape index: {}]
  %s6 = sld [smem:[#allocation0]]
  $region50: #{stacked_brnn_forward.6} parent=0
    _
  %s8 = ssub.s32 1, %s6
  %s9 = scalar_select 0, %s8, %s6
  $region1: #{stacked_brnn_forward.6} parent=0
    #allocation2 [shape = 'u8[8192]{0}', space=vmem, size = 0x2000, scoped, tag = 'input window, operand 0, single buffered']
    #allocation3 [shape = 's32[1]{0}', space=sflag, size = 0x4, scoped, tag = 'scoped memory for stacked_brnn_forward.6']
    #allocation4 [shape = 's32[1]{0}', space=sflag, size = 0x4, scoped, tag = 'scoped memory for stacked_brnn_forward.6']
    #allocation5 [shape = 'u8[8192]{0}', space=vmem, size = 0x2000, scoped, tag = 'input window, operand 1, single buffered']
    #allocation6 [shape = 's32[1]{0}', space=sflag, size = 0x4, scoped, tag = 'scoped memory for stacked_brnn_forward.6']
    #allocation7 [shape = 'u8[32768]{0}', space=vmem, size = 0x8000, scoped, tag = 'input window, operand 2, single buffered']
    #allocation8 [shape = 'u8[32768]{0}', space=vmem, size = 0x8000, scoped, tag = 'input window, operand 3, single buffered']
    #allocation9 [shape = 's32[1]{0}', space=sflag, size = 0x4, scoped, tag = 'scoped memory for stacked_brnn_forward.6']
    #allocation10 [shape = 'u8[1024]{0}', space=vmem, size = 0x400, scoped, tag = 'input window, operand 4, single buffered']
    #allocation11 [shape = 'u8[16384]{0}', space=vmem, size = 0x4000, scoped, tag = 'output window, operand 0, single buffered']
    %10 = vsyncpa [#allocation3], 0
    %11 = vsyncpa [#allocation6], 0
    %12 = vsyncpa [#allocation9], 0
    %13 = vsyncpa [#allocation4], 0
    // Predicated region
    $region2: #{stacked_brnn_forward.6} parent=1 // pred_check
      _
    $region3: #{stacked_brnn_forward.6} parent=1 // pred_check_branch
      %15 = sbr.rel (0) target = $region5
    $region4: #{stacked_brnn_forward.6} parent=1 // pred_region
      %s17 = ssub.s32 256, 256
      %18 = vsyncadd [#allocation3], %s17
      %s19 = sshll.u32 [#allocation2], 4
      %s20 = int_to_ptr.vmem [resolvable:$true] %s19
      %25 = dma.hbm_to_vmem [thread:$0]  %s0, 256, %s20, [#allocation3], 128, 128, 8
    $region5: #{stacked_brnn_forward.6} parent=1 // pred_fallthru
      _
    // Predicated region
    $region6: #{stacked_brnn_forward.6} parent=1 // pred_check
      _
    $region7: #{stacked_brnn_forward.6} parent=1 // pred_check_branch
      %27 = sbr.rel (0) target = $region9
    $region8: #{stacked_brnn_forward.6} parent=1 // pred_region
      %s29 = ssub.s32 256, 256
      %30 = vsyncadd [#allocation6], %s29
      %s31 = sshll.u32 [#allocation5], 4
      %s32 = int_to_ptr.vmem [resolvable:$true] %s31
      %37 = dma.hbm_to_vmem [thread:$0]  %s1, 256, %s32, [#allocation6], 128, 128, 8
    $region9: #{stacked_brnn_forward.6} parent=1 // pred_fallthru
      _
    // Predicated region
    $region10: #{stacked_brnn_forward.6} parent=1 // pred_check
      _
    $region11: #{stacked_brnn_forward.6} parent=1 // pred_check_branch
      %39 = sbr.rel (0) target = $region13
    $region12: #{stacked_brnn_forward.6} parent=1 // pred_region
      %s41 = ssub.s32 1024, 1024
      %42 = vsyncadd [#allocation6], %s41
      %s43 = sshll.u32 [#allocation7], 4
      %s44 = int_to_ptr.vmem [resolvable:$true] %s43
      %49 = dma.hbm_to_vmem [thread:$0]  %s2, 1024, %s44, [#allocation6], 256, 256, 16
    $region13: #{stacked_brnn_forward.6} parent=1 // pred_fallthru
      _
    // Predicated region
    $region14: #{stacked_brnn_forward.6} parent=1 // pred_check
      _
    $region15: #{stacked_brnn_forward.6} parent=1 // pred_check_branch
      %51 = sbr.rel (0) target = $region17
    $region16: #{stacked_brnn_forward.6} parent=1 // pred_region
      %s53 = ssub.s32 1024, 1024
      %54 = vsyncadd [#allocation9], %s53
      %s55 = sshll.u32 [#allocation8], 4
      %s56 = int_to_ptr.vmem [resolvable:$true] %s55
      %61 = dma.hbm_to_vmem [thread:$0]  %s3, 1024, %s56, [#allocation9], 256, 256, 16
    $region17: #{stacked_brnn_forward.6} parent=1 // pred_fallthru
      _
    // Predicated region
    $region18: #{stacked_brnn_forward.6} parent=1 // pred_check
      _
    $region19: #{stacked_brnn_forward.6} parent=1 // pred_check_branch
      %63 = sbr.rel (0) target = $region21
    $region20: #{stacked_brnn_forward.6} parent=1 // pred_region
      %s65 = ssub.s32 32, 32
      %66 = vsyncadd [#allocation9], %s65
      %s68 = sshll.u32 [#allocation10], 4
      %s69 = int_to_ptr.vmem [resolvable:$true] %s68
      %71 = dma.hbm_to_vmem [thread:$0]  %s4, 32, %s69, [#allocation9]
    $region21: #{stacked_brnn_forward.6} parent=1 // pred_fallthru
      _
    // Predicated region
    $region22: #{stacked_brnn_forward.6} parent=1 // pred_check
      _
    $region23: #{stacked_brnn_forward.6} parent=1 // pred_check_branch
      %73 = sbr.rel (0) target = $region25
    $region24: #{stacked_brnn_forward.6} parent=1 // pred_region
      %74 = dma.done [#allocation3], 256
    $region25: #{stacked_brnn_forward.6} parent=1 // pred_fallthru
      _
    // Predicated region
    $region26: #{stacked_brnn_forward.6} parent=1 // pred_check
      _
    $region27: #{stacked_brnn_forward.6} parent=1 // pred_check_branch
      %76 = sbr.rel (0) target = $region29
    $region28: #{stacked_brnn_forward.6} parent=1 // pred_region
      %77 = dma.done [#allocation6], 256
    $region29: #{stacked_brnn_forward.6} parent=1 // pred_fallthru
      _
    // Predicated region
    $region30: #{stacked_brnn_forward.6} parent=1 // pred_check
      _
    $region31: #{stacked_brnn_forward.6} parent=1 // pred_check_branch
      %79 = sbr.rel (0) target = $region33
    $region32: #{stacked_brnn_forward.6} parent=1 // pred_region
      %80 = dma.done [#allocation6], 1024
    $region33: #{stacked_brnn_forward.6} parent=1 // pred_fallthru
      _
    // Predicated region
    $region34: #{stacked_brnn_forward.6} parent=1 // pred_check
      _
    $region35: #{stacked_brnn_forward.6} parent=1 // pred_check_branch
      %82 = sbr.rel (0) target = $region37
    $region36: #{stacked_brnn_forward.6} parent=1 // pred_region
      %83 = dma.done [#allocation9], 1024
    $region37: #{stacked_brnn_forward.6} parent=1 // pred_fallthru
      _
    // Predicated region
    $region38: #{stacked_brnn_forward.6} parent=1 // pred_check
      _
    $region39: #{stacked_brnn_forward.6} parent=1 // pred_check_branch
      %85 = sbr.rel (0) target = $region41
    $region40: #{stacked_brnn_forward.6} parent=1 // pred_region
      %86 = dma.done [#allocation9], 32
    $region41: #{stacked_brnn_forward.6} parent=1 // pred_fallthru
      _
    %v87 = vld [vmem:[#allocation2] sm:$0xff]
    %v88 = vld [vmem:[#allocation2 + $0x8] sm:$0xff]
    %v89 = vld [vmem:[#allocation7] sm:$0xff]
    %v90 = vld [vmem:[#allocation7 + $0x8] sm:$0xff]
    %v91 = vld [vmem:[#allocation7 + $0x10] sm:$0xff]
    %v92 = vld [vmem:[#allocation7 + $0x18] sm:$0xff]
    %v93 = vld [vmem:[#allocation7 + $0x20] sm:$0xff]
    %v94 = vld [vmem:[#allocation7 + $0x28] sm:$0xff]
    %v95 = vld [vmem:[#allocation7 + $0x30] sm:$0xff]
    %v96 = vld [vmem:[#allocation7 + $0x38] sm:$0xff]
    %v97 = vld [vmem:[#allocation10] sm:$0x3]
    %v99 = vlaneseq
    %v100 = vshrl.u32 %v99, 7
    %v101 = vsub.s32 0, %v100
    %v102 = vrot.slane %v97, %v101
    %v103 = vlaneseq
    %v104 = vshrl.u32 %v103, 7
    %v105 = vsub.s32 1, %v104
    %v106 = vrot.slane %v97, %v105
    %vm109 = vcmask 261120
    %v111 = vsel %vm109, %v87, 0
    %v114 = vsel %vm109, %v88, 0
    %v116 = vand.u32 %v90, 4294901760
    %117 = vmatprep.subr.mxu0 %v116
    %v118 = vand.u32 %v89, 4294901760
    %119 = vmatpush1.msra.mxu0 %v118
    %v120 = vand.u32 %v92, 4294901760
    %121 = vmatprep.subr.mxu0 %v120
    %v122 = vand.u32 %v91, 4294901760
    %123 = vmatpush1.msra.mxu0 %v122
    %v124 = vand.u32 %v94, 4294901760
    %125 = vmatprep.subr.mxu0 %v124
    %v126 = vand.u32 %v93, 4294901760
    %127 = vmatpush1.msra.mxu0 %v126
    %v128 = vand.u32 %v96, 4294901760
    %129 = vmatprep.subr.mxu0 %v128
    %v130 = vand.u32 %v95, 4294901760
    %131 = vmatpush1.msra.mxu0 %v130
    %132 = vmatprep.subr.mxu0 0.0
    %133 = vmatpush1.msra.mxu0 0.0
    %134 = vmatprep.subr.mxu0 0.0
    %135 = vmatpush1.msra.mxu0 0.0
    %136 = vmatprep.subr.mxu0 0.0
    %137 = vmatpush1.msra.mxu0 0.0
    %138 = vmatprep.subr.mxu0 0.0
    %139 = vmatpush1.msra.mxu0 0.0
    %140 = vmatprep.subr.mxu0 0.0
    %141 = vmatpush1.msra.mxu0 0.0
    %142 = vmatprep.subr.mxu0 0.0
    %143 = vmatpush1.msra.mxu0 0.0
    %144 = vmatprep.subr.mxu0 0.0
    %145 = vmatpush1.msra.mxu0 0.0
    %146 = vmatprep.subr.mxu0 0.0
    %147 = vmatpush1.msra.mxu0 0.0
    %148 = vmatprep.subr.mxu0 0.0
    %149 = vmatpush1.msra.mxu0 0.0
    %150 = vmatprep.subr.mxu0 0.0
    %151 = vmatpush1.msra.mxu0 0.0
    %152 = vmatprep.subr.mxu0 0.0
    %153 = vmatpush1.msra.mxu0 0.0
    %154 = vmatprep.subr.mxu0 0.0
    %155 = vmatpush1.msra.mxu0 0.0
    %156 = vmatprep.subr.mxu0 0.0
    %157 = vmatpush1.msra.mxu0 0.0
    %158 = vmatprep.subr.mxu0 0.0
    %159 = vmatpush1.msra.mxu0 0.0
    %160 = vmatprep.subr.mxu0 0.0
    %161 = vmatpush1.msra.mxu0 0.0
    %162 = vmatprep.subr.mxu0 0.0
    %163 = vmatpush1.msra.mxu0 0.0
    %164 = vmatprep.subr.mxu0 0.0
    %165 = vmatpush1.msra.mxu0 0.0
    %166 = vmatprep.subr.mxu0 0.0
    %167 = vmatpush1.msra.mxu0 0.0
    %168 = vmatprep.subr.mxu0 0.0
    %169 = vmatpush1.msra.mxu0 0.0
    %170 = vmatprep.subr.mxu0 0.0
    %171 = vmatpush1.msra.mxu0 0.0
    %172 = vmatprep.subr.mxu0 0.0
    %173 = vmatpush1.msra.mxu0 0.0
    %174 = vmatprep.subr.mxu0 0.0
    %175 = vmatpush1.msra.mxu0 0.0
    %176 = vmatprep.subr.mxu0 0.0
    %177 = vmatpush1.msra.mxu0 0.0
    %178 = vmatprep.subr.mxu0 0.0
    %179 = vmatpush1.msra.mxu0 0.0
    %180 = vmatprep.subr.mxu0 0.0
    %181 = vmatpush1.msra.mxu0 0.0
    %182 = vmatprep.subr.mxu0 0.0
    %183 = vmatpush1.msra.mxu0 0.0
    %184 = vmatprep.subr.mxu0 0.0
    %185 = vmatpush1.msra.mxu0 0.0
    %186 = vmatprep.subr.mxu0 0.0
    %187 = vmatpush1.msra.mxu0 0.0
    %188 = vmatprep.mubr.f32.mxu0 0.0
    %v189 = vand.u32 %v111, 4294901760
    %v190 = vsub.f32 %v111, %v189
    %v191 = vand.u32 %v190, 4294901760
    %v192 = vsub.f32 %v190, %v191
    %v193 = vand.u32 %v192, 4294901760
    %194 = vmatmul.mubr.f32.gmra.mrb[0].mxu0 %v193
    %v195 = vpop.f32.mrb[0].mxu0
    %v196 = vadd.f32 %v102, %v195
    %v197 = vpop.f32.mrb[0].mxu0
    %v198 = vadd.f32 %v106, %v197
    %199 = vmatprep.mubr.f32.mxu0 0.0
    %v200 = vand.u32 %v114, 4294901760
    %v201 = vsub.f32 %v114, %v200
    %v202 = vand.u32 %v201, 4294901760
    %v203 = vsub.f32 %v201, %v202
    %v204 = vand.u32 %v203, 4294901760
    %205 = vmatmul.mubr.f32.gmra.mrb[0].mxu0 %v204
    %v206 = vpop.f32.mrb[0].mxu0
    %v207 = vadd.f32 %v102, %v206
    %v208 = vpop.f32.mrb[0].mxu0
    %v209 = vadd.f32 %v106, %v208
    %210 = vdwg.mxu0
    %v211 = vand.u32 %v90, 4294901760
    %v212 = vsub.f32 %v90, %v211
    %v213 = vand.u32 %v212, 4294901760
    %v214 = vsub.f32 %v212, %v213
    %v215 = vand.u32 %v214, 4294901760
    %216 = vmatprep.subr.mxu0 %v215
    %v217 = vand.u32 %v89, 4294901760
    %v218 = vsub.f32 %v89, %v217
    %v219 = vand.u32 %v218, 4294901760
    %v220 = vsub.f32 %v218, %v219
    %v221 = vand.u32 %v220, 4294901760
    %222 = vmatpush1.msra.mxu0 %v221
    %v223 = vand.u32 %v92, 4294901760
    %v224 = vsub.f32 %v92, %v223
    %v225 = vand.u32 %v224, 4294901760
    %v226 = vsub.f32 %v224, %v225
    %v227 = vand.u32 %v226, 4294901760
    %228 = vmatprep.subr.mxu0 %v227
    %v229 = vand.u32 %v91, 4294901760
    %v230 = vsub.f32 %v91, %v229
    %v231 = vand.u32 %v230, 4294901760
    %v232 = vsub.f32 %v230, %v231
    %v233 = vand.u32 %v232, 4294901760
    %234 = vmatpush1.msra.mxu0 %v233
    %v235 = vand.u32 %v94, 4294901760
    %v236 = vsub.f32 %v94, %v235
    %v237 = vand.u32 %v236, 4294901760
    %v238 = vsub.f32 %v236, %v237
    %v239 = vand.u32 %v238, 4294901760
    %240 = vmatprep.subr.mxu0 %v239
    %v241 = vand.u32 %v93, 4294901760
    %v242 = vsub.f32 %v93, %v241
    %v243 = vand.u32 %v242, 4294901760
    %v244 = vsub.f32 %v242, %v243
    %v245 = vand.u32 %v244, 4294901760
    %246 = vmatpush1.msra.mxu0 %v245
    %v247 = vand.u32 %v96, 4294901760
    %v248 = vsub.f32 %v96, %v247
    %v249 = vand.u32 %v248, 4294901760
    %v250 = vsub.f32 %v248, %v249
    %v251 = vand.u32 %v250, 4294901760
    %252 = vmatprep.subr.mxu0 %v251
    %v253 = vand.u32 %v95, 4294901760
    %v254 = vsub.f32 %v95, %v253
    %v255 = vand.u32 %v254, 4294901760
    %v256 = vsub.f32 %v254, %v255
    %v257 = vand.u32 %v256, 4294901760
    %258 = vmatpush1.msra.mxu0 %v257
    %259 = vmatprep.subr.mxu0 0.0
    %260 = vmatpush1.msra.mxu0 0.0
    %261 = vmatprep.subr.mxu0 0.0
    %262 = vmatpush1.msra.mxu0 0.0
    %263 = vmatprep.subr.mxu0 0.0
    %264 = vmatpush1.msra.mxu0 0.0
    %265 = vmatprep.subr.mxu0 0.0
    %266 = vmatpush1.msra.mxu0 0.0
    %267 = vmatprep.subr.mxu0 0.0
    %268 = vmatpush1.msra.mxu0 0.0
    %269 = vmatprep.subr.mxu0 0.0
    %270 = vmatpush1.msra.mxu0 0.0
    %271 = vmatprep.subr.mxu0 0.0
    %272 = vmatpush1.msra.mxu0 0.0
    %273 = vmatprep.subr.mxu0 0.0
    %274 = vmatpush1.msra.mxu0 0.0
    %275 = vmatprep.subr.mxu0 0.0
    %276 = vmatpush1.msra.mxu0 0.0
    %277 = vmatprep.subr.mxu0 0.0
    %278 = vmatpush1.msra.mxu0 0.0
    %279 = vmatprep.subr.mxu0 0.0
    %280 = vmatpush1.msra.mxu0 0.0
    %281 = vmatprep.subr.mxu0 0.0
    %282 = vmatpush1.msra.mxu0 0.0
    %283 = vmatprep.subr.mxu0 0.0
    %284 = vmatpush1.msra.mxu0 0.0
    %285 = vmatprep.subr.mxu0 0.0
    %286 = vmatpush1.msra.mxu0 0.0
    %287 = vmatprep.subr.mxu0 0.0
    %288 = vmatpush1.msra.mxu0 0.0
    %289 = vmatprep.subr.mxu0 0.0
    %290 = vmatpush1.msra.mxu0 0.0
    %291 = vmatprep.subr.mxu0 0.0
    %292 = vmatpush1.msra.mxu0 0.0
    %293 = vmatprep.subr.mxu0 0.0
    %294 = vmatpush1.msra.mxu0 0.0
    %295 = vmatprep.subr.mxu0 0.0
    %296 = vmatpush1.msra.mxu0 0.0
    %297 = vmatprep.subr.mxu0 0.0
    %298 = vmatpush1.msra.mxu0 0.0
    %299 = vmatprep.subr.mxu0 0.0
    %300 = vmatpush1.msra.mxu0 0.0
    %301 = vmatprep.subr.mxu0 0.0
    %302 = vmatpush1.msra.mxu0 0.0
    %303 = vmatprep.subr.mxu0 0.0
    %304 = vmatpush1.msra.mxu0 0.0
    %305 = vmatprep.subr.mxu0 0.0
    %306 = vmatpush1.msra.mxu0 0.0
    %307 = vmatprep.subr.mxu0 0.0
    %308 = vmatpush1.msra.mxu0 0.0
    %309 = vmatprep.subr.mxu0 0.0
    %310 = vmatpush1.msra.mxu0 0.0
    %311 = vmatprep.subr.mxu0 0.0
    %312 = vmatpush1.msra.mxu0 0.0
    %313 = vmatprep.subr.mxu0 0.0
    %314 = vmatpush1.msra.mxu0 0.0
    %315 = vmatprep.mubr.f32.mxu0 0.0
    %v316 = vand.u32 %v111, 4294901760
    %317 = vmatmul.mubr.f32.gmra.mrb[0].mxu0 %v316
    %v318 = vpop.f32.mrb[0].mxu0
    %v319 = vadd.f32 %v196, %v318
    %v320 = vpop.f32.mrb[0].mxu0
    %v321 = vadd.f32 %v198, %v320
    %322 = vmatprep.mubr.f32.mxu0 0.0
    %v323 = vand.u32 %v114, 4294901760
    %324 = vmatmul.mubr.f32.gmra.mrb[0].mxu0 %v323
    %v325 = vpop.f32.mrb[0].mxu0
    %v326 = vadd.f32 %v207, %v325
    %v327 = vpop.f32.mrb[0].mxu0
    %v328 = vadd.f32 %v209, %v327
    %329 = vdwg.mxu0
    %v330 = vand.u32 %v90, 4294901760
    %v331 = vsub.f32 %v90, %v330
    %332 = vmatprep.subr.mxu0 %v331
    %v333 = vand.u32 %v89, 4294901760
    %v334 = vsub.f32 %v89, %v333
    %335 = vmatpush1.msra.mxu0 %v334
    %v336 = vand.u32 %v92, 4294901760
    %v337 = vsub.f32 %v92, %v336
    %338 = vmatprep.subr.mxu0 %v337
    %v339 = vand.u32 %v91, 4294901760
    %v340 = vsub.f32 %v91, %v339
    %341 = vmatpush1.msra.mxu0 %v340
    %v342 = vand.u32 %v94, 4294901760
    %v343 = vsub.f32 %v94, %v342
    %344 = vmatprep.subr.mxu0 %v343
    %v345 = vand.u32 %v93, 4294901760
    %v346 = vsub.f32 %v93, %v345
    %347 = vmatpush1.msra.mxu0 %v346
    %v348 = vand.u32 %v96, 4294901760
    %v349 = vsub.f32 %v96, %v348
    %350 = vmatprep.subr.mxu0 %v349
    %v351 = vand.u32 %v95, 4294901760
    %v352 = vsub.f32 %v95, %v351
    %353 = vmatpush1.msra.mxu0 %v352
    %354 = vmatprep.subr.mxu0 0.0
    %355 = vmatpush1.msra.mxu0 0.0
    %356 = vmatprep.subr.mxu0 0.0
    %357 = vmatpush1.msra.mxu0 0.0
    %358 = vmatprep.subr.mxu0 0.0
    %359 = vmatpush1.msra.mxu0 0.0
    %360 = vmatprep.subr.mxu0 0.0
    %361 = vmatpush1.msra.mxu0 0.0
    %362 = vmatprep.subr.mxu0 0.0
    %363 = vmatpush1.msra.mxu0 0.0
    %364 = vmatprep.subr.mxu0 0.0
    %365 = vmatpush1.msra.mxu0 0.0
    %366 = vmatprep.subr.mxu0 0.0
    %367 = vmatpush1.msra.mxu0 0.0
    %368 = vmatprep.subr.mxu0 0.0
    %369 = vmatpush1.msra.mxu0 0.0
    %370 = vmatprep.subr.mxu0 0.0
    %371 = vmatpush1.msra.mxu0 0.0
    %372 = vmatprep.subr.mxu0 0.0
    %373 = vmatpush1.msra.mxu0 0.0
    %374 = vmatprep.subr.mxu0 0.0
    %375 = vmatpush1.msra.mxu0 0.0
    %376 = vmatprep.subr.mxu0 0.0
    %377 = vmatpush1.msra.mxu0 0.0
    %378 = vmatprep.subr.mxu0 0.0
    %379 = vmatpush1.msra.mxu0 0.0
    %380 = vmatprep.subr.mxu0 0.0
    %381 = vmatpush1.msra.mxu0 0.0
    %382 = vmatprep.subr.mxu0 0.0
    %383 = vmatpush1.msra.mxu0 0.0
    %384 = vmatprep.subr.mxu0 0.0
    %385 = vmatpush1.msra.mxu0 0.0
    %386 = vmatprep.subr.mxu0 0.0
    %387 = vmatpush1.msra.mxu0 0.0
    %388 = vmatprep.subr.mxu0 0.0
    %389 = vmatpush1.msra.mxu0 0.0
    %390 = vmatprep.subr.mxu0 0.0
    %391 = vmatpush1.msra.mxu0 0.0
    %392 = vmatprep.subr.mxu0 0.0
    %393 = vmatpush1.msra.mxu0 0.0
    %394 = vmatprep.subr.mxu0 0.0
    %395 = vmatpush1.msra.mxu0 0.0
    %396 = vmatprep.subr.mxu0 0.0
    %397 = vmatpush1.msra.mxu0 0.0
    %398 = vmatprep.subr.mxu0 0.0
    %399 = vmatpush1.msra.mxu0 0.0
    %400 = vmatprep.subr.mxu0 0.0
    %401 = vmatpush1.msra.mxu0 0.0
    %402 = vmatprep.subr.mxu0 0.0
    %403 = vmatpush1.msra.mxu0 0.0
    %404 = vmatprep.subr.mxu0 0.0
    %405 = vmatpush1.msra.mxu0 0.0
    %406 = vmatprep.subr.mxu0 0.0
    %407 = vmatpush1.msra.mxu0 0.0
    %408 = vmatprep.subr.mxu0 0.0
    %409 = vmatpush1.msra.mxu0 0.0
    %410 = vmatprep.mubr.f32.mxu0 0.0
    %v411 = vand.u32 %v111, 4294901760
    %v412 = vsub.f32 %v111, %v411
    %413 = vmatmul.mubr.f32.gmra.mrb[0].mxu0 %v412
    %v414 = vpop.f32.mrb[0].mxu0
    %v415 = vadd.f32 %v319, %v414
    %v416 = vpop.f32.mrb[0].mxu0
    %v417 = vadd.f32 %v321, %v416
    %418 = vmatprep.mubr.f32.mxu0 0.0
    %v419 = vand.u32 %v114, 4294901760
    %v420 = vsub.f32 %v114, %v419
    %421 = vmatmul.mubr.f32.gmra.mrb[0].mxu0 %v420
    %v422 = vpop.f32.mrb[0].mxu0
    %v423 = vadd.f32 %v326, %v422
    %v424 = vpop.f32.mrb[0].mxu0
    %v425 = vadd.f32 %v328, %v424
    %426 = vdwg.mxu0
    %v427 = vand.u32 %v90, 4294901760
    %428 = vmatprep.subr.mxu0 %v427
    %v429 = vand.u32 %v89, 4294901760
    %430 = vmatpush1.msra.mxu0 %v429
    %v431 = vand.u32 %v92, 4294901760
    %432 = vmatprep.subr.mxu0 %v431
    %v433 = vand.u32 %v91, 4294901760
    %434 = vmatpush1.msra.mxu0 %v433
    %v435 = vand.u32 %v94, 4294901760
    %436 = vmatprep.subr.mxu0 %v435
    %v437 = vand.u32 %v93, 4294901760
    %438 = vmatpush1.msra.mxu0 %v437
    %v439 = vand.u32 %v96, 4294901760
    %440 = vmatprep.subr.mxu0 %v439
    %v441 = vand.u32 %v95, 4294901760
    %442 = vmatpush1.msra.mxu0 %v441
    %443 = vmatprep.subr.mxu0 0.0
    %444 = vmatpush1.msra.mxu0 0.0
    %445 = vmatprep.subr.mxu0 0.0
    %446 = vmatpush1.msra.mxu0 0.0
    %447 = vmatprep.subr.mxu0 0.0
    %448 = vmatpush1.msra.mxu0 0.0
    %449 = vmatprep.subr.mxu0 0.0
    %450 = vmatpush1.msra.mxu0 0.0
    %451 = vmatprep.subr.mxu0 0.0
    %452 = vmatpush1.msra.mxu0 0.0
    %453 = vmatprep.subr.mxu0 0.0
    %454 = vmatpush1.msra.mxu0 0.0
    %455 = vmatprep.subr.mxu0 0.0
    %456 = vmatpush1.msra.mxu0 0.0
    %457 = vmatprep.subr.mxu0 0.0
    %458 = vmatpush1.msra.mxu0 0.0
    %459 = vmatprep.subr.mxu0 0.0
    %460 = vmatpush1.msra.mxu0 0.0
    %461 = vmatprep.subr.mxu0 0.0
    %462 = vmatpush1.msra.mxu0 0.0
    %463 = vmatprep.subr.mxu0 0.0
    %464 = vmatpush1.msra.mxu0 0.0
    %465 = vmatprep.subr.mxu0 0.0
    %466 = vmatpush1.msra.mxu0 0.0
    %467 = vmatprep.subr.mxu0 0.0
    %468 = vmatpush1.msra.mxu0 0.0
    %469 = vmatprep.subr.mxu0 0.0
    %470 = vmatpush1.msra.mxu0 0.0
    %471 = vmatprep.subr.mxu0 0.0
    %472 = vmatpush1.msra.mxu0 0.0
    %473 = vmatprep.subr.mxu0 0.0
    %474 = vmatpush1.msra.mxu0 0.0
    %475 = vmatprep.subr.mxu0 0.0
    %476 = vmatpush1.msra.mxu0 0.0
    %477 = vmatprep.subr.mxu0 0.0
    %478 = vmatpush1.msra.mxu0 0.0
    %479 = vmatprep.subr.mxu0 0.0
    %480 = vmatpush1.msra.mxu0 0.0
    %481 = vmatprep.subr.mxu0 0.0
    %482 = vmatpush1.msra.mxu0 0.0
    %483 = vmatprep.subr.mxu0 0.0
    %484 = vmatpush1.msra.mxu0 0.0
    %485 = vmatprep.subr.mxu0 0.0
    %486 = vmatpush1.msra.mxu0 0.0
    %487 = vmatprep.subr.mxu0 0.0
    %488 = vmatpush1.msra.mxu0 0.0
    %489 = vmatprep.subr.mxu0 0.0
    %490 = vmatpush1.msra.mxu0 0.0
    %491 = vmatprep.subr.mxu0 0.0
    %492 = vmatpush1.msra.mxu0 0.0
    %493 = vmatprep.subr.mxu0 0.0
    %494 = vmatpush1.msra.mxu0 0.0
    %495 = vmatprep.subr.mxu0 0.0
    %496 = vmatpush1.msra.mxu0 0.0
    %497 = vmatprep.subr.mxu0 0.0
    %498 = vmatpush1.msra.mxu0 0.0
    %499 = vmatprep.mubr.f32.mxu0 0.0
    %v500 = vand.u32 %v111, 4294901760
    %v501 = vsub.f32 %v111, %v500
    %v502 = vand.u32 %v501, 4294901760
    %503 = vmatmul.mubr.f32.gmra.mrb[0].mxu0 %v502
    %v504 = vpop.f32.mrb[0].mxu0
    %v505 = vadd.f32 %v415, %v504
    %v506 = vpop.f32.mrb[0].mxu0
    %v507 = vadd.f32 %v417, %v506
    %508 = vmatprep.mubr.f32.mxu0 0.0
    %v509 = vand.u32 %v114, 4294901760
    %v510 = vsub.f32 %v114, %v509
    %v511 = vand.u32 %v510, 4294901760
    %512 = vmatmul.mubr.f32.gmra.mrb[0].mxu0 %v511
    %v513 = vpop.f32.mrb[0].mxu0
    %v514 = vadd.f32 %v423, %v513
    %v515 = vpop.f32.mrb[0].mxu0
    %v516 = vadd.f32 %v425, %v515
    %517 = vdwg.mxu0
    %v518 = vand.u32 %v90, 4294901760
    %v519 = vsub.f32 %v90, %v518
    %v520 = vand.u32 %v519, 4294901760
    %521 = vmatprep.subr.mxu0 %v520
    %v522 = vand.u32 %v89, 4294901760
    %v523 = vsub.f32 %v89, %v522
    %v524 = vand.u32 %v523, 4294901760
    %525 = vmatpush1.msra.mxu0 %v524
    %v526 = vand.u32 %v92, 4294901760
    %v527 = vsub.f32 %v92, %v526
    %v528 = vand.u32 %v527, 4294901760
    %529 = vmatprep.subr.mxu0 %v528
    %v530 = vand.u32 %v91, 4294901760
    %v531 = vsub.f32 %v91, %v530
    %v532 = vand.u32 %v531, 4294901760
    %533 = vmatpush1.msra.mxu0 %v532
    %v534 = vand.u32 %v94, 4294901760
    %v535 = vsub.f32 %v94, %v534
    %v536 = vand.u32 %v535, 4294901760
    %537 = vmatprep.subr.mxu0 %v536
    %v538 = vand.u32 %v93, 4294901760
    %v539 = vsub.f32 %v93, %v538
    %v540 = vand.u32 %v539, 4294901760
    %541 = vmatpush1.msra.mxu0 %v540
    %v542 = vand.u32 %v96, 4294901760
    %v543 = vsub.f32 %v96, %v542
    %v544 = vand.u32 %v543, 4294901760
    %545 = vmatprep.subr.mxu0 %v544
    %v546 = vand.u32 %v95, 4294901760
    %v547 = vsub.f32 %v95, %v546
    %v548 = vand.u32 %v547, 4294901760
    %549 = vmatpush1.msra.mxu0 %v548
    %550 = vmatprep.subr.mxu0 0.0
    %551 = vmatpush1.msra.mxu0 0.0
    %552 = vmatprep.subr.mxu0 0.0
    %553 = vmatpush1.msra.mxu0 0.0
    %554 = vmatprep.subr.mxu0 0.0
    %555 = vmatpush1.msra.mxu0 0.0
    %556 = vmatprep.subr.mxu0 0.0
    %557 = vmatpush1.msra.mxu0 0.0
    %558 = vmatprep.subr.mxu0 0.0
    %559 = vmatpush1.msra.mxu0 0.0
    %560 = vmatprep.subr.mxu0 0.0
    %561 = vmatpush1.msra.mxu0 0.0
    %562 = vmatprep.subr.mxu0 0.0
    %563 = vmatpush1.msra.mxu0 0.0
    %564 = vmatprep.subr.mxu0 0.0
    %565 = vmatpush1.msra.mxu0 0.0
    %566 = vmatprep.subr.mxu0 0.0
    %567 = vmatpush1.msra.mxu0 0.0
    %568 = vmatprep.subr.mxu0 0.0
    %569 = vmatpush1.msra.mxu0 0.0
    %570 = vmatprep.subr.mxu0 0.0
    %571 = vmatpush1.msra.mxu0 0.0
    %572 = vmatprep.subr.mxu0 0.0
    %573 = vmatpush1.msra.mxu0 0.0
    %574 = vmatprep.subr.mxu0 0.0
    %575 = vmatpush1.msra.mxu0 0.0
    %576 = vmatprep.subr.mxu0 0.0
    %577 = vmatpush1.msra.mxu0 0.0
    %578 = vmatprep.subr.mxu0 0.0
    %579 = vmatpush1.msra.mxu0 0.0
    %580 = vmatprep.subr.mxu0 0.0
    %581 = vmatpush1.msra.mxu0 0.0
    %582 = vmatprep.subr.mxu0 0.0
    %583 = vmatpush1.msra.mxu0 0.0
    %584 = vmatprep.subr.mxu0 0.0
    %585 = vmatpush1.msra.mxu0 0.0
    %586 = vmatprep.subr.mxu0 0.0
    %587 = vmatpush1.msra.mxu0 0.0
    %588 = vmatprep.subr.mxu0 0.0
    %589 = vmatpush1.msra.mxu0 0.0
    %590 = vmatprep.subr.mxu0 0.0
    %591 = vmatpush1.msra.mxu0 0.0
    %592 = vmatprep.subr.mxu0 0.0
    %593 = vmatpush1.msra.mxu0 0.0
    %594 = vmatprep.subr.mxu0 0.0
    %595 = vmatpush1.msra.mxu0 0.0
    %596 = vmatprep.subr.mxu0 0.0
    %597 = vmatpush1.msra.mxu0 0.0
    %598 = vmatprep.subr.mxu0 0.0
    %599 = vmatpush1.msra.mxu0 0.0
    %600 = vmatprep.subr.mxu0 0.0
    %601 = vmatpush1.msra.mxu0 0.0
    %602 = vmatprep.subr.mxu0 0.0
    %603 = vmatpush1.msra.mxu0 0.0
    %604 = vmatprep.subr.mxu0 0.0
    %605 = vmatpush1.msra.mxu0 0.0
    %606 = vmatprep.mubr.f32.mxu0 0.0
    %v607 = vand.u32 %v111, 4294901760
    %608 = vmatmul.mubr.f32.gmra.mrb[0].mxu0 %v607
    %v609 = vpop.f32.mrb[0].mxu0
    %v610 = vadd.f32 %v505, %v609
    %v611 = vpop.f32.mrb[0].mxu0
    %v612 = vadd.f32 %v507, %v611
    %613 = vmatprep.mubr.f32.mxu0 0.0
    %v614 = vand.u32 %v114, 4294901760
    %615 = vmatmul.mubr.f32.gmra.mrb[0].mxu0 %v614
    %v616 = vpop.f32.mrb[0].mxu0
    %v617 = vadd.f32 %v514, %v616
    %v618 = vpop.f32.mrb[0].mxu0
    %v619 = vadd.f32 %v516, %v618
    %620 = vdwg.mxu0
    %v621 = vand.u32 %v90, 4294901760
    %622 = vmatprep.subr.mxu0 %v621
    %v623 = vand.u32 %v89, 4294901760
    %624 = vmatpush1.msra.mxu0 %v623
    %v625 = vand.u32 %v92, 4294901760
    %626 = vmatprep.subr.mxu0 %v625
    %v627 = vand.u32 %v91, 4294901760
    %628 = vmatpush1.msra.mxu0 %v627
    %v629 = vand.u32 %v94, 4294901760
    %630 = vmatprep.subr.mxu0 %v629
    %v631 = vand.u32 %v93, 4294901760
    %632 = vmatpush1.msra.mxu0 %v631
    %v633 = vand.u32 %v96, 4294901760
    %634 = vmatprep.subr.mxu0 %v633
    %v635 = vand.u32 %v95, 4294901760
    %636 = vmatpush1.msra.mxu0 %v635
    %637 = vmatprep.subr.mxu0 0.0
    %638 = vmatpush1.msra.mxu0 0.0
    %639 = vmatprep.subr.mxu0 0.0
    %640 = vmatpush1.msra.mxu0 0.0
    %641 = vmatprep.subr.mxu0 0.0
    %642 = vmatpush1.msra.mxu0 0.0
    %643 = vmatprep.subr.mxu0 0.0
    %644 = vmatpush1.msra.mxu0 0.0
    %645 = vmatprep.subr.mxu0 0.0
    %646 = vmatpush1.msra.mxu0 0.0
    %647 = vmatprep.subr.mxu0 0.0
    %648 = vmatpush1.msra.mxu0 0.0
    %649 = vmatprep.subr.mxu0 0.0
    %650 = vmatpush1.msra.mxu0 0.0
    %651 = vmatprep.subr.mxu0 0.0
    %652 = vmatpush1.msra.mxu0 0.0
    %653 = vmatprep.subr.mxu0 0.0
    %654 = vmatpush1.msra.mxu0 0.0
    %655 = vmatprep.subr.mxu0 0.0
    %656 = vmatpush1.msra.mxu0 0.0
    %657 = vmatprep.subr.mxu0 0.0
    %658 = vmatpush1.msra.mxu0 0.0
    %659 = vmatprep.subr.mxu0 0.0
    %660 = vmatpush1.msra.mxu0 0.0
    %661 = vmatprep.subr.mxu0 0.0
    %662 = vmatpush1.msra.mxu0 0.0
    %663 = vmatprep.subr.mxu0 0.0
    %664 = vmatpush1.msra.mxu0 0.0
    %665 = vmatprep.subr.mxu0 0.0
    %666 = vmatpush1.msra.mxu0 0.0
    %667 = vmatprep.subr.mxu0 0.0
    %668 = vmatpush1.msra.mxu0 0.0
    %669 = vmatprep.subr.mxu0 0.0
    %670 = vmatpush1.msra.mxu0 0.0
    %671 = vmatprep.subr.mxu0 0.0
    %672 = vmatpush1.msra.mxu0 0.0
    %673 = vmatprep.subr.mxu0 0.0
    %674 = vmatpush1.msra.mxu0 0.0
    %675 = vmatprep.subr.mxu0 0.0
    %676 = vmatpush1.msra.mxu0 0.0
    %677 = vmatprep.subr.mxu0 0.0
    %678 = vmatpush1.msra.mxu0 0.0
    %679 = vmatprep.subr.mxu0 0.0
    %680 = vmatpush1.msra.mxu0 0.0
    %681 = vmatprep.subr.mxu0 0.0
    %682 = vmatpush1.msra.mxu0 0.0
    %683 = vmatprep.subr.mxu0 0.0
    %684 = vmatpush1.msra.mxu0 0.0
    %685 = vmatprep.subr.mxu0 0.0
    %686 = vmatpush1.msra.mxu0 0.0
    %687 = vmatprep.subr.mxu0 0.0
    %688 = vmatpush1.msra.mxu0 0.0
    %689 = vmatprep.subr.mxu0 0.0
    %690 = vmatpush1.msra.mxu0 0.0
    %691 = vmatprep.subr.mxu0 0.0
    %692 = vmatpush1.msra.mxu0 0.0
    %693 = vmatprep.mubr.f32.mxu0 0.0
    %v694 = vand.u32 %v111, 4294901760
    %695 = vmatmul.mubr.f32.gmra.mrb[0].mxu0 %v694
    %v696 = vpop.f32.mrb[0].mxu0
    %v697 = vadd.f32 %v610, %v696
    %v698 = vpop.f32.mrb[0].mxu0
    %v699 = vadd.f32 %v612, %v698
    %700 = vmatprep.mubr.f32.mxu0 0.0
    %v701 = vand.u32 %v114, 4294901760
    %702 = vmatmul.mubr.f32.gmra.mrb[0].mxu0 %v701
    %v703 = vpop.f32.mrb[0].mxu0
    %v704 = vadd.f32 %v617, %v703
    %v705 = vpop.f32.mrb[0].mxu0
    %v706 = vadd.f32 %v619, %v705
    %707 = vdwg.mxu0
    %v708 = vld [vmem:[#allocation5] sm:$0xff]
    %v709 = vld [vmem:[#allocation5 + $0x8] sm:$0xff]
    %v710 = vld [vmem:[#allocation8] sm:$0xff]
    %v711 = vld [vmem:[#allocation8 + $0x8] sm:$0xff]
    %v712 = vld [vmem:[#allocation8 + $0x10] sm:$0xff]
    %v713 = vld [vmem:[#allocation8 + $0x18] sm:$0xff]
    %v714 = vld [vmem:[#allocation8 + $0x20] sm:$0xff]
    %v715 = vld [vmem:[#allocation8 + $0x28] sm:$0xff]
    %v716 = vld [vmem:[#allocation8 + $0x30] sm:$0xff]
    %v717 = vld [vmem:[#allocation8 + $0x38] sm:$0xff]
    %v719 = vsel %vm109, %v708, 0
    %v722 = vsel %vm109, %v709, 0
    %v724 = vand.u32 %v711, 4294901760
    %725 = vmatprep.subr.mxu0 %v724
    %v726 = vand.u32 %v710, 4294901760
    %727 = vmatpush1.msra.mxu0 %v726
    %v728 = vand.u32 %v713, 4294901760
    %729 = vmatprep.subr.mxu0 %v728
    %v730 = vand.u32 %v712, 4294901760
    %731 = vmatpush1.msra.mxu0 %v730
    %v732 = vand.u32 %v715, 4294901760
    %733 = vmatprep.subr.mxu0 %v732
    %v734 = vand.u32 %v714, 4294901760
    %735 = vmatpush1.msra.mxu0 %v734
    %v736 = vand.u32 %v717, 4294901760
    %737 = vmatprep.subr.mxu0 %v736
    %v738 = vand.u32 %v716, 4294901760
    %739 = vmatpush1.msra.mxu0 %v738
    %740 = vmatprep.subr.mxu0 0.0
    %741 = vmatpush1.msra.mxu0 0.0
    %742 = vmatprep.subr.mxu0 0.0
    %743 = vmatpush1.msra.mxu0 0.0
    %744 = vmatprep.subr.mxu0 0.0
    %745 = vmatpush1.msra.mxu0 0.0
    %746 = vmatprep.subr.mxu0 0.0
    %747 = vmatpush1.msra.mxu0 0.0
    %748 = vmatprep.subr.mxu0 0.0
    %749 = vmatpush1.msra.mxu0 0.0
    %750 = vmatprep.subr.mxu0 0.0
    %751 = vmatpush1.msra.mxu0 0.0
    %752 = vmatprep.subr.mxu0 0.0
    %753 = vmatpush1.msra.mxu0 0.0
    %754 = vmatprep.subr.mxu0 0.0
    %755 = vmatpush1.msra.mxu0 0.0
    %756 = vmatprep.subr.mxu0 0.0
    %757 = vmatpush1.msra.mxu0 0.0
    %758 = vmatprep.subr.mxu0 0.0
    %759 = vmatpush1.msra.mxu0 0.0
    %760 = vmatprep.subr.mxu0 0.0
    %761 = vmatpush1.msra.mxu0 0.0
    %762 = vmatprep.subr.mxu0 0.0
    %763 = vmatpush1.msra.mxu0 0.0
    %764 = vmatprep.subr.mxu0 0.0
    %765 = vmatpush1.msra.mxu0 0.0
    %766 = vmatprep.subr.mxu0 0.0
    %767 = vmatpush1.msra.mxu0 0.0
    %768 = vmatprep.subr.mxu0 0.0
    %769 = vmatpush1.msra.mxu0 0.0
    %770 = vmatprep.subr.mxu0 0.0
    %771 = vmatpush1.msra.mxu0 0.0
    %772 = vmatprep.subr.mxu0 0.0
    %773 = vmatpush1.msra.mxu0 0.0
    %774 = vmatprep.subr.mxu0 0.0
    %775 = vmatpush1.msra.mxu0 0.0
    %776 = vmatprep.subr.mxu0 0.0
    %777 = vmatpush1.msra.mxu0 0.0
    %778 = vmatprep.subr.mxu0 0.0
    %779 = vmatpush1.msra.mxu0 0.0
    %780 = vmatprep.subr.mxu0 0.0
    %781 = vmatpush1.msra.mxu0 0.0
    %782 = vmatprep.subr.mxu0 0.0
    %783 = vmatpush1.msra.mxu0 0.0
    %784 = vmatprep.subr.mxu0 0.0
    %785 = vmatpush1.msra.mxu0 0.0
    %786 = vmatprep.subr.mxu0 0.0
    %787 = vmatpush1.msra.mxu0 0.0
    %788 = vmatprep.subr.mxu0 0.0
    %789 = vmatpush1.msra.mxu0 0.0
    %790 = vmatprep.subr.mxu0 0.0
    %791 = vmatpush1.msra.mxu0 0.0
    %792 = vmatprep.subr.mxu0 0.0
    %793 = vmatpush1.msra.mxu0 0.0
    %794 = vmatprep.subr.mxu0 0.0
    %795 = vmatpush1.msra.mxu0 0.0
    %796 = vmatprep.mubr.f32.mxu0 0.0
    %v797 = vand.u32 %v719, 4294901760
    %v798 = vsub.f32 %v719, %v797
    %v799 = vand.u32 %v798, 4294901760
    %v800 = vsub.f32 %v798, %v799
    %v801 = vand.u32 %v800, 4294901760
    %802 = vmatmul.mubr.f32.gmra.mrb[0].mxu0 %v801
    %v803 = vpop.f32.mrb[0].mxu0
    %v804 = vadd.f32 0.0, %v803
    %v805 = vpop.f32.mrb[0].mxu0
    %v806 = vadd.f32 0.0, %v805
    %807 = vmatprep.mubr.f32.mxu0 0.0
    %v808 = vand.u32 %v722, 4294901760
    %v809 = vsub.f32 %v722, %v808
    %v810 = vand.u32 %v809, 4294901760
    %v811 = vsub.f32 %v809, %v810
    %v812 = vand.u32 %v811, 4294901760
    %813 = vmatmul.mubr.f32.gmra.mrb[0].mxu0 %v812
    %v814 = vpop.f32.mrb[0].mxu0
    %v815 = vadd.f32 0.0, %v814
    %v816 = vpop.f32.mrb[0].mxu0
    %v817 = vadd.f32 0.0, %v816
    %818 = vdwg.mxu0
    %v819 = vand.u32 %v711, 4294901760
    %v820 = vsub.f32 %v711, %v819
    %v821 = vand.u32 %v820, 4294901760
    %v822 = vsub.f32 %v820, %v821
    %v823 = vand.u32 %v822, 4294901760
    %824 = vmatprep.subr.mxu0 %v823
    %v825 = vand.u32 %v710, 4294901760
    %v826 = vsub.f32 %v710, %v825
    %v827 = vand.u32 %v826, 4294901760
    %v828 = vsub.f32 %v826, %v827
    %v829 = vand.u32 %v828, 4294901760
    %830 = vmatpush1.msra.mxu0 %v829
    %v831 = vand.u32 %v713, 4294901760
    %v832 = vsub.f32 %v713, %v831
    %v833 = vand.u32 %v832, 4294901760
    %v834 = vsub.f32 %v832, %v833
    %v835 = vand.u32 %v834, 4294901760
    %836 = vmatprep.subr.mxu0 %v835
    %v837 = vand.u32 %v712, 4294901760
    %v838 = vsub.f32 %v712, %v837
    %v839 = vand.u32 %v838, 4294901760
    %v840 = vsub.f32 %v838, %v839
    %v841 = vand.u32 %v840, 4294901760
    %842 = vmatpush1.msra.mxu0 %v841
    %v843 = vand.u32 %v715, 4294901760
    %v844 = vsub.f32 %v715, %v843
    %v845 = vand.u32 %v844, 4294901760
    %v846 = vsub.f32 %v844, %v845
    %v847 = vand.u32 %v846, 4294901760
    %848 = vmatprep.subr.mxu0 %v847
    %v849 = vand.u32 %v714, 4294901760
    %v850 = vsub.f32 %v714, %v849
    %v851 = vand.u32 %v850, 4294901760
    %v852 = vsub.f32 %v850, %v851
    %v853 = vand.u32 %v852, 4294901760
    %854 = vmatpush1.msra.mxu0 %v853
    %v855 = vand.u32 %v717, 4294901760
    %v856 = vsub.f32 %v717, %v855
    %v857 = vand.u32 %v856, 4294901760
    %v858 = vsub.f32 %v856, %v857
    %v859 = vand.u32 %v858, 4294901760
    %860 = vmatprep.subr.mxu0 %v859
    %v861 = vand.u32 %v716, 4294901760
    %v862 = vsub.f32 %v716, %v861
    %v863 = vand.u32 %v862, 4294901760
    %v864 = vsub.f32 %v862, %v863
    %v865 = vand.u32 %v864, 4294901760
    %866 = vmatpush1.msra.mxu0 %v865
    %867 = vmatprep.subr.mxu0 0.0
    %868 = vmatpush1.msra.mxu0 0.0
    %869 = vmatprep.subr.mxu0 0.0
    %870 = vmatpush1.msra.mxu0 0.0
    %871 = vmatprep.subr.mxu0 0.0
    %872 = vmatpush1.msra.mxu0 0.0
    %873 = vmatprep.subr.mxu0 0.0
    %874 = vmatpush1.msra.mxu0 0.0
    %875 = vmatprep.subr.mxu0 0.0
    %876 = vmatpush1.msra.mxu0 0.0
    %877 = vmatprep.subr.mxu0 0.0
    %878 = vmatpush1.msra.mxu0 0.0
    %879 = vmatprep.subr.mxu0 0.0
    %880 = vmatpush1.msra.mxu0 0.0
    %881 = vmatprep.subr.mxu0 0.0
    %882 = vmatpush1.msra.mxu0 0.0
    %883 = vmatprep.subr.mxu0 0.0
    %884 = vmatpush1.msra.mxu0 0.0
    %885 = vmatprep.subr.mxu0 0.0
    %886 = vmatpush1.msra.mxu0 0.0
    %887 = vmatprep.subr.mxu0 0.0
    %888 = vmatpush1.msra.mxu0 0.0
    %889 = vmatprep.subr.mxu0 0.0
    %890 = vmatpush1.msra.mxu0 0.0
    %891 = vmatprep.subr.mxu0 0.0
    %892 = vmatpush1.msra.mxu0 0.0
    %893 = vmatprep.subr.mxu0 0.0
    %894 = vmatpush1.msra.mxu0 0.0
    %895 = vmatprep.subr.mxu0 0.0
    %896 = vmatpush1.msra.mxu0 0.0
    %897 = vmatprep.subr.mxu0 0.0
    %898 = vmatpush1.msra.mxu0 0.0
    %899 = vmatprep.subr.mxu0 0.0
    %900 = vmatpush1.msra.mxu0 0.0
    %901 = vmatprep.subr.mxu0 0.0
    %902 = vmatpush1.msra.mxu0 0.0
    %903 = vmatprep.subr.mxu0 0.0
    %904 = vmatpush1.msra.mxu0 0.0
    %905 = vmatprep.subr.mxu0 0.0
    %906 = vmatpush1.msra.mxu0 0.0
    %907 = vmatprep.subr.mxu0 0.0
    %908 = vmatpush1.msra.mxu0 0.0
    %909 = vmatprep.subr.mxu0 0.0
    %910 = vmatpush1.msra.mxu0 0.0
    %911 = vmatprep.subr.mxu0 0.0
    %912 = vmatpush1.msra.mxu0 0.0
    %913 = vmatprep.subr.mxu0 0.0
    %914 = vmatpush1.msra.mxu0 0.0
    %915 = vmatprep.subr.mxu0 0.0
    %916 = vmatpush1.msra.mxu0 0.0
    %917 = vmatprep.subr.mxu0 0.0
    %918 = vmatpush1.msra.mxu0 0.0
    %919 = vmatprep.subr.mxu0 0.0
    %920 = vmatpush1.msra.mxu0 0.0
    %921 = vmatprep.subr.mxu0 0.0
    %922 = vmatpush1.msra.mxu0 0.0
    %923 = vmatprep.mubr.f32.mxu0 0.0
    %v924 = vand.u32 %v719, 4294901760
    %925 = vmatmul.mubr.f32.gmra.mrb[0].mxu0 %v924
    %v926 = vpop.f32.mrb[0].mxu0
    %v927 = vadd.f32 %v804, %v926
    %v928 = vpop.f32.mrb[0].mxu0
    %v929 = vadd.f32 %v806, %v928
    %930 = vmatprep.mubr.f32.mxu0 0.0
    %v931 = vand.u32 %v722, 4294901760
    %932 = vmatmul.mubr.f32.gmra.mrb[0].mxu0 %v931
    %v933 = vpop.f32.mrb[0].mxu0
    %v934 = vadd.f32 %v815, %v933
    %v935 = vpop.f32.mrb[0].mxu0
    %v936 = vadd.f32 %v817, %v935
    %937 = vdwg.mxu0
    %v938 = vand.u32 %v711, 4294901760
    %v939 = vsub.f32 %v711, %v938
    %940 = vmatprep.subr.mxu0 %v939
    %v941 = vand.u32 %v710, 4294901760
    %v942 = vsub.f32 %v710, %v941
    %943 = vmatpush1.msra.mxu0 %v942
    %v944 = vand.u32 %v713, 4294901760
    %v945 = vsub.f32 %v713, %v944
    %946 = vmatprep.subr.mxu0 %v945
    %v947 = vand.u32 %v712, 4294901760
    %v948 = vsub.f32 %v712, %v947
    %949 = vmatpush1.msra.mxu0 %v948
    %v950 = vand.u32 %v715, 4294901760
    %v951 = vsub.f32 %v715, %v950
    %952 = vmatprep.subr.mxu0 %v951
    %v953 = vand.u32 %v714, 4294901760
    %v954 = vsub.f32 %v714, %v953
    %955 = vmatpush1.msra.mxu0 %v954
    %v956 = vand.u32 %v717, 4294901760
    %v957 = vsub.f32 %v717, %v956
    %958 = vmatprep.subr.mxu0 %v957
    %v959 = vand.u32 %v716, 4294901760
    %v960 = vsub.f32 %v716, %v959
    %961 = vmatpush1.msra.mxu0 %v960
    %962 = vmatprep.subr.mxu0 0.0
    %963 = vmatpush1.msra.mxu0 0.0
    %964 = vmatprep.subr.mxu0 0.0
    %965 = vmatpush1.msra.mxu0 0.0
    %966 = vmatprep.subr.mxu0 0.0
    %967 = vmatpush1.msra.mxu0 0.0
    %968 = vmatprep.subr.mxu0 0.0
    %969 = vmatpush1.msra.mxu0 0.0
    %970 = vmatprep.subr.mxu0 0.0
    %971 = vmatpush1.msra.mxu0 0.0
    %972 = vmatprep.subr.mxu0 0.0
    %973 = vmatpush1.msra.mxu0 0.0
    %974 = vmatprep.subr.mxu0 0.0
    %975 = vmatpush1.msra.mxu0 0.0
    %976 = vmatprep.subr.mxu0 0.0
    %977 = vmatpush1.msra.mxu0 0.0
    %978 = vmatprep.subr.mxu0 0.0
    %979 = vmatpush1.msra.mxu0 0.0
    %980 = vmatprep.subr.mxu0 0.0
    %981 = vmatpush1.msra.mxu0 0.0
    %982 = vmatprep.subr.mxu0 0.0
    %983 = vmatpush1.msra.mxu0 0.0
    %984 = vmatprep.subr.mxu0 0.0
    %985 = vmatpush1.msra.mxu0 0.0
    %986 = vmatprep.subr.mxu0 0.0
    %987 = vmatpush1.msra.mxu0 0.0
    %988 = vmatprep.subr.mxu0 0.0
    %989 = vmatpush1.msra.mxu0 0.0
    %990 = vmatprep.subr.mxu0 0.0
    %991 = vmatpush1.msra.mxu0 0.0
    %992 = vmatprep.subr.mxu0 0.0
    %993 = vmatpush1.msra.mxu0 0.0
    %994 = vmatprep.subr.mxu0 0.0
    %995 = vmatpush1.msra.mxu0 0.0
    %996 = vmatprep.subr.mxu0 0.0
    %997 = vmatpush1.msra.mxu0 0.0
    %998 = vmatprep.subr.mxu0 0.0
    %999 = vmatpush1.msra.mxu0 0.0
    %1000 = vmatprep.subr.mxu0 0.0
    %1001 = vmatpush1.msra.mxu0 0.0
    %1002 = vmatprep.subr.mxu0 0.0
    %1003 = vmatpush1.msra.mxu0 0.0
    %1004 = vmatprep.subr.mxu0 0.0
    %1005 = vmatpush1.msra.mxu0 0.0
    %1006 = vmatprep.subr.mxu0 0.0
    %1007 = vmatpush1.msra.mxu0 0.0
    %1008 = vmatprep.subr.mxu0 0.0
    %1009 = vmatpush1.msra.mxu0 0.0
    %1010 = vmatprep.subr.mxu0 0.0
    %1011 = vmatpush1.msra.mxu0 0.0
    %1012 = vmatprep.subr.mxu0 0.0
    %1013 = vmatpush1.msra.mxu0 0.0
    %1014 = vmatprep.subr.mxu0 0.0
    %1015 = vmatpush1.msra.mxu0 0.0
    %1016 = vmatprep.subr.mxu0 0.0
    %1017 = vmatpush1.msra.mxu0 0.0
    %1018 = vmatprep.mubr.f32.mxu0 0.0
    %v1019 = vand.u32 %v719, 4294901760
    %v1020 = vsub.f32 %v719, %v1019
    %1021 = vmatmul.mubr.f32.gmra.mrb[0].mxu0 %v1020
    %v1022 = vpop.f32.mrb[0].mxu0
    %v1023 = vadd.f32 %v927, %v1022
    %v1024 = vpop.f32.mrb[0].mxu0
    %v1025 = vadd.f32 %v929, %v1024
    %1026 = vmatprep.mubr.f32.mxu0 0.0
    %v1027 = vand.u32 %v722, 4294901760
    %v1028 = vsub.f32 %v722, %v1027
    %1029 = vmatmul.mubr.f32.gmra.mrb[0].mxu0 %v1028
    %v1030 = vpop.f32.mrb[0].mxu0
    %v1031 = vadd.f32 %v934, %v1030
    %v1032 = vpop.f32.mrb[0].mxu0
    %v1033 = vadd.f32 %v936, %v1032
    %1034 = vdwg.mxu0
    %v1035 = vand.u32 %v711, 4294901760
    %1036 = vmatprep.subr.mxu0 %v1035
    %v1037 = vand.u32 %v710, 4294901760
    %1038 = vmatpush1.msra.mxu0 %v1037
    %v1039 = vand.u32 %v713, 4294901760
    %1040 = vmatprep.subr.mxu0 %v1039
    %v1041 = vand.u32 %v712, 4294901760
    %1042 = vmatpush1.msra.mxu0 %v1041
    %v1043 = vand.u32 %v715, 4294901760
    %1044 = vmatprep.subr.mxu0 %v1043
    %v1045 = vand.u32 %v714, 4294901760
    %1046 = vmatpush1.msra.mxu0 %v1045
    %v1047 = vand.u32 %v717, 4294901760
    %1048 = vmatprep.subr.mxu0 %v1047
    %v1049 = vand.u32 %v716, 4294901760
    %1050 = vmatpush1.msra.mxu0 %v1049
    %1051 = vmatprep.subr.mxu0 0.0
    %1052 = vmatpush1.msra.mxu0 0.0
    %1053 = vmatprep.subr.mxu0 0.0
    %1054 = vmatpush1.msra.mxu0 0.0
    %1055 = vmatprep.subr.mxu0 0.0
    %1056 = vmatpush1.msra.mxu0 0.0
    %1057 = vmatprep.subr.mxu0 0.0
    %1058 = vmatpush1.msra.mxu0 0.0
    %1059 = vmatprep.subr.mxu0 0.0
    %1060 = vmatpush1.msra.mxu0 0.0
    %1061 = vmatprep.subr.mxu0 0.0
    %1062 = vmatpush1.msra.mxu0 0.0
    %1063 = vmatprep.subr.mxu0 0.0
    %1064 = vmatpush1.msra.mxu0 0.0
    %1065 = vmatprep.subr.mxu0 0.0
    %1066 = vmatpush1.msra.mxu0 0.0
    %1067 = vmatprep.subr.mxu0 0.0
    %1068 = vmatpush1.msra.mxu0 0.0
    %1069 = vmatprep.subr.mxu0 0.0
    %1070 = vmatpush1.msra.mxu0 0.0
    %1071 = vmatprep.subr.mxu0 0.0
    %1072 = vmatpush1.msra.mxu0 0.0
    %1073 = vmatprep.subr.mxu0 0.0
    %1074 = vmatpush1.msra.mxu0 0.0
    %1075 = vmatprep.subr.mxu0 0.0
    %1076 = vmatpush1.msra.mxu0 0.0
    %1077 = vmatprep.subr.mxu0 0.0
    %1078 = vmatpush1.msra.mxu0 0.0
    %1079 = vmatprep.subr.mxu0 0.0
    %1080 = vmatpush1.msra.mxu0 0.0
    %1081 = vmatprep.subr.mxu0 0.0
    %1082 = vmatpush1.msra.mxu0 0.0
    %1083 = vmatprep.subr.mxu0 0.0
    %1084 = vmatpush1.msra.mxu0 0.0
    %1085 = vmatprep.subr.mxu0 0.0
    %1086 = vmatpush1.msra.mxu0 0.0
    %1087 = vmatprep.subr.mxu0 0.0
    %1088 = vmatpush1.msra.mxu0 0.0
    %1089 = vmatprep.subr.mxu0 0.0
    %1090 = vmatpush1.msra.mxu0 0.0
    %1091 = vmatprep.subr.mxu0 0.0
    %1092 = vmatpush1.msra.mxu0 0.0
    %1093 = vmatprep.subr.mxu0 0.0
    %1094 = vmatpush1.msra.mxu0 0.0
    %1095 = vmatprep.subr.mxu0 0.0
    %1096 = vmatpush1.msra.mxu0 0.0
    %1097 = vmatprep.subr.mxu0 0.0
    %1098 = vmatpush1.msra.mxu0 0.0
    %1099 = vmatprep.subr.mxu0 0.0
    %1100 = vmatpush1.msra.mxu0 0.0
    %1101 = vmatprep.subr.mxu0 0.0
    %1102 = vmatpush1.msra.mxu0 0.0
    %1103 = vmatprep.subr.mxu0 0.0
    %1104 = vmatpush1.msra.mxu0 0.0
    %1105 = vmatprep.subr.mxu0 0.0
    %1106 = vmatpush1.msra.mxu0 0.0
    %1107 = vmatprep.mubr.f32.mxu0 0.0
    %v1108 = vand.u32 %v719, 4294901760
    %v1109 = vsub.f32 %v719, %v1108
    %v1110 = vand.u32 %v1109, 4294901760
    %1111 = vmatmul.mubr.f32.gmra.mrb[0].mxu0 %v1110
    %v1112 = vpop.f32.mrb[0].mxu0
    %v1113 = vadd.f32 %v1023, %v1112
    %v1114 = vpop.f32.mrb[0].mxu0
    %v1115 = vadd.f32 %v1025, %v1114
    %1116 = vmatprep.mubr.f32.mxu0 0.0
    %v1117 = vand.u32 %v722, 4294901760
    %v1118 = vsub.f32 %v722, %v1117
    %v1119 = vand.u32 %v1118, 4294901760
    %1120 = vmatmul.mubr.f32.gmra.mrb[0].mxu0 %v1119
    %v1121 = vpop.f32.mrb[0].mxu0
    %v1122 = vadd.f32 %v1031, %v1121
    %v1123 = vpop.f32.mrb[0].mxu0
    %v1124 = vadd.f32 %v1033, %v1123
    %1125 = vdwg.mxu0
    %v1126 = vand.u32 %v711, 4294901760
    %v1127 = vsub.f32 %v711, %v1126
    %v1128 = vand.u32 %v1127, 4294901760
    %1129 = vmatprep.subr.mxu0 %v1128
    %v1130 = vand.u32 %v710, 4294901760
    %v1131 = vsub.f32 %v710, %v1130
    %v1132 = vand.u32 %v1131, 4294901760
    %1133 = vmatpush1.msra.mxu0 %v1132
    %v1134 = vand.u32 %v713, 4294901760
    %v1135 = vsub.f32 %v713, %v1134
    %v1136 = vand.u32 %v1135, 4294901760
    %1137 = vmatprep.subr.mxu0 %v1136
    %v1138 = vand.u32 %v712, 4294901760
    %v1139 = vsub.f32 %v712, %v1138
    %v1140 = vand.u32 %v1139, 4294901760
    %1141 = vmatpush1.msra.mxu0 %v1140
    %v1142 = vand.u32 %v715, 4294901760
    %v1143 = vsub.f32 %v715, %v1142
    %v1144 = vand.u32 %v1143, 4294901760
    %1145 = vmatprep.subr.mxu0 %v1144
    %v1146 = vand.u32 %v714, 4294901760
    %v1147 = vsub.f32 %v714, %v1146
    %v1148 = vand.u32 %v1147, 4294901760
    %1149 = vmatpush1.msra.mxu0 %v1148
    %v1150 = vand.u32 %v717, 4294901760
    %v1151 = vsub.f32 %v717, %v1150
    %v1152 = vand.u32 %v1151, 4294901760
    %1153 = vmatprep.subr.mxu0 %v1152
    %v1154 = vand.u32 %v716, 4294901760
    %v1155 = vsub.f32 %v716, %v1154
    %v1156 = vand.u32 %v1155, 4294901760
    %1157 = vmatpush1.msra.mxu0 %v1156
    %1158 = vmatprep.subr.mxu0 0.0
    %1159 = vmatpush1.msra.mxu0 0.0
    %1160 = vmatprep.subr.mxu0 0.0
    %1161 = vmatpush1.msra.mxu0 0.0
    %1162 = vmatprep.subr.mxu0 0.0
    %1163 = vmatpush1.msra.mxu0 0.0
    %1164 = vmatprep.subr.mxu0 0.0
    %1165 = vmatpush1.msra.mxu0 0.0
    %1166 = vmatprep.subr.mxu0 0.0
    %1167 = vmatpush1.msra.mxu0 0.0
    %1168 = vmatprep.subr.mxu0 0.0
    %1169 = vmatpush1.msra.mxu0 0.0
    %1170 = vmatprep.subr.mxu0 0.0
    %1171 = vmatpush1.msra.mxu0 0.0
    %1172 = vmatprep.subr.mxu0 0.0
    %1173 = vmatpush1.msra.mxu0 0.0
    %1174 = vmatprep.subr.mxu0 0.0
    %1175 = vmatpush1.msra.mxu0 0.0
    %1176 = vmatprep.subr.mxu0 0.0
    %1177 = vmatpush1.msra.mxu0 0.0
    %1178 = vmatprep.subr.mxu0 0.0
    %1179 = vmatpush1.msra.mxu0 0.0
    %1180 = vmatprep.subr.mxu0 0.0
    %1181 = vmatpush1.msra.mxu0 0.0
    %1182 = vmatprep.subr.mxu0 0.0
    %1183 = vmatpush1.msra.mxu0 0.0
    %1184 = vmatprep.subr.mxu0 0.0
    %1185 = vmatpush1.msra.mxu0 0.0
    %1186 = vmatprep.subr.mxu0 0.0
    %1187 = vmatpush1.msra.mxu0 0.0
    %1188 = vmatprep.subr.mxu0 0.0
    %1189 = vmatpush1.msra.mxu0 0.0
    %1190 = vmatprep.subr.mxu0 0.0
    %1191 = vmatpush1.msra.mxu0 0.0
    %1192 = vmatprep.subr.mxu0 0.0
    %1193 = vmatpush1.msra.mxu0 0.0
    %1194 = vmatprep.subr.mxu0 0.0
    %1195 = vmatpush1.msra.mxu0 0.0
    %1196 = vmatprep.subr.mxu0 0.0
    %1197 = vmatpush1.msra.mxu0 0.0
    %1198 = vmatprep.subr.mxu0 0.0
    %1199 = vmatpush1.msra.mxu0 0.0
    %1200 = vmatprep.subr.mxu0 0.0
    %1201 = vmatpush1.msra.mxu0 0.0
    %1202 = vmatprep.subr.mxu0 0.0
    %1203 = vmatpush1.msra.mxu0 0.0
    %1204 = vmatprep.subr.mxu0 0.0
    %1205 = vmatpush1.msra.mxu0 0.0
    %1206 = vmatprep.subr.mxu0 0.0
    %1207 = vmatpush1.msra.mxu0 0.0
    %1208 = vmatprep.subr.mxu0 0.0
    %1209 = vmatpush1.msra.mxu0 0.0
    %1210 = vmatprep.subr.mxu0 0.0
    %1211 = vmatpush1.msra.mxu0 0.0
    %1212 = vmatprep.subr.mxu0 0.0
    %1213 = vmatpush1.msra.mxu0 0.0
    %1214 = vmatprep.mubr.f32.mxu0 0.0
    %v1215 = vand.u32 %v719, 4294901760
    %1216 = vmatmul.mubr.f32.gmra.mrb[0].mxu0 %v1215
    %v1217 = vpop.f32.mrb[0].mxu0
    %v1218 = vadd.f32 %v1113, %v1217
    %v1219 = vpop.f32.mrb[0].mxu0
    %v1220 = vadd.f32 %v1115, %v1219
    %1221 = vmatprep.mubr.f32.mxu0 0.0
    %v1222 = vand.u32 %v722, 4294901760
    %1223 = vmatmul.mubr.f32.gmra.mrb[0].mxu0 %v1222
    %v1224 = vpop.f32.mrb[0].mxu0
    %v1225 = vadd.f32 %v1122, %v1224
    %v1226 = vpop.f32.mrb[0].mxu0
    %v1227 = vadd.f32 %v1124, %v1226
    %1228 = vdwg.mxu0
    %v1229 = vand.u32 %v711, 4294901760
    %1230 = vmatprep.subr.mxu0 %v1229
    %v1231 = vand.u32 %v710, 4294901760
    %1232 = vmatpush1.msra.mxu0 %v1231
    %v1233 = vand.u32 %v713, 4294901760
    %1234 = vmatprep.subr.mxu0 %v1233
    %v1235 = vand.u32 %v712, 4294901760
    %1236 = vmatpush1.msra.mxu0 %v1235
    %v1237 = vand.u32 %v715, 4294901760
    %1238 = vmatprep.subr.mxu0 %v1237
    %v1239 = vand.u32 %v714, 4294901760
    %1240 = vmatpush1.msra.mxu0 %v1239
    %v1241 = vand.u32 %v717, 4294901760
    %1242 = vmatprep.subr.mxu0 %v1241
    %v1243 = vand.u32 %v716, 4294901760
    %1244 = vmatpush1.msra.mxu0 %v1243
    %1245 = vmatprep.subr.mxu0 0.0
    %1246 = vmatpush1.msra.mxu0 0.0
    %1247 = vmatprep.subr.mxu0 0.0
    %1248 = vmatpush1.msra.mxu0 0.0
    %1249 = vmatprep.subr.mxu0 0.0
    %1250 = vmatpush1.msra.mxu0 0.0
    %1251 = vmatprep.subr.mxu0 0.0
    %1252 = vmatpush1.msra.mxu0 0.0
    %1253 = vmatprep.subr.mxu0 0.0
    %1254 = vmatpush1.msra.mxu0 0.0
    %1255 = vmatprep.subr.mxu0 0.0
    %1256 = vmatpush1.msra.mxu0 0.0
    %1257 = vmatprep.subr.mxu0 0.0
    %1258 = vmatpush1.msra.mxu0 0.0
    %1259 = vmatprep.subr.mxu0 0.0
    %1260 = vmatpush1.msra.mxu0 0.0
    %1261 = vmatprep.subr.mxu0 0.0
    %1262 = vmatpush1.msra.mxu0 0.0
    %1263 = vmatprep.subr.mxu0 0.0
    %1264 = vmatpush1.msra.mxu0 0.0
    %1265 = vmatprep.subr.mxu0 0.0
    %1266 = vmatpush1.msra.mxu0 0.0
    %1267 = vmatprep.subr.mxu0 0.0
    %1268 = vmatpush1.msra.mxu0 0.0
    %1269 = vmatprep.subr.mxu0 0.0
    %1270 = vmatpush1.msra.mxu0 0.0
    %1271 = vmatprep.subr.mxu0 0.0
    %1272 = vmatpush1.msra.mxu0 0.0
    %1273 = vmatprep.subr.mxu0 0.0
    %1274 = vmatpush1.msra.mxu0 0.0
    %1275 = vmatprep.subr.mxu0 0.0
    %1276 = vmatpush1.msra.mxu0 0.0
    %1277 = vmatprep.subr.mxu0 0.0
    %1278 = vmatpush1.msra.mxu0 0.0
    %1279 = vmatprep.subr.mxu0 0.0
    %1280 = vmatpush1.msra.mxu0 0.0
    %1281 = vmatprep.subr.mxu0 0.0
    %1282 = vmatpush1.msra.mxu0 0.0
    %1283 = vmatprep.subr.mxu0 0.0
    %1284 = vmatpush1.msra.mxu0 0.0
    %1285 = vmatprep.subr.mxu0 0.0
    %1286 = vmatpush1.msra.mxu0 0.0
    %1287 = vmatprep.subr.mxu0 0.0
    %1288 = vmatpush1.msra.mxu0 0.0
    %1289 = vmatprep.subr.mxu0 0.0
    %1290 = vmatpush1.msra.mxu0 0.0
    %1291 = vmatprep.subr.mxu0 0.0
    %1292 = vmatpush1.msra.mxu0 0.0
    %1293 = vmatprep.subr.mxu0 0.0
    %1294 = vmatpush1.msra.mxu0 0.0
    %1295 = vmatprep.subr.mxu0 0.0
    %1296 = vmatpush1.msra.mxu0 0.0
    %1297 = vmatprep.subr.mxu0 0.0
    %1298 = vmatpush1.msra.mxu0 0.0
    %1299 = vmatprep.subr.mxu0 0.0
    %1300 = vmatpush1.msra.mxu0 0.0
    %1301 = vmatprep.mubr.f32.mxu0 0.0
    %v1302 = vand.u32 %v719, 4294901760
    %1303 = vmatmul.mubr.f32.gmra.mrb[0].mxu0 %v1302
    %v1304 = vpop.f32.mrb[0].mxu0
    %v1305 = vadd.f32 %v1218, %v1304
    %v1306 = vpop.f32.mrb[0].mxu0
    %v1307 = vadd.f32 %v1220, %v1306
    %1308 = vmatprep.mubr.f32.mxu0 0.0
    %v1309 = vand.u32 %v722, 4294901760
    %1310 = vmatmul.mubr.f32.gmra.mrb[0].mxu0 %v1309
    %v1311 = vpop.f32.mrb[0].mxu0
    %v1312 = vadd.f32 %v1225, %v1311
    %v1313 = vpop.f32.mrb[0].mxu0
    %v1314 = vadd.f32 %v1227, %v1313
    %1315 = vdwg.mxu0
    %v1316 = vadd.f32 %v697, %v1305
    %v1317 = vadd.f32 %v699, %v1307
    %v1318 = vadd.f32 %v704, %v1312
    %v1319 = vadd.f32 %v706, %v1314
    %1320 = vst [vmem:[#allocation11] sm:$0xff] %v1316
    %1321 = vst [vmem:[#allocation11 + $0x8] sm:$0xff] %v1317
    %1322 = vst [vmem:[#allocation11 + $0x10] sm:$0xff] %v1318
    %1323 = vst [vmem:[#allocation11 + $0x18] sm:$0xff] %v1319
    // Predicated region
    $region42: #{stacked_brnn_forward.6} parent=1 // pred_check
      _
    $region43: #{stacked_brnn_forward.6} parent=1 // pred_check_branch
      %1325 = sbr.rel (0) target = $region45
    $region44: #{stacked_brnn_forward.6} parent=1 // pred_region
      %s1327 = ssub.s32 512, 512
      %1328 = vsyncadd [#allocation4], %s1327
      %s1329 = sshll.u32 [#allocation11], 4
      %s1330 = int_to_ptr.vmem [resolvable:$true] %s1329
      %1335 = dma.vmem_to_hbm [thread:$0]  %s1330, 512, %s5, [#allocation4], 256, 256, 16
    $region45: #{stacked_brnn_forward.6} parent=1 // pred_fallthru
      _
    // Predicated region
    $region46: #{stacked_brnn_forward.6} parent=1 // pred_check
      _
    $region47: #{stacked_brnn_forward.6} parent=1 // pred_check_branch
      %1337 = sbr.rel (0) target = $region49
    $region48: #{stacked_brnn_forward.6} parent=1 // pred_region
      %1338 = dma.done [#allocation4], 512
    $region49: #{stacked_brnn_forward.6} parent=1 // pred_fallthru
      _
    %1339 = vsyncpa [#allocation3], 1
    %1340 = vsyncpa [#allocation6], 1
    %1341 = vsyncpa [#allocation9], 1
    %1342 = vsyncpa [#allocation4], 1

// kernel: stacked_brnn_forward.5
$region0: #{stacked_brnn_forward.5}
  #allocation0 [shape = 'u32[]', space=smem, size = 0x4, offset = 0x4, fixed_abs, tag = 'smem constant byte address 0x4 - core index']
  #allocation1 [shape = 'u32[144,128]{1,0:T(1,128)}', space=vmem, size = 0x12000, scoped, tag = 'internal scratch']
  %s0 = inlined_call_operand.hbm [shape: f32[8,2,256], index: 0, kind: input, shape index: {}]
  %s1 = inlined_call_operand.hbm [shape: f32[32,128], index: 1, kind: input, shape index: {}]
  %s2 = inlined_call_operand.hbm [shape: f32[32,128], index: 2, kind: input, shape index: {}]
  %s3 = inlined_call_operand.hbm [shape: f32[8,2,32], index: 3, kind: output, shape index: {0}]
  %s4 = inlined_call_operand.hbm [shape: f32[8,2,32], index: 4, kind: output, shape index: {1}]
  %5 = xla_tuple %s3, %s4
  %s6 = sld [smem:[#allocation0]]
  $region42: #{stacked_brnn_forward.5} parent=0
    _
  %s8 = ssub.s32 1, %s6
  %s9 = scalar_select 0, %s8, %s6
  $region1: #{stacked_brnn_forward.5} parent=0
    #allocation2 [shape = 'u8[16384]{0}', space=vmem, size = 0x4000, scoped, tag = 'input window, operand 0, single buffered']
    #allocation3 [shape = 's32[1]{0}', space=sflag, size = 0x4, scoped, tag = 'scoped memory for stacked_brnn_forward.5']
    #allocation4 [shape = 's32[1]{0}', space=sflag, size = 0x4, scoped, tag = 'scoped memory for stacked_brnn_forward.5']
    #allocation5 [shape = 'u8[16384]{0}', space=vmem, size = 0x4000, scoped, tag = 'input window, operand 1, single buffered']
    #allocation6 [shape = 's32[1]{0}', space=sflag, size = 0x4, scoped, tag = 'scoped memory for stacked_brnn_forward.5']
    #allocation7 [shape = 'u8[16384]{0}', space=vmem, size = 0x4000, scoped, tag = 'input window, operand 2, single buffered']
    #allocation8 [shape = 'u8[8192]{0}', space=vmem, size = 0x2000, scoped, tag = 'output window, operand 0, single buffered']
    #allocation9 [shape = 'u8[8192]{0}', space=vmem, size = 0x2000, scoped, tag = 'output window, operand 1, single buffered']
    #allocation10 [shape = 's32[1]{0}', space=sflag, size = 0x4, scoped, tag = 'scoped memory for stacked_brnn_forward.5']
    %10 = vsyncpa [#allocation3], 0
    %11 = vsyncpa [#allocation6], 0
    %12 = vsyncpa [#allocation4], 0
    %13 = vsyncpa [#allocation10], 0
    // Predicated region
    $region2: #{stacked_brnn_forward.5} parent=1 // pred_check
      _
    $region3: #{stacked_brnn_forward.5} parent=1 // pred_check_branch
      %15 = sbr.rel (0) target = $region5
    $region4: #{stacked_brnn_forward.5} parent=1 // pred_region
      %s17 = ssub.s32 512, 512
      %18 = vsyncadd [#allocation3], %s17
      %s19 = sshll.u32 [#allocation2], 4
      %s20 = int_to_ptr.vmem [resolvable:$true] %s19
      %25 = dma.hbm_to_vmem [thread:$0]  %s0, 512, %s20, [#allocation3], 64, 64, 4
    $region5: #{stacked_brnn_forward.5} parent=1 // pred_fallthru
      _
    // Predicated region
    $region6: #{stacked_brnn_forward.5} parent=1 // pred_check
      _
    $region7: #{stacked_brnn_forward.5} parent=1 // pred_check_branch
      %27 = sbr.rel (0) target = $region9
    $region8: #{stacked_brnn_forward.5} parent=1 // pred_region
      %s29 = ssub.s32 512, 512
      %30 = vsyncadd [#allocation6], %s29
      %s31 = sshll.u32 [#allocation5], 4
      %s32 = int_to_ptr.vmem [resolvable:$true] %s31
      %37 = dma.hbm_to_vmem [thread:$0]  %s1, 512, %s32, [#allocation6], 128, 128, 8
    $region9: #{stacked_brnn_forward.5} parent=1 // pred_fallthru
      _
    // Predicated region
    $region10: #{stacked_brnn_forward.5} parent=1 // pred_check
      _
    $region11: #{stacked_brnn_forward.5} parent=1 // pred_check_branch
      %39 = sbr.rel (0) target = $region13
    $region12: #{stacked_brnn_forward.5} parent=1 // pred_region
      %s41 = ssub.s32 512, 512
      %42 = vsyncadd [#allocation6], %s41
      %s43 = sshll.u32 [#allocation7], 4
      %s44 = int_to_ptr.vmem [resolvable:$true] %s43
      %49 = dma.hbm_to_vmem [thread:$0]  %s2, 512, %s44, [#allocation6], 128, 128, 8
    $region13: #{stacked_brnn_forward.5} parent=1 // pred_fallthru
      _
    // Predicated region
    $region14: #{stacked_brnn_forward.5} parent=1 // pred_check
      _
    $region15: #{stacked_brnn_forward.5} parent=1 // pred_check_branch
      %51 = sbr.rel (0) target = $region17
    $region16: #{stacked_brnn_forward.5} parent=1 // pred_region
      %52 = dma.done [#allocation3], 512
    $region17: #{stacked_brnn_forward.5} parent=1 // pred_fallthru
      _
    // Predicated region
    $region18: #{stacked_brnn_forward.5} parent=1 // pred_check
      _
    $region19: #{stacked_brnn_forward.5} parent=1 // pred_check_branch
      %54 = sbr.rel (0) target = $region21
    $region20: #{stacked_brnn_forward.5} parent=1 // pred_region
      %55 = dma.done [#allocation6], 512
    $region21: #{stacked_brnn_forward.5} parent=1 // pred_fallthru
      _
    // Predicated region
    $region22: #{stacked_brnn_forward.5} parent=1 // pred_check
      _
    $region23: #{stacked_brnn_forward.5} parent=1 // pred_check_branch
      %57 = sbr.rel (0) target = $region25
    $region24: #{stacked_brnn_forward.5} parent=1 // pred_region
      %58 = dma.done [#allocation6], 512
    $region25: #{stacked_brnn_forward.5} parent=1 // pred_fallthru
      _
    %v59 = vld [vmem:[#allocation5] sm:$0xff]
    %v60 = vld [vmem:[#allocation5 + $0x8] sm:$0xff]
    %v61 = vld [vmem:[#allocation5 + $0x10] sm:$0xff]
    %v62 = vld [vmem:[#allocation5 + $0x18] sm:$0xff]
    %v63 = vld [vmem:[#allocation7] sm:$0xff]
    %v64 = vld [vmem:[#allocation7 + $0x8] sm:$0xff]
    %v65 = vld [vmem:[#allocation7 + $0x10] sm:$0xff]
    %v66 = vld [vmem:[#allocation7 + $0x18] sm:$0xff]
    %v67 = vld [vmem:[#allocation2] sm:$0xf]
    %s68 = scalar_lea.vmem [#allocation2], 28
    %v69 = vld [vmem:[%s68] sm:$0xf]
    %vm70 = vcmask 261120
    %v72 = vsel %vm70, 0.0, 0
    %74 = vmatprep.subr.mxu0 0.0
    %v75 = vand.u32 %v59, 4294901760
    %76 = vmatpush1.msra.mxu0 %v75
    %77 = vmatprep.subr.mxu0 0.0
    %v78 = vand.u32 %v60, 4294901760
    %79 = vmatpush1.msra.mxu0 %v78
    %80 = vmatprep.subr.mxu0 0.0
    %v81 = vand.u32 %v61, 4294901760
    %82 = vmatpush1.msra.mxu0 %v81
    %83 = vmatprep.subr.mxu0 0.0
    %v84 = vand.u32 %v62, 4294901760
    %85 = vmatpush1.msra.mxu0 %v84
    %86 = vmatprep.subr.mxu0 0.0
    %87 = vmatpush1.msra.mxu0 0.0
    %88 = vmatprep.subr.mxu0 0.0
    %89 = vmatpush1.msra.mxu0 0.0
    %90 = vmatprep.subr.mxu0 0.0
    %91 = vmatpush1.msra.mxu0 0.0
    %92 = vmatprep.subr.mxu0 0.0
    %93 = vmatpush1.msra.mxu0 0.0
    %94 = vmatprep.subr.mxu0 0.0
    %95 = vmatpush1.msra.mxu0 0.0
    %96 = vmatprep.subr.mxu0 0.0
    %97 = vmatpush1.msra.mxu0 0.0
    %98 = vmatprep.subr.mxu0 0.0
    %99 = vmatpush1.msra.mxu0 0.0
    %100 = vmatprep.subr.mxu0 0.0
    %101 = vmatpush1.msra.mxu0 0.0
    %102 = vmatprep.subr.mxu0 0.0
    %103 = vmatpush1.msra.mxu0 0.0
    %104 = vmatprep.subr.mxu0 0.0
    %105 = vmatpush1.msra.mxu0 0.0
    %106 = vmatprep.subr.mxu0 0.0
    %107 = vmatpush1.msra.mxu0 0.0
    %108 = vmatprep.subr.mxu0 0.0
    %109 = vmatpush1.msra.mxu0 0.0
    %110 = vmatprep.subr.mxu0 0.0
    %111 = vmatpush1.msra.mxu0 0.0
    %112 = vmatprep.subr.mxu0 0.0
    %113 = vmatpush1.msra.mxu0 0.0
    %114 = vmatprep.subr.mxu0 0.0
    %115 = vmatpush1.msra.mxu0 0.0
    %116 = vmatprep.subr.mxu0 0.0
    %117 = vmatpush1.msra.mxu0 0.0
    %118 = vmatprep.subr.mxu0 0.0
    %119 = vmatpush1.msra.mxu0 0.0
    %120 = vmatprep.subr.mxu0 0.0
    %121 = vmatpush1.msra.mxu0 0.0
    %122 = vmatprep.subr.mxu0 0.0
    %123 = vmatpush1.msra.mxu0 0.0
    %124 = vmatprep.subr.mxu0 0.0
    %125 = vmatpush1.msra.mxu0 0.0
    %126 = vmatprep.subr.mxu0 0.0
    %127 = vmatpush1.msra.mxu0 0.0
    %128 = vmatprep.subr.mxu0 0.0
    %129 = vmatpush1.msra.mxu0 0.0
    %130 = vmatprep.subr.mxu0 0.0
    %131 = vmatpush1.msra.mxu0 0.0
    %132 = vmatprep.subr.mxu0 0.0
    %133 = vmatpush1.msra.mxu0 0.0
    %134 = vmatprep.subr.mxu0 0.0
    %135 = vmatpush1.msra.mxu0 0.0
    %136 = vmatprep.subr.mxu0 0.0
    %137 = vmatpush1.msra.mxu0 0.0
    %138 = vmatprep.subr.mxu0 0.0
    %139 = vmatpush1.msra.mxu0 0.0
    %140 = vmatprep.subr.mxu0 0.0
    %141 = vmatpush1.msra.mxu0 0.0
    %142 = vmatprep.mubr.f32.mxu0 0.0
    %v143 = vand.u32 %v72, 4294901760
    %v144 = vsub.f32 %v72, %v143
    %v145 = vand.u32 %v144, 4294901760
    %v146 = vsub.f32 %v144, %v145
    %v147 = vand.u32 %v146, 4294901760
    %148 = vmatmul.mubr.f32.gmra.mrb[0].mxu0 %v147
    %v149 = vpop.f32.mrb[0].mxu0
    %v150 = vadd.f32 0.0, %v149
    %v151 = vpop.f32.mrb[0].mxu0
    %152 = vdwg.mxu0
    %153 = vmatprep.subr.mxu0 0.0
    %v154 = vand.u32 %v59, 4294901760
    %v155 = vsub.f32 %v59, %v154
    %v156 = vand.u32 %v155, 4294901760
    %v157 = vsub.f32 %v155, %v156
    %v158 = vand.u32 %v157, 4294901760
    %159 = vmatpush1.msra.mxu0 %v158
    %160 = vmatprep.subr.mxu0 0.0
    %v161 = vand.u32 %v60, 4294901760
    %v162 = vsub.f32 %v60, %v161
    %v163 = vand.u32 %v162, 4294901760
    %v164 = vsub.f32 %v162, %v163
    %v165 = vand.u32 %v164, 4294901760
    %166 = vmatpush1.msra.mxu0 %v165
    %167 = vmatprep.subr.mxu0 0.0
    %v168 = vand.u32 %v61, 4294901760
    %v169 = vsub.f32 %v61, %v168
    %v170 = vand.u32 %v169, 4294901760
    %v171 = vsub.f32 %v169, %v170
    %v172 = vand.u32 %v171, 4294901760
    %173 = vmatpush1.msra.mxu0 %v172
    %174 = vmatprep.subr.mxu0 0.0
    %v175 = vand.u32 %v62, 4294901760
    %v176 = vsub.f32 %v62, %v175
    %v177 = vand.u32 %v176, 4294901760
    %v178 = vsub.f32 %v176, %v177
    %v179 = vand.u32 %v178, 4294901760
    %180 = vmatpush1.msra.mxu0 %v179
    %181 = vmatprep.subr.mxu0 0.0
    %182 = vmatpush1.msra.mxu0 0.0
    %183 = vmatprep.subr.mxu0 0.0
    %184 = vmatpush1.msra.mxu0 0.0
    %185 = vmatprep.subr.mxu0 0.0
    %186 = vmatpush1.msra.mxu0 0.0
    %187 = vmatprep.subr.mxu0 0.0
    %188 = vmatpush1.msra.mxu0 0.0
    %189 = vmatprep.subr.mxu0 0.0
    %190 = vmatpush1.msra.mxu0 0.0
    %191 = vmatprep.subr.mxu0 0.0
    %192 = vmatpush1.msra.mxu0 0.0
    %193 = vmatprep.subr.mxu0 0.0
    %194 = vmatpush1.msra.mxu0 0.0
    %195 = vmatprep.subr.mxu0 0.0
    %196 = vmatpush1.msra.mxu0 0.0
    %197 = vmatprep.subr.mxu0 0.0
    %198 = vmatpush1.msra.mxu0 0.0
    %199 = vmatprep.subr.mxu0 0.0
    %200 = vmatpush1.msra.mxu0 0.0
    %201 = vmatprep.subr.mxu0 0.0
    %202 = vmatpush1.msra.mxu0 0.0
    %203 = vmatprep.subr.mxu0 0.0
    %204 = vmatpush1.msra.mxu0 0.0
    %205 = vmatprep.subr.mxu0 0.0
    %206 = vmatpush1.msra.mxu0 0.0
    %207 = vmatprep.subr.mxu0 0.0
    %208 = vmatpush1.msra.mxu0 0.0
    %209 = vmatprep.subr.mxu0 0.0
    %210 = vmatpush1.msra.mxu0 0.0
    %211 = vmatprep.subr.mxu0 0.0
    %212 = vmatpush1.msra.mxu0 0.0
    %213 = vmatprep.subr.mxu0 0.0
    %214 = vmatpush1.msra.mxu0 0.0
    %215 = vmatprep.subr.mxu0 0.0
    %216 = vmatpush1.msra.mxu0 0.0
    %217 = vmatprep.subr.mxu0 0.0
    %218 = vmatpush1.msra.mxu0 0.0
    %219 = vmatprep.subr.mxu0 0.0
    %220 = vmatpush1.msra.mxu0 0.0
    %221 = vmatprep.subr.mxu0 0.0
    %222 = vmatpush1.msra.mxu0 0.0
    %223 = vmatprep.subr.mxu0 0.0
    %224 = vmatpush1.msra.mxu0 0.0
    %225 = vmatprep.subr.mxu0 0.0
    %226 = vmatpush1.msra.mxu0 0.0
    %227 = vmatprep.subr.mxu0 0.0
    %228 = vmatpush1.msra.mxu0 0.0
    %229 = vmatprep.subr.mxu0 0.0
    %230 = vmatpush1.msra.mxu0 0.0
    %231 = vmatprep.subr.mxu0 0.0
    %232 = vmatpush1.msra.mxu0 0.0
    %233 = vmatprep.subr.mxu0 0.0
    %234 = vmatpush1.msra.mxu0 0.0
    %235 = vmatprep.subr.mxu0 0.0
    %236 = vmatpush1.msra.mxu0 0.0
    %237 = vmatprep.mubr.f32.mxu0 0.0
    %v238 = vand.u32 %v72, 4294901760
    %239 = vmatmul.mubr.f32.gmra.mrb[0].mxu0 %v238
    %v240 = vpop.f32.mrb[0].mxu0
    %v241 = vadd.f32 %v150, %v240
    %v242 = vpop.f32.mrb[0].mxu0
    %243 = vdwg.mxu0
    %244 = vmatprep.subr.mxu0 0.0
    %v245 = vand.u32 %v59, 4294901760
    %v246 = vsub.f32 %v59, %v245
    %247 = vmatpush1.msra.mxu0 %v246
    %248 = vmatprep.subr.mxu0 0.0
    %v249 = vand.u32 %v60, 4294901760
    %v250 = vsub.f32 %v60, %v249
    %251 = vmatpush1.msra.mxu0 %v250
    %252 = vmatprep.subr.mxu0 0.0
    %v253 = vand.u32 %v61, 4294901760
    %v254 = vsub.f32 %v61, %v253
    %255 = vmatpush1.msra.mxu0 %v254
    %256 = vmatprep.subr.mxu0 0.0
    %v257 = vand.u32 %v62, 4294901760
    %v258 = vsub.f32 %v62, %v257
    %259 = vmatpush1.msra.mxu0 %v258
    %260 = vmatprep.subr.mxu0 0.0
    %261 = vmatpush1.msra.mxu0 0.0
    %262 = vmatprep.subr.mxu0 0.0
    %263 = vmatpush1.msra.mxu0 0.0
    %264 = vmatprep.subr.mxu0 0.0
    %265 = vmatpush1.msra.mxu0 0.0
    %266 = vmatprep.subr.mxu0 0.0
    %267 = vmatpush1.msra.mxu0 0.0
    %268 = vmatprep.subr.mxu0 0.0
    %269 = vmatpush1.msra.mxu0 0.0
    %270 = vmatprep.subr.mxu0 0.0
    %271 = vmatpush1.msra.mxu0 0.0
    %272 = vmatprep.subr.mxu0 0.0
    %273 = vmatpush1.msra.mxu0 0.0
    %274 = vmatprep.subr.mxu0 0.0
    %275 = vmatpush1.msra.mxu0 0.0
    %276 = vmatprep.subr.mxu0 0.0
    %277 = vmatpush1.msra.mxu0 0.0
    %278 = vmatprep.subr.mxu0 0.0
    %279 = vmatpush1.msra.mxu0 0.0
    %280 = vmatprep.subr.mxu0 0.0
    %281 = vmatpush1.msra.mxu0 0.0
    %282 = vmatprep.subr.mxu0 0.0
    %283 = vmatpush1.msra.mxu0 0.0
    %284 = vmatprep.subr.mxu0 0.0
    %285 = vmatpush1.msra.mxu0 0.0
    %286 = vmatprep.subr.mxu0 0.0
    %287 = vmatpush1.msra.mxu0 0.0
    %288 = vmatprep.subr.mxu0 0.0
    %289 = vmatpush1.msra.mxu0 0.0
    %290 = vmatprep.subr.mxu0 0.0
    %291 = vmatpush1.msra.mxu0 0.0
    %292 = vmatprep.subr.mxu0 0.0
    %293 = vmatpush1.msra.mxu0 0.0
    %294 = vmatprep.subr.mxu0 0.0
    %295 = vmatpush1.msra.mxu0 0.0
    %296 = vmatprep.subr.mxu0 0.0
    %297 = vmatpush1.msra.mxu0 0.0
    %298 = vmatprep.subr.mxu0 0.0
    %299 = vmatpush1.msra.mxu0 0.0
    %300 = vmatprep.subr.mxu0 0.0
    %301 = vmatpush1.msra.mxu0 0.0
    %302 = vmatprep.subr.mxu0 0.0
    %303 = vmatpush1.msra.mxu0 0.0
    %304 = vmatprep.subr.mxu0 0.0
    %305 = vmatpush1.msra.mxu0 0.0
    %306 = vmatprep.subr.mxu0 0.0
    %307 = vmatpush1.msra.mxu0 0.0
    %308 = vmatprep.subr.mxu0 0.0
    %309 = vmatpush1.msra.mxu0 0.0
    %310 = vmatprep.subr.mxu0 0.0
    %311 = vmatpush1.msra.mxu0 0.0
    %312 = vmatprep.subr.mxu0 0.0
    %313 = vmatpush1.msra.mxu0 0.0
    %314 = vmatprep.subr.mxu0 0.0
    %315 = vmatpush1.msra.mxu0 0.0
    %316 = vmatprep.mubr.f32.mxu0 0.0
    %v317 = vand.u32 %v72, 4294901760
    %v318 = vsub.f32 %v72, %v317
    %319 = vmatmul.mubr.f32.gmra.mrb[0].mxu0 %v318
    %v320 = vpop.f32.mrb[0].mxu0
    %v321 = vadd.f32 %v241, %v320
    %v322 = vpop.f32.mrb[0].mxu0
    %323 = vdwg.mxu0
    %324 = vmatprep.subr.mxu0 0.0
    %v325 = vand.u32 %v59, 4294901760
    %326 = vmatpush1.msra.mxu0 %v325
    %327 = vmatprep.subr.mxu0 0.0
    %v328 = vand.u32 %v60, 4294901760
    %329 = vmatpush1.msra.mxu0 %v328
    %330 = vmatprep.subr.mxu0 0.0
    %v331 = vand.u32 %v61, 4294901760
    %332 = vmatpush1.msra.mxu0 %v331
    %333 = vmatprep.subr.mxu0 0.0
    %v334 = vand.u32 %v62, 4294901760
    %335 = vmatpush1.msra.mxu0 %v334
    %336 = vmatprep.subr.mxu0 0.0
    %337 = vmatpush1.msra.mxu0 0.0
    %338 = vmatprep.subr.mxu0 0.0
    %339 = vmatpush1.msra.mxu0 0.0
    %340 = vmatprep.subr.mxu0 0.0
    %341 = vmatpush1.msra.mxu0 0.0
    %342 = vmatprep.subr.mxu0 0.0
    %343 = vmatpush1.msra.mxu0 0.0
    %344 = vmatprep.subr.mxu0 0.0
    %345 = vmatpush1.msra.mxu0 0.0
    %346 = vmatprep.subr.mxu0 0.0
    %347 = vmatpush1.msra.mxu0 0.0
    %348 = vmatprep.subr.mxu0 0.0
    %349 = vmatpush1.msra.mxu0 0.0
    %350 = vmatprep.subr.mxu0 0.0
    %351 = vmatpush1.msra.mxu0 0.0
    %352 = vmatprep.subr.mxu0 0.0
    %353 = vmatpush1.msra.mxu0 0.0
    %354 = vmatprep.subr.mxu0 0.0
    %355 = vmatpush1.msra.mxu0 0.0
    %356 = vmatprep.subr.mxu0 0.0
    %357 = vmatpush1.msra.mxu0 0.0
    %358 = vmatprep.subr.mxu0 0.0
    %359 = vmatpush1.msra.mxu0 0.0
    %360 = vmatprep.subr.mxu0 0.0
    %361 = vmatpush1.msra.mxu0 0.0
    %362 = vmatprep.subr.mxu0 0.0
    %363 = vmatpush1.msra.mxu0 0.0
    %364 = vmatprep.subr.mxu0 0.0
    %365 = vmatpush1.msra.mxu0 0.0
    %366 = vmatprep.subr.mxu0 0.0
    %367 = vmatpush1.msra.mxu0 0.0
    %368 = vmatprep.subr.mxu0 0.0
    %369 = vmatpush1.msra.mxu0 0.0
    %370 = vmatprep.subr.mxu0 0.0
    %371 = vmatpush1.msra.mxu0 0.0
    %372 = vmatprep.subr.mxu0 0.0
    %373 = vmatpush1.msra.mxu0 0.0
    %374 = vmatprep.subr.mxu0 0.0
    %375 = vmatpush1.msra.mxu0 0.0
    %376 = vmatprep.subr.mxu0 0.0
    %377 = vmatpush1.msra.mxu0 0.0
    %378 = vmatprep.subr.mxu0 0.0
    %379 = vmatpush1.msra.mxu0 0.0
    %380 = vmatprep.subr.mxu0 0.0
    %381 = vmatpush1.msra.mxu0 0.0
    %382 = vmatprep.subr.mxu0 0.0
    %383 = vmatpush1.msra.mxu0 0.0
    %384 = vmatprep.subr.mxu0 0.0
    %385 = vmatpush1.msra.mxu0 0.0
    %386 = vmatprep.subr.mxu0 0.0
    %387 = vmatpush1.msra.mxu0 0.0
    %388 = vmatprep.subr.mxu0 0.0
    %389 = vmatpush1.msra.mxu0 0.0
    %390 = vmatprep.subr.mxu0 0.0
    %391 = vmatpush1.msra.mxu0 0.0
    %392 = vmatprep.mubr.f32.mxu0 0.0
    %v393 = vand.u32 %v72, 4294901760
    %v394 = vsub.f32 %v72, %v393
    %v395 = vand.u32 %v394, 4294901760
    %396 = vmatmul.mubr.f32.gmra.mrb[0].mxu0 %v395
    %v397 = vpop.f32.mrb[0].mxu0
    %v398 = vadd.f32 %v321, %v397
    %v399 = vpop.f32.mrb[0].mxu0
    %400 = vdwg.mxu0
    %401 = vmatprep.subr.mxu0 0.0
    %v402 = vand.u32 %v59, 4294901760
    %v403 = vsub.f32 %v59, %v402
    %v404 = vand.u32 %v403, 4294901760
    %405 = vmatpush1.msra.mxu0 %v404
    %406 = vmatprep.subr.mxu0 0.0
    %v407 = vand.u32 %v60, 4294901760
    %v408 = vsub.f32 %v60, %v407
    %v409 = vand.u32 %v408, 4294901760
    %410 = vmatpush1.msra.mxu0 %v409
    %411 = vmatprep.subr.mxu0 0.0
    %v412 = vand.u32 %v61, 4294901760
    %v413 = vsub.f32 %v61, %v412
    %v414 = vand.u32 %v413, 4294901760
    %415 = vmatpush1.msra.mxu0 %v414
    %416 = vmatprep.subr.mxu0 0.0
    %v417 = vand.u32 %v62, 4294901760
    %v418 = vsub.f32 %v62, %v417
    %v419 = vand.u32 %v418, 4294901760
    %420 = vmatpush1.msra.mxu0 %v419
    %421 = vmatprep.subr.mxu0 0.0
    %422 = vmatpush1.msra.mxu0 0.0
    %423 = vmatprep.subr.mxu0 0.0
    %424 = vmatpush1.msra.mxu0 0.0
    %425 = vmatprep.subr.mxu0 0.0
    %426 = vmatpush1.msra.mxu0 0.0
    %427 = vmatprep.subr.mxu0 0.0
    %428 = vmatpush1.msra.mxu0 0.0
    %429 = vmatprep.subr.mxu0 0.0
    %430 = vmatpush1.msra.mxu0 0.0
    %431 = vmatprep.subr.mxu0 0.0
    %432 = vmatpush1.msra.mxu0 0.0
    %433 = vmatprep.subr.mxu0 0.0
    %434 = vmatpush1.msra.mxu0 0.0
    %435 = vmatprep.subr.mxu0 0.0
    %436 = vmatpush1.msra.mxu0 0.0
    %437 = vmatprep.subr.mxu0 0.0
    %438 = vmatpush1.msra.mxu0 0.0
    %439 = vmatprep.subr.mxu0 0.0
    %440 = vmatpush1.msra.mxu0 0.0
    %441 = vmatprep.subr.mxu0 0.0
    %442 = vmatpush1.msra.mxu0 0.0
    %443 = vmatprep.subr.mxu0 0.0
    %444 = vmatpush1.msra.mxu0 0.0
    %445 = vmatprep.subr.mxu0 0.0
    %446 = vmatpush1.msra.mxu0 0.0
    %447 = vmatprep.subr.mxu0 0.0
    %448 = vmatpush1.msra.mxu0 0.0
    %449 = vmatprep.subr.mxu0 0.0
    %450 = vmatpush1.msra.mxu0 0.0
    %451 = vmatprep.subr.mxu0 0.0
    %452 = vmatpush1.msra.mxu0 0.0
    %453 = vmatprep.subr.mxu0 0.0
    %454 = vmatpush1.msra.mxu0 0.0
    %455 = vmatprep.subr.mxu0 0.0
    %456 = vmatpush1.msra.mxu0 0.0
    %457 = vmatprep.subr.mxu0 0.0
    %458 = vmatpush1.msra.mxu0 0.0
    %459 = vmatprep.subr.mxu0 0.0
    %460 = vmatpush1.msra.mxu0 0.0
    %461 = vmatprep.subr.mxu0 0.0
    %462 = vmatpush1.msra.mxu0 0.0
    %463 = vmatprep.subr.mxu0 0.0
    %464 = vmatpush1.msra.mxu0 0.0
    %465 = vmatprep.subr.mxu0 0.0
    %466 = vmatpush1.msra.mxu0 0.0
    %467 = vmatprep.subr.mxu0 0.0
    %468 = vmatpush1.msra.mxu0 0.0
    %469 = vmatprep.subr.mxu0 0.0
    %470 = vmatpush1.msra.mxu0 0.0
    %471 = vmatprep.subr.mxu0 0.0
    %472 = vmatpush1.msra.mxu0 0.0
    %473 = vmatprep.subr.mxu0 0.0
    %474 = vmatpush1.msra.mxu0 0.0
    %475 = vmatprep.subr.mxu0 0.0
    %476 = vmatpush1.msra.mxu0 0.0
    %477 = vmatprep.mubr.f32.mxu0 0.0
    %v478 = vand.u32 %v72, 4294901760
    %479 = vmatmul.mubr.f32.gmra.mrb[0].mxu0 %v478
    %v480 = vpop.f32.mrb[0].mxu0
    %v481 = vadd.f32 %v398, %v480
    %v482 = vpop.f32.mrb[0].mxu0
    %483 = vdwg.mxu0
    %484 = vmatprep.subr.mxu0 0.0
    %v485 = vand.u32 %v59, 4294901760
    %486 = vmatpush1.msra.mxu0 %v485
    %487 = vmatprep.subr.mxu0 0.0
    %v488 = vand.u32 %v60, 4294901760
    %489 = vmatpush1.msra.mxu0 %v488
    %490 = vmatprep.subr.mxu0 0.0
    %v491 = vand.u32 %v61, 4294901760
    %492 = vmatpush1.msra.mxu0 %v491
    %493 = vmatprep.subr.mxu0 0.0
    %v494 = vand.u32 %v62, 4294901760
    %495 = vmatpush1.msra.mxu0 %v494
    %496 = vmatprep.subr.mxu0 0.0
    %497 = vmatpush1.msra.mxu0 0.0
    %498 = vmatprep.subr.mxu0 0.0
    %499 = vmatpush1.msra.mxu0 0.0
    %500 = vmatprep.subr.mxu0 0.0
    %501 = vmatpush1.msra.mxu0 0.0
    %502 = vmatprep.subr.mxu0 0.0
    %503 = vmatpush1.msra.mxu0 0.0
    %504 = vmatprep.subr.mxu0 0.0
    %505 = vmatpush1.msra.mxu0 0.0
    %506 = vmatprep.subr.mxu0 0.0
    %507 = vmatpush1.msra.mxu0 0.0
    %508 = vmatprep.subr.mxu0 0.0
    %509 = vmatpush1.msra.mxu0 0.0
    %510 = vmatprep.subr.mxu0 0.0
    %511 = vmatpush1.msra.mxu0 0.0
    %512 = vmatprep.subr.mxu0 0.0
    %513 = vmatpush1.msra.mxu0 0.0
    %514 = vmatprep.subr.mxu0 0.0
    %515 = vmatpush1.msra.mxu0 0.0
    %516 = vmatprep.subr.mxu0 0.0
    %517 = vmatpush1.msra.mxu0 0.0
    %518 = vmatprep.subr.mxu0 0.0
    %519 = vmatpush1.msra.mxu0 0.0
    %520 = vmatprep.subr.mxu0 0.0
    %521 = vmatpush1.msra.mxu0 0.0
    %522 = vmatprep.subr.mxu0 0.0
    %523 = vmatpush1.msra.mxu0 0.0
    %524 = vmatprep.subr.mxu0 0.0
    %525 = vmatpush1.msra.mxu0 0.0
    %526 = vmatprep.subr.mxu0 0.0
    %527 = vmatpush1.msra.mxu0 0.0
    %528 = vmatprep.subr.mxu0 0.0
    %529 = vmatpush1.msra.mxu0 0.0
    %530 = vmatprep.subr.mxu0 0.0
    %531 = vmatpush1.msra.mxu0 0.0
    %532 = vmatprep.subr.mxu0 0.0
    %533 = vmatpush1.msra.mxu0 0.0
    %534 = vmatprep.subr.mxu0 0.0
    %535 = vmatpush1.msra.mxu0 0.0
    %536 = vmatprep.subr.mxu0 0.0
    %537 = vmatpush1.msra.mxu0 0.0
    %538 = vmatprep.subr.mxu0 0.0
    %539 = vmatpush1.msra.mxu0 0.0
    %540 = vmatprep.subr.mxu0 0.0
    %541 = vmatpush1.msra.mxu0 0.0
    %542 = vmatprep.subr.mxu0 0.0
    %543 = vmatpush1.msra.mxu0 0.0
    %544 = vmatprep.subr.mxu0 0.0
    %545 = vmatpush1.msra.mxu0 0.0
    %546 = vmatprep.subr.mxu0 0.0
    %547 = vmatpush1.msra.mxu0 0.0
    %548 = vmatprep.subr.mxu0 0.0
    %549 = vmatpush1.msra.mxu0 0.0
    %550 = vmatprep.subr.mxu0 0.0
    %551 = vmatpush1.msra.mxu0 0.0
    %552 = vmatprep.mubr.f32.mxu0 0.0
    %v553 = vand.u32 %v72, 4294901760
    %554 = vmatmul.mubr.f32.gmra.mrb[0].mxu0 %v553
    %v555 = vpop.f32.mrb[0].mxu0
    %v556 = vadd.f32 %v481, %v555
    %v557 = vpop.f32.mrb[0].mxu0
    %558 = vdwg.mxu0
    %v559 = vadd.f32 %v67, %v556
    %v560 = vxor.u32 %v559, 2147483648
    %v561 = vmul.f32 %v560, 1.442695
    %v562 = vpow.pop %v561
    %v563 = vadd.f32 %v562, 1.0
    %v564 = vrcp.pop %v563
    %v565 = vmul.f32 1.0, %v564
    %v566 = vtanh.pop %v559
    %v567 = vmul.f32 %v565, 0.0
    %569 = vrot.lane.b32.xlu0 %v566, 64
    %v570 = vpop.permute.xlu0 %569
    %v572 = vmul.f32 %v565, %v570
    %574 = vrot.lane.b32.xlu0 %v572, 32
    %v575 = vpop.permute.xlu0 %574
    %v577 = vadd.f32 %v567, %v575
    %v578 = vtanh.pop %v577
    %580 = vrot.lane.b32.xlu0 %v578, 64
    %v581 = vpop.permute.xlu0 %580
    %v583 = vmul.f32 %v565, %v581
    %584 = vmatprep.subr.mxu0 0.0
    %v585 = vand.u32 %v63, 4294901760
    %586 = vmatpush1.msra.mxu0 %v585
    %587 = vmatprep.subr.mxu0 0.0
    %v588 = vand.u32 %v64, 4294901760
    %589 = vmatpush1.msra.mxu0 %v588
    %590 = vmatprep.subr.mxu0 0.0
    %v591 = vand.u32 %v65, 4294901760
    %592 = vmatpush1.msra.mxu0 %v591
    %593 = vmatprep.subr.mxu0 0.0
    %v594 = vand.u32 %v66, 4294901760
    %595 = vmatpush1.msra.mxu0 %v594
    %596 = vmatprep.subr.mxu0 0.0
    %597 = vmatpush1.msra.mxu0 0.0
    %598 = vmatprep.subr.mxu0 0.0
    %599 = vmatpush1.msra.mxu0 0.0
    %600 = vmatprep.subr.mxu0 0.0
    %601 = vmatpush1.msra.mxu0 0.0
    %602 = vmatprep.subr.mxu0 0.0
    %603 = vmatpush1.msra.mxu0 0.0
    %604 = vmatprep.subr.mxu0 0.0
    %605 = vmatpush1.msra.mxu0 0.0
    %606 = vmatprep.subr.mxu0 0.0
    %607 = vmatpush1.msra.mxu0 0.0
    %608 = vmatprep.subr.mxu0 0.0
    %609 = vmatpush1.msra.mxu0 0.0
    %610 = vmatprep.subr.mxu0 0.0
    %611 = vmatpush1.msra.mxu0 0.0
    %612 = vmatprep.subr.mxu0 0.0
    %613 = vmatpush1.msra.mxu0 0.0
    %614 = vmatprep.subr.mxu0 0.0
    %615 = vmatpush1.msra.mxu0 0.0
    %616 = vmatprep.subr.mxu0 0.0
    %617 = vmatpush1.msra.mxu0 0.0
    %618 = vmatprep.subr.mxu0 0.0
    %619 = vmatpush1.msra.mxu0 0.0
    %620 = vmatprep.subr.mxu0 0.0
    %621 = vmatpush1.msra.mxu0 0.0
    %622 = vmatprep.subr.mxu0 0.0
    %623 = vmatpush1.msra.mxu0 0.0
    %624 = vmatprep.subr.mxu0 0.0
    %625 = vmatpush1.msra.mxu0 0.0
    %626 = vmatprep.subr.mxu0 0.0
    %627 = vmatpush1.msra.mxu0 0.0
    %628 = vmatprep.subr.mxu0 0.0
    %629 = vmatpush1.msra.mxu0 0.0
    %630 = vmatprep.subr.mxu0 0.0
    %631 = vmatpush1.msra.mxu0 0.0
    %632 = vmatprep.subr.mxu0 0.0
    %633 = vmatpush1.msra.mxu0 0.0
    %634 = vmatprep.subr.mxu0 0.0
    %635 = vmatpush1.msra.mxu0 0.0
    %636 = vmatprep.subr.mxu0 0.0
    %637 = vmatpush1.msra.mxu0 0.0
    %638 = vmatprep.subr.mxu0 0.0
    %639 = vmatpush1.msra.mxu0 0.0
    %640 = vmatprep.subr.mxu0 0.0
    %641 = vmatpush1.msra.mxu0 0.0
    %642 = vmatprep.subr.mxu0 0.0
    %643 = vmatpush1.msra.mxu0 0.0
    %644 = vmatprep.subr.mxu0 0.0
    %645 = vmatpush1.msra.mxu0 0.0
    %646 = vmatprep.subr.mxu0 0.0
    %647 = vmatpush1.msra.mxu0 0.0
    %648 = vmatprep.subr.mxu0 0.0
    %649 = vmatpush1.msra.mxu0 0.0
    %650 = vmatprep.subr.mxu0 0.0
    %651 = vmatpush1.msra.mxu0 0.0
    %652 = vmatprep.mubr.f32.mxu0 0.0
    %v653 = vand.u32 %v72, 4294901760
    %v654 = vsub.f32 %v72, %v653
    %v655 = vand.u32 %v654, 4294901760
    %v656 = vsub.f32 %v654, %v655
    %v657 = vand.u32 %v656, 4294901760
    %658 = vmatmul.mubr.f32.gmra.mrb[0].mxu0 %v657
    %v659 = vpop.f32.mrb[0].mxu0
    %v660 = vadd.f32 0.0, %v659
    %v661 = vpop.f32.mrb[0].mxu0
    %662 = vdwg.mxu0
    %663 = vmatprep.subr.mxu0 0.0
    %v664 = vand.u32 %v63, 4294901760
    %v665 = vsub.f32 %v63, %v664
    %v666 = vand.u32 %v665, 4294901760
    %v667 = vsub.f32 %v665, %v666
    %v668 = vand.u32 %v667, 4294901760
    %669 = vmatpush1.msra.mxu0 %v668
    %670 = vmatprep.subr.mxu0 0.0
    %v671 = vand.u32 %v64, 4294901760
    %v672 = vsub.f32 %v64, %v671
    %v673 = vand.u32 %v672, 4294901760
    %v674 = vsub.f32 %v672, %v673
    %v675 = vand.u32 %v674, 4294901760
    %676 = vmatpush1.msra.mxu0 %v675
    %677 = vmatprep.subr.mxu0 0.0
    %v678 = vand.u32 %v65, 4294901760
    %v679 = vsub.f32 %v65, %v678
    %v680 = vand.u32 %v679, 4294901760
    %v681 = vsub.f32 %v679, %v680
    %v682 = vand.u32 %v681, 4294901760
    %683 = vmatpush1.msra.mxu0 %v682
    %684 = vmatprep.subr.mxu0 0.0
    %v685 = vand.u32 %v66, 4294901760
    %v686 = vsub.f32 %v66, %v685
    %v687 = vand.u32 %v686, 4294901760
    %v688 = vsub.f32 %v686, %v687
    %v689 = vand.u32 %v688, 4294901760
    %690 = vmatpush1.msra.mxu0 %v689
    %691 = vmatprep.subr.mxu0 0.0
    %692 = vmatpush1.msra.mxu0 0.0
    %693 = vmatprep.subr.mxu0 0.0
    %694 = vmatpush1.msra.mxu0 0.0
    %695 = vmatprep.subr.mxu0 0.0
    %696 = vmatpush1.msra.mxu0 0.0
    %697 = vmatprep.subr.mxu0 0.0
    %698 = vmatpush1.msra.mxu0 0.0
    %699 = vmatprep.subr.mxu0 0.0
    %700 = vmatpush1.msra.mxu0 0.0
    %701 = vmatprep.subr.mxu0 0.0
    %702 = vmatpush1.msra.mxu0 0.0
    %703 = vmatprep.subr.mxu0 0.0
    %704 = vmatpush1.msra.mxu0 0.0
    %705 = vmatprep.subr.mxu0 0.0
    %706 = vmatpush1.msra.mxu0 0.0
    %707 = vmatprep.subr.mxu0 0.0
    %708 = vmatpush1.msra.mxu0 0.0
    %709 = vmatprep.subr.mxu0 0.0
    %710 = vmatpush1.msra.mxu0 0.0
    %711 = vmatprep.subr.mxu0 0.0
    %712 = vmatpush1.msra.mxu0 0.0
    %713 = vmatprep.subr.mxu0 0.0
    %714 = vmatpush1.msra.mxu0 0.0
    %715 = vmatprep.subr.mxu0 0.0
    %716 = vmatpush1.msra.mxu0 0.0
    %717 = vmatprep.subr.mxu0 0.0
    %718 = vmatpush1.msra.mxu0 0.0
    %719 = vmatprep.subr.mxu0 0.0
    %720 = vmatpush1.msra.mxu0 0.0
    %721 = vmatprep.subr.mxu0 0.0
    %722 = vmatpush1.msra.mxu0 0.0
    %723 = vmatprep.subr.mxu0 0.0
    %724 = vmatpush1.msra.mxu0 0.0
    %725 = vmatprep.subr.mxu0 0.0
    %726 = vmatpush1.msra.mxu0 0.0
    %727 = vmatprep.subr.mxu0 0.0
    %728 = vmatpush1.msra.mxu0 0.0
    %729 = vmatprep.subr.mxu0 0.0
    %730 = vmatpush1.msra.mxu0 0.0
    %731 = vmatprep.subr.mxu0 0.0
    %732 = vmatpush1.msra.mxu0 0.0
    %733 = vmatprep.subr.mxu0 0.0
    %734 = vmatpush1.msra.mxu0 0.0
    %735 = vmatprep.subr.mxu0 0.0
    %736 = vmatpush1.msra.mxu0 0.0
    %737 = vmatprep.subr.mxu0 0.0
    %738 = vmatpush1.msra.mxu0 0.0
    %739 = vmatprep.subr.mxu0 0.0
    %740 = vmatpush1.msra.mxu0 0.0
    %741 = vmatprep.subr.mxu0 0.0
    %742 = vmatpush1.msra.mxu0 0.0
    %743 = vmatprep.subr.mxu0 0.0
    %744 = vmatpush1.msra.mxu0 0.0
    %745 = vmatprep.subr.mxu0 0.0
    %746 = vmatpush1.msra.mxu0 0.0
    %747 = vmatprep.mubr.f32.mxu0 0.0
    %v748 = vand.u32 %v72, 4294901760
    %749 = vmatmul.mubr.f32.gmra.mrb[0].mxu0 %v748
    %v750 = vpop.f32.mrb[0].mxu0
    %v751 = vadd.f32 %v660, %v750
    %v752 = vpop.f32.mrb[0].mxu0
    %753 = vdwg.mxu0
    %754 = vmatprep.subr.mxu0 0.0
    %v755 = vand.u32 %v63, 4294901760
    %v756 = vsub.f32 %v63, %v755
    %757 = vmatpush1.msra.mxu0 %v756
    %758 = vmatprep.subr.mxu0 0.0
    %v759 = vand.u32 %v64, 4294901760
    %v760 = vsub.f32 %v64, %v759
    %761 = vmatpush1.msra.mxu0 %v760
    %762 = vmatprep.subr.mxu0 0.0
    %v763 = vand.u32 %v65, 4294901760
    %v764 = vsub.f32 %v65, %v763
    %765 = vmatpush1.msra.mxu0 %v764
    %766 = vmatprep.subr.mxu0 0.0
    %v767 = vand.u32 %v66, 4294901760
    %v768 = vsub.f32 %v66, %v767
    %769 = vmatpush1.msra.mxu0 %v768
    %770 = vmatprep.subr.mxu0 0.0
    %771 = vmatpush1.msra.mxu0 0.0
    %772 = vmatprep.subr.mxu0 0.0
    %773 = vmatpush1.msra.mxu0 0.0
    %774 = vmatprep.subr.mxu0 0.0
    %775 = vmatpush1.msra.mxu0 0.0
    %776 = vmatprep.subr.mxu0 0.0
    %777 = vmatpush1.msra.mxu0 0.0
    %778 = vmatprep.subr.mxu0 0.0
    %779 = vmatpush1.msra.mxu0 0.0
    %780 = vmatprep.subr.mxu0 0.0
    %781 = vmatpush1.msra.mxu0 0.0
    %782 = vmatprep.subr.mxu0 0.0
    %783 = vmatpush1.msra.mxu0 0.0
    %784 = vmatprep.subr.mxu0 0.0
    %785 = vmatpush1.msra.mxu0 0.0
    %786 = vmatprep.subr.mxu0 0.0
    %787 = vmatpush1.msra.mxu0 0.0
    %788 = vmatprep.subr.mxu0 0.0
    %789 = vmatpush1.msra.mxu0 0.0
    %790 = vmatprep.subr.mxu0 0.0
    %791 = vmatpush1.msra.mxu0 0.0
    %792 = vmatprep.subr.mxu0 0.0
    %793 = vmatpush1.msra.mxu0 0.0
    %794 = vmatprep.subr.mxu0 0.0
    %795 = vmatpush1.msra.mxu0 0.0
    %796 = vmatprep.subr.mxu0 0.0
    %797 = vmatpush1.msra.mxu0 0.0
    %798 = vmatprep.subr.mxu0 0.0
    %799 = vmatpush1.msra.mxu0 0.0
    %800 = vmatprep.subr.mxu0 0.0
    %801 = vmatpush1.msra.mxu0 0.0
    %802 = vmatprep.subr.mxu0 0.0
    %803 = vmatpush1.msra.mxu0 0.0
    %804 = vmatprep.subr.mxu0 0.0
    %805 = vmatpush1.msra.mxu0 0.0
    %806 = vmatprep.subr.mxu0 0.0
    %807 = vmatpush1.msra.mxu0 0.0
    %808 = vmatprep.subr.mxu0 0.0
    %809 = vmatpush1.msra.mxu0 0.0
    %810 = vmatprep.subr.mxu0 0.0
    %811 = vmatpush1.msra.mxu0 0.0
    %812 = vmatprep.subr.mxu0 0.0
    %813 = vmatpush1.msra.mxu0 0.0
    %814 = vmatprep.subr.mxu0 0.0
    %815 = vmatpush1.msra.mxu0 0.0
    %816 = vmatprep.subr.mxu0 0.0
    %817 = vmatpush1.msra.mxu0 0.0
    %818 = vmatprep.subr.mxu0 0.0
    %819 = vmatpush1.msra.mxu0 0.0
    %820 = vmatprep.subr.mxu0 0.0
    %821 = vmatpush1.msra.mxu0 0.0
    %822 = vmatprep.subr.mxu0 0.0
    %823 = vmatpush1.msra.mxu0 0.0
    %824 = vmatprep.subr.mxu0 0.0
    %825 = vmatpush1.msra.mxu0 0.0
    %826 = vmatprep.mubr.f32.mxu0 0.0
    %v827 = vand.u32 %v72, 4294901760
    %v828 = vsub.f32 %v72, %v827
    %829 = vmatmul.mubr.f32.gmra.mrb[0].mxu0 %v828
    %v830 = vpop.f32.mrb[0].mxu0
    %v831 = vadd.f32 %v751, %v830
    %v832 = vpop.f32.mrb[0].mxu0
    %833 = vdwg.mxu0
    %834 = vmatprep.subr.mxu0 0.0
    %v835 = vand.u32 %v63, 4294901760
    %836 = vmatpush1.msra.mxu0 %v835
    %837 = vmatprep.subr.mxu0 0.0
    %v838 = vand.u32 %v64, 4294901760
    %839 = vmatpush1.msra.mxu0 %v838
    %840 = vmatprep.subr.mxu0 0.0
    %v841 = vand.u32 %v65, 4294901760
    %842 = vmatpush1.msra.mxu0 %v841
    %843 = vmatprep.subr.mxu0 0.0
    %v844 = vand.u32 %v66, 4294901760
    %845 = vmatpush1.msra.mxu0 %v844
    %846 = vmatprep.subr.mxu0 0.0
    %847 = vmatpush1.msra.mxu0 0.0
    %848 = vmatprep.subr.mxu0 0.0
    %849 = vmatpush1.msra.mxu0 0.0
    %850 = vmatprep.subr.mxu0 0.0
    %851 = vmatpush1.msra.mxu0 0.0
    %852 = vmatprep.subr.mxu0 0.0
    %853 = vmatpush1.msra.mxu0 0.0
    %854 = vmatprep.subr.mxu0 0.0
    %855 = vmatpush1.msra.mxu0 0.0
    %856 = vmatprep.subr.mxu0 0.0
    %857 = vmatpush1.msra.mxu0 0.0
    %858 = vmatprep.subr.mxu0 0.0
    %859 = vmatpush1.msra.mxu0 0.0
    %860 = vmatprep.subr.mxu0 0.0
    %861 = vmatpush1.msra.mxu0 0.0
    %862 = vmatprep.subr.mxu0 0.0
    %863 = vmatpush1.msra.mxu0 0.0
    %864 = vmatprep.subr.mxu0 0.0
    %865 = vmatpush1.msra.mxu0 0.0
    %866 = vmatprep.subr.mxu0 0.0
    %867 = vmatpush1.msra.mxu0 0.0
    %868 = vmatprep.subr.mxu0 0.0
    %869 = vmatpush1.msra.mxu0 0.0
    %870 = vmatprep.subr.mxu0 0.0
    %871 = vmatpush1.msra.mxu0 0.0
    %872 = vmatprep.subr.mxu0 0.0
    %873 = vmatpush1.msra.mxu0 0.0
    %874 = vmatprep.subr.mxu0 0.0
    %875 = vmatpush1.msra.mxu0 0.0
    %876 = vmatprep.subr.mxu0 0.0
    %877 = vmatpush1.msra.mxu0 0.0
    %878 = vmatprep.subr.mxu0 0.0
    %879 = vmatpush1.msra.mxu0 0.0
    %880 = vmatprep.subr.mxu0 0.0
    %881 = vmatpush1.msra.mxu0 0.0
    %882 = vmatprep.subr.mxu0 0.0
    %883 = vmatpush1.msra.mxu0 0.0
    %884 = vmatprep.subr.mxu0 0.0
    %885 = vmatpush1.msra.mxu0 0.0
    %886 = vmatprep.subr.mxu0 0.0
    %887 = vmatpush1.msra.mxu0 0.0
    %888 = vmatprep.subr.mxu0 0.0
    %889 = vmatpush1.msra.mxu0 0.0
    %890 = vmatprep.subr.mxu0 0.0
    %891 = vmatpush1.msra.mxu0 0.0
    %892 = vmatprep.subr.mxu0 0.0
    %893 = vmatpush1.msra.mxu0 0.0
    %894 = vmatprep.subr.mxu0 0.0
    %895 = vmatpush1.msra.mxu0 0.0
    %896 = vmatprep.subr.mxu0 0.0
    %897 = vmatpush1.msra.mxu0 0.0
    %898 = vmatprep.subr.mxu0 0.0
    %899 = vmatpush1.msra.mxu0 0.0
    %900 = vmatprep.subr.mxu0 0.0
    %901 = vmatpush1.msra.mxu0 0.0
    %902 = vmatprep.mubr.f32.mxu0 0.0
    %v903 = vand.u32 %v72, 4294901760
    %v904 = vsub.f32 %v72, %v903
    %v905 = vand.u32 %v904, 4294901760
    %906 = vmatmul.mubr.f32.gmra.mrb[0].mxu0 %v905
    %v907 = vpop.f32.mrb[0].mxu0
    %v908 = vadd.f32 %v831, %v907
    %v909 = vpop.f32.mrb[0].mxu0
    %910 = vdwg.mxu0
    %911 = vmatprep.subr.mxu0 0.0
    %v912 = vand.u32 %v63, 4294901760
    %v913 = vsub.f32 %v63, %v912
    %v914 = vand.u32 %v913, 4294901760
    %915 = vmatpush1.msra.mxu0 %v914
    %916 = vmatprep.subr.mxu0 0.0
    %v917 = vand.u32 %v64, 4294901760
    %v918 = vsub.f32 %v64, %v917
    %v919 = vand.u32 %v918, 4294901760
    %920 = vmatpush1.msra.mxu0 %v919
    %921 = vmatprep.subr.mxu0 0.0
    %v922 = vand.u32 %v65, 4294901760
    %v923 = vsub.f32 %v65, %v922
    %v924 = vand.u32 %v923, 4294901760
    %925 = vmatpush1.msra.mxu0 %v924
    %926 = vmatprep.subr.mxu0 0.0
    %v927 = vand.u32 %v66, 4294901760
    %v928 = vsub.f32 %v66, %v927
    %v929 = vand.u32 %v928, 4294901760
    %930 = vmatpush1.msra.mxu0 %v929
    %931 = vmatprep.subr.mxu0 0.0
    %932 = vmatpush1.msra.mxu0 0.0
    %933 = vmatprep.subr.mxu0 0.0
    %934 = vmatpush1.msra.mxu0 0.0
    %935 = vmatprep.subr.mxu0 0.0
    %936 = vmatpush1.msra.mxu0 0.0
    %937 = vmatprep.subr.mxu0 0.0
    %938 = vmatpush1.msra.mxu0 0.0
    %939 = vmatprep.subr.mxu0 0.0
    %940 = vmatpush1.msra.mxu0 0.0
    %941 = vmatprep.subr.mxu0 0.0
    %942 = vmatpush1.msra.mxu0 0.0
    %943 = vmatprep.subr.mxu0 0.0
    %944 = vmatpush1.msra.mxu0 0.0
    %945 = vmatprep.subr.mxu0 0.0
    %946 = vmatpush1.msra.mxu0 0.0
    %947 = vmatprep.subr.mxu0 0.0
    %948 = vmatpush1.msra.mxu0 0.0
    %949 = vmatprep.subr.mxu0 0.0
    %950 = vmatpush1.msra.mxu0 0.0
    %951 = vmatprep.subr.mxu0 0.0
    %952 = vmatpush1.msra.mxu0 0.0
    %953 = vmatprep.subr.mxu0 0.0
    %954 = vmatpush1.msra.mxu0 0.0
    %955 = vmatprep.subr.mxu0 0.0
    %956 = vmatpush1.msra.mxu0 0.0
    %957 = vmatprep.subr.mxu0 0.0
    %958 = vmatpush1.msra.mxu0 0.0
    %959 = vmatprep.subr.mxu0 0.0
    %960 = vmatpush1.msra.mxu0 0.0
    %961 = vmatprep.subr.mxu0 0.0
    %962 = vmatpush1.msra.mxu0 0.0
    %963 = vmatprep.subr.mxu0 0.0
    %964 = vmatpush1.msra.mxu0 0.0
    %965 = vmatprep.subr.mxu0 0.0
    %966 = vmatpush1.msra.mxu0 0.0
    %967 = vmatprep.subr.mxu0 0.0
    %968 = vmatpush1.msra.mxu0 0.0
    %969 = vmatprep.subr.mxu0 0.0
    %970 = vmatpush1.msra.mxu0 0.0
    %971 = vmatprep.subr.mxu0 0.0
    %972 = vmatpush1.msra.mxu0 0.0
    %973 = vmatprep.subr.mxu0 0.0
    %974 = vmatpush1.msra.mxu0 0.0
    %975 = vmatprep.subr.mxu0 0.0
    %976 = vmatpush1.msra.mxu0 0.0
    %977 = vmatprep.subr.mxu0 0.0
    %978 = vmatpush1.msra.mxu0 0.0
    %979 = vmatprep.subr.mxu0 0.0
    %980 = vmatpush1.msra.mxu0 0.0
    %981 = vmatprep.subr.mxu0 0.0
    %982 = vmatpush1.msra.mxu0 0.0
    %983 = vmatprep.subr.mxu0 0.0
    %984 = vmatpush1.msra.mxu0 0.0
    %985 = vmatprep.subr.mxu0 0.0
    %986 = vmatpush1.msra.mxu0 0.0
    %987 = vmatprep.mubr.f32.mxu0 0.0
    %v988 = vand.u32 %v72, 4294901760
    %989 = vmatmul.mubr.f32.gmra.mrb[0].mxu0 %v988
    %v990 = vpop.f32.mrb[0].mxu0
    %v991 = vadd.f32 %v908, %v990
    %v992 = vpop.f32.mrb[0].mxu0
    %993 = vdwg.mxu0
    %994 = vmatprep.subr.mxu0 0.0
    %v995 = vand.u32 %v63, 4294901760
    %996 = vmatpush1.msra.mxu0 %v995
    %997 = vmatprep.subr.mxu0 0.0
    %v998 = vand.u32 %v64, 4294901760
    %999 = vmatpush1.msra.mxu0 %v998
    %1000 = vmatprep.subr.mxu0 0.0
    %v1001 = vand.u32 %v65, 4294901760
    %1002 = vmatpush1.msra.mxu0 %v1001
    %1003 = vmatprep.subr.mxu0 0.0
    %v1004 = vand.u32 %v66, 4294901760
    %1005 = vmatpush1.msra.mxu0 %v1004
    %1006 = vmatprep.subr.mxu0 0.0
    %1007 = vmatpush1.msra.mxu0 0.0
    %1008 = vmatprep.subr.mxu0 0.0
    %1009 = vmatpush1.msra.mxu0 0.0
    %1010 = vmatprep.subr.mxu0 0.0
    %1011 = vmatpush1.msra.mxu0 0.0
    %1012 = vmatprep.subr.mxu0 0.0
    %1013 = vmatpush1.msra.mxu0 0.0
    %1014 = vmatprep.subr.mxu0 0.0
    %1015 = vmatpush1.msra.mxu0 0.0
    %1016 = vmatprep.subr.mxu0 0.0
    %1017 = vmatpush1.msra.mxu0 0.0
    %1018 = vmatprep.subr.mxu0 0.0
    %1019 = vmatpush1.msra.mxu0 0.0
    %1020 = vmatprep.subr.mxu0 0.0
    %1021 = vmatpush1.msra.mxu0 0.0
    %1022 = vmatprep.subr.mxu0 0.0
    %1023 = vmatpush1.msra.mxu0 0.0
    %1024 = vmatprep.subr.mxu0 0.0
    %1025 = vmatpush1.msra.mxu0 0.0
    %1026 = vmatprep.subr.mxu0 0.0
    %1027 = vmatpush1.msra.mxu0 0.0
    %1028 = vmatprep.subr.mxu0 0.0
    %1029 = vmatpush1.msra.mxu0 0.0
    %1030 = vmatprep.subr.mxu0 0.0
    %1031 = vmatpush1.msra.mxu0 0.0
    %1032 = vmatprep.subr.mxu0 0.0
    %1033 = vmatpush1.msra.mxu0 0.0
    %1034 = vmatprep.subr.mxu0 0.0
    %1035 = vmatpush1.msra.mxu0 0.0
    %1036 = vmatprep.subr.mxu0 0.0
    %1037 = vmatpush1.msra.mxu0 0.0
    %1038 = vmatprep.subr.mxu0 0.0
    %1039 = vmatpush1.msra.mxu0 0.0
    %1040 = vmatprep.subr.mxu0 0.0
    %1041 = vmatpush1.msra.mxu0 0.0
    %1042 = vmatprep.subr.mxu0 0.0
    %1043 = vmatpush1.msra.mxu0 0.0
    %1044 = vmatprep.subr.mxu0 0.0
    %1045 = vmatpush1.msra.mxu0 0.0
    %1046 = vmatprep.subr.mxu0 0.0
    %1047 = vmatpush1.msra.mxu0 0.0
    %1048 = vmatprep.subr.mxu0 0.0
    %1049 = vmatpush1.msra.mxu0 0.0
    %1050 = vmatprep.subr.mxu0 0.0
    %1051 = vmatpush1.msra.mxu0 0.0
    %1052 = vmatprep.subr.mxu0 0.0
    %1053 = vmatpush1.msra.mxu0 0.0
    %1054 = vmatprep.subr.mxu0 0.0
    %1055 = vmatpush1.msra.mxu0 0.0
    %1056 = vmatprep.subr.mxu0 0.0
    %1057 = vmatpush1.msra.mxu0 0.0
    %1058 = vmatprep.subr.mxu0 0.0
    %1059 = vmatpush1.msra.mxu0 0.0
    %1060 = vmatprep.subr.mxu0 0.0
    %1061 = vmatpush1.msra.mxu0 0.0
    %1062 = vmatprep.mubr.f32.mxu0 0.0
    %v1063 = vand.u32 %v72, 4294901760
    %1064 = vmatmul.mubr.f32.gmra.mrb[0].mxu0 %v1063
    %v1065 = vpop.f32.mrb[0].mxu0
    %v1066 = vadd.f32 %v991, %v1065
    %v1067 = vpop.f32.mrb[0].mxu0
    %1068 = vdwg.mxu0
    %v1070 = vrot.slane %v69, 2
    %v1072 = vadd.f32 %v1070, %v1066
    %v1073 = vxor.u32 %v1072, 2147483648
    %v1074 = vmul.f32 %v1073, 1.442695
    %v1075 = vpow.pop %v1074
    %v1076 = vadd.f32 %v1075, 1.0
    %v1077 = vrcp.pop %v1076
    %v1078 = vmul.f32 1.0, %v1077
    %v1079 = vtanh.pop %v1072
    %v1080 = vmul.f32 %v1078, 0.0
    %1082 = vrot.lane.b32.xlu0 %v1079, 64
    %v1083 = vpop.permute.xlu0 %1082
    %v1085 = vmul.f32 %v1078, %v1083
    %1087 = vrot.lane.b32.xlu0 %v1085, 32
    %v1088 = vpop.permute.xlu0 %1087
    %v1090 = vadd.f32 %v1080, %v1088
    %v1091 = vtanh.pop %v1090
    %1093 = vrot.lane.b32.xlu0 %v1091, 64
    %v1094 = vpop.permute.xlu0 %1093
    %v1096 = vmul.f32 %v1078, %v1094
    %v1099 = vunpack.c.l.s4 1983009808
    %v1100 = vunpack.c.0.s8 %v1099
    %v1101 = vlaneseq
    %v1102 = vshrl.u32 %v1101, 7
    %v1103 = vsub.s32 %v1100, %v1102
    %v1104 = vrot.slane %v583, %v1103
    %1105 = vrot.lane.b32.xlu0 %v1104, 32
    %v1106 = vpop.permute.xlu0 %1105
    %vm1108 = vcmask 254976
    %1109 = vst.msk [vmem:[#allocation8] sm:$0x3] %vm1108, %v1106
    %v1112 = vunpack.c.l.s4 1983009808
    %v1113 = vunpack.c.0.s8 %v1112
    %v1114 = vlaneseq
    %v1115 = vshrl.u32 %v1114, 7
    %v1116 = vsub.s32 %v1113, %v1115
    %v1117 = vrot.slane %v1096, %v1116
    %1118 = vrot.lane.b32.xlu0 %v1117, 32
    %v1119 = vpop.permute.xlu0 %1118
    %s1121 = scalar_lea.vmem [#allocation9], 14
    %1122 = vst.msk [vmem:[%s1121] sm:$0x3] %vm1108, %v1119
    %s1123 = scalar_lea.vmem [#allocation2], 4
    %v1124 = vld [vmem:[%s1123] sm:$0xf]
    %s1125 = scalar_lea.vmem [#allocation2], 24
    %v1126 = vld [vmem:[%s1125] sm:$0xf]
    %v1127 = vsel %vm70, %v1106, 0
    %1129 = vmatprep.subr.mxu0 0.0
    %v1130 = vand.u32 %v59, 4294901760
    %1131 = vmatpush1.msra.mxu0 %v1130
    %1132 = vmatprep.subr.mxu0 0.0
    %v1133 = vand.u32 %v60, 4294901760
    %1134 = vmatpush1.msra.mxu0 %v1133
    %1135 = vmatprep.subr.mxu0 0.0
    %v1136 = vand.u32 %v61, 4294901760
    %1137 = vmatpush1.msra.mxu0 %v1136
    %1138 = vmatprep.subr.mxu0 0.0
    %v1139 = vand.u32 %v62, 4294901760
    %1140 = vmatpush1.msra.mxu0 %v1139
    %1141 = vmatprep.subr.mxu0 0.0
    %1142 = vmatpush1.msra.mxu0 0.0
    %1143 = vmatprep.subr.mxu0 0.0
    %1144 = vmatpush1.msra.mxu0 0.0
    %1145 = vmatprep.subr.mxu0 0.0
    %1146 = vmatpush1.msra.mxu0 0.0
    %1147 = vmatprep.subr.mxu0 0.0
    %1148 = vmatpush1.msra.mxu0 0.0
    %1149 = vmatprep.subr.mxu0 0.0
    %1150 = vmatpush1.msra.mxu0 0.0
    %1151 = vmatprep.subr.mxu0 0.0
    %1152 = vmatpush1.msra.mxu0 0.0
    %1153 = vmatprep.subr.mxu0 0.0
    %1154 = vmatpush1.msra.mxu0 0.0
    %1155 = vmatprep.subr.mxu0 0.0
    %1156 = vmatpush1.msra.mxu0 0.0
    %1157 = vmatprep.subr.mxu0 0.0
    %1158 = vmatpush1.msra.mxu0 0.0
    %1159 = vmatprep.subr.mxu0 0.0
    %1160 = vmatpush1.msra.mxu0 0.0
    %1161 = vmatprep.subr.mxu0 0.0
    %1162 = vmatpush1.msra.mxu0 0.0
    %1163 = vmatprep.subr.mxu0 0.0
    %1164 = vmatpush1.msra.mxu0 0.0
    %1165 = vmatprep.subr.mxu0 0.0
    %1166 = vmatpush1.msra.mxu0 0.0
    %1167 = vmatprep.subr.mxu0 0.0
    %1168 = vmatpush1.msra.mxu0 0.0
    %1169 = vmatprep.subr.mxu0 0.0
    %1170 = vmatpush1.msra.mxu0 0.0
    %1171 = vmatprep.subr.mxu0 0.0
    %1172 = vmatpush1.msra.mxu0 0.0
    %1173 = vmatprep.subr.mxu0 0.0
    %1174 = vmatpush1.msra.mxu0 0.0
    %1175 = vmatprep.subr.mxu0 0.0
    %1176 = vmatpush1.msra.mxu0 0.0
    %1177 = vmatprep.subr.mxu0 0.0
    %1178 = vmatpush1.msra.mxu0 0.0
    %1179 = vmatprep.subr.mxu0 0.0
    %1180 = vmatpush1.msra.mxu0 0.0
    %1181 = vmatprep.subr.mxu0 0.0
    %1182 = vmatpush1.msra.mxu0 0.0
    %1183 = vmatprep.subr.mxu0 0.0
    %1184 = vmatpush1.msra.mxu0 0.0
    %1185 = vmatprep.subr.mxu0 0.0
    %1186 = vmatpush1.msra.mxu0 0.0
    %1187 = vmatprep.subr.mxu0 0.0
    %1188 = vmatpush1.msra.mxu0 0.0
    %1189 = vmatprep.subr.mxu0 0.0
    %1190 = vmatpush1.msra.mxu0 0.0
    %1191 = vmatprep.subr.mxu0 0.0
    %1192 = vmatpush1.msra.mxu0 0.0
    %1193 = vmatprep.subr.mxu0 0.0
    %1194 = vmatpush1.msra.mxu0 0.0
    %1195 = vmatprep.subr.mxu0 0.0
    %1196 = vmatpush1.msra.mxu0 0.0
    %1197 = vmatprep.mubr.f32.mxu0 0.0
    %v1198 = vand.u32 %v1127, 4294901760
    %v1199 = vsub.f32 %v1127, %v1198
    %v1200 = vand.u32 %v1199, 4294901760
    %v1201 = vsub.f32 %v1199, %v1200
    %v1202 = vand.u32 %v1201, 4294901760
    %1203 = vmatmul.mubr.f32.gmra.mrb[0].mxu0 %v1202
    %v1204 = vpop.f32.mrb[0].mxu0
    %v1205 = vadd.f32 0.0, %v1204
    %v1206 = vpop.f32.mrb[0].mxu0
    %1207 = vdwg.mxu0
    %1208 = vmatprep.subr.mxu0 0.0
    %v1209 = vand.u32 %v59, 4294901760
    %v1210 = vsub.f32 %v59, %v1209
    %v1211 = vand.u32 %v1210, 4294901760
    %v1212 = vsub.f32 %v1210, %v1211
    %v1213 = vand.u32 %v1212, 4294901760
    %1214 = vmatpush1.msra.mxu0 %v1213
    %1215 = vmatprep.subr.mxu0 0.0
    %v1216 = vand.u32 %v60, 4294901760
    %v1217 = vsub.f32 %v60, %v1216
    %v1218 = vand.u32 %v1217, 4294901760
    %v1219 = vsub.f32 %v1217, %v1218
    %v1220 = vand.u32 %v1219, 4294901760
    %1221 = vmatpush1.msra.mxu0 %v1220
    %1222 = vmatprep.subr.mxu0 0.0
    %v1223 = vand.u32 %v61, 4294901760
    %v1224 = vsub.f32 %v61, %v1223
    %v1225 = vand.u32 %v1224, 4294901760
    %v1226 = vsub.f32 %v1224, %v1225
    %v1227 = vand.u32 %v1226, 4294901760
    %1228 = vmatpush1.msra.mxu0 %v1227
    %1229 = vmatprep.subr.mxu0 0.0
    %v1230 = vand.u32 %v62, 4294901760
    %v1231 = vsub.f32 %v62, %v1230
    %v1232 = vand.u32 %v1231, 4294901760
    %v1233 = vsub.f32 %v1231, %v1232
    %v1234 = vand.u32 %v1233, 4294901760
    %1235 = vmatpush1.msra.mxu0 %v1234
    %1236 = vmatprep.subr.mxu0 0.0
    %1237 = vmatpush1.msra.mxu0 0.0
    %1238 = vmatprep.subr.mxu0 0.0
    %1239 = vmatpush1.msra.mxu0 0.0
    %1240 = vmatprep.subr.mxu0 0.0
    %1241 = vmatpush1.msra.mxu0 0.0
    %1242 = vmatprep.subr.mxu0 0.0
    %1243 = vmatpush1.msra.mxu0 0.0
    %1244 = vmatprep.subr.mxu0 0.0
    %1245 = vmatpush1.msra.mxu0 0.0
    %1246 = vmatprep.subr.mxu0 0.0
    %1247 = vmatpush1.msra.mxu0 0.0
    %1248 = vmatprep.subr.mxu0 0.0
    %1249 = vmatpush1.msra.mxu0 0.0
    %1250 = vmatprep.subr.mxu0 0.0
    %1251 = vmatpush1.msra.mxu0 0.0
    %1252 = vmatprep.subr.mxu0 0.0
    %1253 = vmatpush1.msra.mxu0 0.0
    %1254 = vmatprep.subr.mxu0 0.0
    %1255 = vmatpush1.msra.mxu0 0.0
    %1256 = vmatprep.subr.mxu0 0.0
    %1257 = vmatpush1.msra.mxu0 0.0
    %1258 = vmatprep.subr.mxu0 0.0
    %1259 = vmatpush1.msra.mxu0 0.0
    %1260 = vmatprep.subr.mxu0 0.0
    %1261 = vmatpush1.msra.mxu0 0.0
    %1262 = vmatprep.subr.mxu0 0.0
    %1263 = vmatpush1.msra.mxu0 0.0
    %1264 = vmatprep.subr.mxu0 0.0
    %1265 = vmatpush1.msra.mxu0 0.0
    %1266 = vmatprep.subr.mxu0 0.0
    %1267 = vmatpush1.msra.mxu0 0.0
    %1268 = vmatprep.subr.mxu0 0.0
    %1269 = vmatpush1.msra.mxu0 0.0
    %1270 = vmatprep.subr.mxu0 0.0
    %1271 = vmatpush1.msra.mxu0 0.0
    %1272 = vmatprep.subr.mxu0 0.0
    %1273 = vmatpush1.msra.mxu0 0.0
    %1274 = vmatprep.subr.mxu0 0.0
    %1275 = vmatpush1.msra.mxu0 0.0
    %1276 = vmatprep.subr.mxu0 0.0
    %1277 = vmatpush1.msra.mxu0 0.0
    %1278 = vmatprep.subr.mxu0 0.0
    %1279 = vmatpush1.msra.mxu0 0.0
    %1280 = vmatprep.subr.mxu0 0.0
    %1281 = vmatpush1.msra.mxu0 0.0
    %1282 = vmatprep.subr.mxu0 0.0
    %1283 = vmatpush1.msra.mxu0 0.0
    %1284 = vmatprep.subr.mxu0 0.0
    %1285 = vmatpush1.msra.mxu0 0.0
    %1286 = vmatprep.subr.mxu0 0.0
    %1287 = vmatpush1.msra.mxu0 0.0
    %1288 = vmatprep.subr.mxu0 0.0
    %1289 = vmatpush1.msra.mxu0 0.0
    %1290 = vmatprep.subr.mxu0 0.0
    %1291 = vmatpush1.msra.mxu0 0.0
    %1292 = vmatprep.mubr.f32.mxu0 0.0
    %v1293 = vand.u32 %v1127, 4294901760
    %1294 = vmatmul.mubr.f32.gmra.mrb[0].mxu0 %v1293
    %v1295 = vpop.f32.mrb[0].mxu0
    %v1296 = vadd.f32 %v1205, %v1295
    %v1297 = vpop.f32.mrb[0].mxu0
    %1298 = vdwg.mxu0
    %1299 = vmatprep.subr.mxu0 0.0
    %v1300 = vand.u32 %v59, 4294901760
    %v1301 = vsub.f32 %v59, %v1300
    %1302 = vmatpush1.msra.mxu0 %v1301
    %1303 = vmatprep.subr.mxu0 0.0
    %v1304 = vand.u32 %v60, 4294901760
    %v1305 = vsub.f32 %v60, %v1304
    %1306 = vmatpush1.msra.mxu0 %v1305
    %1307 = vmatprep.subr.mxu0 0.0
    %v1308 = vand.u32 %v61, 4294901760
    %v1309 = vsub.f32 %v61, %v1308
    %1310 = vmatpush1.msra.mxu0 %v1309
    %1311 = vmatprep.subr.mxu0 0.0
    %v1312 = vand.u32 %v62, 4294901760
    %v1313 = vsub.f32 %v62, %v1312
    %1314 = vmatpush1.msra.mxu0 %v1313
    %1315 = vmatprep.subr.mxu0 0.0
    %1316 = vmatpush1.msra.mxu0 0.0
    %1317 = vmatprep.subr.mxu0 0.0
    %1318 = vmatpush1.msra.mxu0 0.0
    %1319 = vmatprep.subr.mxu0 0.0
    %1320 = vmatpush1.msra.mxu0 0.0
    %1321 = vmatprep.subr.mxu0 0.0
    %1322 = vmatpush1.msra.mxu0 0.0
    %1323 = vmatprep.subr.mxu0 0.0
    %1324 = vmatpush1.msra.mxu0 0.0
    %1325 = vmatprep.subr.mxu0 0.0
    %1326 = vmatpush1.msra.mxu0 0.0
    %1327 = vmatprep.subr.mxu0 0.0
    %1328 = vmatpush1.msra.mxu0 0.0
    %1329 = vmatprep.subr.mxu0 0.0
    %1330 = vmatpush1.msra.mxu0 0.0
    %1331 = vmatprep.subr.mxu0 0.0
    %1332 = vmatpush1.msra.mxu0 0.0
    %1333 = vmatprep.subr.mxu0 0.0
    %1334 = vmatpush1.msra.mxu0 0.0
    %1335 = vmatprep.subr.mxu0 0.0
    %1336 = vmatpush1.msra.mxu0 0.0
    %1337 = vmatprep.subr.mxu0 0.0
    %1338 = vmatpush1.msra.mxu0 0.0
    %1339 = vmatprep.subr.mxu0 0.0
    %1340 = vmatpush1.msra.mxu0 0.0
    %1341 = vmatprep.subr.mxu0 0.0
    %1342 = vmatpush1.msra.mxu0 0.0
    %1343 = vmatprep.subr.mxu0 0.0
    %1344 = vmatpush1.msra.mxu0 0.0
    %1345 = vmatprep.subr.mxu0 0.0
    %1346 = vmatpush1.msra.mxu0 0.0
    %1347 = vmatprep.subr.mxu0 0.0
    %1348 = vmatpush1.msra.mxu0 0.0
    %1349 = vmatprep.subr.mxu0 0.0
    %1350 = vmatpush1.msra.mxu0 0.0
    %1351 = vmatprep.subr.mxu0 0.0
    %1352 = vmatpush1.msra.mxu0 0.0
    %1353 = vmatprep.subr.mxu0 0.0
    %1354 = vmatpush1.msra.mxu0 0.0
    %1355 = vmatprep.subr.mxu0 0.0
    %1356 = vmatpush1.msra.mxu0 0.0
    %1357 = vmatprep.subr.mxu0 0.0
    %1358 = vmatpush1.msra.mxu0 0.0
    %1359 = vmatprep.subr.mxu0 0.0
    %1360 = vmatpush1.msra.mxu0 0.0
    %1361 = vmatprep.subr.mxu0 0.0
    %1362 = vmatpush1.msra.mxu0 0.0
    %1363 = vmatprep.subr.mxu0 0.0
    %1364 = vmatpush1.msra.mxu0 0.0
    %1365 = vmatprep.subr.mxu0 0.0
    %1366 = vmatpush1.msra.mxu0 0.0
    %1367 = vmatprep.subr.mxu0 0.0
    %1368 = vmatpush1.msra.mxu0 0.0
    %1369 = vmatprep.subr.mxu0 0.0
    %1370 = vmatpush1.msra.mxu0 0.0
    %1371 = vmatprep.mubr.f32.mxu0 0.0
    %v1372 = vand.u32 %v1127, 4294901760
    %v1373 = vsub.f32 %v1127, %v1372
    %1374 = vmatmul.mubr.f32.gmra.mrb[0].mxu0 %v1373
    %v1375 = vpop.f32.mrb[0].mxu0
    %v1376 = vadd.f32 %v1296, %v1375
    %v1377 = vpop.f32.mrb[0].mxu0
    %1378 = vdwg.mxu0
    %1379 = vmatprep.subr.mxu0 0.0
    %v1380 = vand.u32 %v59, 4294901760
    %1381 = vmatpush1.msra.mxu0 %v1380
    %1382 = vmatprep.subr.mxu0 0.0
    %v1383 = vand.u32 %v60, 4294901760
    %1384 = vmatpush1.msra.mxu0 %v1383
    %1385 = vmatprep.subr.mxu0 0.0
    %v1386 = vand.u32 %v61, 4294901760
    %1387 = vmatpush1.msra.mxu0 %v1386
    %1388 = vmatprep.subr.mxu0 0.0
    %v1389 = vand.u32 %v62, 4294901760
    %1390 = vmatpush1.msra.mxu0 %v1389
    %1391 = vmatprep.subr.mxu0 0.0
    %1392 = vmatpush1.msra.mxu0 0.0
    %1393 = vmatprep.subr.mxu0 0.0
    %1394 = vmatpush1.msra.mxu0 0.0
    %1395 = vmatprep.subr.mxu0 0.0
    %1396 = vmatpush1.msra.mxu0 0.0
    %1397 = vmatprep.subr.mxu0 0.0
    %1398 = vmatpush1.msra.mxu0 0.0
    %1399 = vmatprep.subr.mxu0 0.0
    %1400 = vmatpush1.msra.mxu0 0.0
    %1401 = vmatprep.subr.mxu0 0.0
    %1402 = vmatpush1.msra.mxu0 0.0
    %1403 = vmatprep.subr.mxu0 0.0
    %1404 = vmatpush1.msra.mxu0 0.0
    %1405 = vmatprep.subr.mxu0 0.0
    %1406 = vmatpush1.msra.mxu0 0.0
    %1407 = vmatprep.subr.mxu0 0.0
    %1408 = vmatpush1.msra.mxu0 0.0
    %1409 = vmatprep.subr.mxu0 0.0
    %1410 = vmatpush1.msra.mxu0 0.0
    %1411 = vmatprep.subr.mxu0 0.0
    %1412 = vmatpush1.msra.mxu0 0.0
    %1413 = vmatprep.subr.mxu0 0.0
    %1414 = vmatpush1.msra.mxu0 0.0
    %1415 = vmatprep.subr.mxu0 0.0
    %1416 = vmatpush1.msra.mxu0 0.0
    %1417 = vmatprep.subr.mxu0 0.0
    %1418 = vmatpush1.msra.mxu0 0.0
    %1419 = vmatprep.subr.mxu0 0.0
    %1420 = vmatpush1.msra.mxu0 0.0
    %1421 = vmatprep.subr.mxu0 0.0
    %1422 = vmatpush1.msra.mxu0 0.0
    %1423 = vmatprep.subr.mxu0 0.0
    %1424 = vmatpush1.msra.mxu0 0.0
    %1425 = vmatprep.subr.mxu0 0.0
    %1426 = vmatpush1.msra.mxu0 0.0
    %1427 = vmatprep.subr.mxu0 0.0
    %1428 = vmatpush1.msra.mxu0 0.0
    %1429 = vmatprep.subr.mxu0 0.0
    %1430 = vmatpush1.msra.mxu0 0.0
    %1431 = vmatprep.subr.mxu0 0.0
    %1432 = vmatpush1.msra.mxu0 0.0
    %1433 = vmatprep.subr.mxu0 0.0
    %1434 = vmatpush1.msra.mxu0 0.0
    %1435 = vmatprep.subr.mxu0 0.0
    %1436 = vmatpush1.msra.mxu0 0.0
    %1437 = vmatprep.subr.mxu0 0.0
    %1438 = vmatpush1.msra.mxu0 0.0
    %1439 = vmatprep.subr.mxu0 0.0
    %1440 = vmatpush1.msra.mxu0 0.0
    %1441 = vmatprep.subr.mxu0 0.0
    %1442 = vmatpush1.msra.mxu0 0.0
    %1443 = vmatprep.subr.mxu0 0.0
    %1444 = vmatpush1.msra.mxu0 0.0
    %1445 = vmatprep.subr.mxu0 0.0
    %1446 = vmatpush1.msra.mxu0 0.0
    %1447 = vmatprep.mubr.f32.mxu0 0.0
    %v1448 = vand.u32 %v1127, 4294901760
    %v1449 = vsub.f32 %v1127, %v1448
    %v1450 = vand.u32 %v1449, 4294901760
    %1451 = vmatmul.mubr.f32.gmra.mrb[0].mxu0 %v1450
    %v1452 = vpop.f32.mrb[0].mxu0
    %v1453 = vadd.f32 %v1376, %v1452
    %v1454 = vpop.f32.mrb[0].mxu0
    %1455 = vdwg.mxu0
    %1456 = vmatprep.subr.mxu0 0.0
    %v1457 = vand.u32 %v59, 4294901760
    %v1458 = vsub.f32 %v59, %v1457
    %v1459 = vand.u32 %v1458, 4294901760
    %1460 = vmatpush1.msra.mxu0 %v1459
    %1461 = vmatprep.subr.mxu0 0.0
    %v1462 = vand.u32 %v60, 4294901760
    %v1463 = vsub.f32 %v60, %v1462
    %v1464 = vand.u32 %v1463, 4294901760
    %1465 = vmatpush1.msra.mxu0 %v1464
    %1466 = vmatprep.subr.mxu0 0.0
    %v1467 = vand.u32 %v61, 4294901760
    %v1468 = vsub.f32 %v61, %v1467
    %v1469 = vand.u32 %v1468, 4294901760
    %1470 = vmatpush1.msra.mxu0 %v1469
    %1471 = vmatprep.subr.mxu0 0.0
    %v1472 = vand.u32 %v62, 4294901760
    %v1473 = vsub.f32 %v62, %v1472
    %v1474 = vand.u32 %v1473, 4294901760
    %1475 = vmatpush1.msra.mxu0 %v1474
    %1476 = vmatprep.subr.mxu0 0.0
    %1477 = vmatpush1.msra.mxu0 0.0
    %1478 = vmatprep.subr.mxu0 0.0
    %1479 = vmatpush1.msra.mxu0 0.0
    %1480 = vmatprep.subr.mxu0 0.0
    %1481 = vmatpush1.msra.mxu0 0.0
    %1482 = vmatprep.subr.mxu0 0.0
    %1483 = vmatpush1.msra.mxu0 0.0
    %1484 = vmatprep.subr.mxu0 0.0
    %1485 = vmatpush1.msra.mxu0 0.0
    %1486 = vmatprep.subr.mxu0 0.0
    %1487 = vmatpush1.msra.mxu0 0.0
    %1488 = vmatprep.subr.mxu0 0.0
    %1489 = vmatpush1.msra.mxu0 0.0
    %1490 = vmatprep.subr.mxu0 0.0
    %1491 = vmatpush1.msra.mxu0 0.0
    %1492 = vmatprep.subr.mxu0 0.0
    %1493 = vmatpush1.msra.mxu0 0.0
    %1494 = vmatprep.subr.mxu0 0.0
    %1495 = vmatpush1.msra.mxu0 0.0
    %1496 = vmatprep.subr.mxu0 0.0
    %1497 = vmatpush1.msra.mxu0 0.0
    %1498 = vmatprep.subr.mxu0 0.0
    %1499 = vmatpush1.msra.mxu0 0.0
    %1500 = vmatprep.subr.mxu0 0.0
    %1501 = vmatpush1.msra.mxu0 0.0
    %1502 = vmatprep.subr.mxu0 0.0
    %1503 = vmatpush1.msra.mxu0 0.0
    %1504 = vmatprep.subr.mxu0 0.0
    %1505 = vmatpush1.msra.mxu0 0.0
    %1506 = vmatprep.subr.mxu0 0.0
    %1507 = vmatpush1.msra.mxu0 0.0
    %1508 = vmatprep.subr.mxu0 0.0
    %1509 = vmatpush1.msra.mxu0 0.0
    %1510 = vmatprep.subr.mxu0 0.0
    %1511 = vmatpush1.msra.mxu0 0.0
    %1512 = vmatprep.subr.mxu0 0.0
    %1513 = vmatpush1.msra.mxu0 0.0
    %1514 = vmatprep.subr.mxu0 0.0
    %1515 = vmatpush1.msra.mxu0 0.0
    %1516 = vmatprep.subr.mxu0 0.0
    %1517 = vmatpush1.msra.mxu0 0.0
    %1518 = vmatprep.subr.mxu0 0.0
    %1519 = vmatpush1.msra.mxu0 0.0
    %1520 = vmatprep.subr.mxu0 0.0
    %1521 = vmatpush1.msra.mxu0 0.0
    %1522 = vmatprep.subr.mxu0 0.0
    %1523 = vmatpush1.msra.mxu0 0.0
    %1524 = vmatprep.subr.mxu0 0.0
    %1525 = vmatpush1.msra.mxu0 0.0
    %1526 = vmatprep.subr.mxu0 0.0
    %1527 = vmatpush1.msra.mxu0 0.0
    %1528 = vmatprep.subr.mxu0 0.0
    %1529 = vmatpush1.msra.mxu0 0.0
    %1530 = vmatprep.subr.mxu0 0.0
    %1531 = vmatpush1.msra.mxu0 0.0
    %1532 = vmatprep.mubr.f32.mxu0 0.0
    %v1533 = vand.u32 %v1127, 4294901760
    %1534 = vmatmul.mubr.f32.gmra.mrb[0].mxu0 %v1533
    %v1535 = vpop.f32.mrb[0].mxu0
    %v1536 = vadd.f32 %v1453, %v1535
    %v1537 = vpop.f32.mrb[0].mxu0
    %1538 = vdwg.mxu0
    %1539 = vmatprep.subr.mxu0 0.0
    %v1540 = vand.u32 %v59, 4294901760
    %1541 = vmatpush1.msra.mxu0 %v1540
    %1542 = vmatprep.subr.mxu0 0.0
    %v1543 = vand.u32 %v60, 4294901760
    %1544 = vmatpush1.msra.mxu0 %v1543
    %1545 = vmatprep.subr.mxu0 0.0
    %v1546 = vand.u32 %v61, 4294901760
    %1547 = vmatpush1.msra.mxu0 %v1546
    %1548 = vmatprep.subr.mxu0 0.0
    %v1549 = vand.u32 %v62, 4294901760
    %1550 = vmatpush1.msra.mxu0 %v1549
    %1551 = vmatprep.subr.mxu0 0.0
    %1552 = vmatpush1.msra.mxu0 0.0
    %1553 = vmatprep.subr.mxu0 0.0
    %1554 = vmatpush1.msra.mxu0 0.0
    %1555 = vmatprep.subr.mxu0 0.0
    %1556 = vmatpush1.msra.mxu0 0.0
    %1557 = vmatprep.subr.mxu0 0.0
    %1558 = vmatpush1.msra.mxu0 0.0
    %1559 = vmatprep.subr.mxu0 0.0
    %1560 = vmatpush1.msra.mxu0 0.0
    %1561 = vmatprep.subr.mxu0 0.0
    %1562 = vmatpush1.msra.mxu0 0.0
    %1563 = vmatprep.subr.mxu0 0.0
    %1564 = vmatpush1.msra.mxu0 0.0
    %1565 = vmatprep.subr.mxu0 0.0
    %1566 = vmatpush1.msra.mxu0 0.0
    %1567 = vmatprep.subr.mxu0 0.0
    %1568 = vmatpush1.msra.mxu0 0.0
    %1569 = vmatprep.subr.mxu0 0.0
    %1570 = vmatpush1.msra.mxu0 0.0
    %1571 = vmatprep.subr.mxu0 0.0
    %1572 = vmatpush1.msra.mxu0 0.0
    %1573 = vmatprep.subr.mxu0 0.0
    %1574 = vmatpush1.msra.mxu0 0.0
    %1575 = vmatprep.subr.mxu0 0.0
    %1576 = vmatpush1.msra.mxu0 0.0
    %1577 = vmatprep.subr.mxu0 0.0
    %1578 = vmatpush1.msra.mxu0 0.0
    %1579 = vmatprep.subr.mxu0 0.0
    %1580 = vmatpush1.msra.mxu0 0.0
    %1581 = vmatprep.subr.mxu0 0.0
    %1582 = vmatpush1.msra.mxu0 0.0
    %1583 = vmatprep.subr.mxu0 0.0
    %1584 = vmatpush1.msra.mxu0 0.0
    %1585 = vmatprep.subr.mxu0 0.0
    %1586 = vmatpush1.msra.mxu0 0.0
    %1587 = vmatprep.subr.mxu0 0.0
    %1588 = vmatpush1.msra.mxu0 0.0
    %1589 = vmatprep.subr.mxu0 0.0
    %1590 = vmatpush1.msra.mxu0 0.0
    %1591 = vmatprep.subr.mxu0 0.0
    %1592 = vmatpush1.msra.mxu0 0.0
    %1593 = vmatprep.subr.mxu0 0.0
    %1594 = vmatpush1.msra.mxu0 0.0
    %1595 = vmatprep.subr.mxu0 0.0
    %1596 = vmatpush1.msra.mxu0 0.0
    %1597 = vmatprep.subr.mxu0 0.0
    %1598 = vmatpush1.msra.mxu0 0.0
    %1599 = vmatprep.subr.mxu0 0.0
    %1600 = vmatpush1.msra.mxu0 0.0
    %1601 = vmatprep.subr.mxu0 0.0
    %1602 = vmatpush1.msra.mxu0 0.0
    %1603 = vmatprep.subr.mxu0 0.0
    %1604 = vmatpush1.msra.mxu0 0.0
    %1605 = vmatprep.subr.mxu0 0.0
    %1606 = vmatpush1.msra.mxu0 0.0
    %1607 = vmatprep.mubr.f32.mxu0 0.0
    %v1608 = vand.u32 %v1127, 4294901760
    %1609 = vmatmul.mubr.f32.gmra.mrb[0].mxu0 %v1608
    %v1610 = vpop.f32.mrb[0].mxu0
    %v1611 = vadd.f32 %v1536, %v1610
    %v1612 = vpop.f32.mrb[0].mxu0
    %1613 = vdwg.mxu0
    %v1614 = vadd.f32 %v1124, %v1611
    %v1615 = vxor.u32 %v1614, 2147483648
    %v1616 = vmul.f32 %v1615, 1.442695
    %v1617 = vpow.pop %v1616
    %v1618 = vadd.f32 %v1617, 1.0
    %v1619 = vrcp.pop %v1618
    %v1620 = vmul.f32 1.0, %v1619
    %v1621 = vtanh.pop %v1614
    %v1622 = vmul.f32 %v1620, %v577
    %1624 = vrot.lane.b32.xlu0 %v1621, 64
    %v1625 = vpop.permute.xlu0 %1624
    %v1627 = vmul.f32 %v1620, %v1625
    %1629 = vrot.lane.b32.xlu0 %v1627, 32
    %v1630 = vpop.permute.xlu0 %1629
    %v1632 = vadd.f32 %v1622, %v1630
    %v1633 = vtanh.pop %v1632
    %1635 = vrot.lane.b32.xlu0 %v1633, 64
    %v1636 = vpop.permute.xlu0 %1635
    %v1638 = vmul.f32 %v1620, %v1636
    %v1639 = vsel %vm70, %v1119, 0
    %1641 = vmatprep.subr.mxu0 0.0
    %v1642 = vand.u32 %v63, 4294901760
    %1643 = vmatpush1.msra.mxu0 %v1642
    %1644 = vmatprep.subr.mxu0 0.0
    %v1645 = vand.u32 %v64, 4294901760
    %1646 = vmatpush1.msra.mxu0 %v1645
    %1647 = vmatprep.subr.mxu0 0.0
    %v1648 = vand.u32 %v65, 4294901760
    %1649 = vmatpush1.msra.mxu0 %v1648
    %1650 = vmatprep.subr.mxu0 0.0
    %v1651 = vand.u32 %v66, 4294901760
    %1652 = vmatpush1.msra.mxu0 %v1651
    %1653 = vmatprep.subr.mxu0 0.0
    %1654 = vmatpush1.msra.mxu0 0.0
    %1655 = vmatprep.subr.mxu0 0.0
    %1656 = vmatpush1.msra.mxu0 0.0
    %1657 = vmatprep.subr.mxu0 0.0
    %1658 = vmatpush1.msra.mxu0 0.0
    %1659 = vmatprep.subr.mxu0 0.0
    %1660 = vmatpush1.msra.mxu0 0.0
    %1661 = vmatprep.subr.mxu0 0.0
    %1662 = vmatpush1.msra.mxu0 0.0
    %1663 = vmatprep.subr.mxu0 0.0
    %1664 = vmatpush1.msra.mxu0 0.0
    %1665 = vmatprep.subr.mxu0 0.0
    %1666 = vmatpush1.msra.mxu0 0.0
    %1667 = vmatprep.subr.mxu0 0.0
    %1668 = vmatpush1.msra.mxu0 0.0
    %1669 = vmatprep.subr.mxu0 0.0
    %1670 = vmatpush1.msra.mxu0 0.0
    %1671 = vmatprep.subr.mxu0 0.0
    %1672 = vmatpush1.msra.mxu0 0.0
    %1673 = vmatprep.subr.mxu0 0.0
    %1674 = vmatpush1.msra.mxu0 0.0
    %1675 = vmatprep.subr.mxu0 0.0
    %1676 = vmatpush1.msra.mxu0 0.0
    %1677 = vmatprep.subr.mxu0 0.0
    %1678 = vmatpush1.msra.mxu0 0.0
    %1679 = vmatprep.subr.mxu0 0.0
    %1680 = vmatpush1.msra.mxu0 0.0
    %1681 = vmatprep.subr.mxu0 0.0
    %1682 = vmatpush1.msra.mxu0 0.0
    %1683 = vmatprep.subr.mxu0 0.0
    %1684 = vmatpush1.msra.mxu0 0.0
    %1685 = vmatprep.subr.mxu0 0.0
    %1686 = vmatpush1.msra.mxu0 0.0
    %1687 = vmatprep.subr.mxu0 0.0
    %1688 = vmatpush1.msra.mxu0 0.0
    %1689 = vmatprep.subr.mxu0 0.0
    %1690 = vmatpush1.msra.mxu0 0.0
    %1691 = vmatprep.subr.mxu0 0.0
    %1692 = vmatpush1.msra.mxu0 0.0
    %1693 = vmatprep.subr.mxu0 0.0
    %1694 = vmatpush1.msra.mxu0 0.0
    %1695 = vmatprep.subr.mxu0 0.0
    %1696 = vmatpush1.msra.mxu0 0.0
    %1697 = vmatprep.subr.mxu0 0.0
    %1698 = vmatpush1.msra.mxu0 0.0
    %1699 = vmatprep.subr.mxu0 0.0
    %1700 = vmatpush1.msra.mxu0 0.0
    %1701 = vmatprep.subr.mxu0 0.0
    %1702 = vmatpush1.msra.mxu0 0.0
    %1703 = vmatprep.subr.mxu0 0.0
    %1704 = vmatpush1.msra.mxu0 0.0
    %1705 = vmatprep.subr.mxu0 0.0
    %1706 = vmatpush1.msra.mxu0 0.0
    %1707 = vmatprep.subr.mxu0 0.0
    %1708 = vmatpush1.msra.mxu0 0.0
    %1709 = vmatprep.mubr.f32.mxu0 0.0
    %v1710 = vand.u32 %v1639, 4294901760
    %v1711 = vsub.f32 %v1639, %v1710
    %v1712 = vand.u32 %v1711, 4294901760
    %v1713 = vsub.f32 %v1711, %v1712
    %v1714 = vand.u32 %v1713, 4294901760
    %1715 = vmatmul.mubr.f32.gmra.mrb[0].mxu0 %v1714
    %v1716 = vpop.f32.mrb[0].mxu0
    %v1717 = vadd.f32 0.0, %v1716
    %v1718 = vpop.f32.mrb[0].mxu0
    %1719 = vdwg.mxu0
    %1720 = vmatprep.subr.mxu0 0.0
    %v1721 = vand.u32 %v63, 4294901760
    %v1722 = vsub.f32 %v63, %v1721
    %v1723 = vand.u32 %v1722, 4294901760
    %v1724 = vsub.f32 %v1722, %v1723
    %v1725 = vand.u32 %v1724, 4294901760
    %1726 = vmatpush1.msra.mxu0 %v1725
    %1727 = vmatprep.subr.mxu0 0.0
    %v1728 = vand.u32 %v64, 4294901760
    %v1729 = vsub.f32 %v64, %v1728
    %v1730 = vand.u32 %v1729, 4294901760
    %v1731 = vsub.f32 %v1729, %v1730
    %v1732 = vand.u32 %v1731, 4294901760
    %1733 = vmatpush1.msra.mxu0 %v1732
    %1734 = vmatprep.subr.mxu0 0.0
    %v1735 = vand.u32 %v65, 4294901760
    %v1736 = vsub.f32 %v65, %v1735
    %v1737 = vand.u32 %v1736, 4294901760
    %v1738 = vsub.f32 %v1736, %v1737
    %v1739 = vand.u32 %v1738, 4294901760
    %1740 = vmatpush1.msra.mxu0 %v1739
    %1741 = vmatprep.subr.mxu0 0.0
    %v1742 = vand.u32 %v66, 4294901760
    %v1743 = vsub.f32 %v66, %v1742
    %v1744 = vand.u32 %v1743, 4294901760
    %v1745 = vsub.f32 %v1743, %v1744
    %v1746 = vand.u32 %v1745, 4294901760
    %1747 = vmatpush1.msra.mxu0 %v1746
    %1748 = vmatprep.subr.mxu0 0.0
    %1749 = vmatpush1.msra.mxu0 0.0
    %1750 = vmatprep.subr.mxu0 0.0
    %1751 = vmatpush1.msra.mxu0 0.0
    %1752 = vmatprep.subr.mxu0 0.0
    %1753 = vmatpush1.msra.mxu0 0.0
    %1754 = vmatprep.subr.mxu0 0.0
    %1755 = vmatpush1.msra.mxu0 0.0
    %1756 = vmatprep.subr.mxu0 0.0
    %1757 = vmatpush1.msra.mxu0 0.0
    %1758 = vmatprep.subr.mxu0 0.0
    %1759 = vmatpush1.msra.mxu0 0.0
    %1760 = vmatprep.subr.mxu0 0.0
    %1761 = vmatpush1.msra.mxu0 0.0
    %1762 = vmatprep.subr.mxu0 0.0
    %1763 = vmatpush1.msra.mxu0 0.0
    %1764 = vmatprep.subr.mxu0 0.0
    %1765 = vmatpush1.msra.mxu0 0.0
    %1766 = vmatprep.subr.mxu0 0.0
    %1767 = vmatpush1.msra.mxu0 0.0
    %1768 = vmatprep.subr.mxu0 0.0
    %1769 = vmatpush1.msra.mxu0 0.0
    %1770 = vmatprep.subr.mxu0 0.0
    %1771 = vmatpush1.msra.mxu0 0.0
    %1772 = vmatprep.subr.mxu0 0.0
    %1773 = vmatpush1.msra.mxu0 0.0
    %1774 = vmatprep.subr.mxu0 0.0
    %1775 = vmatpush1.msra.mxu0 0.0
    %1776 = vmatprep.subr.mxu0 0.0
    %1777 = vmatpush1.msra.mxu0 0.0
    %1778 = vmatprep.subr.mxu0 0.0
    %1779 = vmatpush1.msra.mxu0 0.0
    %1780 = vmatprep.subr.mxu0 0.0
    %1781 = vmatpush1.msra.mxu0 0.0
    %1782 = vmatprep.subr.mxu0 0.0
    %1783 = vmatpush1.msra.mxu0 0.0
    %1784 = vmatprep.subr.mxu0 0.0
    %1785 = vmatpush1.msra.mxu0 0.0
    %1786 = vmatprep.subr.mxu0 0.0
    %1787 = vmatpush1.msra.mxu0 0.0
    %1788 = vmatprep.subr.mxu0 0.0
    %1789 = vmatpush1.msra.mxu0 0.0
    %1790 = vmatprep.subr.mxu0 0.0
    %1791 = vmatpush1.msra.mxu0 0.0
    %1792 = vmatprep.subr.mxu0 0.0
    %1793 = vmatpush1.msra.mxu0 0.0
    %1794 = vmatprep.subr.mxu0 0.0
    %1795 = vmatpush1.msra.mxu0 0.0
    %1796 = vmatprep.subr.mxu0 0.0
    %1797 = vmatpush1.msra.mxu0 0.0
    %1798 = vmatprep.subr.mxu0 0.0
    %1799 = vmatpush1.msra.mxu0 0.0
    %1800 = vmatprep.subr.mxu0 0.0
    %1801 = vmatpush1.msra.mxu0 0.0
    %1802 = vmatprep.subr.mxu0 0.0
    %1803 = vmatpush1.msra.mxu0 0.0
    %1804 = vmatprep.mubr.f32.mxu0 0.0
    %v1805 = vand.u32 %v1639, 4294901760
    %1806 = vmatmul.mubr.f32.gmra.mrb[0].mxu0 %v1805
    %v1807 = vpop.f32.mrb[0].mxu0
    %v1808 = vadd.f32 %v1717, %v1807
    %v1809 = vpop.f32.mrb[0].mxu0
    %1810 = vdwg.mxu0
    %1811 = vmatprep.subr.mxu0 0.0
    %v1812 = vand.u32 %v63, 4294901760
    %v1813 = vsub.f32 %v63, %v1812
    %1814 = vmatpush1.msra.mxu0 %v1813
    %1815 = vmatprep.subr.mxu0 0.0
    %v1816 = vand.u32 %v64, 4294901760
    %v1817 = vsub.f32 %v64, %v1816
    %1818 = vmatpush1.msra.mxu0 %v1817
    %1819 = vmatprep.subr.mxu0 0.0
    %v1820 = vand.u32 %v65, 4294901760
    %v1821 = vsub.f32 %v65, %v1820
    %1822 = vmatpush1.msra.mxu0 %v1821
    %1823 = vmatprep.subr.mxu0 0.0
    %v1824 = vand.u32 %v66, 4294901760
    %v1825 = vsub.f32 %v66, %v1824
    %1826 = vmatpush1.msra.mxu0 %v1825
    %1827 = vmatprep.subr.mxu0 0.0
    %1828 = vmatpush1.msra.mxu0 0.0
    %1829 = vmatprep.subr.mxu0 0.0
    %1830 = vmatpush1.msra.mxu0 0.0
    %1831 = vmatprep.subr.mxu0 0.0
    %1832 = vmatpush1.msra.mxu0 0.0
    %1833 = vmatprep.subr.mxu0 0.0
    %1834 = vmatpush1.msra.mxu0 0.0
    %1835 = vmatprep.subr.mxu0 0.0
    %1836 = vmatpush1.msra.mxu0 0.0
    %1837 = vmatprep.subr.mxu0 0.0
    %1838 = vmatpush1.msra.mxu0 0.0
    %1839 = vmatprep.subr.mxu0 0.0
    %1840 = vmatpush1.msra.mxu0 0.0
    %1841 = vmatprep.subr.mxu0 0.0
    %1842 = vmatpush1.msra.mxu0 0.0
    %1843 = vmatprep.subr.mxu0 0.0
    %1844 = vmatpush1.msra.mxu0 0.0
    %1845 = vmatprep.subr.mxu0 0.0
    %1846 = vmatpush1.msra.mxu0 0.0
    %1847 = vmatprep.subr.mxu0 0.0
    %1848 = vmatpush1.msra.mxu0 0.0
    %1849 = vmatprep.subr.mxu0 0.0
    %1850 = vmatpush1.msra.mxu0 0.0
    %1851 = vmatprep.subr.mxu0 0.0
    %1852 = vmatpush1.msra.mxu0 0.0
    %1853 = vmatprep.subr.mxu0 0.0
    %1854 = vmatpush1.msra.mxu0 0.0
    %1855 = vmatprep.subr.mxu0 0.0
    %1856 = vmatpush1.msra.mxu0 0.0
    %1857 = vmatprep.subr.mxu0 0.0
    %1858 = vmatpush1.msra.mxu0 0.0
    %1859 = vmatprep.subr.mxu0 0.0
    %1860 = vmatpush1.msra.mxu0 0.0
    %1861 = vmatprep.subr.mxu0 0.0
    %1862 = vmatpush1.msra.mxu0 0.0
    %1863 = vmatprep.subr.mxu0 0.0
    %1864 = vmatpush1.msra.mxu0 0.0
    %1865 = vmatprep.subr.mxu0 0.0
    %1866 = vmatpush1.msra.mxu0 0.0
    %1867 = vmatprep.subr.mxu0 0.0
    %1868 = vmatpush1.msra.mxu0 0.0
    %1869 = vmatprep.subr.mxu0 0.0
    %1870 = vmatpush1.msra.mxu0 0.0
    %1871 = vmatprep.subr.mxu0 0.0
    %1872 = vmatpush1.msra.mxu0 0.0
    %1873 = vmatprep.subr.mxu0 0.0
    %1874 = vmatpush1.msra.mxu0 0.0
    %1875 = vmatprep.subr.mxu0 0.0
    %1876 = vmatpush1.msra.mxu0 0.0
    %1877 = vmatprep.subr.mxu0 0.0
    %1878 = vmatpush1.msra.mxu0 0.0
    %1879 = vmatprep.subr.mxu0 0.0
    %1880 = vmatpush1.msra.mxu0 0.0
    %1881 = vmatprep.subr.mxu0 0.0
    %1882 = vmatpush1.msra.mxu0 0.0
    %1883 = vmatprep.mubr.f32.mxu0 0.0
    %v1884 = vand.u32 %v1639, 4294901760
    %v1885 = vsub.f32 %v1639, %v1884
    %1886 = vmatmul.mubr.f32.gmra.mrb[0].mxu0 %v1885
    %v1887 = vpop.f32.mrb[0].mxu0
    %v1888 = vadd.f32 %v1808, %v1887
    %v1889 = vpop.f32.mrb[0].mxu0
    %1890 = vdwg.mxu0
    %1891 = vmatprep.subr.mxu0 0.0
    %v1892 = vand.u32 %v63, 4294901760
    %1893 = vmatpush1.msra.mxu0 %v1892
    %1894 = vmatprep.subr.mxu0 0.0
    %v1895 = vand.u32 %v64, 4294901760
    %1896 = vmatpush1.msra.mxu0 %v1895
    %1897 = vmatprep.subr.mxu0 0.0
    %v1898 = vand.u32 %v65, 4294901760
    %1899 = vmatpush1.msra.mxu0 %v1898
    %1900 = vmatprep.subr.mxu0 0.0
    %v1901 = vand.u32 %v66, 4294901760
    %1902 = vmatpush1.msra.mxu0 %v1901
    %1903 = vmatprep.subr.mxu0 0.0
    %1904 = vmatpush1.msra.mxu0 0.0
    %1905 = vmatprep.subr.mxu0 0.0
    %1906 = vmatpush1.msra.mxu0 0.0
    %1907 = vmatprep.subr.mxu0 0.0
    %1908 = vmatpush1.msra.mxu0 0.0
    %1909 = vmatprep.subr.mxu0 0.0
    %1910 = vmatpush1.msra.mxu0 0.0
    %1911 = vmatprep.subr.mxu0 0.0
    %1912 = vmatpush1.msra.mxu0 0.0
    %1913 = vmatprep.subr.mxu0 0.0
    %1914 = vmatpush1.msra.mxu0 0.0
    %1915 = vmatprep.subr.mxu0 0.0
    %1916 = vmatpush1.msra.mxu0 0.0
    %1917 = vmatprep.subr.mxu0 0.0
    %1918 = vmatpush1.msra.mxu0 0.0
    %1919 = vmatprep.subr.mxu0 0.0
    %1920 = vmatpush1.msra.mxu0 0.0
    %1921 = vmatprep.subr.mxu0 0.0
    %1922 = vmatpush1.msra.mxu0 0.0
    %1923 = vmatprep.subr.mxu0 0.0
    %1924 = vmatpush1.msra.mxu0 0.0
    %1925 = vmatprep.subr.mxu0 0.0
    %1926 = vmatpush1.msra.mxu0 0.0
    %1927 = vmatprep.subr.mxu0 0.0
    %1928 = vmatpush1.msra.mxu0 0.0
    %1929 = vmatprep.subr.mxu0 0.0
    %1930 = vmatpush1.msra.mxu0 0.0
    %1931 = vmatprep.subr.mxu0 0.0
    %1932 = vmatpush1.msra.mxu0 0.0
    %1933 = vmatprep.subr.mxu0 0.0
    %1934 = vmatpush1.msra.mxu0 0.0
    %1935 = vmatprep.subr.mxu0 0.0
    %1936 = vmatpush1.msra.mxu0 0.0
    %1937 = vmatprep.subr.mxu0 0.0
    %1938 = vmatpush1.msra.mxu0 0.0
    %1939 = vmatprep.subr.mxu0 0.0
    %1940 = vmatpush1.msra.mxu0 0.0
    %1941 = vmatprep.subr.mxu0 0.0
    %1942 = vmatpush1.msra.mxu0 0.0
    %1943 = vmatprep.subr.mxu0 0.0
    %1944 = vmatpush1.msra.mxu0 0.0
    %1945 = vmatprep.subr.mxu0 0.0
    %1946 = vmatpush1.msra.mxu0 0.0
    %1947 = vmatprep.subr.mxu0 0.0
    %1948 = vmatpush1.msra.mxu0 0.0
    %1949 = vmatprep.subr.mxu0 0.0
    %1950 = vmatpush1.msra.mxu0 0.0
    %1951 = vmatprep.subr.mxu0 0.0
    %1952 = vmatpush1.msra.mxu0 0.0
    %1953 = vmatprep.subr.mxu0 0.0
    %1954 = vmatpush1.msra.mxu0 0.0
    %1955 = vmatprep.subr.mxu0 0.0
    %1956 = vmatpush1.msra.mxu0 0.0
    %1957 = vmatprep.subr.mxu0 0.0
    %1958 = vmatpush1.msra.mxu0 0.0
    %1959 = vmatprep.mubr.f32.mxu0 0.0
    %v1960 = vand.u32 %v1639, 4294901760
    %v1961 = vsub.f32 %v1639, %v1960
    %v1962 = vand.u32 %v1961, 4294901760
    %1963 = vmatmul.mubr.f32.gmra.mrb[0].mxu0 %v1962
    %v1964 = vpop.f32.mrb[0].mxu0
    %v1965 = vadd.f32 %v1888, %v1964
    %v1966 = vpop.f32.mrb[0].mxu0
    %1967 = vdwg.mxu0
    %1968 = vmatprep.subr.mxu0 0.0
    %v1969 = vand.u32 %v63, 4294901760
    %v1970 = vsub.f32 %v63, %v1969
    %v1971 = vand.u32 %v1970, 4294901760
    %1972 = vmatpush1.msra.mxu0 %v1971
    %1973 = vmatprep.subr.mxu0 0.0
    %v1974 = vand.u32 %v64, 4294901760
    %v1975 = vsub.f32 %v64, %v1974
    %v1976 = vand.u32 %v1975, 4294901760
    %1977 = vmatpush1.msra.mxu0 %v1976
    %1978 = vmatprep.subr.mxu0 0.0
    %v1979 = vand.u32 %v65, 4294901760
    %v1980 = vsub.f32 %v65, %v1979
    %v1981 = vand.u32 %v1980, 4294901760
    %1982 = vmatpush1.msra.mxu0 %v1981
    %1983 = vmatprep.subr.mxu0 0.0
    %v1984 = vand.u32 %v66, 4294901760
    %v1985 = vsub.f32 %v66, %v1984
    %v1986 = vand.u32 %v1985, 4294901760
    %1987 = vmatpush1.msra.mxu0 %v1986
    %1988 = vmatprep.subr.mxu0 0.0
    %1989 = vmatpush1.msra.mxu0 0.0
    %1990 = vmatprep.subr.mxu0 0.0
    %1991 = vmatpush1.msra.mxu0 0.0
    %1992 = vmatprep.subr.mxu0 0.0
    %1993 = vmatpush1.msra.mxu0 0.0
    %1994 = vmatprep.subr.mxu0 0.0
    %1995 = vmatpush1.msra.mxu0 0.0
    %1996 = vmatprep.subr.mxu0 0.0
    %1997 = vmatpush1.msra.mxu0 0.0
    %1998 = vmatprep.subr.mxu0 0.0
    %1999 = vmatpush1.msra.mxu0 0.0
    %2000 = vmatprep.subr.mxu0 0.0
    %2001 = vmatpush1.msra.mxu0 0.0
    %2002 = vmatprep.subr.mxu0 0.0
    %2003 = vmatpush1.msra.mxu0 0.0
    %2004 = vmatprep.subr.mxu0 0.0
    %2005 = vmatpush1.msra.mxu0 0.0
    %2006 = vmatprep.subr.mxu0 0.0
    %2007 = vmatpush1.msra.mxu0 0.0
    %2008 = vmatprep.subr.mxu0 0.0
    %2009 = vmatpush1.msra.mxu0 0.0
    %2010 = vmatprep.subr.mxu0 0.0
    %2011 = vmatpush1.msra.mxu0 0.0
    %2012 = vmatprep.subr.mxu0 0.0
    %2013 = vmatpush1.msra.mxu0 0.0
    %2014 = vmatprep.subr.mxu0 0.0
    %2015 = vmatpush1.msra.mxu0 0.0
    %2016 = vmatprep.subr.mxu0 0.0
    %2017 = vmatpush1.msra.mxu0 0.0
    %2018 = vmatprep.subr.mxu0 0.0
    %2019 = vmatpush1.msra.mxu0 0.0
    %2020 = vmatprep.subr.mxu0 0.0
    %2021 = vmatpush1.msra.mxu0 0.0
    %2022 = vmatprep.subr.mxu0 0.0
    %2023 = vmatpush1.msra.mxu0 0.0
    %2024 = vmatprep.subr.mxu0 0.0
    %2025 = vmatpush1.msra.mxu0 0.0
    %2026 = vmatprep.subr.mxu0 0.0
    %2027 = vmatpush1.msra.mxu0 0.0
    %2028 = vmatprep.subr.mxu0 0.0
    %2029 = vmatpush1.msra.mxu0 0.0
    %2030 = vmatprep.subr.mxu0 0.0
    %2031 = vmatpush1.msra.mxu0 0.0
    %2032 = vmatprep.subr.mxu0 0.0
    %2033 = vmatpush1.msra.mxu0 0.0
    %2034 = vmatprep.subr.mxu0 0.0
    %2035 = vmatpush1.msra.mxu0 0.0
    %2036 = vmatprep.subr.mxu0 0.0
    %2037 = vmatpush1.msra.mxu0 0.0
    %2038 = vmatprep.subr.mxu0 0.0
    %2039 = vmatpush1.msra.mxu0 0.0
    %2040 = vmatprep.subr.mxu0 0.0
    %2041 = vmatpush1.msra.mxu0 0.0
    %2042 = vmatprep.subr.mxu0 0.0
    %2043 = vmatpush1.msra.mxu0 0.0
    %2044 = vmatprep.mubr.f32.mxu0 0.0
    %v2045 = vand.u32 %v1639, 4294901760
    %2046 = vmatmul.mubr.f32.gmra.mrb[0].mxu0 %v2045
    %v2047 = vpop.f32.mrb[0].mxu0
    %v2048 = vadd.f32 %v1965, %v2047
    %v2049 = vpop.f32.mrb[0].mxu0
    %2050 = vdwg.mxu0
    %2051 = vmatprep.subr.mxu0 0.0
    %v2052 = vand.u32 %v63, 4294901760
    %2053 = vmatpush1.msra.mxu0 %v2052
    %2054 = vmatprep.subr.mxu0 0.0
    %v2055 = vand.u32 %v64, 4294901760
    %2056 = vmatpush1.msra.mxu0 %v2055
    %2057 = vmatprep.subr.mxu0 0.0
    %v2058 = vand.u32 %v65, 4294901760
    %2059 = vmatpush1.msra.mxu0 %v2058
    %2060 = vmatprep.subr.mxu0 0.0
    %v2061 = vand.u32 %v66, 4294901760
    %2062 = vmatpush1.msra.mxu0 %v2061
    %2063 = vmatprep.subr.mxu0 0.0
    %2064 = vmatpush1.msra.mxu0 0.0
    %2065 = vmatprep.subr.mxu0 0.0
    %2066 = vmatpush1.msra.mxu0 0.0
    %2067 = vmatprep.subr.mxu0 0.0
    %2068 = vmatpush1.msra.mxu0 0.0
    %2069 = vmatprep.subr.mxu0 0.0
    %2070 = vmatpush1.msra.mxu0 0.0
    %2071 = vmatprep.subr.mxu0 0.0
    %2072 = vmatpush1.msra.mxu0 0.0
    %2073 = vmatprep.subr.mxu0 0.0
    %2074 = vmatpush1.msra.mxu0 0.0
    %2075 = vmatprep.subr.mxu0 0.0
    %2076 = vmatpush1.msra.mxu0 0.0
    %2077 = vmatprep.subr.mxu0 0.0
    %2078 = vmatpush1.msra.mxu0 0.0
    %2079 = vmatprep.subr.mxu0 0.0
    %2080 = vmatpush1.msra.mxu0 0.0
    %2081 = vmatprep.subr.mxu0 0.0
    %2082 = vmatpush1.msra.mxu0 0.0
    %2083 = vmatprep.subr.mxu0 0.0
    %2084 = vmatpush1.msra.mxu0 0.0
    %2085 = vmatprep.subr.mxu0 0.0
    %2086 = vmatpush1.msra.mxu0 0.0
    %2087 = vmatprep.subr.mxu0 0.0
    %2088 = vmatpush1.msra.mxu0 0.0
    %2089 = vmatprep.subr.mxu0 0.0
    %2090 = vmatpush1.msra.mxu0 0.0
    %2091 = vmatprep.subr.mxu0 0.0
    %2092 = vmatpush1.msra.mxu0 0.0
    %2093 = vmatprep.subr.mxu0 0.0
    %2094 = vmatpush1.msra.mxu0 0.0
    %2095 = vmatprep.subr.mxu0 0.0
    %2096 = vmatpush1.msra.mxu0 0.0
    %2097 = vmatprep.subr.mxu0 0.0
    %2098 = vmatpush1.msra.mxu0 0.0
    %2099 = vmatprep.subr.mxu0 0.0
    %2100 = vmatpush1.msra.mxu0 0.0
    %2101 = vmatprep.subr.mxu0 0.0
    %2102 = vmatpush1.msra.mxu0 0.0
    %2103 = vmatprep.subr.mxu0 0.0
    %2104 = vmatpush1.msra.mxu0 0.0
    %2105 = vmatprep.subr.mxu0 0.0
    %2106 = vmatpush1.msra.mxu0 0.0
    %2107 = vmatprep.subr.mxu0 0.0
    %2108 = vmatpush1.msra.mxu0 0.0
    %2109 = vmatprep.subr.mxu0 0.0
    %2110 = vmatpush1.msra.mxu0 0.0
    %2111 = vmatprep.subr.mxu0 0.0
    %2112 = vmatpush1.msra.mxu0 0.0
    %2113 = vmatprep.subr.mxu0 0.0
    %2114 = vmatpush1.msra.mxu0 0.0
    %2115 = vmatprep.subr.mxu0 0.0
    %2116 = vmatpush1.msra.mxu0 0.0
    %2117 = vmatprep.subr.mxu0 0.0
    %2118 = vmatpush1.msra.mxu0 0.0
    %2119 = vmatprep.mubr.f32.mxu0 0.0
    %v2120 = vand.u32 %v1639, 4294901760
    %2121 = vmatmul.mubr.f32.gmra.mrb[0].mxu0 %v2120
    %v2122 = vpop.f32.mrb[0].mxu0
    %v2123 = vadd.f32 %v2048, %v2122
    %v2124 = vpop.f32.mrb[0].mxu0
    %2125 = vdwg.mxu0
    %v2127 = vrot.slane %v1126, 2
    %v2129 = vadd.f32 %v2127, %v2123
    %v2130 = vxor.u32 %v2129, 2147483648
    %v2131 = vmul.f32 %v2130, 1.442695
    %v2132 = vpow.pop %v2131
    %v2133 = vadd.f32 %v2132, 1.0
    %v2134 = vrcp.pop %v2133
    %v2135 = vmul.f32 1.0, %v2134
    %v2136 = vtanh.pop %v2129
    %v2137 = vmul.f32 %v2135, %v1090
    %2139 = vrot.lane.b32.xlu0 %v2136, 64
    %v2140 = vpop.permute.xlu0 %2139
    %v2142 = vmul.f32 %v2135, %v2140
    %2144 = vrot.lane.b32.xlu0 %v2142, 32
    %v2145 = vpop.permute.xlu0 %2144
    %v2147 = vadd.f32 %v2137, %v2145
    %v2148 = vtanh.pop %v2147
    %2150 = vrot.lane.b32.xlu0 %v2148, 64
    %v2151 = vpop.permute.xlu0 %2150
    %v2153 = vmul.f32 %v2135, %v2151
    %v2156 = vunpack.c.l.s4 1983009808
    %v2157 = vunpack.c.0.s8 %v2156
    %v2158 = vlaneseq
    %v2159 = vshrl.u32 %v2158, 7
    %v2160 = vsub.s32 %v2157, %v2159
    %v2161 = vrot.slane %v1638, %v2160
    %2162 = vrot.lane.b32.xlu0 %v2161, 32
    %v2163 = vpop.permute.xlu0 %2162
    %s2165 = scalar_lea.vmem [#allocation8], 2
    %2166 = vst.msk [vmem:[%s2165] sm:$0x3] %vm1108, %v2163
    %v2169 = vunpack.c.l.s4 1983009808
    %v2170 = vunpack.c.0.s8 %v2169
    %v2171 = vlaneseq
    %v2172 = vshrl.u32 %v2171, 7
    %v2173 = vsub.s32 %v2170, %v2172
    %v2174 = vrot.slane %v2153, %v2173
    %2175 = vrot.lane.b32.xlu0 %v2174, 32
    %v2176 = vpop.permute.xlu0 %2175
    %s2178 = scalar_lea.vmem [#allocation9], 12
    %2179 = vst.msk [vmem:[%s2178] sm:$0x3] %vm1108, %v2176
    %s2180 = scalar_lea.vmem [#allocation2], 8
    %v2181 = vld [vmem:[%s2180] sm:$0xf]
    %s2182 = scalar_lea.vmem [#allocation2], 20
    %v2183 = vld [vmem:[%s2182] sm:$0xf]
    %v2184 = vsel %vm70, %v2163, 0
    %2186 = vmatprep.subr.mxu0 0.0
    %v2187 = vand.u32 %v59, 4294901760
    %2188 = vmatpush1.msra.mxu0 %v2187
    %2189 = vmatprep.subr.mxu0 0.0
    %v2190 = vand.u32 %v60, 4294901760
    %2191 = vmatpush1.msra.mxu0 %v2190
    %2192 = vmatprep.subr.mxu0 0.0
    %v2193 = vand.u32 %v61, 4294901760
    %2194 = vmatpush1.msra.mxu0 %v2193
    %2195 = vmatprep.subr.mxu0 0.0
    %v2196 = vand.u32 %v62, 4294901760
    %2197 = vmatpush1.msra.mxu0 %v2196
    %2198 = vmatprep.subr.mxu0 0.0
    %2199 = vmatpush1.msra.mxu0 0.0
    %2200 = vmatprep.subr.mxu0 0.0
    %2201 = vmatpush1.msra.mxu0 0.0
    %2202 = vmatprep.subr.mxu0 0.0
    %2203 = vmatpush1.msra.mxu0 0.0
    %2204 = vmatprep.subr.mxu0 0.0
    %2205 = vmatpush1.msra.mxu0 0.0
    %2206 = vmatprep.subr.mxu0 0.0
    %2207 = vmatpush1.msra.mxu0 0.0
    %2208 = vmatprep.subr.mxu0 0.0
    %2209 = vmatpush1.msra.mxu0 0.0
    %2210 = vmatprep.subr.mxu0 0.0
    %2211 = vmatpush1.msra.mxu0 0.0
    %2212 = vmatprep.subr.mxu0 0.0
    %2213 = vmatpush1.msra.mxu0 0.0
    %2214 = vmatprep.subr.mxu0 0.0
    %2215 = vmatpush1.msra.mxu0 0.0
    %2216 = vmatprep.subr.mxu0 0.0
    %2217 = vmatpush1.msra.mxu0 0.0
    %2218 = vmatprep.subr.mxu0 0.0
    %2219 = vmatpush1.msra.mxu0 0.0
    %2220 = vmatprep.subr.mxu0 0.0
    %2221 = vmatpush1.msra.mxu0 0.0
    %2222 = vmatprep.subr.mxu0 0.0
    %2223 = vmatpush1.msra.mxu0 0.0
    %2224 = vmatprep.subr.mxu0 0.0
    %2225 = vmatpush1.msra.mxu0 0.0
    %2226 = vmatprep.subr.mxu0 0.0
    %2227 = vmatpush1.msra.mxu0 0.0
    %2228 = vmatprep.subr.mxu0 0.0
    %2229 = vmatpush1.msra.mxu0 0.0
    %2230 = vmatprep.subr.mxu0 0.0
    %2231 = vmatpush1.msra.mxu0 0.0
    %2232 = vmatprep.subr.mxu0 0.0
    %2233 = vmatpush1.msra.mxu0 0.0
    %2234 = vmatprep.subr.mxu0 0.0
    %2235 = vmatpush1.msra.mxu0 0.0
    %2236 = vmatprep.subr.mxu0 0.0
    %2237 = vmatpush1.msra.mxu0 0.0
    %2238 = vmatprep.subr.mxu0 0.0
    %2239 = vmatpush1.msra.mxu0 0.0
    %2240 = vmatprep.subr.mxu0 0.0
    %2241 = vmatpush1.msra.mxu0 0.0
    %2242 = vmatprep.subr.mxu0 0.0
    %2243 = vmatpush1.msra.mxu0 0.0
    %2244 = vmatprep.subr.mxu0 0.0
    %2245 = vmatpush1.msra.mxu0 0.0
    %2246 = vmatprep.subr.mxu0 0.0
    %2247 = vmatpush1.msra.mxu0 0.0
    %2248 = vmatprep.subr.mxu0 0.0
    %2249 = vmatpush1.msra.mxu0 0.0
    %2250 = vmatprep.subr.mxu0 0.0
    %2251 = vmatpush1.msra.mxu0 0.0
    %2252 = vmatprep.subr.mxu0 0.0
    %2253 = vmatpush1.msra.mxu0 0.0
    %2254 = vmatprep.mubr.f32.mxu0 0.0
    %v2255 = vand.u32 %v2184, 4294901760
    %v2256 = vsub.f32 %v2184, %v2255
    %v2257 = vand.u32 %v2256, 4294901760
    %v2258 = vsub.f32 %v2256, %v2257
    %v2259 = vand.u32 %v2258, 4294901760
    %2260 = vmatmul.mubr.f32.gmra.mrb[0].mxu0 %v2259
    %v2261 = vpop.f32.mrb[0].mxu0
    %v2262 = vadd.f32 0.0, %v2261
    %v2263 = vpop.f32.mrb[0].mxu0
    %2264 = vdwg.mxu0
    %2265 = vmatprep.subr.mxu0 0.0
    %v2266 = vand.u32 %v59, 4294901760
    %v2267 = vsub.f32 %v59, %v2266
    %v2268 = vand.u32 %v2267, 4294901760
    %v2269 = vsub.f32 %v2267, %v2268
    %v2270 = vand.u32 %v2269, 4294901760
    %2271 = vmatpush1.msra.mxu0 %v2270
    %2272 = vmatprep.subr.mxu0 0.0
    %v2273 = vand.u32 %v60, 4294901760
    %v2274 = vsub.f32 %v60, %v2273
    %v2275 = vand.u32 %v2274, 4294901760
    %v2276 = vsub.f32 %v2274, %v2275
    %v2277 = vand.u32 %v2276, 4294901760
    %2278 = vmatpush1.msra.mxu0 %v2277
    %2279 = vmatprep.subr.mxu0 0.0
    %v2280 = vand.u32 %v61, 4294901760
    %v2281 = vsub.f32 %v61, %v2280
    %v2282 = vand.u32 %v2281, 4294901760
    %v2283 = vsub.f32 %v2281, %v2282
    %v2284 = vand.u32 %v2283, 4294901760
    %2285 = vmatpush1.msra.mxu0 %v2284
    %2286 = vmatprep.subr.mxu0 0.0
    %v2287 = vand.u32 %v62, 4294901760
    %v2288 = vsub.f32 %v62, %v2287
    %v2289 = vand.u32 %v2288, 4294901760
    %v2290 = vsub.f32 %v2288, %v2289
    %v2291 = vand.u32 %v2290, 4294901760
    %2292 = vmatpush1.msra.mxu0 %v2291
    %2293 = vmatprep.subr.mxu0 0.0
    %2294 = vmatpush1.msra.mxu0 0.0
    %2295 = vmatprep.subr.mxu0 0.0
    %2296 = vmatpush1.msra.mxu0 0.0
    %2297 = vmatprep.subr.mxu0 0.0
    %2298 = vmatpush1.msra.mxu0 0.0
    %2299 = vmatprep.subr.mxu0 0.0
    %2300 = vmatpush1.msra.mxu0 0.0
    %2301 = vmatprep.subr.mxu0 0.0
    %2302 = vmatpush1.msra.mxu0 0.0
    %2303 = vmatprep.subr.mxu0 0.0
    %2304 = vmatpush1.msra.mxu0 0.0
    %2305 = vmatprep.subr.mxu0 0.0
    %2306 = vmatpush1.msra.mxu0 0.0
    %2307 = vmatprep.subr.mxu0 0.0
    %2308 = vmatpush1.msra.mxu0 0.0
    %2309 = vmatprep.subr.mxu0 0.0
    %2310 = vmatpush1.msra.mxu0 0.0
    %2311 = vmatprep.subr.mxu0 0.0
    %2312 = vmatpush1.msra.mxu0 0.0
    %2313 = vmatprep.subr.mxu0 0.0
    %2314 = vmatpush1.msra.mxu0 0.0
    %2315 = vmatprep.subr.mxu0 0.0
    %2316 = vmatpush1.msra.mxu0 0.0
    %2317 = vmatprep.subr.mxu0 0.0
    %2318 = vmatpush1.msra.mxu0 0.0
    %2319 = vmatprep.subr.mxu0 0.0
    %2320 = vmatpush1.msra.mxu0 0.0
    %2321 = vmatprep.subr.mxu0 0.0
    %2322 = vmatpush1.msra.mxu0 0.0
    %2323 = vmatprep.subr.mxu0 0.0
    %2324 = vmatpush1.msra.mxu0 0.0
    %2325 = vmatprep.subr.mxu0 0.0
    %2326 = vmatpush1.msra.mxu0 0.0
    %2327 = vmatprep.subr.mxu0 0.0
    %2328 = vmatpush1.msra.mxu0 0.0
    %2329 = vmatprep.subr.mxu0 0.0
    %2330 = vmatpush1.msra.mxu0 0.0
    %2331 = vmatprep.subr.mxu0 0.0
    %2332 = vmatpush1.msra.mxu0 0.0
    %2333 = vmatprep.subr.mxu0 0.0
    %2334 = vmatpush1.msra.mxu0 0.0
    %2335 = vmatprep.subr.mxu0 0.0
    %2336 = vmatpush1.msra.mxu0 0.0
    %2337 = vmatprep.subr.mxu0 0.0
    %2338 = vmatpush1.msra.mxu0 0.0
    %2339 = vmatprep.subr.mxu0 0.0
    %2340 = vmatpush1.msra.mxu0 0.0
    %2341 = vmatprep.subr.mxu0 0.0
    %2342 = vmatpush1.msra.mxu0 0.0
    %2343 = vmatprep.subr.mxu0 0.0
    %2344 = vmatpush1.msra.mxu0 0.0
    %2345 = vmatprep.subr.mxu0 0.0
    %2346 = vmatpush1.msra.mxu0 0.0
    %2347 = vmatprep.subr.mxu0 0.0
    %2348 = vmatpush1.msra.mxu0 0.0
    %2349 = vmatprep.mubr.f32.mxu0 0.0
    %v2350 = vand.u32 %v2184, 4294901760
    %2351 = vmatmul.mubr.f32.gmra.mrb[0].mxu0 %v2350
    %v2352 = vpop.f32.mrb[0].mxu0
    %v2353 = vadd.f32 %v2262, %v2352
    %v2354 = vpop.f32.mrb[0].mxu0
    %2355 = vdwg.mxu0
    %2356 = vmatprep.subr.mxu0 0.0
    %v2357 = vand.u32 %v59, 4294901760
    %v2358 = vsub.f32 %v59, %v2357
    %2359 = vmatpush1.msra.mxu0 %v2358
    %2360 = vmatprep.subr.mxu0 0.0
    %v2361 = vand.u32 %v60, 4294901760
    %v2362 = vsub.f32 %v60, %v2361
    %2363 = vmatpush1.msra.mxu0 %v2362
    %2364 = vmatprep.subr.mxu0 0.0
    %v2365 = vand.u32 %v61, 4294901760
    %v2366 = vsub.f32 %v61, %v2365
    %2367 = vmatpush1.msra.mxu0 %v2366
    %2368 = vmatprep.subr.mxu0 0.0
    %v2369 = vand.u32 %v62, 4294901760
    %v2370 = vsub.f32 %v62, %v2369
    %2371 = vmatpush1.msra.mxu0 %v2370
    %2372 = vmatprep.subr.mxu0 0.0
    %2373 = vmatpush1.msra.mxu0 0.0
    %2374 = vmatprep.subr.mxu0 0.0
    %2375 = vmatpush1.msra.mxu0 0.0
    %2376 = vmatprep.subr.mxu0 0.0
    %2377 = vmatpush1.msra.mxu0 0.0
    %2378 = vmatprep.subr.mxu0 0.0
    %2379 = vmatpush1.msra.mxu0 0.0
    %2380 = vmatprep.subr.mxu0 0.0
    %2381 = vmatpush1.msra.mxu0 0.0
    %2382 = vmatprep.subr.mxu0 0.0
    %2383 = vmatpush1.msra.mxu0 0.0
    %2384 = vmatprep.subr.mxu0 0.0
    %2385 = vmatpush1.msra.mxu0 0.0
    %2386 = vmatprep.subr.mxu0 0.0
    %2387 = vmatpush1.msra.mxu0 0.0
    %2388 = vmatprep.subr.mxu0 0.0
    %2389 = vmatpush1.msra.mxu0 0.0
    %2390 = vmatprep.subr.mxu0 0.0
    %2391 = vmatpush1.msra.mxu0 0.0
    %2392 = vmatprep.subr.mxu0 0.0
    %2393 = vmatpush1.msra.mxu0 0.0
    %2394 = vmatprep.subr.mxu0 0.0
    %2395 = vmatpush1.msra.mxu0 0.0
    %2396 = vmatprep.subr.mxu0 0.0
    %2397 = vmatpush1.msra.mxu0 0.0
    %2398 = vmatprep.subr.mxu0 0.0
    %2399 = vmatpush1.msra.mxu0 0.0
    %2400 = vmatprep.subr.mxu0 0.0
    %2401 = vmatpush1.msra.mxu0 0.0
    %2402 = vmatprep.subr.mxu0 0.0
    %2403 = vmatpush1.msra.mxu0 0.0
    %2404 = vmatprep.subr.mxu0 0.0
    %2405 = vmatpush1.msra.mxu0 0.0
    %2406 = vmatprep.subr.mxu0 0.0
    %2407 = vmatpush1.msra.mxu0 0.0
    %2408 = vmatprep.subr.mxu0 0.0
    %2409 = vmatpush1.msra.mxu0 0.0
    %2410 = vmatprep.subr.mxu0 0.0
    %2411 = vmatpush1.msra.mxu0 0.0
    %2412 = vmatprep.subr.mxu0 0.0
    %2413 = vmatpush1.msra.mxu0 0.0
    %2414 = vmatprep.subr.mxu0 0.0
    %2415 = vmatpush1.msra.mxu0 0.0
    %2416 = vmatprep.subr.mxu0 0.0
    %2417 = vmatpush1.msra.mxu0 0.0
    %2418 = vmatprep.subr.mxu0 0.0
    %2419 = vmatpush1.msra.mxu0 0.0
    %2420 = vmatprep.subr.mxu0 0.0
    %2421 = vmatpush1.msra.mxu0 0.0
    %2422 = vmatprep.subr.mxu0 0.0
    %2423 = vmatpush1.msra.mxu0 0.0
    %2424 = vmatprep.subr.mxu0 0.0
    %2425 = vmatpush1.msra.mxu0 0.0
    %2426 = vmatprep.subr.mxu0 0.0
    %2427 = vmatpush1.msra.mxu0 0.0
    %2428 = vmatprep.mubr.f32.mxu0 0.0
    %v2429 = vand.u32 %v2184, 4294901760
    %v2430 = vsub.f32 %v2184, %v2429
    %2431 = vmatmul.mubr.f32.gmra.mrb[0].mxu0 %v2430
    %v2432 = vpop.f32.mrb[0].mxu0
    %v2433 = vadd.f32 %v2353, %v2432
    %v2434 = vpop.f32.mrb[0].mxu0
    %2435 = vdwg.mxu0
    %2436 = vmatprep.subr.mxu0 0.0
    %v2437 = vand.u32 %v59, 4294901760
    %2438 = vmatpush1.msra.mxu0 %v2437
    %2439 = vmatprep.subr.mxu0 0.0
    %v2440 = vand.u32 %v60, 4294901760
    %2441 = vmatpush1.msra.mxu0 %v2440
    %2442 = vmatprep.subr.mxu0 0.0
    %v2443 = vand.u32 %v61, 4294901760
    %2444 = vmatpush1.msra.mxu0 %v2443
    %2445 = vmatprep.subr.mxu0 0.0
    %v2446 = vand.u32 %v62, 4294901760
    %2447 = vmatpush1.msra.mxu0 %v2446
    %2448 = vmatprep.subr.mxu0 0.0
    %2449 = vmatpush1.msra.mxu0 0.0
    %2450 = vmatprep.subr.mxu0 0.0
    %2451 = vmatpush1.msra.mxu0 0.0
    %2452 = vmatprep.subr.mxu0 0.0
    %2453 = vmatpush1.msra.mxu0 0.0
    %2454 = vmatprep.subr.mxu0 0.0
    %2455 = vmatpush1.msra.mxu0 0.0
    %2456 = vmatprep.subr.mxu0 0.0
    %2457 = vmatpush1.msra.mxu0 0.0
    %2458 = vmatprep.subr.mxu0 0.0
    %2459 = vmatpush1.msra.mxu0 0.0
    %2460 = vmatprep.subr.mxu0 0.0
    %2461 = vmatpush1.msra.mxu0 0.0
    %2462 = vmatprep.subr.mxu0 0.0
    %2463 = vmatpush1.msra.mxu0 0.0
    %2464 = vmatprep.subr.mxu0 0.0
    %2465 = vmatpush1.msra.mxu0 0.0
    %2466 = vmatprep.subr.mxu0 0.0
    %2467 = vmatpush1.msra.mxu0 0.0
    %2468 = vmatprep.subr.mxu0 0.0
    %2469 = vmatpush1.msra.mxu0 0.0
    %2470 = vmatprep.subr.mxu0 0.0
    %2471 = vmatpush1.msra.mxu0 0.0
    %2472 = vmatprep.subr.mxu0 0.0
    %2473 = vmatpush1.msra.mxu0 0.0
    %2474 = vmatprep.subr.mxu0 0.0
    %2475 = vmatpush1.msra.mxu0 0.0
    %2476 = vmatprep.subr.mxu0 0.0
    %2477 = vmatpush1.msra.mxu0 0.0
    %2478 = vmatprep.subr.mxu0 0.0
    %2479 = vmatpush1.msra.mxu0 0.0
    %2480 = vmatprep.subr.mxu0 0.0
    %2481 = vmatpush1.msra.mxu0 0.0
    %2482 = vmatprep.subr.mxu0 0.0
    %2483 = vmatpush1.msra.mxu0 0.0
    %2484 = vmatprep.subr.mxu0 0.0
    %2485 = vmatpush1.msra.mxu0 0.0
    %2486 = vmatprep.subr.mxu0 0.0
    %2487 = vmatpush1.msra.mxu0 0.0
    %2488 = vmatprep.subr.mxu0 0.0
    %2489 = vmatpush1.msra.mxu0 0.0
    %2490 = vmatprep.subr.mxu0 0.0
    %2491 = vmatpush1.msra.mxu0 0.0
    %2492 = vmatprep.subr.mxu0 0.0
    %2493 = vmatpush1.msra.mxu0 0.0
    %2494 = vmatprep.subr.mxu0 0.0
    %2495 = vmatpush1.msra.mxu0 0.0
    %2496 = vmatprep.subr.mxu0 0.0
    %2497 = vmatpush1.msra.mxu0 0.0
    %2498 = vmatprep.subr.mxu0 0.0
    %2499 = vmatpush1.msra.mxu0 0.0
    %2500 = vmatprep.subr.mxu0 0.0
    %2501 = vmatpush1.msra.mxu0 0.0
    %2502 = vmatprep.subr.mxu0 0.0
    %2503 = vmatpush1.msra.mxu0 0.0
    %2504 = vmatprep.mubr.f32.mxu0 0.0
    %v2505 = vand.u32 %v2184, 4294901760
    %v2506 = vsub.f32 %v2184, %v2505
    %v2507 = vand.u32 %v2506, 4294901760
    %2508 = vmatmul.mubr.f32.gmra.mrb[0].mxu0 %v2507
    %v2509 = vpop.f32.mrb[0].mxu0
    %v2510 = vadd.f32 %v2433, %v2509
    %v2511 = vpop.f32.mrb[0].mxu0
    %2512 = vdwg.mxu0
    %2513 = vmatprep.subr.mxu0 0.0
    %v2514 = vand.u32 %v59, 4294901760
    %v2515 = vsub.f32 %v59, %v2514
    %v2516 = vand.u32 %v2515, 4294901760
    %2517 = vmatpush1.msra.mxu0 %v2516
    %2518 = vmatprep.subr.mxu0 0.0
    %v2519 = vand.u32 %v60, 4294901760
    %v2520 = vsub.f32 %v60, %v2519
    %v2521 = vand.u32 %v2520, 4294901760
    %2522 = vmatpush1.msra.mxu0 %v2521
    %2523 = vmatprep.subr.mxu0 0.0
    %v2524 = vand.u32 %v61, 4294901760
    %v2525 = vsub.f32 %v61, %v2524
    %v2526 = vand.u32 %v2525, 4294901760
    %2527 = vmatpush1.msra.mxu0 %v2526
    %2528 = vmatprep.subr.mxu0 0.0
    %v2529 = vand.u32 %v62, 4294901760
    %v2530 = vsub.f32 %v62, %v2529
    %v2531 = vand.u32 %v2530, 4294901760
    %2532 = vmatpush1.msra.mxu0 %v2531
    %2533 = vmatprep.subr.mxu0 0.0
    %2534 = vmatpush1.msra.mxu0 0.0
    %2535 = vmatprep.subr.mxu0 0.0
    %2536 = vmatpush1.msra.mxu0 0.0
    %2537 = vmatprep.subr.mxu0 0.0
    %2538 = vmatpush1.msra.mxu0 0.0
    %2539 = vmatprep.subr.mxu0 0.0
    %2540 = vmatpush1.msra.mxu0 0.0
    %2541 = vmatprep.subr.mxu0 0.0
    %2542 = vmatpush1.msra.mxu0 0.0
    %2543 = vmatprep.subr.mxu0 0.0
    %2544 = vmatpush1.msra.mxu0 0.0
    %2545 = vmatprep.subr.mxu0 0.0
    %2546 = vmatpush1.msra.mxu0 0.0
    %2547 = vmatprep.subr.mxu0 0.0
    %2548 = vmatpush1.msra.mxu0 0.0
    %2549 = vmatprep.subr.mxu0 0.0
    %2550 = vmatpush1.msra.mxu0 0.0
    %2551 = vmatprep.subr.mxu0 0.0
    %2552 = vmatpush1.msra.mxu0 0.0
    %2553 = vmatprep.subr.mxu0 0.0
    %2554 = vmatpush1.msra.mxu0 0.0
    %2555 = vmatprep.subr.mxu0 0.0
    %2556 = vmatpush1.msra.mxu0 0.0
    %2557 = vmatprep.subr.mxu0 0.0
    %2558 = vmatpush1.msra.mxu0 0.0
    %2559 = vmatprep.subr.mxu0 0.0
    %2560 = vmatpush1.msra.mxu0 0.0
    %2561 = vmatprep.subr.mxu0 0.0
    %2562 = vmatpush1.msra.mxu0 0.0
    %2563 = vmatprep.subr.mxu0 0.0
    %2564 = vmatpush1.msra.mxu0 0.0
    %2565 = vmatprep.subr.mxu0 0.0
    %2566 = vmatpush1.msra.mxu0 0.0
    %2567 = vmatprep.subr.mxu0 0.0
    %2568 = vmatpush1.msra.mxu0 0.0
    %2569 = vmatprep.subr.mxu0 0.0
    %2570 = vmatpush1.msra.mxu0 0.0
    %2571 = vmatprep.subr.mxu0 0.0
    %2572 = vmatpush1.msra.mxu0 0.0
    %2573 = vmatprep.subr.mxu0 0.0
    %2574 = vmatpush1.msra.mxu0 0.0
    %2575 = vmatprep.subr.mxu0 0.0
    %2576 = vmatpush1.msra.mxu0 0.0
    %2577 = vmatprep.subr.mxu0 0.0
    %2578 = vmatpush1.msra.mxu0 0.0
    %2579 = vmatprep.subr.mxu0 0.0
    %2580 = vmatpush1.msra.mxu0 0.0
    %2581 = vmatprep.subr.mxu0 0.0
    %2582 = vmatpush1.msra.mxu0 0.0
    %2583 = vmatprep.subr.mxu0 0.0
    %2584 = vmatpush1.msra.mxu0 0.0
    %2585 = vmatprep.subr.mxu0 0.0
    %2586 = vmatpush1.msra.mxu0 0.0
    %2587 = vmatprep.subr.mxu0 0.0
    %2588 = vmatpush1.msra.mxu0 0.0
    %2589 = vmatprep.mubr.f32.mxu0 0.0
    %v2590 = vand.u32 %v2184, 4294901760
    %2591 = vmatmul.mubr.f32.gmra.mrb[0].mxu0 %v2590
    %v2592 = vpop.f32.mrb[0].mxu0
    %v2593 = vadd.f32 %v2510, %v2592
    %v2594 = vpop.f32.mrb[0].mxu0
    %2595 = vdwg.mxu0
    %2596 = vmatprep.subr.mxu0 0.0
    %v2597 = vand.u32 %v59, 4294901760
    %2598 = vmatpush1.msra.mxu0 %v2597
    %2599 = vmatprep.subr.mxu0 0.0
    %v2600 = vand.u32 %v60, 4294901760
    %2601 = vmatpush1.msra.mxu0 %v2600
    %2602 = vmatprep.subr.mxu0 0.0
    %v2603 = vand.u32 %v61, 4294901760
    %2604 = vmatpush1.msra.mxu0 %v2603
    %2605 = vmatprep.subr.mxu0 0.0
    %v2606 = vand.u32 %v62, 4294901760
    %2607 = vmatpush1.msra.mxu0 %v2606
    %2608 = vmatprep.subr.mxu0 0.0
    %2609 = vmatpush1.msra.mxu0 0.0
    %2610 = vmatprep.subr.mxu0 0.0
    %2611 = vmatpush1.msra.mxu0 0.0
    %2612 = vmatprep.subr.mxu0 0.0
    %2613 = vmatpush1.msra.mxu0 0.0
    %2614 = vmatprep.subr.mxu0 0.0
    %2615 = vmatpush1.msra.mxu0 0.0
    %2616 = vmatprep.subr.mxu0 0.0
    %2617 = vmatpush1.msra.mxu0 0.0
    %2618 = vmatprep.subr.mxu0 0.0
    %2619 = vmatpush1.msra.mxu0 0.0
    %2620 = vmatprep.subr.mxu0 0.0
    %2621 = vmatpush1.msra.mxu0 0.0
    %2622 = vmatprep.subr.mxu0 0.0
    %2623 = vmatpush1.msra.mxu0 0.0
    %2624 = vmatprep.subr.mxu0 0.0
    %2625 = vmatpush1.msra.mxu0 0.0
    %2626 = vmatprep.subr.mxu0 0.0
    %2627 = vmatpush1.msra.mxu0 0.0
    %2628 = vmatprep.subr.mxu0 0.0
    %2629 = vmatpush1.msra.mxu0 0.0
    %2630 = vmatprep.subr.mxu0 0.0
    %2631 = vmatpush1.msra.mxu0 0.0
    %2632 = vmatprep.subr.mxu0 0.0
    %2633 = vmatpush1.msra.mxu0 0.0
    %2634 = vmatprep.subr.mxu0 0.0
    %2635 = vmatpush1.msra.mxu0 0.0
    %2636 = vmatprep.subr.mxu0 0.0
    %2637 = vmatpush1.msra.mxu0 0.0
    %2638 = vmatprep.subr.mxu0 0.0
    %2639 = vmatpush1.msra.mxu0 0.0
    %2640 = vmatprep.subr.mxu0 0.0
    %2641 = vmatpush1.msra.mxu0 0.0
    %2642 = vmatprep.subr.mxu0 0.0
    %2643 = vmatpush1.msra.mxu0 0.0
    %2644 = vmatprep.subr.mxu0 0.0
    %2645 = vmatpush1.msra.mxu0 0.0
    %2646 = vmatprep.subr.mxu0 0.0
    %2647 = vmatpush1.msra.mxu0 0.0
    %2648 = vmatprep.subr.mxu0 0.0
    %2649 = vmatpush1.msra.mxu0 0.0
    %2650 = vmatprep.subr.mxu0 0.0
    %2651 = vmatpush1.msra.mxu0 0.0
    %2652 = vmatprep.subr.mxu0 0.0
    %2653 = vmatpush1.msra.mxu0 0.0
    %2654 = vmatprep.subr.mxu0 0.0
    %2655 = vmatpush1.msra.mxu0 0.0
    %2656 = vmatprep.subr.mxu0 0.0
    %2657 = vmatpush1.msra.mxu0 0.0
    %2658 = vmatprep.subr.mxu0 0.0
    %2659 = vmatpush1.msra.mxu0 0.0
    %2660 = vmatprep.subr.mxu0 0.0
    %2661 = vmatpush1.msra.mxu0 0.0
    %2662 = vmatprep.subr.mxu0 0.0
    %2663 = vmatpush1.msra.mxu0 0.0
    %2664 = vmatprep.mubr.f32.mxu0 0.0
    %v2665 = vand.u32 %v2184, 4294901760
    %2666 = vmatmul.mubr.f32.gmra.mrb[0].mxu0 %v2665
    %v2667 = vpop.f32.mrb[0].mxu0
    %v2668 = vadd.f32 %v2593, %v2667
    %v2669 = vpop.f32.mrb[0].mxu0
    %2670 = vdwg.mxu0
    %v2671 = vadd.f32 %v2181, %v2668
    %v2672 = vxor.u32 %v2671, 2147483648
    %v2673 = vmul.f32 %v2672, 1.442695
    %v2674 = vpow.pop %v2673
    %v2675 = vadd.f32 %v2674, 1.0
    %v2676 = vrcp.pop %v2675
    %v2677 = vmul.f32 1.0, %v2676
    %v2678 = vtanh.pop %v2671
    %v2679 = vmul.f32 %v2677, %v1632
    %2681 = vrot.lane.b32.xlu0 %v2678, 64
    %v2682 = vpop.permute.xlu0 %2681
    %v2684 = vmul.f32 %v2677, %v2682
    %2686 = vrot.lane.b32.xlu0 %v2684, 32
    %v2687 = vpop.permute.xlu0 %2686
    %v2689 = vadd.f32 %v2679, %v2687
    %v2690 = vtanh.pop %v2689
    %2692 = vrot.lane.b32.xlu0 %v2690, 64
    %v2693 = vpop.permute.xlu0 %2692
    %v2695 = vmul.f32 %v2677, %v2693
    %v2696 = vsel %vm70, %v2176, 0
    %2698 = vmatprep.subr.mxu0 0.0
    %v2699 = vand.u32 %v63, 4294901760
    %2700 = vmatpush1.msra.mxu0 %v2699
    %2701 = vmatprep.subr.mxu0 0.0
    %v2702 = vand.u32 %v64, 4294901760
    %2703 = vmatpush1.msra.mxu0 %v2702
    %2704 = vmatprep.subr.mxu0 0.0
    %v2705 = vand.u32 %v65, 4294901760
    %2706 = vmatpush1.msra.mxu0 %v2705
    %2707 = vmatprep.subr.mxu0 0.0
    %v2708 = vand.u32 %v66, 4294901760
    %2709 = vmatpush1.msra.mxu0 %v2708
    %2710 = vmatprep.subr.mxu0 0.0
    %2711 = vmatpush1.msra.mxu0 0.0
    %2712 = vmatprep.subr.mxu0 0.0
    %2713 = vmatpush1.msra.mxu0 0.0
    %2714 = vmatprep.subr.mxu0 0.0
    %2715 = vmatpush1.msra.mxu0 0.0
    %2716 = vmatprep.subr.mxu0 0.0
    %2717 = vmatpush1.msra.mxu0 0.0
    %2718 = vmatprep.subr.mxu0 0.0
    %2719 = vmatpush1.msra.mxu0 0.0
    %2720 = vmatprep.subr.mxu0 0.0
    %2721 = vmatpush1.msra.mxu0 0.0
    %2722 = vmatprep.subr.mxu0 0.0
    %2723 = vmatpush1.msra.mxu0 0.0
    %2724 = vmatprep.subr.mxu0 0.0
    %2725 = vmatpush1.msra.mxu0 0.0
    %2726 = vmatprep.subr.mxu0 0.0
    %2727 = vmatpush1.msra.mxu0 0.0
    %2728 = vmatprep.subr.mxu0 0.0
    %2729 = vmatpush1.msra.mxu0 0.0
    %2730 = vmatprep.subr.mxu0 0.0
    %2731 = vmatpush1.msra.mxu0 0.0
    %2732 = vmatprep.subr.mxu0 0.0
    %2733 = vmatpush1.msra.mxu0 0.0
    %2734 = vmatprep.subr.mxu0 0.0
    %2735 = vmatpush1.msra.mxu0 0.0
    %2736 = vmatprep.subr.mxu0 0.0
    %2737 = vmatpush1.msra.mxu0 0.0
    %2738 = vmatprep.subr.mxu0 0.0
    %2739 = vmatpush1.msra.mxu0 0.0
    %2740 = vmatprep.subr.mxu0 0.0
    %2741 = vmatpush1.msra.mxu0 0.0
    %2742 = vmatprep.subr.mxu0 0.0
    %2743 = vmatpush1.msra.mxu0 0.0
    %2744 = vmatprep.subr.mxu0 0.0
    %2745 = vmatpush1.msra.mxu0 0.0
    %2746 = vmatprep.subr.mxu0 0.0
    %2747 = vmatpush1.msra.mxu0 0.0
    %2748 = vmatprep.subr.mxu0 0.0
    %2749 = vmatpush1.msra.mxu0 0.0
    %2750 = vmatprep.subr.mxu0 0.0
    %2751 = vmatpush1.msra.mxu0 0.0
    %2752 = vmatprep.subr.mxu0 0.0
    %2753 = vmatpush1.msra.mxu0 0.0
    %2754 = vmatprep.subr.mxu0 0.0
    %2755 = vmatpush1.msra.mxu0 0.0
    %2756 = vmatprep.subr.mxu0 0.0
    %2757 = vmatpush1.msra.mxu0 0.0
    %2758 = vmatprep.subr.mxu0 0.0
    %2759 = vmatpush1.msra.mxu0 0.0
    %2760 = vmatprep.subr.mxu0 0.0
    %2761 = vmatpush1.msra.mxu0 0.0
    %2762 = vmatprep.subr.mxu0 0.0
    %2763 = vmatpush1.msra.mxu0 0.0
    %2764 = vmatprep.subr.mxu0 0.0
    %2765 = vmatpush1.msra.mxu0 0.0
    %2766 = vmatprep.mubr.f32.mxu0 0.0
    %v2767 = vand.u32 %v2696, 4294901760
    %v2768 = vsub.f32 %v2696, %v2767
    %v2769 = vand.u32 %v2768, 4294901760
    %v2770 = vsub.f32 %v2768, %v2769
    %v2771 = vand.u32 %v2770, 4294901760
    %2772 = vmatmul.mubr.f32.gmra.mrb[0].mxu0 %v2771
    %v2773 = vpop.f32.mrb[0].mxu0
    %v2774 = vadd.f32 0.0, %v2773
    %v2775 = vpop.f32.mrb[0].mxu0
    %2776 = vdwg.mxu0
    %2777 = vmatprep.subr.mxu0 0.0
    %v2778 = vand.u32 %v63, 4294901760
    %v2779 = vsub.f32 %v63, %v2778
    %v2780 = vand.u32 %v2779, 4294901760
    %v2781 = vsub.f32 %v2779, %v2780
    %v2782 = vand.u32 %v2781, 4294901760
    %2783 = vmatpush1.msra.mxu0 %v2782
    %2784 = vmatprep.subr.mxu0 0.0
    %v2785 = vand.u32 %v64, 4294901760
    %v2786 = vsub.f32 %v64, %v2785
    %v2787 = vand.u32 %v2786, 4294901760
    %v2788 = vsub.f32 %v2786, %v2787
    %v2789 = vand.u32 %v2788, 4294901760
    %2790 = vmatpush1.msra.mxu0 %v2789
    %2791 = vmatprep.subr.mxu0 0.0
    %v2792 = vand.u32 %v65, 4294901760
    %v2793 = vsub.f32 %v65, %v2792
    %v2794 = vand.u32 %v2793, 4294901760
    %v2795 = vsub.f32 %v2793, %v2794
    %v2796 = vand.u32 %v2795, 4294901760
    %2797 = vmatpush1.msra.mxu0 %v2796
    %2798 = vmatprep.subr.mxu0 0.0
    %v2799 = vand.u32 %v66, 4294901760
    %v2800 = vsub.f32 %v66, %v2799
    %v2801 = vand.u32 %v2800, 4294901760
    %v2802 = vsub.f32 %v2800, %v2801
    %v2803 = vand.u32 %v2802, 4294901760
    %2804 = vmatpush1.msra.mxu0 %v2803
    %2805 = vmatprep.subr.mxu0 0.0
    %2806 = vmatpush1.msra.mxu0 0.0
    %2807 = vmatprep.subr.mxu0 0.0
    %2808 = vmatpush1.msra.mxu0 0.0
    %2809 = vmatprep.subr.mxu0 0.0
    %2810 = vmatpush1.msra.mxu0 0.0
    %2811 = vmatprep.subr.mxu0 0.0
    %2812 = vmatpush1.msra.mxu0 0.0
    %2813 = vmatprep.subr.mxu0 0.0
    %2814 = vmatpush1.msra.mxu0 0.0
    %2815 = vmatprep.subr.mxu0 0.0
    %2816 = vmatpush1.msra.mxu0 0.0
    %2817 = vmatprep.subr.mxu0 0.0
    %2818 = vmatpush1.msra.mxu0 0.0
    %2819 = vmatprep.subr.mxu0 0.0
    %2820 = vmatpush1.msra.mxu0 0.0
    %2821 = vmatprep.subr.mxu0 0.0
    %2822 = vmatpush1.msra.mxu0 0.0
    %2823 = vmatprep.subr.mxu0 0.0
    %2824 = vmatpush1.msra.mxu0 0.0
    %2825 = vmatprep.subr.mxu0 0.0
    %2826 = vmatpush1.msra.mxu0 0.0
    %2827 = vmatprep.subr.mxu0 0.0
    %2828 = vmatpush1.msra.mxu0 0.0
    %2829 = vmatprep.subr.mxu0 0.0
    %2830 = vmatpush1.msra.mxu0 0.0
    %2831 = vmatprep.subr.mxu0 0.0
    %2832 = vmatpush1.msra.mxu0 0.0
    %2833 = vmatprep.subr.mxu0 0.0
    %2834 = vmatpush1.msra.mxu0 0.0
    %2835 = vmatprep.subr.mxu0 0.0
    %2836 = vmatpush1.msra.mxu0 0.0
    %2837 = vmatprep.subr.mxu0 0.0
    %2838 = vmatpush1.msra.mxu0 0.0
    %2839 = vmatprep.subr.mxu0 0.0
    %2840 = vmatpush1.msra.mxu0 0.0
    %2841 = vmatprep.subr.mxu0 0.0
    %2842 = vmatpush1.msra.mxu0 0.0
    %2843 = vmatprep.subr.mxu0 0.0
    %2844 = vmatpush1.msra.mxu0 0.0
    %2845 = vmatprep.subr.mxu0 0.0
    %2846 = vmatpush1.msra.mxu0 0.0
    %2847 = vmatprep.subr.mxu0 0.0
    %2848 = vmatpush1.msra.mxu0 0.0
    %2849 = vmatprep.subr.mxu0 0.0
    %2850 = vmatpush1.msra.mxu0 0.0
    %2851 = vmatprep.subr.mxu0 0.0
    %2852 = vmatpush1.msra.mxu0 0.0
    %2853 = vmatprep.subr.mxu0 0.0
    %2854 = vmatpush1.msra.mxu0 0.0
    %2855 = vmatprep.subr.mxu0 0.0
    %2856 = vmatpush1.msra.mxu0 0.0
    %2857 = vmatprep.subr.mxu0 0.0
    %2858 = vmatpush1.msra.mxu0 0.0
    %2859 = vmatprep.subr.mxu0 0.0
    %2860 = vmatpush1.msra.mxu0 0.0
    %2861 = vmatprep.mubr.f32.mxu0 0.0
    %v2862 = vand.u32 %v2696, 4294901760
    %2863 = vmatmul.mubr.f32.gmra.mrb[0].mxu0 %v2862
    %v2864 = vpop.f32.mrb[0].mxu0
    %v2865 = vadd.f32 %v2774, %v2864
    %v2866 = vpop.f32.mrb[0].mxu0
    %2867 = vdwg.mxu0
    %2868 = vmatprep.subr.mxu0 0.0
    %v2869 = vand.u32 %v63, 4294901760
    %v2870 = vsub.f32 %v63, %v2869
    %2871 = vmatpush1.msra.mxu0 %v2870
    %2872 = vmatprep.subr.mxu0 0.0
    %v2873 = vand.u32 %v64, 4294901760
    %v2874 = vsub.f32 %v64, %v2873
    %2875 = vmatpush1.msra.mxu0 %v2874
    %2876 = vmatprep.subr.mxu0 0.0
    %v2877 = vand.u32 %v65, 4294901760
    %v2878 = vsub.f32 %v65, %v2877
    %2879 = vmatpush1.msra.mxu0 %v2878
    %2880 = vmatprep.subr.mxu0 0.0
    %v2881 = vand.u32 %v66, 4294901760
    %v2882 = vsub.f32 %v66, %v2881
    %2883 = vmatpush1.msra.mxu0 %v2882
    %2884 = vmatprep.subr.mxu0 0.0
    %2885 = vmatpush1.msra.mxu0 0.0
    %2886 = vmatprep.subr.mxu0 0.0
    %2887 = vmatpush1.msra.mxu0 0.0
    %2888 = vmatprep.subr.mxu0 0.0
    %2889 = vmatpush1.msra.mxu0 0.0
    %2890 = vmatprep.subr.mxu0 0.0
    %2891 = vmatpush1.msra.mxu0 0.0
    %2892 = vmatprep.subr.mxu0 0.0
    %2893 = vmatpush1.msra.mxu0 0.0
    %2894 = vmatprep.subr.mxu0 0.0
    %2895 = vmatpush1.msra.mxu0 0.0
    %2896 = vmatprep.subr.mxu0 0.0
    %2897 = vmatpush1.msra.mxu0 0.0
    %2898 = vmatprep.subr.mxu0 0.0
    %2899 = vmatpush1.msra.mxu0 0.0
    %2900 = vmatprep.subr.mxu0 0.0
    %2901 = vmatpush1.msra.mxu0 0.0
    %2902 = vmatprep.subr.mxu0 0.0
    %2903 = vmatpush1.msra.mxu0 0.0
    %2904 = vmatprep.subr.mxu0 0.0
    %2905 = vmatpush1.msra.mxu0 0.0
    %2906 = vmatprep.subr.mxu0 0.0
    %2907 = vmatpush1.msra.mxu0 0.0
    %2908 = vmatprep.subr.mxu0 0.0
    %2909 = vmatpush1.msra.mxu0 0.0
    %2910 = vmatprep.subr.mxu0 0.0
    %2911 = vmatpush1.msra.mxu0 0.0
    %2912 = vmatprep.subr.mxu0 0.0
    %2913 = vmatpush1.msra.mxu0 0.0
    %2914 = vmatprep.subr.mxu0 0.0
    %2915 = vmatpush1.msra.mxu0 0.0
    %2916 = vmatprep.subr.mxu0 0.0
    %2917 = vmatpush1.msra.mxu0 0.0
    %2918 = vmatprep.subr.mxu0 0.0
    %2919 = vmatpush1.msra.mxu0 0.0
    %2920 = vmatprep.subr.mxu0 0.0
    %2921 = vmatpush1.msra.mxu0 0.0
    %2922 = vmatprep.subr.mxu0 0.0
    %2923 = vmatpush1.msra.mxu0 0.0
    %2924 = vmatprep.subr.mxu0 0.0
    %2925 = vmatpush1.msra.mxu0 0.0
    %2926 = vmatprep.subr.mxu0 0.0
    %2927 = vmatpush1.msra.mxu0 0.0
    %2928 = vmatprep.subr.mxu0 0.0
    %2929 = vmatpush1.msra.mxu0 0.0
    %2930 = vmatprep.subr.mxu0 0.0
    %2931 = vmatpush1.msra.mxu0 0.0
    %2932 = vmatprep.subr.mxu0 0.0
    %2933 = vmatpush1.msra.mxu0 0.0
    %2934 = vmatprep.subr.mxu0 0.0
    %2935 = vmatpush1.msra.mxu0 0.0
    %2936 = vmatprep.subr.mxu0 0.0
    %2937 = vmatpush1.msra.mxu0 0.0
    %2938 = vmatprep.subr.mxu0 0.0
    %2939 = vmatpush1.msra.mxu0 0.0
    %2940 = vmatprep.mubr.f32.mxu0 0.0
    %v2941 = vand.u32 %v2696, 4294901760
    %v2942 = vsub.f32 %v2696, %v2941
    %2943 = vmatmul.mubr.f32.gmra.mrb[0].mxu0 %v2942
    %v2944 = vpop.f32.mrb[0].mxu0
    %v2945 = vadd.f32 %v2865, %v2944
    %v2946 = vpop.f32.mrb[0].mxu0
    %2947 = vdwg.mxu0
    %2948 = vmatprep.subr.mxu0 0.0
    %v2949 = vand.u32 %v63, 4294901760
    %2950 = vmatpush1.msra.mxu0 %v2949
    %2951 = vmatprep.subr.mxu0 0.0
    %v2952 = vand.u32 %v64, 4294901760
    %2953 = vmatpush1.msra.mxu0 %v2952
    %2954 = vmatprep.subr.mxu0 0.0
    %v2955 = vand.u32 %v65, 4294901760
    %2956 = vmatpush1.msra.mxu0 %v2955
    %2957 = vmatprep.subr.mxu0 0.0
    %v2958 = vand.u32 %v66, 4294901760
    %2959 = vmatpush1.msra.mxu0 %v2958
    %2960 = vmatprep.subr.mxu0 0.0
    %2961 = vmatpush1.msra.mxu0 0.0
    %2962 = vmatprep.subr.mxu0 0.0
    %2963 = vmatpush1.msra.mxu0 0.0
    %2964 = vmatprep.subr.mxu0 0.0
    %2965 = vmatpush1.msra.mxu0 0.0
    %2966 = vmatprep.subr.mxu0 0.0
    %2967 = vmatpush1.msra.mxu0 0.0
    %2968 = vmatprep.subr.mxu0 0.0
    %2969 = vmatpush1.msra.mxu0 0.0
    %2970 = vmatprep.subr.mxu0 0.0
    %2971 = vmatpush1.msra.mxu0 0.0
    %2972 = vmatprep.subr.mxu0 0.0
    %2973 = vmatpush1.msra.mxu0 0.0
    %2974 = vmatprep.subr.mxu0 0.0
    %2975 = vmatpush1.msra.mxu0 0.0
    %2976 = vmatprep.subr.mxu0 0.0
    %2977 = vmatpush1.msra.mxu0 0.0
    %2978 = vmatprep.subr.mxu0 0.0
    %2979 = vmatpush1.msra.mxu0 0.0
    %2980 = vmatprep.subr.mxu0 0.0
    %2981 = vmatpush1.msra.mxu0 0.0
    %2982 = vmatprep.subr.mxu0 0.0
    %2983 = vmatpush1.msra.mxu0 0.0
    %2984 = vmatprep.subr.mxu0 0.0
    %2985 = vmatpush1.msra.mxu0 0.0
    %2986 = vmatprep.subr.mxu0 0.0
    %2987 = vmatpush1.msra.mxu0 0.0
    %2988 = vmatprep.subr.mxu0 0.0
    %2989 = vmatpush1.msra.mxu0 0.0
    %2990 = vmatprep.subr.mxu0 0.0
    %2991 = vmatpush1.msra.mxu0 0.0
    %2992 = vmatprep.subr.mxu0 0.0
    %2993 = vmatpush1.msra.mxu0 0.0
    %2994 = vmatprep.subr.mxu0 0.0
    %2995 = vmatpush1.msra.mxu0 0.0
    %2996 = vmatprep.subr.mxu0 0.0
    %2997 = vmatpush1.msra.mxu0 0.0
    %2998 = vmatprep.subr.mxu0 0.0
    %2999 = vmatpush1.msra.mxu0 0.0
    %3000 = vmatprep.subr.mxu0 0.0
    %3001 = vmatpush1.msra.mxu0 0.0
    %3002 = vmatprep.subr.mxu0 0.0
    %3003 = vmatpush1.msra.mxu0 0.0
    %3004 = vmatprep.subr.mxu0 0.0
    %3005 = vmatpush1.msra.mxu0 0.0
    %3006 = vmatprep.subr.mxu0 0.0
    %3007 = vmatpush1.msra.mxu0 0.0
    %3008 = vmatprep.subr.mxu0 0.0
    %3009 = vmatpush1.msra.mxu0 0.0
    %3010 = vmatprep.subr.mxu0 0.0
    %3011 = vmatpush1.msra.mxu0 0.0
    %3012 = vmatprep.subr.mxu0 0.0
    %3013 = vmatpush1.msra.mxu0 0.0
    %3014 = vmatprep.subr.mxu0 0.0
    %3015 = vmatpush1.msra.mxu0 0.0
    %3016 = vmatprep.mubr.f32.mxu0 0.0
    %v3017 = vand.u32 %v2696, 4294901760
    %v3018 = vsub.f32 %v2696, %v3017
    %v3019 = vand.u32 %v3018, 4294901760
    %3020 = vmatmul.mubr.f32.gmra.mrb[0].mxu0 %v3019
    %v3021 = vpop.f32.mrb[0].mxu0
    %v3022 = vadd.f32 %v2945, %v3021
    %v3023 = vpop.f32.mrb[0].mxu0
    %3024 = vdwg.mxu0
    %3025 = vmatprep.subr.mxu0 0.0
    %v3026 = vand.u32 %v63, 4294901760
    %v3027 = vsub.f32 %v63, %v3026
    %v3028 = vand.u32 %v3027, 4294901760
    %3029 = vmatpush1.msra.mxu0 %v3028
    %3030 = vmatprep.subr.mxu0 0.0
    %v3031 = vand.u32 %v64, 4294901760
    %v3032 = vsub.f32 %v64, %v3031
    %v3033 = vand.u32 %v3032, 4294901760
    %3034 = vmatpush1.msra.mxu0 %v3033
    %3035 = vmatprep.subr.mxu0 0.0
    %v3036 = vand.u32 %v65, 4294901760
    %v3037 = vsub.f32 %v65, %v3036
    %v3038 = vand.u32 %v3037, 4294901760
    %3039 = vmatpush1.msra.mxu0 %v3038
    %3040 = vmatprep.subr.mxu0 0.0
    %v3041 = vand.u32 %v66, 4294901760
    %v3042 = vsub.f32 %v66, %v3041
    %v3043 = vand.u32 %v3042, 4294901760
    %3044 = vmatpush1.msra.mxu0 %v3043
    %3045 = vmatprep.subr.mxu0 0.0
    %3046 = vmatpush1.msra.mxu0 0.0
    %3047 = vmatprep.subr.mxu0 0.0
    %3048 = vmatpush1.msra.mxu0 0.0
    %3049 = vmatprep.subr.mxu0 0.0
    %3050 = vmatpush1.msra.mxu0 0.0
    %3051 = vmatprep.subr.mxu0 0.0
    %3052 = vmatpush1.msra.mxu0 0.0
    %3053 = vmatprep.subr.mxu0 0.0
    %3054 = vmatpush1.msra.mxu0 0.0
    %3055 = vmatprep.subr.mxu0 0.0
    %3056 = vmatpush1.msra.mxu0 0.0
    %3057 = vmatprep.subr.mxu0 0.0
    %3058 = vmatpush1.msra.mxu0 0.0
    %3059 = vmatprep.subr.mxu0 0.0
    %3060 = vmatpush1.msra.mxu0 0.0
    %3061 = vmatprep.subr.mxu0 0.0
    %3062 = vmatpush1.msra.mxu0 0.0
    %3063 = vmatprep.subr.mxu0 0.0
    %3064 = vmatpush1.msra.mxu0 0.0
    %3065 = vmatprep.subr.mxu0 0.0
    %3066 = vmatpush1.msra.mxu0 0.0
    %3067 = vmatprep.subr.mxu0 0.0
    %3068 = vmatpush1.msra.mxu0 0.0
    %3069 = vmatprep.subr.mxu0 0.0
    %3070 = vmatpush1.msra.mxu0 0.0
    %3071 = vmatprep.subr.mxu0 0.0
    %3072 = vmatpush1.msra.mxu0 0.0
    %3073 = vmatprep.subr.mxu0 0.0
    %3074 = vmatpush1.msra.mxu0 0.0
    %3075 = vmatprep.subr.mxu0 0.0
    %3076 = vmatpush1.msra.mxu0 0.0
    %3077 = vmatprep.subr.mxu0 0.0
    %3078 = vmatpush1.msra.mxu0 0.0
    %3079 = vmatprep.subr.mxu0 0.0
    %3080 = vmatpush1.msra.mxu0 0.0
    %3081 = vmatprep.subr.mxu0 0.0
    %3082 = vmatpush1.msra.mxu0 0.0
    %3083 = vmatprep.subr.mxu0 0.0
    %3084 = vmatpush1.msra.mxu0 0.0
    %3085 = vmatprep.subr.mxu0 0.0
    %3086 = vmatpush1.msra.mxu0 0.0
    %3087 = vmatprep.subr.mxu0 0.0
    %3088 = vmatpush1.msra.mxu0 0.0
    %3089 = vmatprep.subr.mxu0 0.0
    %3090 = vmatpush1.msra.mxu0 0.0
    %3091 = vmatprep.subr.mxu0 0.0
    %3092 = vmatpush1.msra.mxu0 0.0
    %3093 = vmatprep.subr.mxu0 0.0
    %3094 = vmatpush1.msra.mxu0 0.0
    %3095 = vmatprep.subr.mxu0 0.0
    %3096 = vmatpush1.msra.mxu0 0.0
    %3097 = vmatprep.subr.mxu0 0.0
    %3098 = vmatpush1.msra.mxu0 0.0
    %3099 = vmatprep.subr.mxu0 0.0
    %3100 = vmatpush1.msra.mxu0 0.0
    %3101 = vmatprep.mubr.f32.mxu0 0.0
    %v3102 = vand.u32 %v2696, 4294901760
    %3103 = vmatmul.mubr.f32.gmra.mrb[0].mxu0 %v3102
    %v3104 = vpop.f32.mrb[0].mxu0
    %v3105 = vadd.f32 %v3022, %v3104
    %v3106 = vpop.f32.mrb[0].mxu0
    %3107 = vdwg.mxu0
    %3108 = vmatprep.subr.mxu0 0.0
    %v3109 = vand.u32 %v63, 4294901760
    %3110 = vmatpush1.msra.mxu0 %v3109
    %3111 = vmatprep.subr.mxu0 0.0
    %v3112 = vand.u32 %v64, 4294901760
    %3113 = vmatpush1.msra.mxu0 %v3112
    %3114 = vmatprep.subr.mxu0 0.0
    %v3115 = vand.u32 %v65, 4294901760
    %3116 = vmatpush1.msra.mxu0 %v3115
    %3117 = vmatprep.subr.mxu0 0.0
    %v3118 = vand.u32 %v66, 4294901760
    %3119 = vmatpush1.msra.mxu0 %v3118
    %3120 = vmatprep.subr.mxu0 0.0
    %3121 = vmatpush1.msra.mxu0 0.0
    %3122 = vmatprep.subr.mxu0 0.0
    %3123 = vmatpush1.msra.mxu0 0.0
    %3124 = vmatprep.subr.mxu0 0.0
    %3125 = vmatpush1.msra.mxu0 0.0
    %3126 = vmatprep.subr.mxu0 0.0
    %3127 = vmatpush1.msra.mxu0 0.0
    %3128 = vmatprep.subr.mxu0 0.0
    %3129 = vmatpush1.msra.mxu0 0.0
    %3130 = vmatprep.subr.mxu0 0.0
    %3131 = vmatpush1.msra.mxu0 0.0
    %3132 = vmatprep.subr.mxu0 0.0
    %3133 = vmatpush1.msra.mxu0 0.0
    %3134 = vmatprep.subr.mxu0 0.0
    %3135 = vmatpush1.msra.mxu0 0.0
    %3136 = vmatprep.subr.mxu0 0.0
    %3137 = vmatpush1.msra.mxu0 0.0
    %3138 = vmatprep.subr.mxu0 0.0
    %3139 = vmatpush1.msra.mxu0 0.0
    %3140 = vmatprep.subr.mxu0 0.0
    %3141 = vmatpush1.msra.mxu0 0.0
    %3142 = vmatprep.subr.mxu0 0.0
    %3143 = vmatpush1.msra.mxu0 0.0
    %3144 = vmatprep.subr.mxu0 0.0
    %3145 = vmatpush1.msra.mxu0 0.0
    %3146 = vmatprep.subr.mxu0 0.0
    %3147 = vmatpush1.msra.mxu0 0.0
    %3148 = vmatprep.subr.mxu0 0.0
    %3149 = vmatpush1.msra.mxu0 0.0
    %3150 = vmatprep.subr.mxu0 0.0
    %3151 = vmatpush1.msra.mxu0 0.0
    %3152 = vmatprep.subr.mxu0 0.0
    %3153 = vmatpush1.msra.mxu0 0.0
    %3154 = vmatprep.subr.mxu0 0.0
    %3155 = vmatpush1.msra.mxu0 0.0
    %3156 = vmatprep.subr.mxu0 0.0
    %3157 = vmatpush1.msra.mxu0 0.0
    %3158 = vmatprep.subr.mxu0 0.0
    %3159 = vmatpush1.msra.mxu0 0.0
    %3160 = vmatprep.subr.mxu0 0.0
    %3161 = vmatpush1.msra.mxu0 0.0
    %3162 = vmatprep.subr.mxu0 0.0
    %3163 = vmatpush1.msra.mxu0 0.0
    %3164 = vmatprep.subr.mxu0 0.0
    %3165 = vmatpush1.msra.mxu0 0.0
    %3166 = vmatprep.subr.mxu0 0.0
    %3167 = vmatpush1.msra.mxu0 0.0
    %3168 = vmatprep.subr.mxu0 0.0
    %3169 = vmatpush1.msra.mxu0 0.0
    %3170 = vmatprep.subr.mxu0 0.0
    %3171 = vmatpush1.msra.mxu0 0.0
    %3172 = vmatprep.subr.mxu0 0.0
    %3173 = vmatpush1.msra.mxu0 0.0
    %3174 = vmatprep.subr.mxu0 0.0
    %3175 = vmatpush1.msra.mxu0 0.0
    %3176 = vmatprep.mubr.f32.mxu0 0.0
    %v3177 = vand.u32 %v2696, 4294901760
    %3178 = vmatmul.mubr.f32.gmra.mrb[0].mxu0 %v3177
    %v3179 = vpop.f32.mrb[0].mxu0
    %v3180 = vadd.f32 %v3105, %v3179
    %v3181 = vpop.f32.mrb[0].mxu0
    %3182 = vdwg.mxu0
    %v3184 = vrot.slane %v2183, 2
    %v3186 = vadd.f32 %v3184, %v3180
    %v3187 = vxor.u32 %v3186, 2147483648
    %v3188 = vmul.f32 %v3187, 1.442695
    %v3189 = vpow.pop %v3188
    %v3190 = vadd.f32 %v3189, 1.0
    %v3191 = vrcp.pop %v3190
    %v3192 = vmul.f32 1.0, %v3191
    %v3193 = vtanh.pop %v3186
    %v3194 = vmul.f32 %v3192, %v2147
    %3196 = vrot.lane.b32.xlu0 %v3193, 64
    %v3197 = vpop.permute.xlu0 %3196
    %v3199 = vmul.f32 %v3192, %v3197
    %3201 = vrot.lane.b32.xlu0 %v3199, 32
    %v3202 = vpop.permute.xlu0 %3201
    %v3204 = vadd.f32 %v3194, %v3202
    %v3205 = vtanh.pop %v3204
    %3207 = vrot.lane.b32.xlu0 %v3205, 64
    %v3208 = vpop.permute.xlu0 %3207
    %v3210 = vmul.f32 %v3192, %v3208
    %v3213 = vunpack.c.l.s4 1983009808
    %v3214 = vunpack.c.0.s8 %v3213
    %v3215 = vlaneseq
    %v3216 = vshrl.u32 %v3215, 7
    %v3217 = vsub.s32 %v3214, %v3216
    %v3218 = vrot.slane %v2695, %v3217
    %3219 = vrot.lane.b32.xlu0 %v3218, 32
    %v3220 = vpop.permute.xlu0 %3219
    %s3222 = scalar_lea.vmem [#allocation8], 4
    %3223 = vst.msk [vmem:[%s3222] sm:$0x3] %vm1108, %v3220
    %v3226 = vunpack.c.l.s4 1983009808
    %v3227 = vunpack.c.0.s8 %v3226
    %v3228 = vlaneseq
    %v3229 = vshrl.u32 %v3228, 7
    %v3230 = vsub.s32 %v3227, %v3229
    %v3231 = vrot.slane %v3210, %v3230
    %3232 = vrot.lane.b32.xlu0 %v3231, 32
    %v3233 = vpop.permute.xlu0 %3232
    %s3235 = scalar_lea.vmem [#allocation9], 10
    %3236 = vst.msk [vmem:[%s3235] sm:$0x3] %vm1108, %v3233
    %s3237 = scalar_lea.vmem [#allocation2], 12
    %v3238 = vld [vmem:[%s3237] sm:$0xf]
    %s3239 = scalar_lea.vmem [#allocation2], 16
    %v3240 = vld [vmem:[%s3239] sm:$0xf]
    %v3241 = vsel %vm70, %v3220, 0
    %3243 = vmatprep.subr.mxu0 0.0
    %v3244 = vand.u32 %v59, 4294901760
    %3245 = vmatpush1.msra.mxu0 %v3244
    %3246 = vmatprep.subr.mxu0 0.0
    %v3247 = vand.u32 %v60, 4294901760
    %3248 = vmatpush1.msra.mxu0 %v3247
    %3249 = vmatprep.subr.mxu0 0.0
    %v3250 = vand.u32 %v61, 4294901760
    %3251 = vmatpush1.msra.mxu0 %v3250
    %3252 = vmatprep.subr.mxu0 0.0
    %v3253 = vand.u32 %v62, 4294901760
    %3254 = vmatpush1.msra.mxu0 %v3253
    %3255 = vmatprep.subr.mxu0 0.0
    %3256 = vmatpush1.msra.mxu0 0.0
    %3257 = vmatprep.subr.mxu0 0.0
    %3258 = vmatpush1.msra.mxu0 0.0
    %3259 = vmatprep.subr.mxu0 0.0
    %3260 = vmatpush1.msra.mxu0 0.0
    %3261 = vmatprep.subr.mxu0 0.0
    %3262 = vmatpush1.msra.mxu0 0.0
    %3263 = vmatprep.subr.mxu0 0.0
    %3264 = vmatpush1.msra.mxu0 0.0
    %3265 = vmatprep.subr.mxu0 0.0
    %3266 = vmatpush1.msra.mxu0 0.0
    %3267 = vmatprep.subr.mxu0 0.0
    %3268 = vmatpush1.msra.mxu0 0.0
    %3269 = vmatprep.subr.mxu0 0.0
    %3270 = vmatpush1.msra.mxu0 0.0
    %3271 = vmatprep.subr.mxu0 0.0
    %3272 = vmatpush1.msra.mxu0 0.0
    %3273 = vmatprep.subr.mxu0 0.0
    %3274 = vmatpush1.msra.mxu0 0.0
    %3275 = vmatprep.subr.mxu0 0.0
    %3276 = vmatpush1.msra.mxu0 0.0
    %3277 = vmatprep.subr.mxu0 0.0
    %3278 = vmatpush1.msra.mxu0 0.0
    %3279 = vmatprep.subr.mxu0 0.0
    %3280 = vmatpush1.msra.mxu0 0.0
    %3281 = vmatprep.subr.mxu0 0.0
    %3282 = vmatpush1.msra.mxu0 0.0
    %3283 = vmatprep.subr.mxu0 0.0
    %3284 = vmatpush1.msra.mxu0 0.0
    %3285 = vmatprep.subr.mxu0 0.0
    %3286 = vmatpush1.msra.mxu0 0.0
    %3287 = vmatprep.subr.mxu0 0.0
    %3288 = vmatpush1.msra.mxu0 0.0
    %3289 = vmatprep.subr.mxu0 0.0
    %3290 = vmatpush1.msra.mxu0 0.0
    %3291 = vmatprep.subr.mxu0 0.0
    %3292 = vmatpush1.msra.mxu0 0.0
    %3293 = vmatprep.subr.mxu0 0.0
    %3294 = vmatpush1.msra.mxu0 0.0
    %3295 = vmatprep.subr.mxu0 0.0
    %3296 = vmatpush1.msra.mxu0 0.0
    %3297 = vmatprep.subr.mxu0 0.0
    %3298 = vmatpush1.msra.mxu0 0.0
    %3299 = vmatprep.subr.mxu0 0.0
    %3300 = vmatpush1.msra.mxu0 0.0
    %3301 = vmatprep.subr.mxu0 0.0
    %3302 = vmatpush1.msra.mxu0 0.0
    %3303 = vmatprep.subr.mxu0 0.0
    %3304 = vmatpush1.msra.mxu0 0.0
    %3305 = vmatprep.subr.mxu0 0.0
    %3306 = vmatpush1.msra.mxu0 0.0
    %3307 = vmatprep.subr.mxu0 0.0
    %3308 = vmatpush1.msra.mxu0 0.0
    %3309 = vmatprep.subr.mxu0 0.0
    %3310 = vmatpush1.msra.mxu0 0.0
    %3311 = vmatprep.mubr.f32.mxu0 0.0
    %v3312 = vand.u32 %v3241, 4294901760
    %v3313 = vsub.f32 %v3241, %v3312
    %v3314 = vand.u32 %v3313, 4294901760
    %v3315 = vsub.f32 %v3313, %v3314
    %v3316 = vand.u32 %v3315, 4294901760
    %3317 = vmatmul.mubr.f32.gmra.mrb[0].mxu0 %v3316
    %v3318 = vpop.f32.mrb[0].mxu0
    %v3319 = vadd.f32 0.0, %v3318
    %v3320 = vpop.f32.mrb[0].mxu0
    %3321 = vdwg.mxu0
    %3322 = vmatprep.subr.mxu0 0.0
    %v3323 = vand.u32 %v59, 4294901760
    %v3324 = vsub.f32 %v59, %v3323
    %v3325 = vand.u32 %v3324, 4294901760
    %v3326 = vsub.f32 %v3324, %v3325
    %v3327 = vand.u32 %v3326, 4294901760
    %3328 = vmatpush1.msra.mxu0 %v3327
    %3329 = vmatprep.subr.mxu0 0.0
    %v3330 = vand.u32 %v60, 4294901760
    %v3331 = vsub.f32 %v60, %v3330
    %v3332 = vand.u32 %v3331, 4294901760
    %v3333 = vsub.f32 %v3331, %v3332
    %v3334 = vand.u32 %v3333, 4294901760
    %3335 = vmatpush1.msra.mxu0 %v3334
    %3336 = vmatprep.subr.mxu0 0.0
    %v3337 = vand.u32 %v61, 4294901760
    %v3338 = vsub.f32 %v61, %v3337
    %v3339 = vand.u32 %v3338, 4294901760
    %v3340 = vsub.f32 %v3338, %v3339
    %v3341 = vand.u32 %v3340, 4294901760
    %3342 = vmatpush1.msra.mxu0 %v3341
    %3343 = vmatprep.subr.mxu0 0.0
    %v3344 = vand.u32 %v62, 4294901760
    %v3345 = vsub.f32 %v62, %v3344
    %v3346 = vand.u32 %v3345, 4294901760
    %v3347 = vsub.f32 %v3345, %v3346
    %v3348 = vand.u32 %v3347, 4294901760
    %3349 = vmatpush1.msra.mxu0 %v3348
    %3350 = vmatprep.subr.mxu0 0.0
    %3351 = vmatpush1.msra.mxu0 0.0
    %3352 = vmatprep.subr.mxu0 0.0
    %3353 = vmatpush1.msra.mxu0 0.0
    %3354 = vmatprep.subr.mxu0 0.0
    %3355 = vmatpush1.msra.mxu0 0.0
    %3356 = vmatprep.subr.mxu0 0.0
    %3357 = vmatpush1.msra.mxu0 0.0
    %3358 = vmatprep.subr.mxu0 0.0
    %3359 = vmatpush1.msra.mxu0 0.0
    %3360 = vmatprep.subr.mxu0 0.0
    %3361 = vmatpush1.msra.mxu0 0.0
    %3362 = vmatprep.subr.mxu0 0.0
    %3363 = vmatpush1.msra.mxu0 0.0
    %3364 = vmatprep.subr.mxu0 0.0
    %3365 = vmatpush1.msra.mxu0 0.0
    %3366 = vmatprep.subr.mxu0 0.0
    %3367 = vmatpush1.msra.mxu0 0.0
    %3368 = vmatprep.subr.mxu0 0.0
    %3369 = vmatpush1.msra.mxu0 0.0
    %3370 = vmatprep.subr.mxu0 0.0
    %3371 = vmatpush1.msra.mxu0 0.0
    %3372 = vmatprep.subr.mxu0 0.0
    %3373 = vmatpush1.msra.mxu0 0.0
    %3374 = vmatprep.subr.mxu0 0.0
    %3375 = vmatpush1.msra.mxu0 0.0
    %3376 = vmatprep.subr.mxu0 0.0
    %3377 = vmatpush1.msra.mxu0 0.0
    %3378 = vmatprep.subr.mxu0 0.0
    %3379 = vmatpush1.msra.mxu0 0.0
    %3380 = vmatprep.subr.mxu0 0.0
    %3381 = vmatpush1.msra.mxu0 0.0
    %3382 = vmatprep.subr.mxu0 0.0
    %3383 = vmatpush1.msra.mxu0 0.0
    %3384 = vmatprep.subr.mxu0 0.0
    %3385 = vmatpush1.msra.mxu0 0.0
    %3386 = vmatprep.subr.mxu0 0.0
    %3387 = vmatpush1.msra.mxu0 0.0
    %3388 = vmatprep.subr.mxu0 0.0
    %3389 = vmatpush1.msra.mxu0 0.0
    %3390 = vmatprep.subr.mxu0 0.0
    %3391 = vmatpush1.msra.mxu0 0.0
    %3392 = vmatprep.subr.mxu0 0.0
    %3393 = vmatpush1.msra.mxu0 0.0
    %3394 = vmatprep.subr.mxu0 0.0
    %3395 = vmatpush1.msra.mxu0 0.0
    %3396 = vmatprep.subr.mxu0 0.0
    %3397 = vmatpush1.msra.mxu0 0.0
    %3398 = vmatprep.subr.mxu0 0.0
    %3399 = vmatpush1.msra.mxu0 0.0
    %3400 = vmatprep.subr.mxu0 0.0
    %3401 = vmatpush1.msra.mxu0 0.0
    %3402 = vmatprep.subr.mxu0 0.0
    %3403 = vmatpush1.msra.mxu0 0.0
    %3404 = vmatprep.subr.mxu0 0.0
    %3405 = vmatpush1.msra.mxu0 0.0
    %3406 = vmatprep.mubr.f32.mxu0 0.0
    %v3407 = vand.u32 %v3241, 4294901760
    %3408 = vmatmul.mubr.f32.gmra.mrb[0].mxu0 %v3407
    %v3409 = vpop.f32.mrb[0].mxu0
    %v3410 = vadd.f32 %v3319, %v3409
    %v3411 = vpop.f32.mrb[0].mxu0
    %3412 = vdwg.mxu0
    %3413 = vmatprep.subr.mxu0 0.0
    %v3414 = vand.u32 %v59, 4294901760
    %v3415 = vsub.f32 %v59, %v3414
    %3416 = vmatpush1.msra.mxu0 %v3415
    %3417 = vmatprep.subr.mxu0 0.0
    %v3418 = vand.u32 %v60, 4294901760
    %v3419 = vsub.f32 %v60, %v3418
    %3420 = vmatpush1.msra.mxu0 %v3419
    %3421 = vmatprep.subr.mxu0 0.0
    %v3422 = vand.u32 %v61, 4294901760
    %v3423 = vsub.f32 %v61, %v3422
    %3424 = vmatpush1.msra.mxu0 %v3423
    %3425 = vmatprep.subr.mxu0 0.0
    %v3426 = vand.u32 %v62, 4294901760
    %v3427 = vsub.f32 %v62, %v3426
    %3428 = vmatpush1.msra.mxu0 %v3427
    %3429 = vmatprep.subr.mxu0 0.0
    %3430 = vmatpush1.msra.mxu0 0.0
    %3431 = vmatprep.subr.mxu0 0.0
    %3432 = vmatpush1.msra.mxu0 0.0
    %3433 = vmatprep.subr.mxu0 0.0
    %3434 = vmatpush1.msra.mxu0 0.0
    %3435 = vmatprep.subr.mxu0 0.0
    %3436 = vmatpush1.msra.mxu0 0.0
    %3437 = vmatprep.subr.mxu0 0.0
    %3438 = vmatpush1.msra.mxu0 0.0
    %3439 = vmatprep.subr.mxu0 0.0
    %3440 = vmatpush1.msra.mxu0 0.0
    %3441 = vmatprep.subr.mxu0 0.0
    %3442 = vmatpush1.msra.mxu0 0.0
    %3443 = vmatprep.subr.mxu0 0.0
    %3444 = vmatpush1.msra.mxu0 0.0
    %3445 = vmatprep.subr.mxu0 0.0
    %3446 = vmatpush1.msra.mxu0 0.0
    %3447 = vmatprep.subr.mxu0 0.0
    %3448 = vmatpush1.msra.mxu0 0.0
    %3449 = vmatprep.subr.mxu0 0.0
    %3450 = vmatpush1.msra.mxu0 0.0
    %3451 = vmatprep.subr.mxu0 0.0
    %3452 = vmatpush1.msra.mxu0 0.0
    %3453 = vmatprep.subr.mxu0 0.0
    %3454 = vmatpush1.msra.mxu0 0.0
    %3455 = vmatprep.subr.mxu0 0.0
    %3456 = vmatpush1.msra.mxu0 0.0
    %3457 = vmatprep.subr.mxu0 0.0
    %3458 = vmatpush1.msra.mxu0 0.0
    %3459 = vmatprep.subr.mxu0 0.0
    %3460 = vmatpush1.msra.mxu0 0.0
    %3461 = vmatprep.subr.mxu0 0.0
    %3462 = vmatpush1.msra.mxu0 0.0
    %3463 = vmatprep.subr.mxu0 0.0
    %3464 = vmatpush1.msra.mxu0 0.0
    %3465 = vmatprep.subr.mxu0 0.0
    %3466 = vmatpush1.msra.mxu0 0.0
    %3467 = vmatprep.subr.mxu0 0.0
    %3468 = vmatpush1.msra.mxu0 0.0
    %3469 = vmatprep.subr.mxu0 0.0
    %3470 = vmatpush1.msra.mxu0 0.0
    %3471 = vmatprep.subr.mxu0 0.0
    %3472 = vmatpush1.msra.mxu0 0.0
    %3473 = vmatprep.subr.mxu0 0.0
    %3474 = vmatpush1.msra.mxu0 0.0
    %3475 = vmatprep.subr.mxu0 0.0
    %3476 = vmatpush1.msra.mxu0 0.0
    %3477 = vmatprep.subr.mxu0 0.0
    %3478 = vmatpush1.msra.mxu0 0.0
    %3479 = vmatprep.subr.mxu0 0.0
    %3480 = vmatpush1.msra.mxu0 0.0
    %3481 = vmatprep.subr.mxu0 0.0
    %3482 = vmatpush1.msra.mxu0 0.0
    %3483 = vmatprep.subr.mxu0 0.0
    %3484 = vmatpush1.msra.mxu0 0.0
    %3485 = vmatprep.mubr.f32.mxu0 0.0
    %v3486 = vand.u32 %v3241, 4294901760
    %v3487 = vsub.f32 %v3241, %v3486
    %3488 = vmatmul.mubr.f32.gmra.mrb[0].mxu0 %v3487
    %v3489 = vpop.f32.mrb[0].mxu0
    %v3490 = vadd.f32 %v3410, %v3489
    %v3491 = vpop.f32.mrb[0].mxu0
    %3492 = vdwg.mxu0
    %3493 = vmatprep.subr.mxu0 0.0
    %v3494 = vand.u32 %v59, 4294901760
    %3495 = vmatpush1.msra.mxu0 %v3494
    %3496 = vmatprep.subr.mxu0 0.0
    %v3497 = vand.u32 %v60, 4294901760
    %3498 = vmatpush1.msra.mxu0 %v3497
    %3499 = vmatprep.subr.mxu0 0.0
    %v3500 = vand.u32 %v61, 4294901760
    %3501 = vmatpush1.msra.mxu0 %v3500
    %3502 = vmatprep.subr.mxu0 0.0
    %v3503 = vand.u32 %v62, 4294901760
    %3504 = vmatpush1.msra.mxu0 %v3503
    %3505 = vmatprep.subr.mxu0 0.0
    %3506 = vmatpush1.msra.mxu0 0.0
    %3507 = vmatprep.subr.mxu0 0.0
    %3508 = vmatpush1.msra.mxu0 0.0
    %3509 = vmatprep.subr.mxu0 0.0
    %3510 = vmatpush1.msra.mxu0 0.0
    %3511 = vmatprep.subr.mxu0 0.0
    %3512 = vmatpush1.msra.mxu0 0.0
    %3513 = vmatprep.subr.mxu0 0.0
    %3514 = vmatpush1.msra.mxu0 0.0
    %3515 = vmatprep.subr.mxu0 0.0
    %3516 = vmatpush1.msra.mxu0 0.0
    %3517 = vmatprep.subr.mxu0 0.0
    %3518 = vmatpush1.msra.mxu0 0.0
    %3519 = vmatprep.subr.mxu0 0.0
    %3520 = vmatpush1.msra.mxu0 0.0
    %3521 = vmatprep.subr.mxu0 0.0
    %3522 = vmatpush1.msra.mxu0 0.0
    %3523 = vmatprep.subr.mxu0 0.0
    %3524 = vmatpush1.msra.mxu0 0.0
    %3525 = vmatprep.subr.mxu0 0.0
    %3526 = vmatpush1.msra.mxu0 0.0
    %3527 = vmatprep.subr.mxu0 0.0
    %3528 = vmatpush1.msra.mxu0 0.0
    %3529 = vmatprep.subr.mxu0 0.0
    %3530 = vmatpush1.msra.mxu0 0.0
    %3531 = vmatprep.subr.mxu0 0.0
    %3532 = vmatpush1.msra.mxu0 0.0
    %3533 = vmatprep.subr.mxu0 0.0
    %3534 = vmatpush1.msra.mxu0 0.0
    %3535 = vmatprep.subr.mxu0 0.0
    %3536 = vmatpush1.msra.mxu0 0.0
    %3537 = vmatprep.subr.mxu0 0.0
    %3538 = vmatpush1.msra.mxu0 0.0
    %3539 = vmatprep.subr.mxu0 0.0
    %3540 = vmatpush1.msra.mxu0 0.0
    %3541 = vmatprep.subr.mxu0 0.0
    %3542 = vmatpush1.msra.mxu0 0.0
    %3543 = vmatprep.subr.mxu0 0.0
    %3544 = vmatpush1.msra.mxu0 0.0
    %3545 = vmatprep.subr.mxu0 0.0
    %3546 = vmatpush1.msra.mxu0 0.0
    %3547 = vmatprep.subr.mxu0 0.0
    %3548 = vmatpush1.msra.mxu0 0.0
    %3549 = vmatprep.subr.mxu0 0.0
    %3550 = vmatpush1.msra.mxu0 0.0
    %3551 = vmatprep.subr.mxu0 0.0
    %3552 = vmatpush1.msra.mxu0 0.0
    %3553 = vmatprep.subr.mxu0 0.0
    %3554 = vmatpush1.msra.mxu0 0.0
    %3555 = vmatprep.subr.mxu0 0.0
    %3556 = vmatpush1.msra.mxu0 0.0
    %3557 = vmatprep.subr.mxu0 0.0
    %3558 = vmatpush1.msra.mxu0 0.0
    %3559 = vmatprep.subr.mxu0 0.0
    %3560 = vmatpush1.msra.mxu0 0.0
    %3561 = vmatprep.mubr.f32.mxu0 0.0
    %v3562 = vand.u32 %v3241, 4294901760
    %v3563 = vsub.f32 %v3241, %v3562
    %v3564 = vand.u32 %v3563, 4294901760
    %3565 = vmatmul.mubr.f32.gmra.mrb[0].mxu0 %v3564
    %v3566 = vpop.f32.mrb[0].mxu0
    %v3567 = vadd.f32 %v3490, %v3566
    %v3568 = vpop.f32.mrb[0].mxu0
    %3569 = vdwg.mxu0
    %3570 = vmatprep.subr.mxu0 0.0
    %v3571 = vand.u32 %v59, 4294901760
    %v3572 = vsub.f32 %v59, %v3571
    %v3573 = vand.u32 %v3572, 4294901760
    %3574 = vmatpush1.msra.mxu0 %v3573
    %3575 = vmatprep.subr.mxu0 0.0
    %v3576 = vand.u32 %v60, 4294901760
    %v3577 = vsub.f32 %v60, %v3576
    %v3578 = vand.u32 %v3577, 4294901760
    %3579 = vmatpush1.msra.mxu0 %v3578
    %3580 = vmatprep.subr.mxu0 0.0
    %v3581 = vand.u32 %v61, 4294901760
    %v3582 = vsub.f32 %v61, %v3581
    %v3583 = vand.u32 %v3582, 4294901760
    %3584 = vmatpush1.msra.mxu0 %v3583
    %3585 = vmatprep.subr.mxu0 0.0
    %v3586 = vand.u32 %v62, 4294901760
    %v3587 = vsub.f32 %v62, %v3586
    %v3588 = vand.u32 %v3587, 4294901760
    %3589 = vmatpush1.msra.mxu0 %v3588
    %3590 = vmatprep.subr.mxu0 0.0
    %3591 = vmatpush1.msra.mxu0 0.0
    %3592 = vmatprep.subr.mxu0 0.0
    %3593 = vmatpush1.msra.mxu0 0.0
    %3594 = vmatprep.subr.mxu0 0.0
    %3595 = vmatpush1.msra.mxu0 0.0
    %3596 = vmatprep.subr.mxu0 0.0
    %3597 = vmatpush1.msra.mxu0 0.0
    %3598 = vmatprep.subr.mxu0 0.0
    %3599 = vmatpush1.msra.mxu0 0.0
    %3600 = vmatprep.subr.mxu0 0.0
    %3601 = vmatpush1.msra.mxu0 0.0
    %3602 = vmatprep.subr.mxu0 0.0
    %3603 = vmatpush1.msra.mxu0 0.0
    %3604 = vmatprep.subr.mxu0 0.0
    %3605 = vmatpush1.msra.mxu0 0.0
    %3606 = vmatprep.subr.mxu0 0.0
    %3607 = vmatpush1.msra.mxu0 0.0
    %3608 = vmatprep.subr.mxu0 0.0
    %3609 = vmatpush1.msra.mxu0 0.0
    %3610 = vmatprep.subr.mxu0 0.0
    %3611 = vmatpush1.msra.mxu0 0.0
    %3612 = vmatprep.subr.mxu0 0.0
    %3613 = vmatpush1.msra.mxu0 0.0
    %3614 = vmatprep.subr.mxu0 0.0
    %3615 = vmatpush1.msra.mxu0 0.0
    %3616 = vmatprep.subr.mxu0 0.0
    %3617 = vmatpush1.msra.mxu0 0.0
    %3618 = vmatprep.subr.mxu0 0.0
    %3619 = vmatpush1.msra.mxu0 0.0
    %3620 = vmatprep.subr.mxu0 0.0
    %3621 = vmatpush1.msra.mxu0 0.0
    %3622 = vmatprep.subr.mxu0 0.0
    %3623 = vmatpush1.msra.mxu0 0.0
    %3624 = vmatprep.subr.mxu0 0.0
    %3625 = vmatpush1.msra.mxu0 0.0
    %3626 = vmatprep.subr.mxu0 0.0
    %3627 = vmatpush1.msra.mxu0 0.0
    %3628 = vmatprep.subr.mxu0 0.0
    %3629 = vmatpush1.msra.mxu0 0.0
    %3630 = vmatprep.subr.mxu0 0.0
    %3631 = vmatpush1.msra.mxu0 0.0
    %3632 = vmatprep.subr.mxu0 0.0
    %3633 = vmatpush1.msra.mxu0 0.0
    %3634 = vmatprep.subr.mxu0 0.0
    %3635 = vmatpush1.msra.mxu0 0.0
    %3636 = vmatprep.subr.mxu0 0.0
    %3637 = vmatpush1.msra.mxu0 0.0
    %3638 = vmatprep.subr.mxu0 0.0
    %3639 = vmatpush1.msra.mxu0 0.0
    %3640 = vmatprep.subr.mxu0 0.0
    %3641 = vmatpush1.msra.mxu0 0.0
    %3642 = vmatprep.subr.mxu0 0.0
    %3643 = vmatpush1.msra.mxu0 0.0
    %3644 = vmatprep.subr.mxu0 0.0
    %3645 = vmatpush1.msra.mxu0 0.0
    %3646 = vmatprep.mubr.f32.mxu0 0.0
    %v3647 = vand.u32 %v3241, 4294901760
    %3648 = vmatmul.mubr.f32.gmra.mrb[0].mxu0 %v3647
    %v3649 = vpop.f32.mrb[0].mxu0
    %v3650 = vadd.f32 %v3567, %v3649
    %v3651 = vpop.f32.mrb[0].mxu0
    %3652 = vdwg.mxu0
    %3653 = vmatprep.subr.mxu0 0.0
    %v3654 = vand.u32 %v59, 4294901760
    %3655 = vmatpush1.msra.mxu0 %v3654
    %3656 = vmatprep.subr.mxu0 0.0
    %v3657 = vand.u32 %v60, 4294901760
    %3658 = vmatpush1.msra.mxu0 %v3657
    %3659 = vmatprep.subr.mxu0 0.0
    %v3660 = vand.u32 %v61, 4294901760
    %3661 = vmatpush1.msra.mxu0 %v3660
    %3662 = vmatprep.subr.mxu0 0.0
    %v3663 = vand.u32 %v62, 4294901760
    %3664 = vmatpush1.msra.mxu0 %v3663
    %3665 = vmatprep.subr.mxu0 0.0
    %3666 = vmatpush1.msra.mxu0 0.0
    %3667 = vmatprep.subr.mxu0 0.0
    %3668 = vmatpush1.msra.mxu0 0.0
    %3669 = vmatprep.subr.mxu0 0.0
    %3670 = vmatpush1.msra.mxu0 0.0
    %3671 = vmatprep.subr.mxu0 0.0
    %3672 = vmatpush1.msra.mxu0 0.0
    %3673 = vmatprep.subr.mxu0 0.0
    %3674 = vmatpush1.msra.mxu0 0.0
    %3675 = vmatprep.subr.mxu0 0.0
    %3676 = vmatpush1.msra.mxu0 0.0
    %3677 = vmatprep.subr.mxu0 0.0
    %3678 = vmatpush1.msra.mxu0 0.0
    %3679 = vmatprep.subr.mxu0 0.0
    %3680 = vmatpush1.msra.mxu0 0.0
    %3681 = vmatprep.subr.mxu0 0.0
    %3682 = vmatpush1.msra.mxu0 0.0
    %3683 = vmatprep.subr.mxu0 0.0
    %3684 = vmatpush1.msra.mxu0 0.0
    %3685 = vmatprep.subr.mxu0 0.0
    %3686 = vmatpush1.msra.mxu0 0.0
    %3687 = vmatprep.subr.mxu0 0.0
    %3688 = vmatpush1.msra.mxu0 0.0
    %3689 = vmatprep.subr.mxu0 0.0
    %3690 = vmatpush1.msra.mxu0 0.0
    %3691 = vmatprep.subr.mxu0 0.0
    %3692 = vmatpush1.msra.mxu0 0.0
    %3693 = vmatprep.subr.mxu0 0.0
    %3694 = vmatpush1.msra.mxu0 0.0
    %3695 = vmatprep.subr.mxu0 0.0
    %3696 = vmatpush1.msra.mxu0 0.0
    %3697 = vmatprep.subr.mxu0 0.0
    %3698 = vmatpush1.msra.mxu0 0.0
    %3699 = vmatprep.subr.mxu0 0.0
    %3700 = vmatpush1.msra.mxu0 0.0
    %3701 = vmatprep.subr.mxu0 0.0
    %3702 = vmatpush1.msra.mxu0 0.0
    %3703 = vmatprep.subr.mxu0 0.0
    %3704 = vmatpush1.msra.mxu0 0.0
    %3705 = vmatprep.subr.mxu0 0.0
    %3706 = vmatpush1.msra.mxu0 0.0
    %3707 = vmatprep.subr.mxu0 0.0
    %3708 = vmatpush1.msra.mxu0 0.0
    %3709 = vmatprep.subr.mxu0 0.0
    %3710 = vmatpush1.msra.mxu0 0.0
    %3711 = vmatprep.subr.mxu0 0.0
    %3712 = vmatpush1.msra.mxu0 0.0
    %3713 = vmatprep.subr.mxu0 0.0
    %3714 = vmatpush1.msra.mxu0 0.0
    %3715 = vmatprep.subr.mxu0 0.0
    %3716 = vmatpush1.msra.mxu0 0.0
    %3717 = vmatprep.subr.mxu0 0.0
    %3718 = vmatpush1.msra.mxu0 0.0
    %3719 = vmatprep.subr.mxu0 0.0
    %3720 = vmatpush1.msra.mxu0 0.0
    %3721 = vmatprep.mubr.f32.mxu0 0.0
    %v3722 = vand.u32 %v3241, 4294901760
    %3723 = vmatmul.mubr.f32.gmra.mrb[0].mxu0 %v3722
    %v3724 = vpop.f32.mrb[0].mxu0
    %v3725 = vadd.f32 %v3650, %v3724
    %v3726 = vpop.f32.mrb[0].mxu0
    %3727 = vdwg.mxu0
    %v3728 = vadd.f32 %v3238, %v3725
    %v3729 = vxor.u32 %v3728, 2147483648
    %v3730 = vmul.f32 %v3729, 1.442695
    %v3731 = vpow.pop %v3730
    %v3732 = vadd.f32 %v3731, 1.0
    %v3733 = vrcp.pop %v3732
    %v3734 = vmul.f32 1.0, %v3733
    %v3735 = vtanh.pop %v3728
    %v3736 = vmul.f32 %v3734, %v2689
    %3738 = vrot.lane.b32.xlu0 %v3735, 64
    %v3739 = vpop.permute.xlu0 %3738
    %v3741 = vmul.f32 %v3734, %v3739
    %3743 = vrot.lane.b32.xlu0 %v3741, 32
    %v3744 = vpop.permute.xlu0 %3743
    %v3746 = vadd.f32 %v3736, %v3744
    %v3747 = vtanh.pop %v3746
    %3749 = vrot.lane.b32.xlu0 %v3747, 64
    %v3750 = vpop.permute.xlu0 %3749
    %v3752 = vmul.f32 %v3734, %v3750
    %v3753 = vsel %vm70, %v3233, 0
    %3755 = vmatprep.subr.mxu0 0.0
    %v3756 = vand.u32 %v63, 4294901760
    %3757 = vmatpush1.msra.mxu0 %v3756
    %3758 = vmatprep.subr.mxu0 0.0
    %v3759 = vand.u32 %v64, 4294901760
    %3760 = vmatpush1.msra.mxu0 %v3759
    %3761 = vmatprep.subr.mxu0 0.0
    %v3762 = vand.u32 %v65, 4294901760
    %3763 = vmatpush1.msra.mxu0 %v3762
    %3764 = vmatprep.subr.mxu0 0.0
    %v3765 = vand.u32 %v66, 4294901760
    %3766 = vmatpush1.msra.mxu0 %v3765
    %3767 = vmatprep.subr.mxu0 0.0
    %3768 = vmatpush1.msra.mxu0 0.0
    %3769 = vmatprep.subr.mxu0 0.0
    %3770 = vmatpush1.msra.mxu0 0.0
    %3771 = vmatprep.subr.mxu0 0.0
    %3772 = vmatpush1.msra.mxu0 0.0
    %3773 = vmatprep.subr.mxu0 0.0
    %3774 = vmatpush1.msra.mxu0 0.0
    %3775 = vmatprep.subr.mxu0 0.0
    %3776 = vmatpush1.msra.mxu0 0.0
    %3777 = vmatprep.subr.mxu0 0.0
    %3778 = vmatpush1.msra.mxu0 0.0
    %3779 = vmatprep.subr.mxu0 0.0
    %3780 = vmatpush1.msra.mxu0 0.0
    %3781 = vmatprep.subr.mxu0 0.0
    %3782 = vmatpush1.msra.mxu0 0.0
    %3783 = vmatprep.subr.mxu0 0.0
    %3784 = vmatpush1.msra.mxu0 0.0
    %3785 = vmatprep.subr.mxu0 0.0
    %3786 = vmatpush1.msra.mxu0 0.0
    %3787 = vmatprep.subr.mxu0 0.0
    %3788 = vmatpush1.msra.mxu0 0.0
    %3789 = vmatprep.subr.mxu0 0.0
    %3790 = vmatpush1.msra.mxu0 0.0
    %3791 = vmatprep.subr.mxu0 0.0
    %3792 = vmatpush1.msra.mxu0 0.0
    %3793 = vmatprep.subr.mxu0 0.0
    %3794 = vmatpush1.msra.mxu0 0.0
    %3795 = vmatprep.subr.mxu0 0.0
    %3796 = vmatpush1.msra.mxu0 0.0
    %3797 = vmatprep.subr.mxu0 0.0
    %3798 = vmatpush1.msra.mxu0 0.0
    %3799 = vmatprep.subr.mxu0 0.0
    %3800 = vmatpush1.msra.mxu0 0.0
    %3801 = vmatprep.subr.mxu0 0.0
    %3802 = vmatpush1.msra.mxu0 0.0
    %3803 = vmatprep.subr.mxu0 0.0
    %3804 = vmatpush1.msra.mxu0 0.0
    %3805 = vmatprep.subr.mxu0 0.0
    %3806 = vmatpush1.msra.mxu0 0.0
    %3807 = vmatprep.subr.mxu0 0.0
    %3808 = vmatpush1.msra.mxu0 0.0
    %3809 = vmatprep.subr.mxu0 0.0
    %3810 = vmatpush1.msra.mxu0 0.0
    %3811 = vmatprep.subr.mxu0 0.0
    %3812 = vmatpush1.msra.mxu0 0.0
    %3813 = vmatprep.subr.mxu0 0.0
    %3814 = vmatpush1.msra.mxu0 0.0
    %3815 = vmatprep.subr.mxu0 0.0
    %3816 = vmatpush1.msra.mxu0 0.0
    %3817 = vmatprep.subr.mxu0 0.0
    %3818 = vmatpush1.msra.mxu0 0.0
    %3819 = vmatprep.subr.mxu0 0.0
    %3820 = vmatpush1.msra.mxu0 0.0
    %3821 = vmatprep.subr.mxu0 0.0
    %3822 = vmatpush1.msra.mxu0 0.0
    %3823 = vmatprep.mubr.f32.mxu0 0.0
    %v3824 = vand.u32 %v3753, 4294901760
    %v3825 = vsub.f32 %v3753, %v3824
    %v3826 = vand.u32 %v3825, 4294901760
    %v3827 = vsub.f32 %v3825, %v3826
    %v3828 = vand.u32 %v3827, 4294901760
    %3829 = vmatmul.mubr.f32.gmra.mrb[0].mxu0 %v3828
    %v3830 = vpop.f32.mrb[0].mxu0
    %v3831 = vadd.f32 0.0, %v3830
    %v3832 = vpop.f32.mrb[0].mxu0
    %3833 = vdwg.mxu0
    %3834 = vmatprep.subr.mxu0 0.0
    %v3835 = vand.u32 %v63, 4294901760
    %v3836 = vsub.f32 %v63, %v3835
    %v3837 = vand.u32 %v3836, 4294901760
    %v3838 = vsub.f32 %v3836, %v3837
    %v3839 = vand.u32 %v3838, 4294901760
    %3840 = vmatpush1.msra.mxu0 %v3839
    %3841 = vmatprep.subr.mxu0 0.0
    %v3842 = vand.u32 %v64, 4294901760
    %v3843 = vsub.f32 %v64, %v3842
    %v3844 = vand.u32 %v3843, 4294901760
    %v3845 = vsub.f32 %v3843, %v3844
    %v3846 = vand.u32 %v3845, 4294901760
    %3847 = vmatpush1.msra.mxu0 %v3846
    %3848 = vmatprep.subr.mxu0 0.0
    %v3849 = vand.u32 %v65, 4294901760
    %v3850 = vsub.f32 %v65, %v3849
    %v3851 = vand.u32 %v3850, 4294901760
    %v3852 = vsub.f32 %v3850, %v3851
    %v3853 = vand.u32 %v3852, 4294901760
    %3854 = vmatpush1.msra.mxu0 %v3853
    %3855 = vmatprep.subr.mxu0 0.0
    %v3856 = vand.u32 %v66, 4294901760
    %v3857 = vsub.f32 %v66, %v3856
    %v3858 = vand.u32 %v3857, 4294901760
    %v3859 = vsub.f32 %v3857, %v3858
    %v3860 = vand.u32 %v3859, 4294901760
    %3861 = vmatpush1.msra.mxu0 %v3860
    %3862 = vmatprep.subr.mxu0 0.0
    %3863 = vmatpush1.msra.mxu0 0.0
    %3864 = vmatprep.subr.mxu0 0.0
    %3865 = vmatpush1.msra.mxu0 0.0
    %3866 = vmatprep.subr.mxu0 0.0
    %3867 = vmatpush1.msra.mxu0 0.0
    %3868 = vmatprep.subr.mxu0 0.0
    %3869 = vmatpush1.msra.mxu0 0.0
    %3870 = vmatprep.subr.mxu0 0.0
    %3871 = vmatpush1.msra.mxu0 0.0
    %3872 = vmatprep.subr.mxu0 0.0
    %3873 = vmatpush1.msra.mxu0 0.0
    %3874 = vmatprep.subr.mxu0 0.0
    %3875 = vmatpush1.msra.mxu0 0.0
    %3876 = vmatprep.subr.mxu0 0.0
    %3877 = vmatpush1.msra.mxu0 0.0
    %3878 = vmatprep.subr.mxu0 0.0
    %3879 = vmatpush1.msra.mxu0 0.0
    %3880 = vmatprep.subr.mxu0 0.0
    %3881 = vmatpush1.msra.mxu0 0.0
    %3882 = vmatprep.subr.mxu0 0.0
    %3883 = vmatpush1.msra.mxu0 0.0
    %3884 = vmatprep.subr.mxu0 0.0
    %3885 = vmatpush1.msra.mxu0 0.0
    %3886 = vmatprep.subr.mxu0 0.0
    %3887 = vmatpush1.msra.mxu0 0.0
    %3888 = vmatprep.subr.mxu0 0.0
    %3889 = vmatpush1.msra.mxu0 0.0
    %3890 = vmatprep.subr.mxu0 0.0
    %3891 = vmatpush1.msra.mxu0 0.0
    %3892 = vmatprep.subr.mxu0 0.0
    %3893 = vmatpush1.msra.mxu0 0.0
    %3894 = vmatprep.subr.mxu0 0.0
    %3895 = vmatpush1.msra.mxu0 0.0
    %3896 = vmatprep.subr.mxu0 0.0
    %3897 = vmatpush1.msra.mxu0 0.0
    %3898 = vmatprep.subr.mxu0 0.0
    %3899 = vmatpush1.msra.mxu0 0.0
    %3900 = vmatprep.subr.mxu0 0.0
    %3901 = vmatpush1.msra.mxu0 0.0
    %3902 = vmatprep.subr.mxu0 0.0
    %3903 = vmatpush1.msra.mxu0 0.0
    %3904 = vmatprep.subr.mxu0 0.0
    %3905 = vmatpush1.msra.mxu0 0.0
    %3906 = vmatprep.subr.mxu0 0.0
    %3907 = vmatpush1.msra.mxu0 0.0
    %3908 = vmatprep.subr.mxu0 0.0
    %3909 = vmatpush1.msra.mxu0 0.0
    %3910 = vmatprep.subr.mxu0 0.0
    %3911 = vmatpush1.msra.mxu0 0.0
    %3912 = vmatprep.subr.mxu0 0.0
    %3913 = vmatpush1.msra.mxu0 0.0
    %3914 = vmatprep.subr.mxu0 0.0
    %3915 = vmatpush1.msra.mxu0 0.0
    %3916 = vmatprep.subr.mxu0 0.0
    %3917 = vmatpush1.msra.mxu0 0.0
    %3918 = vmatprep.mubr.f32.mxu0 0.0
    %v3919 = vand.u32 %v3753, 4294901760
    %3920 = vmatmul.mubr.f32.gmra.mrb[0].mxu0 %v3919
    %v3921 = vpop.f32.mrb[0].mxu0
    %v3922 = vadd.f32 %v3831, %v3921
    %v3923 = vpop.f32.mrb[0].mxu0
    %3924 = vdwg.mxu0
    %3925 = vmatprep.subr.mxu0 0.0
    %v3926 = vand.u32 %v63, 4294901760
    %v3927 = vsub.f32 %v63, %v3926
    %3928 = vmatpush1.msra.mxu0 %v3927
    %3929 = vmatprep.subr.mxu0 0.0
    %v3930 = vand.u32 %v64, 4294901760
    %v3931 = vsub.f32 %v64, %v3930
    %3932 = vmatpush1.msra.mxu0 %v3931
    %3933 = vmatprep.subr.mxu0 0.0
    %v3934 = vand.u32 %v65, 4294901760
    %v3935 = vsub.f32 %v65, %v3934
    %3936 = vmatpush1.msra.mxu0 %v3935
    %3937 = vmatprep.subr.mxu0 0.0
    %v3938 = vand.u32 %v66, 4294901760
    %v3939 = vsub.f32 %v66, %v3938
    %3940 = vmatpush1.msra.mxu0 %v3939
    %3941 = vmatprep.subr.mxu0 0.0
    %3942 = vmatpush1.msra.mxu0 0.0
    %3943 = vmatprep.subr.mxu0 0.0
    %3944 = vmatpush1.msra.mxu0 0.0
    %3945 = vmatprep.subr.mxu0 0.0
    %3946 = vmatpush1.msra.mxu0 0.0
    %3947 = vmatprep.subr.mxu0 0.0
    %3948 = vmatpush1.msra.mxu0 0.0
    %3949 = vmatprep.subr.mxu0 0.0
    %3950 = vmatpush1.msra.mxu0 0.0
    %3951 = vmatprep.subr.mxu0 0.0
    %3952 = vmatpush1.msra.mxu0 0.0
    %3953 = vmatprep.subr.mxu0 0.0
    %3954 = vmatpush1.msra.mxu0 0.0
    %3955 = vmatprep.subr.mxu0 0.0
    %3956 = vmatpush1.msra.mxu0 0.0
    %3957 = vmatprep.subr.mxu0 0.0
    %3958 = vmatpush1.msra.mxu0 0.0
    %3959 = vmatprep.subr.mxu0 0.0
    %3960 = vmatpush1.msra.mxu0 0.0
    %3961 = vmatprep.subr.mxu0 0.0
    %3962 = vmatpush1.msra.mxu0 0.0
    %3963 = vmatprep.subr.mxu0 0.0
    %3964 = vmatpush1.msra.mxu0 0.0
    %3965 = vmatprep.subr.mxu0 0.0
    %3966 = vmatpush1.msra.mxu0 0.0
    %3967 = vmatprep.subr.mxu0 0.0
    %3968 = vmatpush1.msra.mxu0 0.0
    %3969 = vmatprep.subr.mxu0 0.0
    %3970 = vmatpush1.msra.mxu0 0.0
    %3971 = vmatprep.subr.mxu0 0.0
    %3972 = vmatpush1.msra.mxu0 0.0
    %3973 = vmatprep.subr.mxu0 0.0
    %3974 = vmatpush1.msra.mxu0 0.0
    %3975 = vmatprep.subr.mxu0 0.0
    %3976 = vmatpush1.msra.mxu0 0.0
    %3977 = vmatprep.subr.mxu0 0.0
    %3978 = vmatpush1.msra.mxu0 0.0
    %3979 = vmatprep.subr.mxu0 0.0
    %3980 = vmatpush1.msra.mxu0 0.0
    %3981 = vmatprep.subr.mxu0 0.0
    %3982 = vmatpush1.msra.mxu0 0.0
    %3983 = vmatprep.subr.mxu0 0.0
    %3984 = vmatpush1.msra.mxu0 0.0
    %3985 = vmatprep.subr.mxu0 0.0
    %3986 = vmatpush1.msra.mxu0 0.0
    %3987 = vmatprep.subr.mxu0 0.0
    %3988 = vmatpush1.msra.mxu0 0.0
    %3989 = vmatprep.subr.mxu0 0.0
    %3990 = vmatpush1.msra.mxu0 0.0
    %3991 = vmatprep.subr.mxu0 0.0
    %3992 = vmatpush1.msra.mxu0 0.0
    %3993 = vmatprep.subr.mxu0 0.0
    %3994 = vmatpush1.msra.mxu0 0.0
    %3995 = vmatprep.subr.mxu0 0.0
    %3996 = vmatpush1.msra.mxu0 0.0
    %3997 = vmatprep.mubr.f32.mxu0 0.0
    %v3998 = vand.u32 %v3753, 4294901760
    %v3999 = vsub.f32 %v3753, %v3998
    %4000 = vmatmul.mubr.f32.gmra.mrb[0].mxu0 %v3999
    %v4001 = vpop.f32.mrb[0].mxu0
    %v4002 = vadd.f32 %v3922, %v4001
    %v4003 = vpop.f32.mrb[0].mxu0
    %4004 = vdwg.mxu0
    %4005 = vmatprep.subr.mxu0 0.0
    %v4006 = vand.u32 %v63, 4294901760
    %4007 = vmatpush1.msra.mxu0 %v4006
    %4008 = vmatprep.subr.mxu0 0.0
    %v4009 = vand.u32 %v64, 4294901760
    %4010 = vmatpush1.msra.mxu0 %v4009
    %4011 = vmatprep.subr.mxu0 0.0
    %v4012 = vand.u32 %v65, 4294901760
    %4013 = vmatpush1.msra.mxu0 %v4012
    %4014 = vmatprep.subr.mxu0 0.0
    %v4015 = vand.u32 %v66, 4294901760
    %4016 = vmatpush1.msra.mxu0 %v4015
    %4017 = vmatprep.subr.mxu0 0.0
    %4018 = vmatpush1.msra.mxu0 0.0
    %4019 = vmatprep.subr.mxu0 0.0
    %4020 = vmatpush1.msra.mxu0 0.0
    %4021 = vmatprep.subr.mxu0 0.0
    %4022 = vmatpush1.msra.mxu0 0.0
    %4023 = vmatprep.subr.mxu0 0.0
    %4024 = vmatpush1.msra.mxu0 0.0
    %4025 = vmatprep.subr.mxu0 0.0
    %4026 = vmatpush1.msra.mxu0 0.0
    %4027 = vmatprep.subr.mxu0 0.0
    %4028 = vmatpush1.msra.mxu0 0.0
    %4029 = vmatprep.subr.mxu0 0.0
    %4030 = vmatpush1.msra.mxu0 0.0
    %4031 = vmatprep.subr.mxu0 0.0
    %4032 = vmatpush1.msra.mxu0 0.0
    %4033 = vmatprep.subr.mxu0 0.0
    %4034 = vmatpush1.msra.mxu0 0.0
    %4035 = vmatprep.subr.mxu0 0.0
    %4036 = vmatpush1.msra.mxu0 0.0
    %4037 = vmatprep.subr.mxu0 0.0
    %4038 = vmatpush1.msra.mxu0 0.0
    %4039 = vmatprep.subr.mxu0 0.0
    %4040 = vmatpush1.msra.mxu0 0.0
    %4041 = vmatprep.subr.mxu0 0.0
    %4042 = vmatpush1.msra.mxu0 0.0
    %4043 = vmatprep.subr.mxu0 0.0
    %4044 = vmatpush1.msra.mxu0 0.0
    %4045 = vmatprep.subr.mxu0 0.0
    %4046 = vmatpush1.msra.mxu0 0.0
    %4047 = vmatprep.subr.mxu0 0.0
    %4048 = vmatpush1.msra.mxu0 0.0
    %4049 = vmatprep.subr.mxu0 0.0
    %4050 = vmatpush1.msra.mxu0 0.0
    %4051 = vmatprep.subr.mxu0 0.0
    %4052 = vmatpush1.msra.mxu0 0.0
    %4053 = vmatprep.subr.mxu0 0.0
    %4054 = vmatpush1.msra.mxu0 0.0
    %4055 = vmatprep.subr.mxu0 0.0
    %4056 = vmatpush1.msra.mxu0 0.0
    %4057 = vmatprep.subr.mxu0 0.0
    %4058 = vmatpush1.msra.mxu0 0.0
    %4059 = vmatprep.subr.mxu0 0.0
    %4060 = vmatpush1.msra.mxu0 0.0
    %4061 = vmatprep.subr.mxu0 0.0
    %4062 = vmatpush1.msra.mxu0 0.0
    %4063 = vmatprep.subr.mxu0 0.0
    %4064 = vmatpush1.msra.mxu0 0.0
    %4065 = vmatprep.subr.mxu0 0.0
    %4066 = vmatpush1.msra.mxu0 0.0
    %4067 = vmatprep.subr.mxu0 0.0
    %4068 = vmatpush1.msra.mxu0 0.0
    %4069 = vmatprep.subr.mxu0 0.0
    %4070 = vmatpush1.msra.mxu0 0.0
    %4071 = vmatprep.subr.mxu0 0.0
    %4072 = vmatpush1.msra.mxu0 0.0
    %4073 = vmatprep.mubr.f32.mxu0 0.0
    %v4074 = vand.u32 %v3753, 4294901760
    %v4075 = vsub.f32 %v3753, %v4074
    %v4076 = vand.u32 %v4075, 4294901760
    %4077 = vmatmul.mubr.f32.gmra.mrb[0].mxu0 %v4076
    %v4078 = vpop.f32.mrb[0].mxu0
    %v4079 = vadd.f32 %v4002, %v4078
    %v4080 = vpop.f32.mrb[0].mxu0
    %4081 = vdwg.mxu0
    %4082 = vmatprep.subr.mxu0 0.0
    %v4083 = vand.u32 %v63, 4294901760
    %v4084 = vsub.f32 %v63, %v4083
    %v4085 = vand.u32 %v4084, 4294901760
    %4086 = vmatpush1.msra.mxu0 %v4085
    %4087 = vmatprep.subr.mxu0 0.0
    %v4088 = vand.u32 %v64, 4294901760
    %v4089 = vsub.f32 %v64, %v4088
    %v4090 = vand.u32 %v4089, 4294901760
    %4091 = vmatpush1.msra.mxu0 %v4090
    %4092 = vmatprep.subr.mxu0 0.0
    %v4093 = vand.u32 %v65, 4294901760
    %v4094 = vsub.f32 %v65, %v4093
    %v4095 = vand.u32 %v4094, 4294901760
    %4096 = vmatpush1.msra.mxu0 %v4095
    %4097 = vmatprep.subr.mxu0 0.0
    %v4098 = vand.u32 %v66, 4294901760
    %v4099 = vsub.f32 %v66, %v4098
    %v4100 = vand.u32 %v4099, 4294901760
    %4101 = vmatpush1.msra.mxu0 %v4100
    %4102 = vmatprep.subr.mxu0 0.0
    %4103 = vmatpush1.msra.mxu0 0.0
    %4104 = vmatprep.subr.mxu0 0.0
    %4105 = vmatpush1.msra.mxu0 0.0
    %4106 = vmatprep.subr.mxu0 0.0
    %4107 = vmatpush1.msra.mxu0 0.0
    %4108 = vmatprep.subr.mxu0 0.0
    %4109 = vmatpush1.msra.mxu0 0.0
    %4110 = vmatprep.subr.mxu0 0.0
    %4111 = vmatpush1.msra.mxu0 0.0
    %4112 = vmatprep.subr.mxu0 0.0
    %4113 = vmatpush1.msra.mxu0 0.0
    %4114 = vmatprep.subr.mxu0 0.0
    %4115 = vmatpush1.msra.mxu0 0.0
    %4116 = vmatprep.subr.mxu0 0.0
    %4117 = vmatpush1.msra.mxu0 0.0
    %4118 = vmatprep.subr.mxu0 0.0
    %4119 = vmatpush1.msra.mxu0 0.0
    %4120 = vmatprep.subr.mxu0 0.0
    %4121 = vmatpush1.msra.mxu0 0.0
    %4122 = vmatprep.subr.mxu0 0.0
    %4123 = vmatpush1.msra.mxu0 0.0
    %4124 = vmatprep.subr.mxu0 0.0
    %4125 = vmatpush1.msra.mxu0 0.0
    %4126 = vmatprep.subr.mxu0 0.0
    %4127 = vmatpush1.msra.mxu0 0.0
    %4128 = vmatprep.subr.mxu0 0.0
    %4129 = vmatpush1.msra.mxu0 0.0
    %4130 = vmatprep.subr.mxu0 0.0
    %4131 = vmatpush1.msra.mxu0 0.0
    %4132 = vmatprep.subr.mxu0 0.0
    %4133 = vmatpush1.msra.mxu0 0.0
    %4134 = vmatprep.subr.mxu0 0.0
    %4135 = vmatpush1.msra.mxu0 0.0
    %4136 = vmatprep.subr.mxu0 0.0
    %4137 = vmatpush1.msra.mxu0 0.0
    %4138 = vmatprep.subr.mxu0 0.0
    %4139 = vmatpush1.msra.mxu0 0.0
    %4140 = vmatprep.subr.mxu0 0.0
    %4141 = vmatpush1.msra.mxu0 0.0
    %4142 = vmatprep.subr.mxu0 0.0
    %4143 = vmatpush1.msra.mxu0 0.0
    %4144 = vmatprep.subr.mxu0 0.0
    %4145 = vmatpush1.msra.mxu0 0.0
    %4146 = vmatprep.subr.mxu0 0.0
    %4147 = vmatpush1.msra.mxu0 0.0
    %4148 = vmatprep.subr.mxu0 0.0
    %4149 = vmatpush1.msra.mxu0 0.0
    %4150 = vmatprep.subr.mxu0 0.0
    %4151 = vmatpush1.msra.mxu0 0.0
    %4152 = vmatprep.subr.mxu0 0.0
    %4153 = vmatpush1.msra.mxu0 0.0
    %4154 = vmatprep.subr.mxu0 0.0
    %4155 = vmatpush1.msra.mxu0 0.0
    %4156 = vmatprep.subr.mxu0 0.0
    %4157 = vmatpush1.msra.mxu0 0.0
    %4158 = vmatprep.mubr.f32.mxu0 0.0
    %v4159 = vand.u32 %v3753, 4294901760
    %4160 = vmatmul.mubr.f32.gmra.mrb[0].mxu0 %v4159
    %v4161 = vpop.f32.mrb[0].mxu0
    %v4162 = vadd.f32 %v4079, %v4161
    %v4163 = vpop.f32.mrb[0].mxu0
    %4164 = vdwg.mxu0
    %4165 = vmatprep.subr.mxu0 0.0
    %v4166 = vand.u32 %v63, 4294901760
    %4167 = vmatpush1.msra.mxu0 %v4166
    %4168 = vmatprep.subr.mxu0 0.0
    %v4169 = vand.u32 %v64, 4294901760
    %4170 = vmatpush1.msra.mxu0 %v4169
    %4171 = vmatprep.subr.mxu0 0.0
    %v4172 = vand.u32 %v65, 4294901760
    %4173 = vmatpush1.msra.mxu0 %v4172
    %4174 = vmatprep.subr.mxu0 0.0
    %v4175 = vand.u32 %v66, 4294901760
    %4176 = vmatpush1.msra.mxu0 %v4175
    %4177 = vmatprep.subr.mxu0 0.0
    %4178 = vmatpush1.msra.mxu0 0.0
    %4179 = vmatprep.subr.mxu0 0.0
    %4180 = vmatpush1.msra.mxu0 0.0
    %4181 = vmatprep.subr.mxu0 0.0
    %4182 = vmatpush1.msra.mxu0 0.0
    %4183 = vmatprep.subr.mxu0 0.0
    %4184 = vmatpush1.msra.mxu0 0.0
    %4185 = vmatprep.subr.mxu0 0.0
    %4186 = vmatpush1.msra.mxu0 0.0
    %4187 = vmatprep.subr.mxu0 0.0
    %4188 = vmatpush1.msra.mxu0 0.0
    %4189 = vmatprep.subr.mxu0 0.0
    %4190 = vmatpush1.msra.mxu0 0.0
    %4191 = vmatprep.subr.mxu0 0.0
    %4192 = vmatpush1.msra.mxu0 0.0
    %4193 = vmatprep.subr.mxu0 0.0
    %4194 = vmatpush1.msra.mxu0 0.0
    %4195 = vmatprep.subr.mxu0 0.0
    %4196 = vmatpush1.msra.mxu0 0.0
    %4197 = vmatprep.subr.mxu0 0.0
    %4198 = vmatpush1.msra.mxu0 0.0
    %4199 = vmatprep.subr.mxu0 0.0
    %4200 = vmatpush1.msra.mxu0 0.0
    %4201 = vmatprep.subr.mxu0 0.0
    %4202 = vmatpush1.msra.mxu0 0.0
    %4203 = vmatprep.subr.mxu0 0.0
    %4204 = vmatpush1.msra.mxu0 0.0
    %4205 = vmatprep.subr.mxu0 0.0
    %4206 = vmatpush1.msra.mxu0 0.0
    %4207 = vmatprep.subr.mxu0 0.0
    %4208 = vmatpush1.msra.mxu0 0.0
    %4209 = vmatprep.subr.mxu0 0.0
    %4210 = vmatpush1.msra.mxu0 0.0
    %4211 = vmatprep.subr.mxu0 0.0
    %4212 = vmatpush1.msra.mxu0 0.0
    %4213 = vmatprep.subr.mxu0 0.0
    %4214 = vmatpush1.msra.mxu0 0.0
    %4215 = vmatprep.subr.mxu0 0.0
    %4216 = vmatpush1.msra.mxu0 0.0
    %4217 = vmatprep.subr.mxu0 0.0
    %4218 = vmatpush1.msra.mxu0 0.0
    %4219 = vmatprep.subr.mxu0 0.0
    %4220 = vmatpush1.msra.mxu0 0.0
    %4221 = vmatprep.subr.mxu0 0.0
    %4222 = vmatpush1.msra.mxu0 0.0
    %4223 = vmatprep.subr.mxu0 0.0
    %4224 = vmatpush1.msra.mxu0 0.0
    %4225 = vmatprep.subr.mxu0 0.0
    %4226 = vmatpush1.msra.mxu0 0.0
    %4227 = vmatprep.subr.mxu0 0.0
    %4228 = vmatpush1.msra.mxu0 0.0
    %4229 = vmatprep.subr.mxu0 0.0
    %4230 = vmatpush1.msra.mxu0 0.0
    %4231 = vmatprep.subr.mxu0 0.0
    %4232 = vmatpush1.msra.mxu0 0.0
    %4233 = vmatprep.mubr.f32.mxu0 0.0
    %v4234 = vand.u32 %v3753, 4294901760
    %4235 = vmatmul.mubr.f32.gmra.mrb[0].mxu0 %v4234
    %v4236 = vpop.f32.mrb[0].mxu0
    %v4237 = vadd.f32 %v4162, %v4236
    %v4238 = vpop.f32.mrb[0].mxu0
    %4239 = vdwg.mxu0
    %v4241 = vrot.slane %v3240, 2
    %v4243 = vadd.f32 %v4241, %v4237
    %v4244 = vxor.u32 %v4243, 2147483648
    %v4245 = vmul.f32 %v4244, 1.442695
    %v4246 = vpow.pop %v4245
    %v4247 = vadd.f32 %v4246, 1.0
    %v4248 = vrcp.pop %v4247
    %v4249 = vmul.f32 1.0, %v4248
    %v4250 = vtanh.pop %v4243
    %v4251 = vmul.f32 %v4249, %v3204
    %4253 = vrot.lane.b32.xlu0 %v4250, 64
    %v4254 = vpop.permute.xlu0 %4253
    %v4256 = vmul.f32 %v4249, %v4254
    %4258 = vrot.lane.b32.xlu0 %v4256, 32
    %v4259 = vpop.permute.xlu0 %4258
    %v4261 = vadd.f32 %v4251, %v4259
    %v4262 = vtanh.pop %v4261
    %4264 = vrot.lane.b32.xlu0 %v4262, 64
    %v4265 = vpop.permute.xlu0 %4264
    %v4267 = vmul.f32 %v4249, %v4265
    %v4270 = vunpack.c.l.s4 1983009808
    %v4271 = vunpack.c.0.s8 %v4270
    %v4272 = vlaneseq
    %v4273 = vshrl.u32 %v4272, 7
    %v4274 = vsub.s32 %v4271, %v4273
    %v4275 = vrot.slane %v3752, %v4274
    %4276 = vrot.lane.b32.xlu0 %v4275, 32
    %v4277 = vpop.permute.xlu0 %4276
    %s4279 = scalar_lea.vmem [#allocation8], 6
    %4280 = vst.msk [vmem:[%s4279] sm:$0x3] %vm1108, %v4277
    %v4283 = vunpack.c.l.s4 1983009808
    %v4284 = vunpack.c.0.s8 %v4283
    %v4285 = vlaneseq
    %v4286 = vshrl.u32 %v4285, 7
    %v4287 = vsub.s32 %v4284, %v4286
    %v4288 = vrot.slane %v4267, %v4287
    %4289 = vrot.lane.b32.xlu0 %v4288, 32
    %v4290 = vpop.permute.xlu0 %4289
    %s4292 = scalar_lea.vmem [#allocation9], 8
    %4293 = vst.msk [vmem:[%s4292] sm:$0x3] %vm1108, %v4290
    %v4294 = vld [vmem:[%s3239] sm:$0xf]
    %v4295 = vld [vmem:[%s3237] sm:$0xf]
    %v4296 = vsel %vm70, %v4277, 0
    %4298 = vmatprep.subr.mxu0 0.0
    %v4299 = vand.u32 %v59, 4294901760
    %4300 = vmatpush1.msra.mxu0 %v4299
    %4301 = vmatprep.subr.mxu0 0.0
    %v4302 = vand.u32 %v60, 4294901760
    %4303 = vmatpush1.msra.mxu0 %v4302
    %4304 = vmatprep.subr.mxu0 0.0
    %v4305 = vand.u32 %v61, 4294901760
    %4306 = vmatpush1.msra.mxu0 %v4305
    %4307 = vmatprep.subr.mxu0 0.0
    %v4308 = vand.u32 %v62, 4294901760
    %4309 = vmatpush1.msra.mxu0 %v4308
    %4310 = vmatprep.subr.mxu0 0.0
    %4311 = vmatpush1.msra.mxu0 0.0
    %4312 = vmatprep.subr.mxu0 0.0
    %4313 = vmatpush1.msra.mxu0 0.0
    %4314 = vmatprep.subr.mxu0 0.0
    %4315 = vmatpush1.msra.mxu0 0.0
    %4316 = vmatprep.subr.mxu0 0.0
    %4317 = vmatpush1.msra.mxu0 0.0
    %4318 = vmatprep.subr.mxu0 0.0
    %4319 = vmatpush1.msra.mxu0 0.0
    %4320 = vmatprep.subr.mxu0 0.0
    %4321 = vmatpush1.msra.mxu0 0.0
    %4322 = vmatprep.subr.mxu0 0.0
    %4323 = vmatpush1.msra.mxu0 0.0
    %4324 = vmatprep.subr.mxu0 0.0
    %4325 = vmatpush1.msra.mxu0 0.0
    %4326 = vmatprep.subr.mxu0 0.0
    %4327 = vmatpush1.msra.mxu0 0.0
    %4328 = vmatprep.subr.mxu0 0.0
    %4329 = vmatpush1.msra.mxu0 0.0
    %4330 = vmatprep.subr.mxu0 0.0
    %4331 = vmatpush1.msra.mxu0 0.0
    %4332 = vmatprep.subr.mxu0 0.0
    %4333 = vmatpush1.msra.mxu0 0.0
    %4334 = vmatprep.subr.mxu0 0.0
    %4335 = vmatpush1.msra.mxu0 0.0
    %4336 = vmatprep.subr.mxu0 0.0
    %4337 = vmatpush1.msra.mxu0 0.0
    %4338 = vmatprep.subr.mxu0 0.0
    %4339 = vmatpush1.msra.mxu0 0.0
    %4340 = vmatprep.subr.mxu0 0.0
    %4341 = vmatpush1.msra.mxu0 0.0
    %4342 = vmatprep.subr.mxu0 0.0
    %4343 = vmatpush1.msra.mxu0 0.0
    %4344 = vmatprep.subr.mxu0 0.0
    %4345 = vmatpush1.msra.mxu0 0.0
    %4346 = vmatprep.subr.mxu0 0.0
    %4347 = vmatpush1.msra.mxu0 0.0
    %4348 = vmatprep.subr.mxu0 0.0
    %4349 = vmatpush1.msra.mxu0 0.0
    %4350 = vmatprep.subr.mxu0 0.0
    %4351 = vmatpush1.msra.mxu0 0.0
    %4352 = vmatprep.subr.mxu0 0.0
    %4353 = vmatpush1.msra.mxu0 0.0
    %4354 = vmatprep.subr.mxu0 0.0
    %4355 = vmatpush1.msra.mxu0 0.0
    %4356 = vmatprep.subr.mxu0 0.0
    %4357 = vmatpush1.msra.mxu0 0.0
    %4358 = vmatprep.subr.mxu0 0.0
    %4359 = vmatpush1.msra.mxu0 0.0
    %4360 = vmatprep.subr.mxu0 0.0
    %4361 = vmatpush1.msra.mxu0 0.0
    %4362 = vmatprep.subr.mxu0 0.0
    %4363 = vmatpush1.msra.mxu0 0.0
    %4364 = vmatprep.subr.mxu0 0.0
    %4365 = vmatpush1.msra.mxu0 0.0
    %4366 = vmatprep.mubr.f32.mxu0 0.0
    %v4367 = vand.u32 %v4296, 4294901760
    %v4368 = vsub.f32 %v4296, %v4367
    %v4369 = vand.u32 %v4368, 4294901760
    %v4370 = vsub.f32 %v4368, %v4369
    %v4371 = vand.u32 %v4370, 4294901760
    %4372 = vmatmul.mubr.f32.gmra.mrb[0].mxu0 %v4371
    %v4373 = vpop.f32.mrb[0].mxu0
    %v4374 = vadd.f32 0.0, %v4373
    %v4375 = vpop.f32.mrb[0].mxu0
    %4376 = vdwg.mxu0
    %4377 = vmatprep.subr.mxu0 0.0
    %v4378 = vand.u32 %v59, 4294901760
    %v4379 = vsub.f32 %v59, %v4378
    %v4380 = vand.u32 %v4379, 4294901760
    %v4381 = vsub.f32 %v4379, %v4380
    %v4382 = vand.u32 %v4381, 4294901760
    %4383 = vmatpush1.msra.mxu0 %v4382
    %4384 = vmatprep.subr.mxu0 0.0
    %v4385 = vand.u32 %v60, 4294901760
    %v4386 = vsub.f32 %v60, %v4385
    %v4387 = vand.u32 %v4386, 4294901760
    %v4388 = vsub.f32 %v4386, %v4387
    %v4389 = vand.u32 %v4388, 4294901760
    %4390 = vmatpush1.msra.mxu0 %v4389
    %4391 = vmatprep.subr.mxu0 0.0
    %v4392 = vand.u32 %v61, 4294901760
    %v4393 = vsub.f32 %v61, %v4392
    %v4394 = vand.u32 %v4393, 4294901760
    %v4395 = vsub.f32 %v4393, %v4394
    %v4396 = vand.u32 %v4395, 4294901760
    %4397 = vmatpush1.msra.mxu0 %v4396
    %4398 = vmatprep.subr.mxu0 0.0
    %v4399 = vand.u32 %v62, 4294901760
    %v4400 = vsub.f32 %v62, %v4399
    %v4401 = vand.u32 %v4400, 4294901760
    %v4402 = vsub.f32 %v4400, %v4401
    %v4403 = vand.u32 %v4402, 4294901760
    %4404 = vmatpush1.msra.mxu0 %v4403
    %4405 = vmatprep.subr.mxu0 0.0
    %4406 = vmatpush1.msra.mxu0 0.0
    %4407 = vmatprep.subr.mxu0 0.0
    %4408 = vmatpush1.msra.mxu0 0.0
    %4409 = vmatprep.subr.mxu0 0.0
    %4410 = vmatpush1.msra.mxu0 0.0
    %4411 = vmatprep.subr.mxu0 0.0
    %4412 = vmatpush1.msra.mxu0 0.0
    %4413 = vmatprep.subr.mxu0 0.0
    %4414 = vmatpush1.msra.mxu0 0.0
    %4415 = vmatprep.subr.mxu0 0.0
    %4416 = vmatpush1.msra.mxu0 0.0
    %4417 = vmatprep.subr.mxu0 0.0
    %4418 = vmatpush1.msra.mxu0 0.0
    %4419 = vmatprep.subr.mxu0 0.0
    %4420 = vmatpush1.msra.mxu0 0.0
    %4421 = vmatprep.subr.mxu0 0.0
    %4422 = vmatpush1.msra.mxu0 0.0
    %4423 = vmatprep.subr.mxu0 0.0
    %4424 = vmatpush1.msra.mxu0 0.0
    %4425 = vmatprep.subr.mxu0 0.0
    %4426 = vmatpush1.msra.mxu0 0.0
    %4427 = vmatprep.subr.mxu0 0.0
    %4428 = vmatpush1.msra.mxu0 0.0
    %4429 = vmatprep.subr.mxu0 0.0
    %4430 = vmatpush1.msra.mxu0 0.0
    %4431 = vmatprep.subr.mxu0 0.0
    %4432 = vmatpush1.msra.mxu0 0.0
    %4433 = vmatprep.subr.mxu0 0.0
    %4434 = vmatpush1.msra.mxu0 0.0
    %4435 = vmatprep.subr.mxu0 0.0
    %4436 = vmatpush1.msra.mxu0 0.0
    %4437 = vmatprep.subr.mxu0 0.0
    %4438 = vmatpush1.msra.mxu0 0.0
    %4439 = vmatprep.subr.mxu0 0.0
    %4440 = vmatpush1.msra.mxu0 0.0
    %4441 = vmatprep.subr.mxu0 0.0
    %4442 = vmatpush1.msra.mxu0 0.0
    %4443 = vmatprep.subr.mxu0 0.0
    %4444 = vmatpush1.msra.mxu0 0.0
    %4445 = vmatprep.subr.mxu0 0.0
    %4446 = vmatpush1.msra.mxu0 0.0
    %4447 = vmatprep.subr.mxu0 0.0
    %4448 = vmatpush1.msra.mxu0 0.0
    %4449 = vmatprep.subr.mxu0 0.0
    %4450 = vmatpush1.msra.mxu0 0.0
    %4451 = vmatprep.subr.mxu0 0.0
    %4452 = vmatpush1.msra.mxu0 0.0
    %4453 = vmatprep.subr.mxu0 0.0
    %4454 = vmatpush1.msra.mxu0 0.0
    %4455 = vmatprep.subr.mxu0 0.0
    %4456 = vmatpush1.msra.mxu0 0.0
    %4457 = vmatprep.subr.mxu0 0.0
    %4458 = vmatpush1.msra.mxu0 0.0
    %4459 = vmatprep.subr.mxu0 0.0
    %4460 = vmatpush1.msra.mxu0 0.0
    %4461 = vmatprep.mubr.f32.mxu0 0.0
    %v4462 = vand.u32 %v4296, 4294901760
    %4463 = vmatmul.mubr.f32.gmra.mrb[0].mxu0 %v4462
    %v4464 = vpop.f32.mrb[0].mxu0
    %v4465 = vadd.f32 %v4374, %v4464
    %v4466 = vpop.f32.mrb[0].mxu0
    %4467 = vdwg.mxu0
    %4468 = vmatprep.subr.mxu0 0.0
    %v4469 = vand.u32 %v59, 4294901760
    %v4470 = vsub.f32 %v59, %v4469
    %4471 = vmatpush1.msra.mxu0 %v4470
    %4472 = vmatprep.subr.mxu0 0.0
    %v4473 = vand.u32 %v60, 4294901760
    %v4474 = vsub.f32 %v60, %v4473
    %4475 = vmatpush1.msra.mxu0 %v4474
    %4476 = vmatprep.subr.mxu0 0.0
    %v4477 = vand.u32 %v61, 4294901760
    %v4478 = vsub.f32 %v61, %v4477
    %4479 = vmatpush1.msra.mxu0 %v4478
    %4480 = vmatprep.subr.mxu0 0.0
    %v4481 = vand.u32 %v62, 4294901760
    %v4482 = vsub.f32 %v62, %v4481
    %4483 = vmatpush1.msra.mxu0 %v4482
    %4484 = vmatprep.subr.mxu0 0.0
    %4485 = vmatpush1.msra.mxu0 0.0
    %4486 = vmatprep.subr.mxu0 0.0
    %4487 = vmatpush1.msra.mxu0 0.0
    %4488 = vmatprep.subr.mxu0 0.0
    %4489 = vmatpush1.msra.mxu0 0.0
    %4490 = vmatprep.subr.mxu0 0.0
    %4491 = vmatpush1.msra.mxu0 0.0
    %4492 = vmatprep.subr.mxu0 0.0
    %4493 = vmatpush1.msra.mxu0 0.0
    %4494 = vmatprep.subr.mxu0 0.0
    %4495 = vmatpush1.msra.mxu0 0.0
    %4496 = vmatprep.subr.mxu0 0.0
    %4497 = vmatpush1.msra.mxu0 0.0
    %4498 = vmatprep.subr.mxu0 0.0
    %4499 = vmatpush1.msra.mxu0 0.0
    %4500 = vmatprep.subr.mxu0 0.0
    %4501 = vmatpush1.msra.mxu0 0.0
    %4502 = vmatprep.subr.mxu0 0.0
    %4503 = vmatpush1.msra.mxu0 0.0
    %4504 = vmatprep.subr.mxu0 0.0
    %4505 = vmatpush1.msra.mxu0 0.0
    %4506 = vmatprep.subr.mxu0 0.0
    %4507 = vmatpush1.msra.mxu0 0.0
    %4508 = vmatprep.subr.mxu0 0.0
    %4509 = vmatpush1.msra.mxu0 0.0
    %4510 = vmatprep.subr.mxu0 0.0
    %4511 = vmatpush1.msra.mxu0 0.0
    %4512 = vmatprep.subr.mxu0 0.0
    %4513 = vmatpush1.msra.mxu0 0.0
    %4514 = vmatprep.subr.mxu0 0.0
    %4515 = vmatpush1.msra.mxu0 0.0
    %4516 = vmatprep.subr.mxu0 0.0
    %4517 = vmatpush1.msra.mxu0 0.0
    %4518 = vmatprep.subr.mxu0 0.0
    %4519 = vmatpush1.msra.mxu0 0.0
    %4520 = vmatprep.subr.mxu0 0.0
    %4521 = vmatpush1.msra.mxu0 0.0
    %4522 = vmatprep.subr.mxu0 0.0
    %4523 = vmatpush1.msra.mxu0 0.0
    %4524 = vmatprep.subr.mxu0 0.0
    %4525 = vmatpush1.msra.mxu0 0.0
    %4526 = vmatprep.subr.mxu0 0.0
    %4527 = vmatpush1.msra.mxu0 0.0
    %4528 = vmatprep.subr.mxu0 0.0
    %4529 = vmatpush1.msra.mxu0 0.0
    %4530 = vmatprep.subr.mxu0 0.0
    %4531 = vmatpush1.msra.mxu0 0.0
    %4532 = vmatprep.subr.mxu0 0.0
    %4533 = vmatpush1.msra.mxu0 0.0
    %4534 = vmatprep.subr.mxu0 0.0
    %4535 = vmatpush1.msra.mxu0 0.0
    %4536 = vmatprep.subr.mxu0 0.0
    %4537 = vmatpush1.msra.mxu0 0.0
    %4538 = vmatprep.subr.mxu0 0.0
    %4539 = vmatpush1.msra.mxu0 0.0
    %4540 = vmatprep.mubr.f32.mxu0 0.0
    %v4541 = vand.u32 %v4296, 4294901760
    %v4542 = vsub.f32 %v4296, %v4541
    %4543 = vmatmul.mubr.f32.gmra.mrb[0].mxu0 %v4542
    %v4544 = vpop.f32.mrb[0].mxu0
    %v4545 = vadd.f32 %v4465, %v4544
    %v4546 = vpop.f32.mrb[0].mxu0
    %4547 = vdwg.mxu0
    %4548 = vmatprep.subr.mxu0 0.0
    %v4549 = vand.u32 %v59, 4294901760
    %4550 = vmatpush1.msra.mxu0 %v4549
    %4551 = vmatprep.subr.mxu0 0.0
    %v4552 = vand.u32 %v60, 4294901760
    %4553 = vmatpush1.msra.mxu0 %v4552
    %4554 = vmatprep.subr.mxu0 0.0
    %v4555 = vand.u32 %v61, 4294901760
    %4556 = vmatpush1.msra.mxu0 %v4555
    %4557 = vmatprep.subr.mxu0 0.0
    %v4558 = vand.u32 %v62, 4294901760
    %4559 = vmatpush1.msra.mxu0 %v4558
    %4560 = vmatprep.subr.mxu0 0.0
    %4561 = vmatpush1.msra.mxu0 0.0
    %4562 = vmatprep.subr.mxu0 0.0
    %4563 = vmatpush1.msra.mxu0 0.0
    %4564 = vmatprep.subr.mxu0 0.0
    %4565 = vmatpush1.msra.mxu0 0.0
    %4566 = vmatprep.subr.mxu0 0.0
    %4567 = vmatpush1.msra.mxu0 0.0
    %4568 = vmatprep.subr.mxu0 0.0
    %4569 = vmatpush1.msra.mxu0 0.0
    %4570 = vmatprep.subr.mxu0 0.0
    %4571 = vmatpush1.msra.mxu0 0.0
    %4572 = vmatprep.subr.mxu0 0.0
    %4573 = vmatpush1.msra.mxu0 0.0
    %4574 = vmatprep.subr.mxu0 0.0
    %4575 = vmatpush1.msra.mxu0 0.0
    %4576 = vmatprep.subr.mxu0 0.0
    %4577 = vmatpush1.msra.mxu0 0.0
    %4578 = vmatprep.subr.mxu0 0.0
    %4579 = vmatpush1.msra.mxu0 0.0
    %4580 = vmatprep.subr.mxu0 0.0
    %4581 = vmatpush1.msra.mxu0 0.0
    %4582 = vmatprep.subr.mxu0 0.0
    %4583 = vmatpush1.msra.mxu0 0.0
    %4584 = vmatprep.subr.mxu0 0.0
    %4585 = vmatpush1.msra.mxu0 0.0
    %4586 = vmatprep.subr.mxu0 0.0
    %4587 = vmatpush1.msra.mxu0 0.0
    %4588 = vmatprep.subr.mxu0 0.0
    %4589 = vmatpush1.msra.mxu0 0.0
    %4590 = vmatprep.subr.mxu0 0.0
    %4591 = vmatpush1.msra.mxu0 0.0
    %4592 = vmatprep.subr.mxu0 0.0
    %4593 = vmatpush1.msra.mxu0 0.0
    %4594 = vmatprep.subr.mxu0 0.0
    %4595 = vmatpush1.msra.mxu0 0.0
    %4596 = vmatprep.subr.mxu0 0.0
    %4597 = vmatpush1.msra.mxu0 0.0
    %4598 = vmatprep.subr.mxu0 0.0
    %4599 = vmatpush1.msra.mxu0 0.0
    %4600 = vmatprep.subr.mxu0 0.0
    %4601 = vmatpush1.msra.mxu0 0.0
    %4602 = vmatprep.subr.mxu0 0.0
    %4603 = vmatpush1.msra.mxu0 0.0
    %4604 = vmatprep.subr.mxu0 0.0
    %4605 = vmatpush1.msra.mxu0 0.0
    %4606 = vmatprep.subr.mxu0 0.0
    %4607 = vmatpush1.msra.mxu0 0.0
    %4608 = vmatprep.subr.mxu0 0.0
    %4609 = vmatpush1.msra.mxu0 0.0
    %4610 = vmatprep.subr.mxu0 0.0
    %4611 = vmatpush1.msra.mxu0 0.0
    %4612 = vmatprep.subr.mxu0 0.0
    %4613 = vmatpush1.msra.mxu0 0.0
    %4614 = vmatprep.subr.mxu0 0.0
    %4615 = vmatpush1.msra.mxu0 0.0
    %4616 = vmatprep.mubr.f32.mxu0 0.0
    %v4617 = vand.u32 %v4296, 4294901760
    %v4618 = vsub.f32 %v4296, %v4617
    %v4619 = vand.u32 %v4618, 4294901760
    %4620 = vmatmul.mubr.f32.gmra.mrb[0].mxu0 %v4619
    %v4621 = vpop.f32.mrb[0].mxu0
    %v4622 = vadd.f32 %v4545, %v4621
    %v4623 = vpop.f32.mrb[0].mxu0
    %4624 = vdwg.mxu0
    %4625 = vmatprep.subr.mxu0 0.0
    %v4626 = vand.u32 %v59, 4294901760
    %v4627 = vsub.f32 %v59, %v4626
    %v4628 = vand.u32 %v4627, 4294901760
    %4629 = vmatpush1.msra.mxu0 %v4628
    %4630 = vmatprep.subr.mxu0 0.0
    %v4631 = vand.u32 %v60, 4294901760
    %v4632 = vsub.f32 %v60, %v4631
    %v4633 = vand.u32 %v4632, 4294901760
    %4634 = vmatpush1.msra.mxu0 %v4633
    %4635 = vmatprep.subr.mxu0 0.0
    %v4636 = vand.u32 %v61, 4294901760
    %v4637 = vsub.f32 %v61, %v4636
    %v4638 = vand.u32 %v4637, 4294901760
    %4639 = vmatpush1.msra.mxu0 %v4638
    %4640 = vmatprep.subr.mxu0 0.0
    %v4641 = vand.u32 %v62, 4294901760
    %v4642 = vsub.f32 %v62, %v4641
    %v4643 = vand.u32 %v4642, 4294901760
    %4644 = vmatpush1.msra.mxu0 %v4643
    %4645 = vmatprep.subr.mxu0 0.0
    %4646 = vmatpush1.msra.mxu0 0.0
    %4647 = vmatprep.subr.mxu0 0.0
    %4648 = vmatpush1.msra.mxu0 0.0
    %4649 = vmatprep.subr.mxu0 0.0
    %4650 = vmatpush1.msra.mxu0 0.0
    %4651 = vmatprep.subr.mxu0 0.0
    %4652 = vmatpush1.msra.mxu0 0.0
    %4653 = vmatprep.subr.mxu0 0.0
    %4654 = vmatpush1.msra.mxu0 0.0
    %4655 = vmatprep.subr.mxu0 0.0
    %4656 = vmatpush1.msra.mxu0 0.0
    %4657 = vmatprep.subr.mxu0 0.0
    %4658 = vmatpush1.msra.mxu0 0.0
    %4659 = vmatprep.subr.mxu0 0.0
    %4660 = vmatpush1.msra.mxu0 0.0
    %4661 = vmatprep.subr.mxu0 0.0
    %4662 = vmatpush1.msra.mxu0 0.0
    %4663 = vmatprep.subr.mxu0 0.0
    %4664 = vmatpush1.msra.mxu0 0.0
    %4665 = vmatprep.subr.mxu0 0.0
    %4666 = vmatpush1.msra.mxu0 0.0
    %4667 = vmatprep.subr.mxu0 0.0
    %4668 = vmatpush1.msra.mxu0 0.0
    %4669 = vmatprep.subr.mxu0 0.0
    %4670 = vmatpush1.msra.mxu0 0.0
    %4671 = vmatprep.subr.mxu0 0.0
    %4672 = vmatpush1.msra.mxu0 0.0
    %4673 = vmatprep.subr.mxu0 0.0
    %4674 = vmatpush1.msra.mxu0 0.0
    %4675 = vmatprep.subr.mxu0 0.0
    %4676 = vmatpush1.msra.mxu0 0.0
    %4677 = vmatprep.subr.mxu0 0.0
    %4678 = vmatpush1.msra.mxu0 0.0
    %4679 = vmatprep.subr.mxu0 0.0
    %4680 = vmatpush1.msra.mxu0 0.0
    %4681 = vmatprep.subr.mxu0 0.0
    %4682 = vmatpush1.msra.mxu0 0.0
    %4683 = vmatprep.subr.mxu0 0.0
    %4684 = vmatpush1.msra.mxu0 0.0
    %4685 = vmatprep.subr.mxu0 0.0
    %4686 = vmatpush1.msra.mxu0 0.0
    %4687 = vmatprep.subr.mxu0 0.0
    %4688 = vmatpush1.msra.mxu0 0.0
    %4689 = vmatprep.subr.mxu0 0.0
    %4690 = vmatpush1.msra.mxu0 0.0
    %4691 = vmatprep.subr.mxu0 0.0
    %4692 = vmatpush1.msra.mxu0 0.0
    %4693 = vmatprep.subr.mxu0 0.0
    %4694 = vmatpush1.msra.mxu0 0.0
    %4695 = vmatprep.subr.mxu0 0.0
    %4696 = vmatpush1.msra.mxu0 0.0
    %4697 = vmatprep.subr.mxu0 0.0
    %4698 = vmatpush1.msra.mxu0 0.0
    %4699 = vmatprep.subr.mxu0 0.0
    %4700 = vmatpush1.msra.mxu0 0.0
    %4701 = vmatprep.mubr.f32.mxu0 0.0
    %v4702 = vand.u32 %v4296, 4294901760
    %4703 = vmatmul.mubr.f32.gmra.mrb[0].mxu0 %v4702
    %v4704 = vpop.f32.mrb[0].mxu0
    %v4705 = vadd.f32 %v4622, %v4704
    %v4706 = vpop.f32.mrb[0].mxu0
    %4707 = vdwg.mxu0
    %4708 = vmatprep.subr.mxu0 0.0
    %v4709 = vand.u32 %v59, 4294901760
    %4710 = vmatpush1.msra.mxu0 %v4709
    %4711 = vmatprep.subr.mxu0 0.0
    %v4712 = vand.u32 %v60, 4294901760
    %4713 = vmatpush1.msra.mxu0 %v4712
    %4714 = vmatprep.subr.mxu0 0.0
    %v4715 = vand.u32 %v61, 4294901760
    %4716 = vmatpush1.msra.mxu0 %v4715
    %4717 = vmatprep.subr.mxu0 0.0
    %v4718 = vand.u32 %v62, 4294901760
    %4719 = vmatpush1.msra.mxu0 %v4718
    %4720 = vmatprep.subr.mxu0 0.0
    %4721 = vmatpush1.msra.mxu0 0.0
    %4722 = vmatprep.subr.mxu0 0.0
    %4723 = vmatpush1.msra.mxu0 0.0
    %4724 = vmatprep.subr.mxu0 0.0
    %4725 = vmatpush1.msra.mxu0 0.0
    %4726 = vmatprep.subr.mxu0 0.0
    %4727 = vmatpush1.msra.mxu0 0.0
    %4728 = vmatprep.subr.mxu0 0.0
    %4729 = vmatpush1.msra.mxu0 0.0
    %4730 = vmatprep.subr.mxu0 0.0
    %4731 = vmatpush1.msra.mxu0 0.0
    %4732 = vmatprep.subr.mxu0 0.0
    %4733 = vmatpush1.msra.mxu0 0.0
    %4734 = vmatprep.subr.mxu0 0.0
    %4735 = vmatpush1.msra.mxu0 0.0
    %4736 = vmatprep.subr.mxu0 0.0
    %4737 = vmatpush1.msra.mxu0 0.0
    %4738 = vmatprep.subr.mxu0 0.0
    %4739 = vmatpush1.msra.mxu0 0.0
    %4740 = vmatprep.subr.mxu0 0.0
    %4741 = vmatpush1.msra.mxu0 0.0
    %4742 = vmatprep.subr.mxu0 0.0
    %4743 = vmatpush1.msra.mxu0 0.0
    %4744 = vmatprep.subr.mxu0 0.0
    %4745 = vmatpush1.msra.mxu0 0.0
    %4746 = vmatprep.subr.mxu0 0.0
    %4747 = vmatpush1.msra.mxu0 0.0
    %4748 = vmatprep.subr.mxu0 0.0
    %4749 = vmatpush1.msra.mxu0 0.0
    %4750 = vmatprep.subr.mxu0 0.0
    %4751 = vmatpush1.msra.mxu0 0.0
    %4752 = vmatprep.subr.mxu0 0.0
    %4753 = vmatpush1.msra.mxu0 0.0
    %4754 = vmatprep.subr.mxu0 0.0
    %4755 = vmatpush1.msra.mxu0 0.0
    %4756 = vmatprep.subr.mxu0 0.0
    %4757 = vmatpush1.msra.mxu0 0.0
    %4758 = vmatprep.subr.mxu0 0.0
    %4759 = vmatpush1.msra.mxu0 0.0
    %4760 = vmatprep.subr.mxu0 0.0
    %4761 = vmatpush1.msra.mxu0 0.0
    %4762 = vmatprep.subr.mxu0 0.0
    %4763 = vmatpush1.msra.mxu0 0.0
    %4764 = vmatprep.subr.mxu0 0.0
    %4765 = vmatpush1.msra.mxu0 0.0
    %4766 = vmatprep.subr.mxu0 0.0
    %4767 = vmatpush1.msra.mxu0 0.0
    %4768 = vmatprep.subr.mxu0 0.0
    %4769 = vmatpush1.msra.mxu0 0.0
    %4770 = vmatprep.subr.mxu0 0.0
    %4771 = vmatpush1.msra.mxu0 0.0
    %4772 = vmatprep.subr.mxu0 0.0
    %4773 = vmatpush1.msra.mxu0 0.0
    %4774 = vmatprep.subr.mxu0 0.0
    %4775 = vmatpush1.msra.mxu0 0.0
    %4776 = vmatprep.mubr.f32.mxu0 0.0
    %v4777 = vand.u32 %v4296, 4294901760
    %4778 = vmatmul.mubr.f32.gmra.mrb[0].mxu0 %v4777
    %v4779 = vpop.f32.mrb[0].mxu0
    %v4780 = vadd.f32 %v4705, %v4779
    %v4781 = vpop.f32.mrb[0].mxu0
    %4782 = vdwg.mxu0
    %v4783 = vadd.f32 %v4294, %v4780
    %v4784 = vxor.u32 %v4783, 2147483648
    %v4785 = vmul.f32 %v4784, 1.442695
    %v4786 = vpow.pop %v4785
    %v4787 = vadd.f32 %v4786, 1.0
    %v4788 = vrcp.pop %v4787
    %v4789 = vmul.f32 1.0, %v4788
    %v4790 = vtanh.pop %v4783
    %v4791 = vmul.f32 %v4789, %v3746
    %4793 = vrot.lane.b32.xlu0 %v4790, 64
    %v4794 = vpop.permute.xlu0 %4793
    %v4796 = vmul.f32 %v4789, %v4794
    %4798 = vrot.lane.b32.xlu0 %v4796, 32
    %v4799 = vpop.permute.xlu0 %4798
    %v4801 = vadd.f32 %v4791, %v4799
    %v4802 = vtanh.pop %v4801
    %4804 = vrot.lane.b32.xlu0 %v4802, 64
    %v4805 = vpop.permute.xlu0 %4804
    %v4807 = vmul.f32 %v4789, %v4805
    %v4808 = vsel %vm70, %v4290, 0
    %4810 = vmatprep.subr.mxu0 0.0
    %v4811 = vand.u32 %v63, 4294901760
    %4812 = vmatpush1.msra.mxu0 %v4811
    %4813 = vmatprep.subr.mxu0 0.0
    %v4814 = vand.u32 %v64, 4294901760
    %4815 = vmatpush1.msra.mxu0 %v4814
    %4816 = vmatprep.subr.mxu0 0.0
    %v4817 = vand.u32 %v65, 4294901760
    %4818 = vmatpush1.msra.mxu0 %v4817
    %4819 = vmatprep.subr.mxu0 0.0
    %v4820 = vand.u32 %v66, 4294901760
    %4821 = vmatpush1.msra.mxu0 %v4820
    %4822 = vmatprep.subr.mxu0 0.0
    %4823 = vmatpush1.msra.mxu0 0.0
    %4824 = vmatprep.subr.mxu0 0.0
    %4825 = vmatpush1.msra.mxu0 0.0
    %4826 = vmatprep.subr.mxu0 0.0
    %4827 = vmatpush1.msra.mxu0 0.0
    %4828 = vmatprep.subr.mxu0 0.0
    %4829 = vmatpush1.msra.mxu0 0.0
    %4830 = vmatprep.subr.mxu0 0.0
    %4831 = vmatpush1.msra.mxu0 0.0
    %4832 = vmatprep.subr.mxu0 0.0
    %4833 = vmatpush1.msra.mxu0 0.0
    %4834 = vmatprep.subr.mxu0 0.0
    %4835 = vmatpush1.msra.mxu0 0.0
    %4836 = vmatprep.subr.mxu0 0.0
    %4837 = vmatpush1.msra.mxu0 0.0
    %4838 = vmatprep.subr.mxu0 0.0
    %4839 = vmatpush1.msra.mxu0 0.0
    %4840 = vmatprep.subr.mxu0 0.0
    %4841 = vmatpush1.msra.mxu0 0.0
    %4842 = vmatprep.subr.mxu0 0.0
    %4843 = vmatpush1.msra.mxu0 0.0
    %4844 = vmatprep.subr.mxu0 0.0
    %4845 = vmatpush1.msra.mxu0 0.0
    %4846 = vmatprep.subr.mxu0 0.0
    %4847 = vmatpush1.msra.mxu0 0.0
    %4848 = vmatprep.subr.mxu0 0.0
    %4849 = vmatpush1.msra.mxu0 0.0
    %4850 = vmatprep.subr.mxu0 0.0
    %4851 = vmatpush1.msra.mxu0 0.0
    %4852 = vmatprep.subr.mxu0 0.0
    %4853 = vmatpush1.msra.mxu0 0.0
    %4854 = vmatprep.subr.mxu0 0.0
    %4855 = vmatpush1.msra.mxu0 0.0
    %4856 = vmatprep.subr.mxu0 0.0
    %4857 = vmatpush1.msra.mxu0 0.0
    %4858 = vmatprep.subr.mxu0 0.0
    %4859 = vmatpush1.msra.mxu0 0.0
    %4860 = vmatprep.subr.mxu0 0.0
    %4861 = vmatpush1.msra.mxu0 0.0
    %4862 = vmatprep.subr.mxu0 0.0
    %4863 = vmatpush1.msra.mxu0 0.0
    %4864 = vmatprep.subr.mxu0 0.0
    %4865 = vmatpush1.msra.mxu0 0.0
    %4866 = vmatprep.subr.mxu0 0.0
    %4867 = vmatpush1.msra.mxu0 0.0
    %4868 = vmatprep.subr.mxu0 0.0
    %4869 = vmatpush1.msra.mxu0 0.0
    %4870 = vmatprep.subr.mxu0 0.0
    %4871 = vmatpush1.msra.mxu0 0.0
    %4872 = vmatprep.subr.mxu0 0.0
    %4873 = vmatpush1.msra.mxu0 0.0
    %4874 = vmatprep.subr.mxu0 0.0
    %4875 = vmatpush1.msra.mxu0 0.0
    %4876 = vmatprep.subr.mxu0 0.0
    %4877 = vmatpush1.msra.mxu0 0.0
    %4878 = vmatprep.mubr.f32.mxu0 0.0
    %v4879 = vand.u32 %v4808, 4294901760
    %v4880 = vsub.f32 %v4808, %v4879
    %v4881 = vand.u32 %v4880, 4294901760
    %v4882 = vsub.f32 %v4880, %v4881
    %v4883 = vand.u32 %v4882, 4294901760
    %4884 = vmatmul.mubr.f32.gmra.mrb[0].mxu0 %v4883
    %v4885 = vpop.f32.mrb[0].mxu0
    %v4886 = vadd.f32 0.0, %v4885
    %v4887 = vpop.f32.mrb[0].mxu0
    %4888 = vdwg.mxu0
    %4889 = vmatprep.subr.mxu0 0.0
    %v4890 = vand.u32 %v63, 4294901760
    %v4891 = vsub.f32 %v63, %v4890
    %v4892 = vand.u32 %v4891, 4294901760
    %v4893 = vsub.f32 %v4891, %v4892
    %v4894 = vand.u32 %v4893, 4294901760
    %4895 = vmatpush1.msra.mxu0 %v4894
    %4896 = vmatprep.subr.mxu0 0.0
    %v4897 = vand.u32 %v64, 4294901760
    %v4898 = vsub.f32 %v64, %v4897
    %v4899 = vand.u32 %v4898, 4294901760
    %v4900 = vsub.f32 %v4898, %v4899
    %v4901 = vand.u32 %v4900, 4294901760
    %4902 = vmatpush1.msra.mxu0 %v4901
    %4903 = vmatprep.subr.mxu0 0.0
    %v4904 = vand.u32 %v65, 4294901760
    %v4905 = vsub.f32 %v65, %v4904
    %v4906 = vand.u32 %v4905, 4294901760
    %v4907 = vsub.f32 %v4905, %v4906
    %v4908 = vand.u32 %v4907, 4294901760
    %4909 = vmatpush1.msra.mxu0 %v4908
    %4910 = vmatprep.subr.mxu0 0.0
    %v4911 = vand.u32 %v66, 4294901760
    %v4912 = vsub.f32 %v66, %v4911
    %v4913 = vand.u32 %v4912, 4294901760
    %v4914 = vsub.f32 %v4912, %v4913
    %v4915 = vand.u32 %v4914, 4294901760
    %4916 = vmatpush1.msra.mxu0 %v4915
    %4917 = vmatprep.subr.mxu0 0.0
    %4918 = vmatpush1.msra.mxu0 0.0
    %4919 = vmatprep.subr.mxu0 0.0
    %4920 = vmatpush1.msra.mxu0 0.0
    %4921 = vmatprep.subr.mxu0 0.0
    %4922 = vmatpush1.msra.mxu0 0.0
    %4923 = vmatprep.subr.mxu0 0.0
    %4924 = vmatpush1.msra.mxu0 0.0
    %4925 = vmatprep.subr.mxu0 0.0
    %4926 = vmatpush1.msra.mxu0 0.0
    %4927 = vmatprep.subr.mxu0 0.0
    %4928 = vmatpush1.msra.mxu0 0.0
    %4929 = vmatprep.subr.mxu0 0.0
    %4930 = vmatpush1.msra.mxu0 0.0
    %4931 = vmatprep.subr.mxu0 0.0
    %4932 = vmatpush1.msra.mxu0 0.0
    %4933 = vmatprep.subr.mxu0 0.0
    %4934 = vmatpush1.msra.mxu0 0.0
    %4935 = vmatprep.subr.mxu0 0.0
    %4936 = vmatpush1.msra.mxu0 0.0
    %4937 = vmatprep.subr.mxu0 0.0
    %4938 = vmatpush1.msra.mxu0 0.0
    %4939 = vmatprep.subr.mxu0 0.0
    %4940 = vmatpush1.msra.mxu0 0.0
    %4941 = vmatprep.subr.mxu0 0.0
    %4942 = vmatpush1.msra.mxu0 0.0
    %4943 = vmatprep.subr.mxu0 0.0
    %4944 = vmatpush1.msra.mxu0 0.0
    %4945 = vmatprep.subr.mxu0 0.0
    %4946 = vmatpush1.msra.mxu0 0.0
    %4947 = vmatprep.subr.mxu0 0.0
    %4948 = vmatpush1.msra.mxu0 0.0
    %4949 = vmatprep.subr.mxu0 0.0
    %4950 = vmatpush1.msra.mxu0 0.0
    %4951 = vmatprep.subr.mxu0 0.0
    %4952 = vmatpush1.msra.mxu0 0.0
    %4953 = vmatprep.subr.mxu0 0.0
    %4954 = vmatpush1.msra.mxu0 0.0
    %4955 = vmatprep.subr.mxu0 0.0
    %4956 = vmatpush1.msra.mxu0 0.0
    %4957 = vmatprep.subr.mxu0 0.0
    %4958 = vmatpush1.msra.mxu0 0.0
    %4959 = vmatprep.subr.mxu0 0.0
    %4960 = vmatpush1.msra.mxu0 0.0
    %4961 = vmatprep.subr.mxu0 0.0
    %4962 = vmatpush1.msra.mxu0 0.0
    %4963 = vmatprep.subr.mxu0 0.0
    %4964 = vmatpush1.msra.mxu0 0.0
    %4965 = vmatprep.subr.mxu0 0.0
    %4966 = vmatpush1.msra.mxu0 0.0
    %4967 = vmatprep.subr.mxu0 0.0
    %4968 = vmatpush1.msra.mxu0 0.0
    %4969 = vmatprep.subr.mxu0 0.0
    %4970 = vmatpush1.msra.mxu0 0.0
    %4971 = vmatprep.subr.mxu0 0.0
    %4972 = vmatpush1.msra.mxu0 0.0
    %4973 = vmatprep.mubr.f32.mxu0 0.0
    %v4974 = vand.u32 %v4808, 4294901760
    %4975 = vmatmul.mubr.f32.gmra.mrb[0].mxu0 %v4974
    %v4976 = vpop.f32.mrb[0].mxu0
    %v4977 = vadd.f32 %v4886, %v4976
    %v4978 = vpop.f32.mrb[0].mxu0
    %4979 = vdwg.mxu0
    %4980 = vmatprep.subr.mxu0 0.0
    %v4981 = vand.u32 %v63, 4294901760
    %v4982 = vsub.f32 %v63, %v4981
    %4983 = vmatpush1.msra.mxu0 %v4982
    %4984 = vmatprep.subr.mxu0 0.0
    %v4985 = vand.u32 %v64, 4294901760
    %v4986 = vsub.f32 %v64, %v4985
    %4987 = vmatpush1.msra.mxu0 %v4986
    %4988 = vmatprep.subr.mxu0 0.0
    %v4989 = vand.u32 %v65, 4294901760
    %v4990 = vsub.f32 %v65, %v4989
    %4991 = vmatpush1.msra.mxu0 %v4990
    %4992 = vmatprep.subr.mxu0 0.0
    %v4993 = vand.u32 %v66, 4294901760
    %v4994 = vsub.f32 %v66, %v4993
    %4995 = vmatpush1.msra.mxu0 %v4994
    %4996 = vmatprep.subr.mxu0 0.0
    %4997 = vmatpush1.msra.mxu0 0.0
    %4998 = vmatprep.subr.mxu0 0.0
    %4999 = vmatpush1.msra.mxu0 0.0
    %5000 = vmatprep.subr.mxu0 0.0
    %5001 = vmatpush1.msra.mxu0 0.0
    %5002 = vmatprep.subr.mxu0 0.0
    %5003 = vmatpush1.msra.mxu0 0.0
    %5004 = vmatprep.subr.mxu0 0.0
    %5005 = vmatpush1.msra.mxu0 0.0
    %5006 = vmatprep.subr.mxu0 0.0
    %5007 = vmatpush1.msra.mxu0 0.0
    %5008 = vmatprep.subr.mxu0 0.0
    %5009 = vmatpush1.msra.mxu0 0.0
    %5010 = vmatprep.subr.mxu0 0.0
    %5011 = vmatpush1.msra.mxu0 0.0
    %5012 = vmatprep.subr.mxu0 0.0
    %5013 = vmatpush1.msra.mxu0 0.0
    %5014 = vmatprep.subr.mxu0 0.0
    %5015 = vmatpush1.msra.mxu0 0.0
    %5016 = vmatprep.subr.mxu0 0.0
    %5017 = vmatpush1.msra.mxu0 0.0
    %5018 = vmatprep.subr.mxu0 0.0
    %5019 = vmatpush1.msra.mxu0 0.0
    %5020 = vmatprep.subr.mxu0 0.0
    %5021 = vmatpush1.msra.mxu0 0.0
    %5022 = vmatprep.subr.mxu0 0.0
    %5023 = vmatpush1.msra.mxu0 0.0
    %5024 = vmatprep.subr.mxu0 0.0
    %5025 = vmatpush1.msra.mxu0 0.0
    %5026 = vmatprep.subr.mxu0 0.0
    %5027 = vmatpush1.msra.mxu0 0.0
    %5028 = vmatprep.subr.mxu0 0.0
    %5029 = vmatpush1.msra.mxu0 0.0
    %5030 = vmatprep.subr.mxu0 0.0
    %5031 = vmatpush1.msra.mxu0 0.0
    %5032 = vmatprep.subr.mxu0 0.0
    %5033 = vmatpush1.msra.mxu0 0.0
    %5034 = vmatprep.subr.mxu0 0.0
    %5035 = vmatpush1.msra.mxu0 0.0
    %5036 = vmatprep.subr.mxu0 0.0
    %5037 = vmatpush1.msra.mxu0 0.0
    %5038 = vmatprep.subr.mxu0 0.0
    %5039 = vmatpush1.msra.mxu0 0.0
    %5040 = vmatprep.subr.mxu0 0.0
    %5041 = vmatpush1.msra.mxu0 0.0
    %5042 = vmatprep.subr.mxu0 0.0
    %5043 = vmatpush1.msra.mxu0 0.0
    %5044 = vmatprep.subr.mxu0 0.0
    %5045 = vmatpush1.msra.mxu0 0.0
    %5046 = vmatprep.subr.mxu0 0.0
    %5047 = vmatpush1.msra.mxu0 0.0
    %5048 = vmatprep.subr.mxu0 0.0
    %5049 = vmatpush1.msra.mxu0 0.0
    %5050 = vmatprep.subr.mxu0 0.0
    %5051 = vmatpush1.msra.mxu0 0.0
    %5052 = vmatprep.mubr.f32.mxu0 0.0
    %v5053 = vand.u32 %v4808, 4294901760
    %v5054 = vsub.f32 %v4808, %v5053
    %5055 = vmatmul.mubr.f32.gmra.mrb[0].mxu0 %v5054
    %v5056 = vpop.f32.mrb[0].mxu0
    %v5057 = vadd.f32 %v4977, %v5056
    %v5058 = vpop.f32.mrb[0].mxu0
    %5059 = vdwg.mxu0
    %5060 = vmatprep.subr.mxu0 0.0
    %v5061 = vand.u32 %v63, 4294901760
    %5062 = vmatpush1.msra.mxu0 %v5061
    %5063 = vmatprep.subr.mxu0 0.0
    %v5064 = vand.u32 %v64, 4294901760
    %5065 = vmatpush1.msra.mxu0 %v5064
    %5066 = vmatprep.subr.mxu0 0.0
    %v5067 = vand.u32 %v65, 4294901760
    %5068 = vmatpush1.msra.mxu0 %v5067
    %5069 = vmatprep.subr.mxu0 0.0
    %v5070 = vand.u32 %v66, 4294901760
    %5071 = vmatpush1.msra.mxu0 %v5070
    %5072 = vmatprep.subr.mxu0 0.0
    %5073 = vmatpush1.msra.mxu0 0.0
    %5074 = vmatprep.subr.mxu0 0.0
    %5075 = vmatpush1.msra.mxu0 0.0
    %5076 = vmatprep.subr.mxu0 0.0
    %5077 = vmatpush1.msra.mxu0 0.0
    %5078 = vmatprep.subr.mxu0 0.0
    %5079 = vmatpush1.msra.mxu0 0.0
    %5080 = vmatprep.subr.mxu0 0.0
    %5081 = vmatpush1.msra.mxu0 0.0
    %5082 = vmatprep.subr.mxu0 0.0
    %5083 = vmatpush1.msra.mxu0 0.0
    %5084 = vmatprep.subr.mxu0 0.0
    %5085 = vmatpush1.msra.mxu0 0.0
    %5086 = vmatprep.subr.mxu0 0.0
    %5087 = vmatpush1.msra.mxu0 0.0
    %5088 = vmatprep.subr.mxu0 0.0
    %5089 = vmatpush1.msra.mxu0 0.0
    %5090 = vmatprep.subr.mxu0 0.0
    %5091 = vmatpush1.msra.mxu0 0.0
    %5092 = vmatprep.subr.mxu0 0.0
    %5093 = vmatpush1.msra.mxu0 0.0
    %5094 = vmatprep.subr.mxu0 0.0
    %5095 = vmatpush1.msra.mxu0 0.0
    %5096 = vmatprep.subr.mxu0 0.0
    %5097 = vmatpush1.msra.mxu0 0.0
    %5098 = vmatprep.subr.mxu0 0.0
    %5099 = vmatpush1.msra.mxu0 0.0
    %5100 = vmatprep.subr.mxu0 0.0
    %5101 = vmatpush1.msra.mxu0 0.0
    %5102 = vmatprep.subr.mxu0 0.0
    %5103 = vmatpush1.msra.mxu0 0.0
    %5104 = vmatprep.subr.mxu0 0.0
    %5105 = vmatpush1.msra.mxu0 0.0
    %5106 = vmatprep.subr.mxu0 0.0
    %5107 = vmatpush1.msra.mxu0 0.0
    %5108 = vmatprep.subr.mxu0 0.0
    %5109 = vmatpush1.msra.mxu0 0.0
    %5110 = vmatprep.subr.mxu0 0.0
    %5111 = vmatpush1.msra.mxu0 0.0
    %5112 = vmatprep.subr.mxu0 0.0
    %5113 = vmatpush1.msra.mxu0 0.0
    %5114 = vmatprep.subr.mxu0 0.0
    %5115 = vmatpush1.msra.mxu0 0.0
    %5116 = vmatprep.subr.mxu0 0.0
    %5117 = vmatpush1.msra.mxu0 0.0
    %5118 = vmatprep.subr.mxu0 0.0
    %5119 = vmatpush1.msra.mxu0 0.0
    %5120 = vmatprep.subr.mxu0 0.0
    %5121 = vmatpush1.msra.mxu0 0.0
    %5122 = vmatprep.subr.mxu0 0.0
    %5123 = vmatpush1.msra.mxu0 0.0
    %5124 = vmatprep.subr.mxu0 0.0
    %5125 = vmatpush1.msra.mxu0 0.0
    %5126 = vmatprep.subr.mxu0 0.0
    %5127 = vmatpush1.msra.mxu0 0.0
    %5128 = vmatprep.mubr.f32.mxu0 0.0
    %v5129 = vand.u32 %v4808, 4294901760
    %v5130 = vsub.f32 %v4808, %v5129
    %v5131 = vand.u32 %v5130, 4294901760
    %5132 = vmatmul.mubr.f32.gmra.mrb[0].mxu0 %v5131
    %v5133 = vpop.f32.mrb[0].mxu0
    %v5134 = vadd.f32 %v5057, %v5133
    %v5135 = vpop.f32.mrb[0].mxu0
    %5136 = vdwg.mxu0
    %5137 = vmatprep.subr.mxu0 0.0
    %v5138 = vand.u32 %v63, 4294901760
    %v5139 = vsub.f32 %v63, %v5138
    %v5140 = vand.u32 %v5139, 4294901760
    %5141 = vmatpush1.msra.mxu0 %v5140
    %5142 = vmatprep.subr.mxu0 0.0
    %v5143 = vand.u32 %v64, 4294901760
    %v5144 = vsub.f32 %v64, %v5143
    %v5145 = vand.u32 %v5144, 4294901760
    %5146 = vmatpush1.msra.mxu0 %v5145
    %5147 = vmatprep.subr.mxu0 0.0
    %v5148 = vand.u32 %v65, 4294901760
    %v5149 = vsub.f32 %v65, %v5148
    %v5150 = vand.u32 %v5149, 4294901760
    %5151 = vmatpush1.msra.mxu0 %v5150
    %5152 = vmatprep.subr.mxu0 0.0
    %v5153 = vand.u32 %v66, 4294901760
    %v5154 = vsub.f32 %v66, %v5153
    %v5155 = vand.u32 %v5154, 4294901760
    %5156 = vmatpush1.msra.mxu0 %v5155
    %5157 = vmatprep.subr.mxu0 0.0
    %5158 = vmatpush1.msra.mxu0 0.0
    %5159 = vmatprep.subr.mxu0 0.0
    %5160 = vmatpush1.msra.mxu0 0.0
    %5161 = vmatprep.subr.mxu0 0.0
    %5162 = vmatpush1.msra.mxu0 0.0
    %5163 = vmatprep.subr.mxu0 0.0
    %5164 = vmatpush1.msra.mxu0 0.0
    %5165 = vmatprep.subr.mxu0 0.0
    %5166 = vmatpush1.msra.mxu0 0.0
    %5167 = vmatprep.subr.mxu0 0.0
    %5168 = vmatpush1.msra.mxu0 0.0
    %5169 = vmatprep.subr.mxu0 0.0
    %5170 = vmatpush1.msra.mxu0 0.0
    %5171 = vmatprep.subr.mxu0 0.0
    %5172 = vmatpush1.msra.mxu0 0.0
    %5173 = vmatprep.subr.mxu0 0.0
    %5174 = vmatpush1.msra.mxu0 0.0
    %5175 = vmatprep.subr.mxu0 0.0
    %5176 = vmatpush1.msra.mxu0 0.0
    %5177 = vmatprep.subr.mxu0 0.0
    %5178 = vmatpush1.msra.mxu0 0.0
    %5179 = vmatprep.subr.mxu0 0.0
    %5180 = vmatpush1.msra.mxu0 0.0
    %5181 = vmatprep.subr.mxu0 0.0
    %5182 = vmatpush1.msra.mxu0 0.0
    %5183 = vmatprep.subr.mxu0 0.0
    %5184 = vmatpush1.msra.mxu0 0.0
    %5185 = vmatprep.subr.mxu0 0.0
    %5186 = vmatpush1.msra.mxu0 0.0
    %5187 = vmatprep.subr.mxu0 0.0
    %5188 = vmatpush1.msra.mxu0 0.0
    %5189 = vmatprep.subr.mxu0 0.0
    %5190 = vmatpush1.msra.mxu0 0.0
    %5191 = vmatprep.subr.mxu0 0.0
    %5192 = vmatpush1.msra.mxu0 0.0
    %5193 = vmatprep.subr.mxu0 0.0
    %5194 = vmatpush1.msra.mxu0 0.0
    %5195 = vmatprep.subr.mxu0 0.0
    %5196 = vmatpush1.msra.mxu0 0.0
    %5197 = vmatprep.subr.mxu0 0.0
    %5198 = vmatpush1.msra.mxu0 0.0
    %5199 = vmatprep.subr.mxu0 0.0
    %5200 = vmatpush1.msra.mxu0 0.0
    %5201 = vmatprep.subr.mxu0 0.0
    %5202 = vmatpush1.msra.mxu0 0.0
    %5203 = vmatprep.subr.mxu0 0.0
    %5204 = vmatpush1.msra.mxu0 0.0
    %5205 = vmatprep.subr.mxu0 0.0
    %5206 = vmatpush1.msra.mxu0 0.0
    %5207 = vmatprep.subr.mxu0 0.0
    %5208 = vmatpush1.msra.mxu0 0.0
    %5209 = vmatprep.subr.mxu0 0.0
    %5210 = vmatpush1.msra.mxu0 0.0
    %5211 = vmatprep.subr.mxu0 0.0
    %5212 = vmatpush1.msra.mxu0 0.0
    %5213 = vmatprep.mubr.f32.mxu0 0.0
    %v5214 = vand.u32 %v4808, 4294901760
    %5215 = vmatmul.mubr.f32.gmra.mrb[0].mxu0 %v5214
    %v5216 = vpop.f32.mrb[0].mxu0
    %v5217 = vadd.f32 %v5134, %v5216
    %v5218 = vpop.f32.mrb[0].mxu0
    %5219 = vdwg.mxu0
    %5220 = vmatprep.subr.mxu0 0.0
    %v5221 = vand.u32 %v63, 4294901760
    %5222 = vmatpush1.msra.mxu0 %v5221
    %5223 = vmatprep.subr.mxu0 0.0
    %v5224 = vand.u32 %v64, 4294901760
    %5225 = vmatpush1.msra.mxu0 %v5224
    %5226 = vmatprep.subr.mxu0 0.0
    %v5227 = vand.u32 %v65, 4294901760
    %5228 = vmatpush1.msra.mxu0 %v5227
    %5229 = vmatprep.subr.mxu0 0.0
    %v5230 = vand.u32 %v66, 4294901760
    %5231 = vmatpush1.msra.mxu0 %v5230
    %5232 = vmatprep.subr.mxu0 0.0
    %5233 = vmatpush1.msra.mxu0 0.0
    %5234 = vmatprep.subr.mxu0 0.0
    %5235 = vmatpush1.msra.mxu0 0.0
    %5236 = vmatprep.subr.mxu0 0.0
    %5237 = vmatpush1.msra.mxu0 0.0
    %5238 = vmatprep.subr.mxu0 0.0
    %5239 = vmatpush1.msra.mxu0 0.0
    %5240 = vmatprep.subr.mxu0 0.0
    %5241 = vmatpush1.msra.mxu0 0.0
    %5242 = vmatprep.subr.mxu0 0.0
    %5243 = vmatpush1.msra.mxu0 0.0
    %5244 = vmatprep.subr.mxu0 0.0
    %5245 = vmatpush1.msra.mxu0 0.0
    %5246 = vmatprep.subr.mxu0 0.0
    %5247 = vmatpush1.msra.mxu0 0.0
    %5248 = vmatprep.subr.mxu0 0.0
    %5249 = vmatpush1.msra.mxu0 0.0
    %5250 = vmatprep.subr.mxu0 0.0
    %5251 = vmatpush1.msra.mxu0 0.0
    %5252 = vmatprep.subr.mxu0 0.0
    %5253 = vmatpush1.msra.mxu0 0.0
    %5254 = vmatprep.subr.mxu0 0.0
    %5255 = vmatpush1.msra.mxu0 0.0
    %5256 = vmatprep.subr.mxu0 0.0
    %5257 = vmatpush1.msra.mxu0 0.0
    %5258 = vmatprep.subr.mxu0 0.0
    %5259 = vmatpush1.msra.mxu0 0.0
    %5260 = vmatprep.subr.mxu0 0.0
    %5261 = vmatpush1.msra.mxu0 0.0
    %5262 = vmatprep.subr.mxu0 0.0
    %5263 = vmatpush1.msra.mxu0 0.0
    %5264 = vmatprep.subr.mxu0 0.0
    %5265 = vmatpush1.msra.mxu0 0.0
    %5266 = vmatprep.subr.mxu0 0.0
    %5267 = vmatpush1.msra.mxu0 0.0
    %5268 = vmatprep.subr.mxu0 0.0
    %5269 = vmatpush1.msra.mxu0 0.0
    %5270 = vmatprep.subr.mxu0 0.0
    %5271 = vmatpush1.msra.mxu0 0.0
    %5272 = vmatprep.subr.mxu0 0.0
    %5273 = vmatpush1.msra.mxu0 0.0
    %5274 = vmatprep.subr.mxu0 0.0
    %5275 = vmatpush1.msra.mxu0 0.0
    %5276 = vmatprep.subr.mxu0 0.0
    %5277 = vmatpush1.msra.mxu0 0.0
    %5278 = vmatprep.subr.mxu0 0.0
    %5279 = vmatpush1.msra.mxu0 0.0
    %5280 = vmatprep.subr.mxu0 0.0
    %5281 = vmatpush1.msra.mxu0 0.0
    %5282 = vmatprep.subr.mxu0 0.0
    %5283 = vmatpush1.msra.mxu0 0.0
    %5284 = vmatprep.subr.mxu0 0.0
    %5285 = vmatpush1.msra.mxu0 0.0
    %5286 = vmatprep.subr.mxu0 0.0
    %5287 = vmatpush1.msra.mxu0 0.0
    %5288 = vmatprep.mubr.f32.mxu0 0.0
    %v5289 = vand.u32 %v4808, 4294901760
    %5290 = vmatmul.mubr.f32.gmra.mrb[0].mxu0 %v5289
    %v5291 = vpop.f32.mrb[0].mxu0
    %v5292 = vadd.f32 %v5217, %v5291
    %v5293 = vpop.f32.mrb[0].mxu0
    %5294 = vdwg.mxu0
    %v5296 = vrot.slane %v4295, 2
    %v5298 = vadd.f32 %v5296, %v5292
    %v5299 = vxor.u32 %v5298, 2147483648
    %v5300 = vmul.f32 %v5299, 1.442695
    %v5301 = vpow.pop %v5300
    %v5302 = vadd.f32 %v5301, 1.0
    %v5303 = vrcp.pop %v5302
    %v5304 = vmul.f32 1.0, %v5303
    %v5305 = vtanh.pop %v5298
    %v5306 = vmul.f32 %v5304, %v4261
    %5308 = vrot.lane.b32.xlu0 %v5305, 64
    %v5309 = vpop.permute.xlu0 %5308
    %v5311 = vmul.f32 %v5304, %v5309
    %5313 = vrot.lane.b32.xlu0 %v5311, 32
    %v5314 = vpop.permute.xlu0 %5313
    %v5316 = vadd.f32 %v5306, %v5314
    %v5317 = vtanh.pop %v5316
    %5319 = vrot.lane.b32.xlu0 %v5317, 64
    %v5320 = vpop.permute.xlu0 %5319
    %v5322 = vmul.f32 %v5304, %v5320
    %v5325 = vunpack.c.l.s4 1983009808
    %v5326 = vunpack.c.0.s8 %v5325
    %v5327 = vlaneseq
    %v5328 = vshrl.u32 %v5327, 7
    %v5329 = vsub.s32 %v5326, %v5328
    %v5330 = vrot.slane %v4807, %v5329
    %5331 = vrot.lane.b32.xlu0 %v5330, 32
    %v5332 = vpop.permute.xlu0 %5331
    %s5334 = scalar_lea.vmem [#allocation8], 8
    %5335 = vst.msk [vmem:[%s5334] sm:$0x3] %vm1108, %v5332
    %v5338 = vunpack.c.l.s4 1983009808
    %v5339 = vunpack.c.0.s8 %v5338
    %v5340 = vlaneseq
    %v5341 = vshrl.u32 %v5340, 7
    %v5342 = vsub.s32 %v5339, %v5341
    %v5343 = vrot.slane %v5322, %v5342
    %5344 = vrot.lane.b32.xlu0 %v5343, 32
    %v5345 = vpop.permute.xlu0 %5344
    %s5347 = scalar_lea.vmem [#allocation9], 6
    %5348 = vst.msk [vmem:[%s5347] sm:$0x3] %vm1108, %v5345
    %v5349 = vld [vmem:[%s2182] sm:$0xf]
    %v5350 = vld [vmem:[%s2180] sm:$0xf]
    %v5351 = vsel %vm70, %v5332, 0
    %5353 = vmatprep.subr.mxu0 0.0
    %v5354 = vand.u32 %v59, 4294901760
    %5355 = vmatpush1.msra.mxu0 %v5354
    %5356 = vmatprep.subr.mxu0 0.0
    %v5357 = vand.u32 %v60, 4294901760
    %5358 = vmatpush1.msra.mxu0 %v5357
    %5359 = vmatprep.subr.mxu0 0.0
    %v5360 = vand.u32 %v61, 4294901760
    %5361 = vmatpush1.msra.mxu0 %v5360
    %5362 = vmatprep.subr.mxu0 0.0
    %v5363 = vand.u32 %v62, 4294901760
    %5364 = vmatpush1.msra.mxu0 %v5363
    %5365 = vmatprep.subr.mxu0 0.0
    %5366 = vmatpush1.msra.mxu0 0.0
    %5367 = vmatprep.subr.mxu0 0.0
    %5368 = vmatpush1.msra.mxu0 0.0
    %5369 = vmatprep.subr.mxu0 0.0
    %5370 = vmatpush1.msra.mxu0 0.0
    %5371 = vmatprep.subr.mxu0 0.0
    %5372 = vmatpush1.msra.mxu0 0.0
    %5373 = vmatprep.subr.mxu0 0.0
    %5374 = vmatpush1.msra.mxu0 0.0
    %5375 = vmatprep.subr.mxu0 0.0
    %5376 = vmatpush1.msra.mxu0 0.0
    %5377 = vmatprep.subr.mxu0 0.0
    %5378 = vmatpush1.msra.mxu0 0.0
    %5379 = vmatprep.subr.mxu0 0.0
    %5380 = vmatpush1.msra.mxu0 0.0
    %5381 = vmatprep.subr.mxu0 0.0
    %5382 = vmatpush1.msra.mxu0 0.0
    %5383 = vmatprep.subr.mxu0 0.0
    %5384 = vmatpush1.msra.mxu0 0.0
    %5385 = vmatprep.subr.mxu0 0.0
    %5386 = vmatpush1.msra.mxu0 0.0
    %5387 = vmatprep.subr.mxu0 0.0
    %5388 = vmatpush1.msra.mxu0 0.0
    %5389 = vmatprep.subr.mxu0 0.0
    %5390 = vmatpush1.msra.mxu0 0.0
    %5391 = vmatprep.subr.mxu0 0.0
    %5392 = vmatpush1.msra.mxu0 0.0
    %5393 = vmatprep.subr.mxu0 0.0
    %5394 = vmatpush1.msra.mxu0 0.0
    %5395 = vmatprep.subr.mxu0 0.0
    %5396 = vmatpush1.msra.mxu0 0.0
    %5397 = vmatprep.subr.mxu0 0.0
    %5398 = vmatpush1.msra.mxu0 0.0
    %5399 = vmatprep.subr.mxu0 0.0
    %5400 = vmatpush1.msra.mxu0 0.0
    %5401 = vmatprep.subr.mxu0 0.0
    %5402 = vmatpush1.msra.mxu0 0.0
    %5403 = vmatprep.subr.mxu0 0.0
    %5404 = vmatpush1.msra.mxu0 0.0
    %5405 = vmatprep.subr.mxu0 0.0
    %5406 = vmatpush1.msra.mxu0 0.0
    %5407 = vmatprep.subr.mxu0 0.0
    %5408 = vmatpush1.msra.mxu0 0.0
    %5409 = vmatprep.subr.mxu0 0.0
    %5410 = vmatpush1.msra.mxu0 0.0
    %5411 = vmatprep.subr.mxu0 0.0
    %5412 = vmatpush1.msra.mxu0 0.0
    %5413 = vmatprep.subr.mxu0 0.0
    %5414 = vmatpush1.msra.mxu0 0.0
    %5415 = vmatprep.subr.mxu0 0.0
    %5416 = vmatpush1.msra.mxu0 0.0
    %5417 = vmatprep.subr.mxu0 0.0
    %5418 = vmatpush1.msra.mxu0 0.0
    %5419 = vmatprep.subr.mxu0 0.0
    %5420 = vmatpush1.msra.mxu0 0.0
    %5421 = vmatprep.mubr.f32.mxu0 0.0
    %v5422 = vand.u32 %v5351, 4294901760
    %v5423 = vsub.f32 %v5351, %v5422
    %v5424 = vand.u32 %v5423, 4294901760
    %v5425 = vsub.f32 %v5423, %v5424
    %v5426 = vand.u32 %v5425, 4294901760
    %5427 = vmatmul.mubr.f32.gmra.mrb[0].mxu0 %v5426
    %v5428 = vpop.f32.mrb[0].mxu0
    %v5429 = vadd.f32 0.0, %v5428
    %v5430 = vpop.f32.mrb[0].mxu0
    %5431 = vdwg.mxu0
    %5432 = vmatprep.subr.mxu0 0.0
    %v5433 = vand.u32 %v59, 4294901760
    %v5434 = vsub.f32 %v59, %v5433
    %v5435 = vand.u32 %v5434, 4294901760
    %v5436 = vsub.f32 %v5434, %v5435
    %v5437 = vand.u32 %v5436, 4294901760
    %5438 = vmatpush1.msra.mxu0 %v5437
    %5439 = vmatprep.subr.mxu0 0.0
    %v5440 = vand.u32 %v60, 4294901760
    %v5441 = vsub.f32 %v60, %v5440
    %v5442 = vand.u32 %v5441, 4294901760
    %v5443 = vsub.f32 %v5441, %v5442
    %v5444 = vand.u32 %v5443, 4294901760
    %5445 = vmatpush1.msra.mxu0 %v5444
    %5446 = vmatprep.subr.mxu0 0.0
    %v5447 = vand.u32 %v61, 4294901760
    %v5448 = vsub.f32 %v61, %v5447
    %v5449 = vand.u32 %v5448, 4294901760
    %v5450 = vsub.f32 %v5448, %v5449
    %v5451 = vand.u32 %v5450, 4294901760
    %5452 = vmatpush1.msra.mxu0 %v5451
    %5453 = vmatprep.subr.mxu0 0.0
    %v5454 = vand.u32 %v62, 4294901760
    %v5455 = vsub.f32 %v62, %v5454
    %v5456 = vand.u32 %v5455, 4294901760
    %v5457 = vsub.f32 %v5455, %v5456
    %v5458 = vand.u32 %v5457, 4294901760
    %5459 = vmatpush1.msra.mxu0 %v5458
    %5460 = vmatprep.subr.mxu0 0.0
    %5461 = vmatpush1.msra.mxu0 0.0
    %5462 = vmatprep.subr.mxu0 0.0
    %5463 = vmatpush1.msra.mxu0 0.0
    %5464 = vmatprep.subr.mxu0 0.0
    %5465 = vmatpush1.msra.mxu0 0.0
    %5466 = vmatprep.subr.mxu0 0.0
    %5467 = vmatpush1.msra.mxu0 0.0
    %5468 = vmatprep.subr.mxu0 0.0
    %5469 = vmatpush1.msra.mxu0 0.0
    %5470 = vmatprep.subr.mxu0 0.0
    %5471 = vmatpush1.msra.mxu0 0.0
    %5472 = vmatprep.subr.mxu0 0.0
    %5473 = vmatpush1.msra.mxu0 0.0
    %5474 = vmatprep.subr.mxu0 0.0
    %5475 = vmatpush1.msra.mxu0 0.0
    %5476 = vmatprep.subr.mxu0 0.0
    %5477 = vmatpush1.msra.mxu0 0.0
    %5478 = vmatprep.subr.mxu0 0.0
    %5479 = vmatpush1.msra.mxu0 0.0
    %5480 = vmatprep.subr.mxu0 0.0
    %5481 = vmatpush1.msra.mxu0 0.0
    %5482 = vmatprep.subr.mxu0 0.0
    %5483 = vmatpush1.msra.mxu0 0.0
    %5484 = vmatprep.subr.mxu0 0.0
    %5485 = vmatpush1.msra.mxu0 0.0
    %5486 = vmatprep.subr.mxu0 0.0
    %5487 = vmatpush1.msra.mxu0 0.0
    %5488 = vmatprep.subr.mxu0 0.0
    %5489 = vmatpush1.msra.mxu0 0.0
    %5490 = vmatprep.subr.mxu0 0.0
    %5491 = vmatpush1.msra.mxu0 0.0
    %5492 = vmatprep.subr.mxu0 0.0
    %5493 = vmatpush1.msra.mxu0 0.0
    %5494 = vmatprep.subr.mxu0 0.0
    %5495 = vmatpush1.msra.mxu0 0.0
    %5496 = vmatprep.subr.mxu0 0.0
    %5497 = vmatpush1.msra.mxu0 0.0
    %5498 = vmatprep.subr.mxu0 0.0
    %5499 = vmatpush1.msra.mxu0 0.0
    %5500 = vmatprep.subr.mxu0 0.0
    %5501 = vmatpush1.msra.mxu0 0.0
    %5502 = vmatprep.subr.mxu0 0.0
    %5503 = vmatpush1.msra.mxu0 0.0
    %5504 = vmatprep.subr.mxu0 0.0
    %5505 = vmatpush1.msra.mxu0 0.0
    %5506 = vmatprep.subr.mxu0 0.0
    %5507 = vmatpush1.msra.mxu0 0.0
    %5508 = vmatprep.subr.mxu0 0.0
    %5509 = vmatpush1.msra.mxu0 0.0
    %5510 = vmatprep.subr.mxu0 0.0
    %5511 = vmatpush1.msra.mxu0 0.0
    %5512 = vmatprep.subr.mxu0 0.0
    %5513 = vmatpush1.msra.mxu0 0.0
    %5514 = vmatprep.subr.mxu0 0.0
    %5515 = vmatpush1.msra.mxu0 0.0
    %5516 = vmatprep.mubr.f32.mxu0 0.0
    %v5517 = vand.u32 %v5351, 4294901760
    %5518 = vmatmul.mubr.f32.gmra.mrb[0].mxu0 %v5517
    %v5519 = vpop.f32.mrb[0].mxu0
    %v5520 = vadd.f32 %v5429, %v5519
    %v5521 = vpop.f32.mrb[0].mxu0
    %5522 = vdwg.mxu0
    %5523 = vmatprep.subr.mxu0 0.0
    %v5524 = vand.u32 %v59, 4294901760
    %v5525 = vsub.f32 %v59, %v5524
    %5526 = vmatpush1.msra.mxu0 %v5525
    %5527 = vmatprep.subr.mxu0 0.0
    %v5528 = vand.u32 %v60, 4294901760
    %v5529 = vsub.f32 %v60, %v5528
    %5530 = vmatpush1.msra.mxu0 %v5529
    %5531 = vmatprep.subr.mxu0 0.0
    %v5532 = vand.u32 %v61, 4294901760
    %v5533 = vsub.f32 %v61, %v5532
    %5534 = vmatpush1.msra.mxu0 %v5533
    %5535 = vmatprep.subr.mxu0 0.0
    %v5536 = vand.u32 %v62, 4294901760
    %v5537 = vsub.f32 %v62, %v5536
    %5538 = vmatpush1.msra.mxu0 %v5537
    %5539 = vmatprep.subr.mxu0 0.0
    %5540 = vmatpush1.msra.mxu0 0.0
    %5541 = vmatprep.subr.mxu0 0.0
    %5542 = vmatpush1.msra.mxu0 0.0
    %5543 = vmatprep.subr.mxu0 0.0
    %5544 = vmatpush1.msra.mxu0 0.0
    %5545 = vmatprep.subr.mxu0 0.0
    %5546 = vmatpush1.msra.mxu0 0.0
    %5547 = vmatprep.subr.mxu0 0.0
    %5548 = vmatpush1.msra.mxu0 0.0
    %5549 = vmatprep.subr.mxu0 0.0
    %5550 = vmatpush1.msra.mxu0 0.0
    %5551 = vmatprep.subr.mxu0 0.0
    %5552 = vmatpush1.msra.mxu0 0.0
    %5553 = vmatprep.subr.mxu0 0.0
    %5554 = vmatpush1.msra.mxu0 0.0
    %5555 = vmatprep.subr.mxu0 0.0
    %5556 = vmatpush1.msra.mxu0 0.0
    %5557 = vmatprep.subr.mxu0 0.0
    %5558 = vmatpush1.msra.mxu0 0.0
    %5559 = vmatprep.subr.mxu0 0.0
    %5560 = vmatpush1.msra.mxu0 0.0
    %5561 = vmatprep.subr.mxu0 0.0
    %5562 = vmatpush1.msra.mxu0 0.0
    %5563 = vmatprep.subr.mxu0 0.0
    %5564 = vmatpush1.msra.mxu0 0.0
    %5565 = vmatprep.subr.mxu0 0.0
    %5566 = vmatpush1.msra.mxu0 0.0
    %5567 = vmatprep.subr.mxu0 0.0
    %5568 = vmatpush1.msra.mxu0 0.0
    %5569 = vmatprep.subr.mxu0 0.0
    %5570 = vmatpush1.msra.mxu0 0.0
    %5571 = vmatprep.subr.mxu0 0.0
    %5572 = vmatpush1.msra.mxu0 0.0
    %5573 = vmatprep.subr.mxu0 0.0
    %5574 = vmatpush1.msra.mxu0 0.0
    %5575 = vmatprep.subr.mxu0 0.0
    %5576 = vmatpush1.msra.mxu0 0.0
    %5577 = vmatprep.subr.mxu0 0.0
    %5578 = vmatpush1.msra.mxu0 0.0
    %5579 = vmatprep.subr.mxu0 0.0
    %5580 = vmatpush1.msra.mxu0 0.0
    %5581 = vmatprep.subr.mxu0 0.0
    %5582 = vmatpush1.msra.mxu0 0.0
    %5583 = vmatprep.subr.mxu0 0.0
    %5584 = vmatpush1.msra.mxu0 0.0
    %5585 = vmatprep.subr.mxu0 0.0
    %5586 = vmatpush1.msra.mxu0 0.0
    %5587 = vmatprep.subr.mxu0 0.0
    %5588 = vmatpush1.msra.mxu0 0.0
    %5589 = vmatprep.subr.mxu0 0.0
    %5590 = vmatpush1.msra.mxu0 0.0
    %5591 = vmatprep.subr.mxu0 0.0
    %5592 = vmatpush1.msra.mxu0 0.0
    %5593 = vmatprep.subr.mxu0 0.0
    %5594 = vmatpush1.msra.mxu0 0.0
    %5595 = vmatprep.mubr.f32.mxu0 0.0
    %v5596 = vand.u32 %v5351, 4294901760
    %v5597 = vsub.f32 %v5351, %v5596
    %5598 = vmatmul.mubr.f32.gmra.mrb[0].mxu0 %v5597
    %v5599 = vpop.f32.mrb[0].mxu0
    %v5600 = vadd.f32 %v5520, %v5599
    %v5601 = vpop.f32.mrb[0].mxu0
    %5602 = vdwg.mxu0
    %5603 = vmatprep.subr.mxu0 0.0
    %v5604 = vand.u32 %v59, 4294901760
    %5605 = vmatpush1.msra.mxu0 %v5604
    %5606 = vmatprep.subr.mxu0 0.0
    %v5607 = vand.u32 %v60, 4294901760
    %5608 = vmatpush1.msra.mxu0 %v5607
    %5609 = vmatprep.subr.mxu0 0.0
    %v5610 = vand.u32 %v61, 4294901760
    %5611 = vmatpush1.msra.mxu0 %v5610
    %5612 = vmatprep.subr.mxu0 0.0
    %v5613 = vand.u32 %v62, 4294901760
    %5614 = vmatpush1.msra.mxu0 %v5613
    %5615 = vmatprep.subr.mxu0 0.0
    %5616 = vmatpush1.msra.mxu0 0.0
    %5617 = vmatprep.subr.mxu0 0.0
    %5618 = vmatpush1.msra.mxu0 0.0
    %5619 = vmatprep.subr.mxu0 0.0
    %5620 = vmatpush1.msra.mxu0 0.0
    %5621 = vmatprep.subr.mxu0 0.0
    %5622 = vmatpush1.msra.mxu0 0.0
    %5623 = vmatprep.subr.mxu0 0.0
    %5624 = vmatpush1.msra.mxu0 0.0
    %5625 = vmatprep.subr.mxu0 0.0
    %5626 = vmatpush1.msra.mxu0 0.0
    %5627 = vmatprep.subr.mxu0 0.0
    %5628 = vmatpush1.msra.mxu0 0.0
    %5629 = vmatprep.subr.mxu0 0.0
    %5630 = vmatpush1.msra.mxu0 0.0
    %5631 = vmatprep.subr.mxu0 0.0
    %5632 = vmatpush1.msra.mxu0 0.0
    %5633 = vmatprep.subr.mxu0 0.0
    %5634 = vmatpush1.msra.mxu0 0.0
    %5635 = vmatprep.subr.mxu0 0.0
    %5636 = vmatpush1.msra.mxu0 0.0
    %5637 = vmatprep.subr.mxu0 0.0
    %5638 = vmatpush1.msra.mxu0 0.0
    %5639 = vmatprep.subr.mxu0 0.0
    %5640 = vmatpush1.msra.mxu0 0.0
    %5641 = vmatprep.subr.mxu0 0.0
    %5642 = vmatpush1.msra.mxu0 0.0
    %5643 = vmatprep.subr.mxu0 0.0
    %5644 = vmatpush1.msra.mxu0 0.0
    %5645 = vmatprep.subr.mxu0 0.0
    %5646 = vmatpush1.msra.mxu0 0.0
    %5647 = vmatprep.subr.mxu0 0.0
    %5648 = vmatpush1.msra.mxu0 0.0
    %5649 = vmatprep.subr.mxu0 0.0
    %5650 = vmatpush1.msra.mxu0 0.0
    %5651 = vmatprep.subr.mxu0 0.0
    %5652 = vmatpush1.msra.mxu0 0.0
    %5653 = vmatprep.subr.mxu0 0.0
    %5654 = vmatpush1.msra.mxu0 0.0
    %5655 = vmatprep.subr.mxu0 0.0
    %5656 = vmatpush1.msra.mxu0 0.0
    %5657 = vmatprep.subr.mxu0 0.0
    %5658 = vmatpush1.msra.mxu0 0.0
    %5659 = vmatprep.subr.mxu0 0.0
    %5660 = vmatpush1.msra.mxu0 0.0
    %5661 = vmatprep.subr.mxu0 0.0
    %5662 = vmatpush1.msra.mxu0 0.0
    %5663 = vmatprep.subr.mxu0 0.0
    %5664 = vmatpush1.msra.mxu0 0.0
    %5665 = vmatprep.subr.mxu0 0.0
    %5666 = vmatpush1.msra.mxu0 0.0
    %5667 = vmatprep.subr.mxu0 0.0
    %5668 = vmatpush1.msra.mxu0 0.0
    %5669 = vmatprep.subr.mxu0 0.0
    %5670 = vmatpush1.msra.mxu0 0.0
    %5671 = vmatprep.mubr.f32.mxu0 0.0
    %v5672 = vand.u32 %v5351, 4294901760
    %v5673 = vsub.f32 %v5351, %v5672
    %v5674 = vand.u32 %v5673, 4294901760
    %5675 = vmatmul.mubr.f32.gmra.mrb[0].mxu0 %v5674
    %v5676 = vpop.f32.mrb[0].mxu0
    %v5677 = vadd.f32 %v5600, %v5676
    %v5678 = vpop.f32.mrb[0].mxu0
    %5679 = vdwg.mxu0
    %5680 = vmatprep.subr.mxu0 0.0
    %v5681 = vand.u32 %v59, 4294901760
    %v5682 = vsub.f32 %v59, %v5681
    %v5683 = vand.u32 %v5682, 4294901760
    %5684 = vmatpush1.msra.mxu0 %v5683
    %5685 = vmatprep.subr.mxu0 0.0
    %v5686 = vand.u32 %v60, 4294901760
    %v5687 = vsub.f32 %v60, %v5686
    %v5688 = vand.u32 %v5687, 4294901760
    %5689 = vmatpush1.msra.mxu0 %v5688
    %5690 = vmatprep.subr.mxu0 0.0
    %v5691 = vand.u32 %v61, 4294901760
    %v5692 = vsub.f32 %v61, %v5691
    %v5693 = vand.u32 %v5692, 4294901760
    %5694 = vmatpush1.msra.mxu0 %v5693
    %5695 = vmatprep.subr.mxu0 0.0
    %v5696 = vand.u32 %v62, 4294901760
    %v5697 = vsub.f32 %v62, %v5696
    %v5698 = vand.u32 %v5697, 4294901760
    %5699 = vmatpush1.msra.mxu0 %v5698
    %5700 = vmatprep.subr.mxu0 0.0
    %5701 = vmatpush1.msra.mxu0 0.0
    %5702 = vmatprep.subr.mxu0 0.0
    %5703 = vmatpush1.msra.mxu0 0.0
    %5704 = vmatprep.subr.mxu0 0.0
    %5705 = vmatpush1.msra.mxu0 0.0
    %5706 = vmatprep.subr.mxu0 0.0
    %5707 = vmatpush1.msra.mxu0 0.0
    %5708 = vmatprep.subr.mxu0 0.0
    %5709 = vmatpush1.msra.mxu0 0.0
    %5710 = vmatprep.subr.mxu0 0.0
    %5711 = vmatpush1.msra.mxu0 0.0
    %5712 = vmatprep.subr.mxu0 0.0
    %5713 = vmatpush1.msra.mxu0 0.0
    %5714 = vmatprep.subr.mxu0 0.0
    %5715 = vmatpush1.msra.mxu0 0.0
    %5716 = vmatprep.subr.mxu0 0.0
    %5717 = vmatpush1.msra.mxu0 0.0
    %5718 = vmatprep.subr.mxu0 0.0
    %5719 = vmatpush1.msra.mxu0 0.0
    %5720 = vmatprep.subr.mxu0 0.0
    %5721 = vmatpush1.msra.mxu0 0.0
    %5722 = vmatprep.subr.mxu0 0.0
    %5723 = vmatpush1.msra.mxu0 0.0
    %5724 = vmatprep.subr.mxu0 0.0
    %5725 = vmatpush1.msra.mxu0 0.0
    %5726 = vmatprep.subr.mxu0 0.0
    %5727 = vmatpush1.msra.mxu0 0.0
    %5728 = vmatprep.subr.mxu0 0.0
    %5729 = vmatpush1.msra.mxu0 0.0
    %5730 = vmatprep.subr.mxu0 0.0
    %5731 = vmatpush1.msra.mxu0 0.0
    %5732 = vmatprep.subr.mxu0 0.0
    %5733 = vmatpush1.msra.mxu0 0.0
    %5734 = vmatprep.subr.mxu0 0.0
    %5735 = vmatpush1.msra.mxu0 0.0
    %5736 = vmatprep.subr.mxu0 0.0
    %5737 = vmatpush1.msra.mxu0 0.0
    %5738 = vmatprep.subr.mxu0 0.0
    %5739 = vmatpush1.msra.mxu0 0.0
    %5740 = vmatprep.subr.mxu0 0.0
    %5741 = vmatpush1.msra.mxu0 0.0
    %5742 = vmatprep.subr.mxu0 0.0
    %5743 = vmatpush1.msra.mxu0 0.0
    %5744 = vmatprep.subr.mxu0 0.0
    %5745 = vmatpush1.msra.mxu0 0.0
    %5746 = vmatprep.subr.mxu0 0.0
    %5747 = vmatpush1.msra.mxu0 0.0
    %5748 = vmatprep.subr.mxu0 0.0
    %5749 = vmatpush1.msra.mxu0 0.0
    %5750 = vmatprep.subr.mxu0 0.0
    %5751 = vmatpush1.msra.mxu0 0.0
    %5752 = vmatprep.subr.mxu0 0.0
    %5753 = vmatpush1.msra.mxu0 0.0
    %5754 = vmatprep.subr.mxu0 0.0
    %5755 = vmatpush1.msra.mxu0 0.0
    %5756 = vmatprep.mubr.f32.mxu0 0.0
    %v5757 = vand.u32 %v5351, 4294901760
    %5758 = vmatmul.mubr.f32.gmra.mrb[0].mxu0 %v5757
    %v5759 = vpop.f32.mrb[0].mxu0
    %v5760 = vadd.f32 %v5677, %v5759
    %v5761 = vpop.f32.mrb[0].mxu0
    %5762 = vdwg.mxu0
    %5763 = vmatprep.subr.mxu0 0.0
    %v5764 = vand.u32 %v59, 4294901760
    %5765 = vmatpush1.msra.mxu0 %v5764
    %5766 = vmatprep.subr.mxu0 0.0
    %v5767 = vand.u32 %v60, 4294901760
    %5768 = vmatpush1.msra.mxu0 %v5767
    %5769 = vmatprep.subr.mxu0 0.0
    %v5770 = vand.u32 %v61, 4294901760
    %5771 = vmatpush1.msra.mxu0 %v5770
    %5772 = vmatprep.subr.mxu0 0.0
    %v5773 = vand.u32 %v62, 4294901760
    %5774 = vmatpush1.msra.mxu0 %v5773
    %5775 = vmatprep.subr.mxu0 0.0
    %5776 = vmatpush1.msra.mxu0 0.0
    %5777 = vmatprep.subr.mxu0 0.0
    %5778 = vmatpush1.msra.mxu0 0.0
    %5779 = vmatprep.subr.mxu0 0.0
    %5780 = vmatpush1.msra.mxu0 0.0
    %5781 = vmatprep.subr.mxu0 0.0
    %5782 = vmatpush1.msra.mxu0 0.0
    %5783 = vmatprep.subr.mxu0 0.0
    %5784 = vmatpush1.msra.mxu0 0.0
    %5785 = vmatprep.subr.mxu0 0.0
    %5786 = vmatpush1.msra.mxu0 0.0
    %5787 = vmatprep.subr.mxu0 0.0
    %5788 = vmatpush1.msra.mxu0 0.0
    %5789 = vmatprep.subr.mxu0 0.0
    %5790 = vmatpush1.msra.mxu0 0.0
    %5791 = vmatprep.subr.mxu0 0.0
    %5792 = vmatpush1.msra.mxu0 0.0
    %5793 = vmatprep.subr.mxu0 0.0
    %5794 = vmatpush1.msra.mxu0 0.0
    %5795 = vmatprep.subr.mxu0 0.0
    %5796 = vmatpush1.msra.mxu0 0.0
    %5797 = vmatprep.subr.mxu0 0.0
    %5798 = vmatpush1.msra.mxu0 0.0
    %5799 = vmatprep.subr.mxu0 0.0
    %5800 = vmatpush1.msra.mxu0 0.0
    %5801 = vmatprep.subr.mxu0 0.0
    %5802 = vmatpush1.msra.mxu0 0.0
    %5803 = vmatprep.subr.mxu0 0.0
    %5804 = vmatpush1.msra.mxu0 0.0
    %5805 = vmatprep.subr.mxu0 0.0
    %5806 = vmatpush1.msra.mxu0 0.0
    %5807 = vmatprep.subr.mxu0 0.0
    %5808 = vmatpush1.msra.mxu0 0.0
    %5809 = vmatprep.subr.mxu0 0.0
    %5810 = vmatpush1.msra.mxu0 0.0
    %5811 = vmatprep.subr.mxu0 0.0
    %5812 = vmatpush1.msra.mxu0 0.0
    %5813 = vmatprep.subr.mxu0 0.0
    %5814 = vmatpush1.msra.mxu0 0.0
    %5815 = vmatprep.subr.mxu0 0.0
    %5816 = vmatpush1.msra.mxu0 0.0
    %5817 = vmatprep.subr.mxu0 0.0
    %5818 = vmatpush1.msra.mxu0 0.0
    %5819 = vmatprep.subr.mxu0 0.0
    %5820 = vmatpush1.msra.mxu0 0.0
    %5821 = vmatprep.subr.mxu0 0.0
    %5822 = vmatpush1.msra.mxu0 0.0
    %5823 = vmatprep.subr.mxu0 0.0
    %5824 = vmatpush1.msra.mxu0 0.0
    %5825 = vmatprep.subr.mxu0 0.0
    %5826 = vmatpush1.msra.mxu0 0.0
    %5827 = vmatprep.subr.mxu0 0.0
    %5828 = vmatpush1.msra.mxu0 0.0
    %5829 = vmatprep.subr.mxu0 0.0
    %5830 = vmatpush1.msra.mxu0 0.0
    %5831 = vmatprep.mubr.f32.mxu0 0.0
    %v5832 = vand.u32 %v5351, 4294901760
    %5833 = vmatmul.mubr.f32.gmra.mrb[0].mxu0 %v5832
    %v5834 = vpop.f32.mrb[0].mxu0
    %v5835 = vadd.f32 %v5760, %v5834
    %v5836 = vpop.f32.mrb[0].mxu0
    %5837 = vdwg.mxu0
    %v5838 = vadd.f32 %v5349, %v5835
    %v5839 = vxor.u32 %v5838, 2147483648
    %v5840 = vmul.f32 %v5839, 1.442695
    %v5841 = vpow.pop %v5840
    %v5842 = vadd.f32 %v5841, 1.0
    %v5843 = vrcp.pop %v5842
    %v5844 = vmul.f32 1.0, %v5843
    %v5845 = vtanh.pop %v5838
    %v5846 = vmul.f32 %v5844, %v4801
    %5848 = vrot.lane.b32.xlu0 %v5845, 64
    %v5849 = vpop.permute.xlu0 %5848
    %v5851 = vmul.f32 %v5844, %v5849
    %5853 = vrot.lane.b32.xlu0 %v5851, 32
    %v5854 = vpop.permute.xlu0 %5853
    %v5856 = vadd.f32 %v5846, %v5854
    %v5857 = vtanh.pop %v5856
    %5859 = vrot.lane.b32.xlu0 %v5857, 64
    %v5860 = vpop.permute.xlu0 %5859
    %v5862 = vmul.f32 %v5844, %v5860
    %v5863 = vsel %vm70, %v5345, 0
    %5865 = vmatprep.subr.mxu0 0.0
    %v5866 = vand.u32 %v63, 4294901760
    %5867 = vmatpush1.msra.mxu0 %v5866
    %5868 = vmatprep.subr.mxu0 0.0
    %v5869 = vand.u32 %v64, 4294901760
    %5870 = vmatpush1.msra.mxu0 %v5869
    %5871 = vmatprep.subr.mxu0 0.0
    %v5872 = vand.u32 %v65, 4294901760
    %5873 = vmatpush1.msra.mxu0 %v5872
    %5874 = vmatprep.subr.mxu0 0.0
    %v5875 = vand.u32 %v66, 4294901760
    %5876 = vmatpush1.msra.mxu0 %v5875
    %5877 = vmatprep.subr.mxu0 0.0
    %5878 = vmatpush1.msra.mxu0 0.0
    %5879 = vmatprep.subr.mxu0 0.0
    %5880 = vmatpush1.msra.mxu0 0.0
    %5881 = vmatprep.subr.mxu0 0.0
    %5882 = vmatpush1.msra.mxu0 0.0
    %5883 = vmatprep.subr.mxu0 0.0
    %5884 = vmatpush1.msra.mxu0 0.0
    %5885 = vmatprep.subr.mxu0 0.0
    %5886 = vmatpush1.msra.mxu0 0.0
    %5887 = vmatprep.subr.mxu0 0.0
    %5888 = vmatpush1.msra.mxu0 0.0
    %5889 = vmatprep.subr.mxu0 0.0
    %5890 = vmatpush1.msra.mxu0 0.0
    %5891 = vmatprep.subr.mxu0 0.0
    %5892 = vmatpush1.msra.mxu0 0.0
    %5893 = vmatprep.subr.mxu0 0.0
    %5894 = vmatpush1.msra.mxu0 0.0
    %5895 = vmatprep.subr.mxu0 0.0
    %5896 = vmatpush1.msra.mxu0 0.0
    %5897 = vmatprep.subr.mxu0 0.0
    %5898 = vmatpush1.msra.mxu0 0.0
    %5899 = vmatprep.subr.mxu0 0.0
    %5900 = vmatpush1.msra.mxu0 0.0
    %5901 = vmatprep.subr.mxu0 0.0
    %5902 = vmatpush1.msra.mxu0 0.0
    %5903 = vmatprep.subr.mxu0 0.0
    %5904 = vmatpush1.msra.mxu0 0.0
    %5905 = vmatprep.subr.mxu0 0.0
    %5906 = vmatpush1.msra.mxu0 0.0
    %5907 = vmatprep.subr.mxu0 0.0
    %5908 = vmatpush1.msra.mxu0 0.0
    %5909 = vmatprep.subr.mxu0 0.0
    %5910 = vmatpush1.msra.mxu0 0.0
    %5911 = vmatprep.subr.mxu0 0.0
    %5912 = vmatpush1.msra.mxu0 0.0
    %5913 = vmatprep.subr.mxu0 0.0
    %5914 = vmatpush1.msra.mxu0 0.0
    %5915 = vmatprep.subr.mxu0 0.0
    %5916 = vmatpush1.msra.mxu0 0.0
    %5917 = vmatprep.subr.mxu0 0.0
    %5918 = vmatpush1.msra.mxu0 0.0
    %5919 = vmatprep.subr.mxu0 0.0
    %5920 = vmatpush1.msra.mxu0 0.0
    %5921 = vmatprep.subr.mxu0 0.0
    %5922 = vmatpush1.msra.mxu0 0.0
    %5923 = vmatprep.subr.mxu0 0.0
    %5924 = vmatpush1.msra.mxu0 0.0
    %5925 = vmatprep.subr.mxu0 0.0
    %5926 = vmatpush1.msra.mxu0 0.0
    %5927 = vmatprep.subr.mxu0 0.0
    %5928 = vmatpush1.msra.mxu0 0.0
    %5929 = vmatprep.subr.mxu0 0.0
    %5930 = vmatpush1.msra.mxu0 0.0
    %5931 = vmatprep.subr.mxu0 0.0
    %5932 = vmatpush1.msra.mxu0 0.0
    %5933 = vmatprep.mubr.f32.mxu0 0.0
    %v5934 = vand.u32 %v5863, 4294901760
    %v5935 = vsub.f32 %v5863, %v5934
    %v5936 = vand.u32 %v5935, 4294901760
    %v5937 = vsub.f32 %v5935, %v5936
    %v5938 = vand.u32 %v5937, 4294901760
    %5939 = vmatmul.mubr.f32.gmra.mrb[0].mxu0 %v5938
    %v5940 = vpop.f32.mrb[0].mxu0
    %v5941 = vadd.f32 0.0, %v5940
    %v5942 = vpop.f32.mrb[0].mxu0
    %5943 = vdwg.mxu0
    %5944 = vmatprep.subr.mxu0 0.0
    %v5945 = vand.u32 %v63, 4294901760
    %v5946 = vsub.f32 %v63, %v5945
    %v5947 = vand.u32 %v5946, 4294901760
    %v5948 = vsub.f32 %v5946, %v5947
    %v5949 = vand.u32 %v5948, 4294901760
    %5950 = vmatpush1.msra.mxu0 %v5949
    %5951 = vmatprep.subr.mxu0 0.0
    %v5952 = vand.u32 %v64, 4294901760
    %v5953 = vsub.f32 %v64, %v5952
    %v5954 = vand.u32 %v5953, 4294901760
    %v5955 = vsub.f32 %v5953, %v5954
    %v5956 = vand.u32 %v5955, 4294901760
    %5957 = vmatpush1.msra.mxu0 %v5956
    %5958 = vmatprep.subr.mxu0 0.0
    %v5959 = vand.u32 %v65, 4294901760
    %v5960 = vsub.f32 %v65, %v5959
    %v5961 = vand.u32 %v5960, 4294901760
    %v5962 = vsub.f32 %v5960, %v5961
    %v5963 = vand.u32 %v5962, 4294901760
    %5964 = vmatpush1.msra.mxu0 %v5963
    %5965 = vmatprep.subr.mxu0 0.0
    %v5966 = vand.u32 %v66, 4294901760
    %v5967 = vsub.f32 %v66, %v5966
    %v5968 = vand.u32 %v5967, 4294901760
    %v5969 = vsub.f32 %v5967, %v5968
    %v5970 = vand.u32 %v5969, 4294901760
    %5971 = vmatpush1.msra.mxu0 %v5970
    %5972 = vmatprep.subr.mxu0 0.0
    %5973 = vmatpush1.msra.mxu0 0.0
    %5974 = vmatprep.subr.mxu0 0.0
    %5975 = vmatpush1.msra.mxu0 0.0
    %5976 = vmatprep.subr.mxu0 0.0
    %5977 = vmatpush1.msra.mxu0 0.0
    %5978 = vmatprep.subr.mxu0 0.0
    %5979 = vmatpush1.msra.mxu0 0.0
    %5980 = vmatprep.subr.mxu0 0.0
    %5981 = vmatpush1.msra.mxu0 0.0
    %5982 = vmatprep.subr.mxu0 0.0
    %5983 = vmatpush1.msra.mxu0 0.0
    %5984 = vmatprep.subr.mxu0 0.0
    %5985 = vmatpush1.msra.mxu0 0.0
    %5986 = vmatprep.subr.mxu0 0.0
    %5987 = vmatpush1.msra.mxu0 0.0
    %5988 = vmatprep.subr.mxu0 0.0
    %5989 = vmatpush1.msra.mxu0 0.0
    %5990 = vmatprep.subr.mxu0 0.0
    %5991 = vmatpush1.msra.mxu0 0.0
    %5992 = vmatprep.subr.mxu0 0.0
    %5993 = vmatpush1.msra.mxu0 0.0
    %5994 = vmatprep.subr.mxu0 0.0
    %5995 = vmatpush1.msra.mxu0 0.0
    %5996 = vmatprep.subr.mxu0 0.0
    %5997 = vmatpush1.msra.mxu0 0.0
    %5998 = vmatprep.subr.mxu0 0.0
    %5999 = vmatpush1.msra.mxu0 0.0
    %6000 = vmatprep.subr.mxu0 0.0
    %6001 = vmatpush1.msra.mxu0 0.0
    %6002 = vmatprep.subr.mxu0 0.0
    %6003 = vmatpush1.msra.mxu0 0.0
    %6004 = vmatprep.subr.mxu0 0.0
    %6005 = vmatpush1.msra.mxu0 0.0
    %6006 = vmatprep.subr.mxu0 0.0
    %6007 = vmatpush1.msra.mxu0 0.0
    %6008 = vmatprep.subr.mxu0 0.0
    %6009 = vmatpush1.msra.mxu0 0.0
    %6010 = vmatprep.subr.mxu0 0.0
    %6011 = vmatpush1.msra.mxu0 0.0
    %6012 = vmatprep.subr.mxu0 0.0
    %6013 = vmatpush1.msra.mxu0 0.0
    %6014 = vmatprep.subr.mxu0 0.0
    %6015 = vmatpush1.msra.mxu0 0.0
    %6016 = vmatprep.subr.mxu0 0.0
    %6017 = vmatpush1.msra.mxu0 0.0
    %6018 = vmatprep.subr.mxu0 0.0
    %6019 = vmatpush1.msra.mxu0 0.0
    %6020 = vmatprep.subr.mxu0 0.0
    %6021 = vmatpush1.msra.mxu0 0.0
    %6022 = vmatprep.subr.mxu0 0.0
    %6023 = vmatpush1.msra.mxu0 0.0
    %6024 = vmatprep.subr.mxu0 0.0
    %6025 = vmatpush1.msra.mxu0 0.0
    %6026 = vmatprep.subr.mxu0 0.0
    %6027 = vmatpush1.msra.mxu0 0.0
    %6028 = vmatprep.mubr.f32.mxu0 0.0
    %v6029 = vand.u32 %v5863, 4294901760
    %6030 = vmatmul.mubr.f32.gmra.mrb[0].mxu0 %v6029
    %v6031 = vpop.f32.mrb[0].mxu0
    %v6032 = vadd.f32 %v5941, %v6031
    %v6033 = vpop.f32.mrb[0].mxu0
    %6034 = vdwg.mxu0
    %6035 = vmatprep.subr.mxu0 0.0
    %v6036 = vand.u32 %v63, 4294901760
    %v6037 = vsub.f32 %v63, %v6036
    %6038 = vmatpush1.msra.mxu0 %v6037
    %6039 = vmatprep.subr.mxu0 0.0
    %v6040 = vand.u32 %v64, 4294901760
    %v6041 = vsub.f32 %v64, %v6040
    %6042 = vmatpush1.msra.mxu0 %v6041
    %6043 = vmatprep.subr.mxu0 0.0
    %v6044 = vand.u32 %v65, 4294901760
    %v6045 = vsub.f32 %v65, %v6044
    %6046 = vmatpush1.msra.mxu0 %v6045
    %6047 = vmatprep.subr.mxu0 0.0
    %v6048 = vand.u32 %v66, 4294901760
    %v6049 = vsub.f32 %v66, %v6048
    %6050 = vmatpush1.msra.mxu0 %v6049
    %6051 = vmatprep.subr.mxu0 0.0
    %6052 = vmatpush1.msra.mxu0 0.0
    %6053 = vmatprep.subr.mxu0 0.0
    %6054 = vmatpush1.msra.mxu0 0.0
    %6055 = vmatprep.subr.mxu0 0.0
    %6056 = vmatpush1.msra.mxu0 0.0
    %6057 = vmatprep.subr.mxu0 0.0
    %6058 = vmatpush1.msra.mxu0 0.0
    %6059 = vmatprep.subr.mxu0 0.0
    %6060 = vmatpush1.msra.mxu0 0.0
    %6061 = vmatprep.subr.mxu0 0.0
    %6062 = vmatpush1.msra.mxu0 0.0
    %6063 = vmatprep.subr.mxu0 0.0
    %6064 = vmatpush1.msra.mxu0 0.0
    %6065 = vmatprep.subr.mxu0 0.0
    %6066 = vmatpush1.msra.mxu0 0.0
    %6067 = vmatprep.subr.mxu0 0.0
    %6068 = vmatpush1.msra.mxu0 0.0
    %6069 = vmatprep.subr.mxu0 0.0
    %6070 = vmatpush1.msra.mxu0 0.0
    %6071 = vmatprep.subr.mxu0 0.0
    %6072 = vmatpush1.msra.mxu0 0.0
    %6073 = vmatprep.subr.mxu0 0.0
    %6074 = vmatpush1.msra.mxu0 0.0
    %6075 = vmatprep.subr.mxu0 0.0
    %6076 = vmatpush1.msra.mxu0 0.0
    %6077 = vmatprep.subr.mxu0 0.0
    %6078 = vmatpush1.msra.mxu0 0.0
    %6079 = vmatprep.subr.mxu0 0.0
    %6080 = vmatpush1.msra.mxu0 0.0
    %6081 = vmatprep.subr.mxu0 0.0
    %6082 = vmatpush1.msra.mxu0 0.0
    %6083 = vmatprep.subr.mxu0 0.0
    %6084 = vmatpush1.msra.mxu0 0.0
    %6085 = vmatprep.subr.mxu0 0.0
    %6086 = vmatpush1.msra.mxu0 0.0
    %6087 = vmatprep.subr.mxu0 0.0
    %6088 = vmatpush1.msra.mxu0 0.0
    %6089 = vmatprep.subr.mxu0 0.0
    %6090 = vmatpush1.msra.mxu0 0.0
    %6091 = vmatprep.subr.mxu0 0.0
    %6092 = vmatpush1.msra.mxu0 0.0
    %6093 = vmatprep.subr.mxu0 0.0
    %6094 = vmatpush1.msra.mxu0 0.0
    %6095 = vmatprep.subr.mxu0 0.0
    %6096 = vmatpush1.msra.mxu0 0.0
    %6097 = vmatprep.subr.mxu0 0.0
    %6098 = vmatpush1.msra.mxu0 0.0
    %6099 = vmatprep.subr.mxu0 0.0
    %6100 = vmatpush1.msra.mxu0 0.0
    %6101 = vmatprep.subr.mxu0 0.0
    %6102 = vmatpush1.msra.mxu0 0.0
    %6103 = vmatprep.subr.mxu0 0.0
    %6104 = vmatpush1.msra.mxu0 0.0
    %6105 = vmatprep.subr.mxu0 0.0
    %6106 = vmatpush1.msra.mxu0 0.0
    %6107 = vmatprep.mubr.f32.mxu0 0.0
    %v6108 = vand.u32 %v5863, 4294901760
    %v6109 = vsub.f32 %v5863, %v6108
    %6110 = vmatmul.mubr.f32.gmra.mrb[0].mxu0 %v6109
    %v6111 = vpop.f32.mrb[0].mxu0
    %v6112 = vadd.f32 %v6032, %v6111
    %v6113 = vpop.f32.mrb[0].mxu0
    %6114 = vdwg.mxu0
    %6115 = vmatprep.subr.mxu0 0.0
    %v6116 = vand.u32 %v63, 4294901760
    %6117 = vmatpush1.msra.mxu0 %v6116
    %6118 = vmatprep.subr.mxu0 0.0
    %v6119 = vand.u32 %v64, 4294901760
    %6120 = vmatpush1.msra.mxu0 %v6119
    %6121 = vmatprep.subr.mxu0 0.0
    %v6122 = vand.u32 %v65, 4294901760
    %6123 = vmatpush1.msra.mxu0 %v6122
    %6124 = vmatprep.subr.mxu0 0.0
    %v6125 = vand.u32 %v66, 4294901760
    %6126 = vmatpush1.msra.mxu0 %v6125
    %6127 = vmatprep.subr.mxu0 0.0
    %6128 = vmatpush1.msra.mxu0 0.0
    %6129 = vmatprep.subr.mxu0 0.0
    %6130 = vmatpush1.msra.mxu0 0.0
    %6131 = vmatprep.subr.mxu0 0.0
    %6132 = vmatpush1.msra.mxu0 0.0
    %6133 = vmatprep.subr.mxu0 0.0
    %6134 = vmatpush1.msra.mxu0 0.0
    %6135 = vmatprep.subr.mxu0 0.0
    %6136 = vmatpush1.msra.mxu0 0.0
    %6137 = vmatprep.subr.mxu0 0.0
    %6138 = vmatpush1.msra.mxu0 0.0
    %6139 = vmatprep.subr.mxu0 0.0
    %6140 = vmatpush1.msra.mxu0 0.0
    %6141 = vmatprep.subr.mxu0 0.0
    %6142 = vmatpush1.msra.mxu0 0.0
    %6143 = vmatprep.subr.mxu0 0.0
    %6144 = vmatpush1.msra.mxu0 0.0
    %6145 = vmatprep.subr.mxu0 0.0
    %6146 = vmatpush1.msra.mxu0 0.0
    %6147 = vmatprep.subr.mxu0 0.0
    %6148 = vmatpush1.msra.mxu0 0.0
    %6149 = vmatprep.subr.mxu0 0.0
    %6150 = vmatpush1.msra.mxu0 0.0
    %6151 = vmatprep.subr.mxu0 0.0
    %6152 = vmatpush1.msra.mxu0 0.0
    %6153 = vmatprep.subr.mxu0 0.0
    %6154 = vmatpush1.msra.mxu0 0.0
    %6155 = vmatprep.subr.mxu0 0.0
    %6156 = vmatpush1.msra.mxu0 0.0
    %6157 = vmatprep.subr.mxu0 0.0
    %6158 = vmatpush1.msra.mxu0 0.0
    %6159 = vmatprep.subr.mxu0 0.0
    %6160 = vmatpush1.msra.mxu0 0.0
    %6161 = vmatprep.subr.mxu0 0.0
    %6162 = vmatpush1.msra.mxu0 0.0
    %6163 = vmatprep.subr.mxu0 0.0
    %6164 = vmatpush1.msra.mxu0 0.0
    %6165 = vmatprep.subr.mxu0 0.0
    %6166 = vmatpush1.msra.mxu0 0.0
    %6167 = vmatprep.subr.mxu0 0.0
    %6168 = vmatpush1.msra.mxu0 0.0
    %6169 = vmatprep.subr.mxu0 0.0
    %6170 = vmatpush1.msra.mxu0 0.0
    %6171 = vmatprep.subr.mxu0 0.0
    %6172 = vmatpush1.msra.mxu0 0.0
    %6173 = vmatprep.subr.mxu0 0.0
    %6174 = vmatpush1.msra.mxu0 0.0
    %6175 = vmatprep.subr.mxu0 0.0
    %6176 = vmatpush1.msra.mxu0 0.0
    %6177 = vmatprep.subr.mxu0 0.0
    %6178 = vmatpush1.msra.mxu0 0.0
    %6179 = vmatprep.subr.mxu0 0.0
    %6180 = vmatpush1.msra.mxu0 0.0
    %6181 = vmatprep.subr.mxu0 0.0
    %6182 = vmatpush1.msra.mxu0 0.0
    %6183 = vmatprep.mubr.f32.mxu0 0.0
    %v6184 = vand.u32 %v5863, 4294901760
    %v6185 = vsub.f32 %v5863, %v6184
    %v6186 = vand.u32 %v6185, 4294901760
    %6187 = vmatmul.mubr.f32.gmra.mrb[0].mxu0 %v6186
    %v6188 = vpop.f32.mrb[0].mxu0
    %v6189 = vadd.f32 %v6112, %v6188
    %v6190 = vpop.f32.mrb[0].mxu0
    %6191 = vdwg.mxu0
    %6192 = vmatprep.subr.mxu0 0.0
    %v6193 = vand.u32 %v63, 4294901760
    %v6194 = vsub.f32 %v63, %v6193
    %v6195 = vand.u32 %v6194, 4294901760
    %6196 = vmatpush1.msra.mxu0 %v6195
    %6197 = vmatprep.subr.mxu0 0.0
    %v6198 = vand.u32 %v64, 4294901760
    %v6199 = vsub.f32 %v64, %v6198
    %v6200 = vand.u32 %v6199, 4294901760
    %6201 = vmatpush1.msra.mxu0 %v6200
    %6202 = vmatprep.subr.mxu0 0.0
    %v6203 = vand.u32 %v65, 4294901760
    %v6204 = vsub.f32 %v65, %v6203
    %v6205 = vand.u32 %v6204, 4294901760
    %6206 = vmatpush1.msra.mxu0 %v6205
    %6207 = vmatprep.subr.mxu0 0.0
    %v6208 = vand.u32 %v66, 4294901760
    %v6209 = vsub.f32 %v66, %v6208
    %v6210 = vand.u32 %v6209, 4294901760
    %6211 = vmatpush1.msra.mxu0 %v6210
    %6212 = vmatprep.subr.mxu0 0.0
    %6213 = vmatpush1.msra.mxu0 0.0
    %6214 = vmatprep.subr.mxu0 0.0
    %6215 = vmatpush1.msra.mxu0 0.0
    %6216 = vmatprep.subr.mxu0 0.0
    %6217 = vmatpush1.msra.mxu0 0.0
    %6218 = vmatprep.subr.mxu0 0.0
    %6219 = vmatpush1.msra.mxu0 0.0
    %6220 = vmatprep.subr.mxu0 0.0
    %6221 = vmatpush1.msra.mxu0 0.0
    %6222 = vmatprep.subr.mxu0 0.0
    %6223 = vmatpush1.msra.mxu0 0.0
    %6224 = vmatprep.subr.mxu0 0.0
    %6225 = vmatpush1.msra.mxu0 0.0
    %6226 = vmatprep.subr.mxu0 0.0
    %6227 = vmatpush1.msra.mxu0 0.0
    %6228 = vmatprep.subr.mxu0 0.0
    %6229 = vmatpush1.msra.mxu0 0.0
    %6230 = vmatprep.subr.mxu0 0.0
    %6231 = vmatpush1.msra.mxu0 0.0
    %6232 = vmatprep.subr.mxu0 0.0
    %6233 = vmatpush1.msra.mxu0 0.0
    %6234 = vmatprep.subr.mxu0 0.0
    %6235 = vmatpush1.msra.mxu0 0.0
    %6236 = vmatprep.subr.mxu0 0.0
    %6237 = vmatpush1.msra.mxu0 0.0
    %6238 = vmatprep.subr.mxu0 0.0
    %6239 = vmatpush1.msra.mxu0 0.0
    %6240 = vmatprep.subr.mxu0 0.0
    %6241 = vmatpush1.msra.mxu0 0.0
    %6242 = vmatprep.subr.mxu0 0.0
    %6243 = vmatpush1.msra.mxu0 0.0
    %6244 = vmatprep.subr.mxu0 0.0
    %6245 = vmatpush1.msra.mxu0 0.0
    %6246 = vmatprep.subr.mxu0 0.0
    %6247 = vmatpush1.msra.mxu0 0.0
    %6248 = vmatprep.subr.mxu0 0.0
    %6249 = vmatpush1.msra.mxu0 0.0
    %6250 = vmatprep.subr.mxu0 0.0
    %6251 = vmatpush1.msra.mxu0 0.0
    %6252 = vmatprep.subr.mxu0 0.0
    %6253 = vmatpush1.msra.mxu0 0.0
    %6254 = vmatprep.subr.mxu0 0.0
    %6255 = vmatpush1.msra.mxu0 0.0
    %6256 = vmatprep.subr.mxu0 0.0
    %6257 = vmatpush1.msra.mxu0 0.0
    %6258 = vmatprep.subr.mxu0 0.0
    %6259 = vmatpush1.msra.mxu0 0.0
    %6260 = vmatprep.subr.mxu0 0.0
    %6261 = vmatpush1.msra.mxu0 0.0
    %6262 = vmatprep.subr.mxu0 0.0
    %6263 = vmatpush1.msra.mxu0 0.0
    %6264 = vmatprep.subr.mxu0 0.0
    %6265 = vmatpush1.msra.mxu0 0.0
    %6266 = vmatprep.subr.mxu0 0.0
    %6267 = vmatpush1.msra.mxu0 0.0
    %6268 = vmatprep.mubr.f32.mxu0 0.0
    %v6269 = vand.u32 %v5863, 4294901760
    %6270 = vmatmul.mubr.f32.gmra.mrb[0].mxu0 %v6269
    %v6271 = vpop.f32.mrb[0].mxu0
    %v6272 = vadd.f32 %v6189, %v6271
    %v6273 = vpop.f32.mrb[0].mxu0
    %6274 = vdwg.mxu0
    %6275 = vmatprep.subr.mxu0 0.0
    %v6276 = vand.u32 %v63, 4294901760
    %6277 = vmatpush1.msra.mxu0 %v6276
    %6278 = vmatprep.subr.mxu0 0.0
    %v6279 = vand.u32 %v64, 4294901760
    %6280 = vmatpush1.msra.mxu0 %v6279
    %6281 = vmatprep.subr.mxu0 0.0
    %v6282 = vand.u32 %v65, 4294901760
    %6283 = vmatpush1.msra.mxu0 %v6282
    %6284 = vmatprep.subr.mxu0 0.0
    %v6285 = vand.u32 %v66, 4294901760
    %6286 = vmatpush1.msra.mxu0 %v6285
    %6287 = vmatprep.subr.mxu0 0.0
    %6288 = vmatpush1.msra.mxu0 0.0
    %6289 = vmatprep.subr.mxu0 0.0
    %6290 = vmatpush1.msra.mxu0 0.0
    %6291 = vmatprep.subr.mxu0 0.0
    %6292 = vmatpush1.msra.mxu0 0.0
    %6293 = vmatprep.subr.mxu0 0.0
    %6294 = vmatpush1.msra.mxu0 0.0
    %6295 = vmatprep.subr.mxu0 0.0
    %6296 = vmatpush1.msra.mxu0 0.0
    %6297 = vmatprep.subr.mxu0 0.0
    %6298 = vmatpush1.msra.mxu0 0.0
    %6299 = vmatprep.subr.mxu0 0.0
    %6300 = vmatpush1.msra.mxu0 0.0
    %6301 = vmatprep.subr.mxu0 0.0
    %6302 = vmatpush1.msra.mxu0 0.0
    %6303 = vmatprep.subr.mxu0 0.0
    %6304 = vmatpush1.msra.mxu0 0.0
    %6305 = vmatprep.subr.mxu0 0.0
    %6306 = vmatpush1.msra.mxu0 0.0
    %6307 = vmatprep.subr.mxu0 0.0
    %6308 = vmatpush1.msra.mxu0 0.0
    %6309 = vmatprep.subr.mxu0 0.0
    %6310 = vmatpush1.msra.mxu0 0.0
    %6311 = vmatprep.subr.mxu0 0.0
    %6312 = vmatpush1.msra.mxu0 0.0
    %6313 = vmatprep.subr.mxu0 0.0
    %6314 = vmatpush1.msra.mxu0 0.0
    %6315 = vmatprep.subr.mxu0 0.0
    %6316 = vmatpush1.msra.mxu0 0.0
    %6317 = vmatprep.subr.mxu0 0.0
    %6318 = vmatpush1.msra.mxu0 0.0
    %6319 = vmatprep.subr.mxu0 0.0
    %6320 = vmatpush1.msra.mxu0 0.0
    %6321 = vmatprep.subr.mxu0 0.0
    %6322 = vmatpush1.msra.mxu0 0.0
    %6323 = vmatprep.subr.mxu0 0.0
    %6324 = vmatpush1.msra.mxu0 0.0
    %6325 = vmatprep.subr.mxu0 0.0
    %6326 = vmatpush1.msra.mxu0 0.0
    %6327 = vmatprep.subr.mxu0 0.0
    %6328 = vmatpush1.msra.mxu0 0.0
    %6329 = vmatprep.subr.mxu0 0.0
    %6330 = vmatpush1.msra.mxu0 0.0
    %6331 = vmatprep.subr.mxu0 0.0
    %6332 = vmatpush1.msra.mxu0 0.0
    %6333 = vmatprep.subr.mxu0 0.0
    %6334 = vmatpush1.msra.mxu0 0.0
    %6335 = vmatprep.subr.mxu0 0.0
    %6336 = vmatpush1.msra.mxu0 0.0
    %6337 = vmatprep.subr.mxu0 0.0
    %6338 = vmatpush1.msra.mxu0 0.0
    %6339 = vmatprep.subr.mxu0 0.0
    %6340 = vmatpush1.msra.mxu0 0.0
    %6341 = vmatprep.subr.mxu0 0.0
    %6342 = vmatpush1.msra.mxu0 0.0
    %6343 = vmatprep.mubr.f32.mxu0 0.0
    %v6344 = vand.u32 %v5863, 4294901760
    %6345 = vmatmul.mubr.f32.gmra.mrb[0].mxu0 %v6344
    %v6346 = vpop.f32.mrb[0].mxu0
    %v6347 = vadd.f32 %v6272, %v6346
    %v6348 = vpop.f32.mrb[0].mxu0
    %6349 = vdwg.mxu0
    %v6351 = vrot.slane %v5350, 2
    %v6353 = vadd.f32 %v6351, %v6347
    %v6354 = vxor.u32 %v6353, 2147483648
    %v6355 = vmul.f32 %v6354, 1.442695
    %v6356 = vpow.pop %v6355
    %v6357 = vadd.f32 %v6356, 1.0
    %v6358 = vrcp.pop %v6357
    %v6359 = vmul.f32 1.0, %v6358
    %v6360 = vtanh.pop %v6353
    %v6361 = vmul.f32 %v6359, %v5316
    %6363 = vrot.lane.b32.xlu0 %v6360, 64
    %v6364 = vpop.permute.xlu0 %6363
    %v6366 = vmul.f32 %v6359, %v6364
    %6368 = vrot.lane.b32.xlu0 %v6366, 32
    %v6369 = vpop.permute.xlu0 %6368
    %v6371 = vadd.f32 %v6361, %v6369
    %v6372 = vtanh.pop %v6371
    %6374 = vrot.lane.b32.xlu0 %v6372, 64
    %v6375 = vpop.permute.xlu0 %6374
    %v6377 = vmul.f32 %v6359, %v6375
    %v6380 = vunpack.c.l.s4 1983009808
    %v6381 = vunpack.c.0.s8 %v6380
    %v6382 = vlaneseq
    %v6383 = vshrl.u32 %v6382, 7
    %v6384 = vsub.s32 %v6381, %v6383
    %v6385 = vrot.slane %v5862, %v6384
    %6386 = vrot.lane.b32.xlu0 %v6385, 32
    %v6387 = vpop.permute.xlu0 %6386
    %s6389 = scalar_lea.vmem [#allocation8], 10
    %6390 = vst.msk [vmem:[%s6389] sm:$0x3] %vm1108, %v6387
    %v6393 = vunpack.c.l.s4 1983009808
    %v6394 = vunpack.c.0.s8 %v6393
    %v6395 = vlaneseq
    %v6396 = vshrl.u32 %v6395, 7
    %v6397 = vsub.s32 %v6394, %v6396
    %v6398 = vrot.slane %v6377, %v6397
    %6399 = vrot.lane.b32.xlu0 %v6398, 32
    %v6400 = vpop.permute.xlu0 %6399
    %s6402 = scalar_lea.vmem [#allocation9], 4
    %6403 = vst.msk [vmem:[%s6402] sm:$0x3] %vm1108, %v6400
    %v6404 = vld [vmem:[%s1125] sm:$0xf]
    %v6405 = vld [vmem:[%s1123] sm:$0xf]
    %v6406 = vsel %vm70, %v6387, 0
    %6408 = vmatprep.subr.mxu0 0.0
    %v6409 = vand.u32 %v59, 4294901760
    %6410 = vmatpush1.msra.mxu0 %v6409
    %6411 = vmatprep.subr.mxu0 0.0
    %v6412 = vand.u32 %v60, 4294901760
    %6413 = vmatpush1.msra.mxu0 %v6412
    %6414 = vmatprep.subr.mxu0 0.0
    %v6415 = vand.u32 %v61, 4294901760
    %6416 = vmatpush1.msra.mxu0 %v6415
    %6417 = vmatprep.subr.mxu0 0.0
    %v6418 = vand.u32 %v62, 4294901760
    %6419 = vmatpush1.msra.mxu0 %v6418
    %6420 = vmatprep.subr.mxu0 0.0
    %6421 = vmatpush1.msra.mxu0 0.0
    %6422 = vmatprep.subr.mxu0 0.0
    %6423 = vmatpush1.msra.mxu0 0.0
    %6424 = vmatprep.subr.mxu0 0.0
    %6425 = vmatpush1.msra.mxu0 0.0
    %6426 = vmatprep.subr.mxu0 0.0
    %6427 = vmatpush1.msra.mxu0 0.0
    %6428 = vmatprep.subr.mxu0 0.0
    %6429 = vmatpush1.msra.mxu0 0.0
    %6430 = vmatprep.subr.mxu0 0.0
    %6431 = vmatpush1.msra.mxu0 0.0
    %6432 = vmatprep.subr.mxu0 0.0
    %6433 = vmatpush1.msra.mxu0 0.0
    %6434 = vmatprep.subr.mxu0 0.0
    %6435 = vmatpush1.msra.mxu0 0.0
    %6436 = vmatprep.subr.mxu0 0.0
    %6437 = vmatpush1.msra.mxu0 0.0
    %6438 = vmatprep.subr.mxu0 0.0
    %6439 = vmatpush1.msra.mxu0 0.0
    %6440 = vmatprep.subr.mxu0 0.0
    %6441 = vmatpush1.msra.mxu0 0.0
    %6442 = vmatprep.subr.mxu0 0.0
    %6443 = vmatpush1.msra.mxu0 0.0
    %6444 = vmatprep.subr.mxu0 0.0
    %6445 = vmatpush1.msra.mxu0 0.0
    %6446 = vmatprep.subr.mxu0 0.0
    %6447 = vmatpush1.msra.mxu0 0.0
    %6448 = vmatprep.subr.mxu0 0.0
    %6449 = vmatpush1.msra.mxu0 0.0
    %6450 = vmatprep.subr.mxu0 0.0
    %6451 = vmatpush1.msra.mxu0 0.0
    %6452 = vmatprep.subr.mxu0 0.0
    %6453 = vmatpush1.msra.mxu0 0.0
    %6454 = vmatprep.subr.mxu0 0.0
    %6455 = vmatpush1.msra.mxu0 0.0
    %6456 = vmatprep.subr.mxu0 0.0
    %6457 = vmatpush1.msra.mxu0 0.0
    %6458 = vmatprep.subr.mxu0 0.0
    %6459 = vmatpush1.msra.mxu0 0.0
    %6460 = vmatprep.subr.mxu0 0.0
    %6461 = vmatpush1.msra.mxu0 0.0
    %6462 = vmatprep.subr.mxu0 0.0
    %6463 = vmatpush1.msra.mxu0 0.0
    %6464 = vmatprep.subr.mxu0 0.0
    %6465 = vmatpush1.msra.mxu0 0.0
    %6466 = vmatprep.subr.mxu0 0.0
    %6467 = vmatpush1.msra.mxu0 0.0
    %6468 = vmatprep.subr.mxu0 0.0
    %6469 = vmatpush1.msra.mxu0 0.0
    %6470 = vmatprep.subr.mxu0 0.0
    %6471 = vmatpush1.msra.mxu0 0.0
    %6472 = vmatprep.subr.mxu0 0.0
    %6473 = vmatpush1.msra.mxu0 0.0
    %6474 = vmatprep.subr.mxu0 0.0
    %6475 = vmatpush1.msra.mxu0 0.0
    %6476 = vmatprep.mubr.f32.mxu0 0.0
    %v6477 = vand.u32 %v6406, 4294901760
    %v6478 = vsub.f32 %v6406, %v6477
    %v6479 = vand.u32 %v6478, 4294901760
    %v6480 = vsub.f32 %v6478, %v6479
    %v6481 = vand.u32 %v6480, 4294901760
    %6482 = vmatmul.mubr.f32.gmra.mrb[0].mxu0 %v6481
    %v6483 = vpop.f32.mrb[0].mxu0
    %v6484 = vadd.f32 0.0, %v6483
    %v6485 = vpop.f32.mrb[0].mxu0
    %6486 = vdwg.mxu0
    %6487 = vmatprep.subr.mxu0 0.0
    %v6488 = vand.u32 %v59, 4294901760
    %v6489 = vsub.f32 %v59, %v6488
    %v6490 = vand.u32 %v6489, 4294901760
    %v6491 = vsub.f32 %v6489, %v6490
    %v6492 = vand.u32 %v6491, 4294901760
    %6493 = vmatpush1.msra.mxu0 %v6492
    %6494 = vmatprep.subr.mxu0 0.0
    %v6495 = vand.u32 %v60, 4294901760
    %v6496 = vsub.f32 %v60, %v6495
    %v6497 = vand.u32 %v6496, 4294901760
    %v6498 = vsub.f32 %v6496, %v6497
    %v6499 = vand.u32 %v6498, 4294901760
    %6500 = vmatpush1.msra.mxu0 %v6499
    %6501 = vmatprep.subr.mxu0 0.0
    %v6502 = vand.u32 %v61, 4294901760
    %v6503 = vsub.f32 %v61, %v6502
    %v6504 = vand.u32 %v6503, 4294901760
    %v6505 = vsub.f32 %v6503, %v6504
    %v6506 = vand.u32 %v6505, 4294901760
    %6507 = vmatpush1.msra.mxu0 %v6506
    %6508 = vmatprep.subr.mxu0 0.0
    %v6509 = vand.u32 %v62, 4294901760
    %v6510 = vsub.f32 %v62, %v6509
    %v6511 = vand.u32 %v6510, 4294901760
    %v6512 = vsub.f32 %v6510, %v6511
    %v6513 = vand.u32 %v6512, 4294901760
    %6514 = vmatpush1.msra.mxu0 %v6513
    %6515 = vmatprep.subr.mxu0 0.0
    %6516 = vmatpush1.msra.mxu0 0.0
    %6517 = vmatprep.subr.mxu0 0.0
    %6518 = vmatpush1.msra.mxu0 0.0
    %6519 = vmatprep.subr.mxu0 0.0
    %6520 = vmatpush1.msra.mxu0 0.0
    %6521 = vmatprep.subr.mxu0 0.0
    %6522 = vmatpush1.msra.mxu0 0.0
    %6523 = vmatprep.subr.mxu0 0.0
    %6524 = vmatpush1.msra.mxu0 0.0
    %6525 = vmatprep.subr.mxu0 0.0
    %6526 = vmatpush1.msra.mxu0 0.0
    %6527 = vmatprep.subr.mxu0 0.0
    %6528 = vmatpush1.msra.mxu0 0.0
    %6529 = vmatprep.subr.mxu0 0.0
    %6530 = vmatpush1.msra.mxu0 0.0
    %6531 = vmatprep.subr.mxu0 0.0
    %6532 = vmatpush1.msra.mxu0 0.0
    %6533 = vmatprep.subr.mxu0 0.0
    %6534 = vmatpush1.msra.mxu0 0.0
    %6535 = vmatprep.subr.mxu0 0.0
    %6536 = vmatpush1.msra.mxu0 0.0
    %6537 = vmatprep.subr.mxu0 0.0
    %6538 = vmatpush1.msra.mxu0 0.0
    %6539 = vmatprep.subr.mxu0 0.0
    %6540 = vmatpush1.msra.mxu0 0.0
    %6541 = vmatprep.subr.mxu0 0.0
    %6542 = vmatpush1.msra.mxu0 0.0
    %6543 = vmatprep.subr.mxu0 0.0
    %6544 = vmatpush1.msra.mxu0 0.0
    %6545 = vmatprep.subr.mxu0 0.0
    %6546 = vmatpush1.msra.mxu0 0.0
    %6547 = vmatprep.subr.mxu0 0.0
    %6548 = vmatpush1.msra.mxu0 0.0
    %6549 = vmatprep.subr.mxu0 0.0
    %6550 = vmatpush1.msra.mxu0 0.0
    %6551 = vmatprep.subr.mxu0 0.0
    %6552 = vmatpush1.msra.mxu0 0.0
    %6553 = vmatprep.subr.mxu0 0.0
    %6554 = vmatpush1.msra.mxu0 0.0
    %6555 = vmatprep.subr.mxu0 0.0
    %6556 = vmatpush1.msra.mxu0 0.0
    %6557 = vmatprep.subr.mxu0 0.0
    %6558 = vmatpush1.msra.mxu0 0.0
    %6559 = vmatprep.subr.mxu0 0.0
    %6560 = vmatpush1.msra.mxu0 0.0
    %6561 = vmatprep.subr.mxu0 0.0
    %6562 = vmatpush1.msra.mxu0 0.0
    %6563 = vmatprep.subr.mxu0 0.0
    %6564 = vmatpush1.msra.mxu0 0.0
    %6565 = vmatprep.subr.mxu0 0.0
    %6566 = vmatpush1.msra.mxu0 0.0
    %6567 = vmatprep.subr.mxu0 0.0
    %6568 = vmatpush1.msra.mxu0 0.0
    %6569 = vmatprep.subr.mxu0 0.0
    %6570 = vmatpush1.msra.mxu0 0.0
    %6571 = vmatprep.mubr.f32.mxu0 0.0
    %v6572 = vand.u32 %v6406, 4294901760
    %6573 = vmatmul.mubr.f32.gmra.mrb[0].mxu0 %v6572
    %v6574 = vpop.f32.mrb[0].mxu0
    %v6575 = vadd.f32 %v6484, %v6574
    %v6576 = vpop.f32.mrb[0].mxu0
    %6577 = vdwg.mxu0
    %6578 = vmatprep.subr.mxu0 0.0
    %v6579 = vand.u32 %v59, 4294901760
    %v6580 = vsub.f32 %v59, %v6579
    %6581 = vmatpush1.msra.mxu0 %v6580
    %6582 = vmatprep.subr.mxu0 0.0
    %v6583 = vand.u32 %v60, 4294901760
    %v6584 = vsub.f32 %v60, %v6583
    %6585 = vmatpush1.msra.mxu0 %v6584
    %6586 = vmatprep.subr.mxu0 0.0
    %v6587 = vand.u32 %v61, 4294901760
    %v6588 = vsub.f32 %v61, %v6587
    %6589 = vmatpush1.msra.mxu0 %v6588
    %6590 = vmatprep.subr.mxu0 0.0
    %v6591 = vand.u32 %v62, 4294901760
    %v6592 = vsub.f32 %v62, %v6591
    %6593 = vmatpush1.msra.mxu0 %v6592
    %6594 = vmatprep.subr.mxu0 0.0
    %6595 = vmatpush1.msra.mxu0 0.0
    %6596 = vmatprep.subr.mxu0 0.0
    %6597 = vmatpush1.msra.mxu0 0.0
    %6598 = vmatprep.subr.mxu0 0.0
    %6599 = vmatpush1.msra.mxu0 0.0
    %6600 = vmatprep.subr.mxu0 0.0
    %6601 = vmatpush1.msra.mxu0 0.0
    %6602 = vmatprep.subr.mxu0 0.0
    %6603 = vmatpush1.msra.mxu0 0.0
    %6604 = vmatprep.subr.mxu0 0.0
    %6605 = vmatpush1.msra.mxu0 0.0
    %6606 = vmatprep.subr.mxu0 0.0
    %6607 = vmatpush1.msra.mxu0 0.0
    %6608 = vmatprep.subr.mxu0 0.0
    %6609 = vmatpush1.msra.mxu0 0.0
    %6610 = vmatprep.subr.mxu0 0.0
    %6611 = vmatpush1.msra.mxu0 0.0
    %6612 = vmatprep.subr.mxu0 0.0
    %6613 = vmatpush1.msra.mxu0 0.0
    %6614 = vmatprep.subr.mxu0 0.0
    %6615 = vmatpush1.msra.mxu0 0.0
    %6616 = vmatprep.subr.mxu0 0.0
    %6617 = vmatpush1.msra.mxu0 0.0
    %6618 = vmatprep.subr.mxu0 0.0
    %6619 = vmatpush1.msra.mxu0 0.0
    %6620 = vmatprep.subr.mxu0 0.0
    %6621 = vmatpush1.msra.mxu0 0.0
    %6622 = vmatprep.subr.mxu0 0.0
    %6623 = vmatpush1.msra.mxu0 0.0
    %6624 = vmatprep.subr.mxu0 0.0
    %6625 = vmatpush1.msra.mxu0 0.0
    %6626 = vmatprep.subr.mxu0 0.0
    %6627 = vmatpush1.msra.mxu0 0.0
    %6628 = vmatprep.subr.mxu0 0.0
    %6629 = vmatpush1.msra.mxu0 0.0
    %6630 = vmatprep.subr.mxu0 0.0
    %6631 = vmatpush1.msra.mxu0 0.0
    %6632 = vmatprep.subr.mxu0 0.0
    %6633 = vmatpush1.msra.mxu0 0.0
    %6634 = vmatprep.subr.mxu0 0.0
    %6635 = vmatpush1.msra.mxu0 0.0
    %6636 = vmatprep.subr.mxu0 0.0
    %6637 = vmatpush1.msra.mxu0 0.0
    %6638 = vmatprep.subr.mxu0 0.0
    %6639 = vmatpush1.msra.mxu0 0.0
    %6640 = vmatprep.subr.mxu0 0.0
    %6641 = vmatpush1.msra.mxu0 0.0
    %6642 = vmatprep.subr.mxu0 0.0
    %6643 = vmatpush1.msra.mxu0 0.0
    %6644 = vmatprep.subr.mxu0 0.0
    %6645 = vmatpush1.msra.mxu0 0.0
    %6646 = vmatprep.subr.mxu0 0.0
    %6647 = vmatpush1.msra.mxu0 0.0
    %6648 = vmatprep.subr.mxu0 0.0
    %6649 = vmatpush1.msra.mxu0 0.0
    %6650 = vmatprep.mubr.f32.mxu0 0.0
    %v6651 = vand.u32 %v6406, 4294901760
    %v6652 = vsub.f32 %v6406, %v6651
    %6653 = vmatmul.mubr.f32.gmra.mrb[0].mxu0 %v6652
    %v6654 = vpop.f32.mrb[0].mxu0
    %v6655 = vadd.f32 %v6575, %v6654
    %v6656 = vpop.f32.mrb[0].mxu0
    %6657 = vdwg.mxu0
    %6658 = vmatprep.subr.mxu0 0.0
    %v6659 = vand.u32 %v59, 4294901760
    %6660 = vmatpush1.msra.mxu0 %v6659
    %6661 = vmatprep.subr.mxu0 0.0
    %v6662 = vand.u32 %v60, 4294901760
    %6663 = vmatpush1.msra.mxu0 %v6662
    %6664 = vmatprep.subr.mxu0 0.0
    %v6665 = vand.u32 %v61, 4294901760
    %6666 = vmatpush1.msra.mxu0 %v6665
    %6667 = vmatprep.subr.mxu0 0.0
    %v6668 = vand.u32 %v62, 4294901760
    %6669 = vmatpush1.msra.mxu0 %v6668
    %6670 = vmatprep.subr.mxu0 0.0
    %6671 = vmatpush1.msra.mxu0 0.0
    %6672 = vmatprep.subr.mxu0 0.0
    %6673 = vmatpush1.msra.mxu0 0.0
    %6674 = vmatprep.subr.mxu0 0.0
    %6675 = vmatpush1.msra.mxu0 0.0
    %6676 = vmatprep.subr.mxu0 0.0
    %6677 = vmatpush1.msra.mxu0 0.0
    %6678 = vmatprep.subr.mxu0 0.0
    %6679 = vmatpush1.msra.mxu0 0.0
    %6680 = vmatprep.subr.mxu0 0.0
    %6681 = vmatpush1.msra.mxu0 0.0
    %6682 = vmatprep.subr.mxu0 0.0
    %6683 = vmatpush1.msra.mxu0 0.0
    %6684 = vmatprep.subr.mxu0 0.0
    %6685 = vmatpush1.msra.mxu0 0.0
    %6686 = vmatprep.subr.mxu0 0.0
    %6687 = vmatpush1.msra.mxu0 0.0
    %6688 = vmatprep.subr.mxu0 0.0
    %6689 = vmatpush1.msra.mxu0 0.0
    %6690 = vmatprep.subr.mxu0 0.0
    %6691 = vmatpush1.msra.mxu0 0.0
    %6692 = vmatprep.subr.mxu0 0.0
    %6693 = vmatpush1.msra.mxu0 0.0
    %6694 = vmatprep.subr.mxu0 0.0
    %6695 = vmatpush1.msra.mxu0 0.0
    %6696 = vmatprep.subr.mxu0 0.0
    %6697 = vmatpush1.msra.mxu0 0.0
    %6698 = vmatprep.subr.mxu0 0.0
    %6699 = vmatpush1.msra.mxu0 0.0
    %6700 = vmatprep.subr.mxu0 0.0
    %6701 = vmatpush1.msra.mxu0 0.0
    %6702 = vmatprep.subr.mxu0 0.0
    %6703 = vmatpush1.msra.mxu0 0.0
    %6704 = vmatprep.subr.mxu0 0.0
    %6705 = vmatpush1.msra.mxu0 0.0
    %6706 = vmatprep.subr.mxu0 0.0
    %6707 = vmatpush1.msra.mxu0 0.0
    %6708 = vmatprep.subr.mxu0 0.0
    %6709 = vmatpush1.msra.mxu0 0.0
    %6710 = vmatprep.subr.mxu0 0.0
    %6711 = vmatpush1.msra.mxu0 0.0
    %6712 = vmatprep.subr.mxu0 0.0
    %6713 = vmatpush1.msra.mxu0 0.0
    %6714 = vmatprep.subr.mxu0 0.0
    %6715 = vmatpush1.msra.mxu0 0.0
    %6716 = vmatprep.subr.mxu0 0.0
    %6717 = vmatpush1.msra.mxu0 0.0
    %6718 = vmatprep.subr.mxu0 0.0
    %6719 = vmatpush1.msra.mxu0 0.0
    %6720 = vmatprep.subr.mxu0 0.0
    %6721 = vmatpush1.msra.mxu0 0.0
    %6722 = vmatprep.subr.mxu0 0.0
    %6723 = vmatpush1.msra.mxu0 0.0
    %6724 = vmatprep.subr.mxu0 0.0
    %6725 = vmatpush1.msra.mxu0 0.0
    %6726 = vmatprep.mubr.f32.mxu0 0.0
    %v6727 = vand.u32 %v6406, 4294901760
    %v6728 = vsub.f32 %v6406, %v6727
    %v6729 = vand.u32 %v6728, 4294901760
    %6730 = vmatmul.mubr.f32.gmra.mrb[0].mxu0 %v6729
    %v6731 = vpop.f32.mrb[0].mxu0
    %v6732 = vadd.f32 %v6655, %v6731
    %v6733 = vpop.f32.mrb[0].mxu0
    %6734 = vdwg.mxu0
    %6735 = vmatprep.subr.mxu0 0.0
    %v6736 = vand.u32 %v59, 4294901760
    %v6737 = vsub.f32 %v59, %v6736
    %v6738 = vand.u32 %v6737, 4294901760
    %6739 = vmatpush1.msra.mxu0 %v6738
    %6740 = vmatprep.subr.mxu0 0.0
    %v6741 = vand.u32 %v60, 4294901760
    %v6742 = vsub.f32 %v60, %v6741
    %v6743 = vand.u32 %v6742, 4294901760
    %6744 = vmatpush1.msra.mxu0 %v6743
    %6745 = vmatprep.subr.mxu0 0.0
    %v6746 = vand.u32 %v61, 4294901760
    %v6747 = vsub.f32 %v61, %v6746
    %v6748 = vand.u32 %v6747, 4294901760
    %6749 = vmatpush1.msra.mxu0 %v6748
    %6750 = vmatprep.subr.mxu0 0.0
    %v6751 = vand.u32 %v62, 4294901760
    %v6752 = vsub.f32 %v62, %v6751
    %v6753 = vand.u32 %v6752, 4294901760
    %6754 = vmatpush1.msra.mxu0 %v6753
    %6755 = vmatprep.subr.mxu0 0.0
    %6756 = vmatpush1.msra.mxu0 0.0
    %6757 = vmatprep.subr.mxu0 0.0
    %6758 = vmatpush1.msra.mxu0 0.0
    %6759 = vmatprep.subr.mxu0 0.0
    %6760 = vmatpush1.msra.mxu0 0.0
    %6761 = vmatprep.subr.mxu0 0.0
    %6762 = vmatpush1.msra.mxu0 0.0
    %6763 = vmatprep.subr.mxu0 0.0
    %6764 = vmatpush1.msra.mxu0 0.0
    %6765 = vmatprep.subr.mxu0 0.0
    %6766 = vmatpush1.msra.mxu0 0.0
    %6767 = vmatprep.subr.mxu0 0.0
    %6768 = vmatpush1.msra.mxu0 0.0
    %6769 = vmatprep.subr.mxu0 0.0
    %6770 = vmatpush1.msra.mxu0 0.0
    %6771 = vmatprep.subr.mxu0 0.0
    %6772 = vmatpush1.msra.mxu0 0.0
    %6773 = vmatprep.subr.mxu0 0.0
    %6774 = vmatpush1.msra.mxu0 0.0
    %6775 = vmatprep.subr.mxu0 0.0
    %6776 = vmatpush1.msra.mxu0 0.0
    %6777 = vmatprep.subr.mxu0 0.0
    %6778 = vmatpush1.msra.mxu0 0.0
    %6779 = vmatprep.subr.mxu0 0.0
    %6780 = vmatpush1.msra.mxu0 0.0
    %6781 = vmatprep.subr.mxu0 0.0
    %6782 = vmatpush1.msra.mxu0 0.0
    %6783 = vmatprep.subr.mxu0 0.0
    %6784 = vmatpush1.msra.mxu0 0.0
    %6785 = vmatprep.subr.mxu0 0.0
    %6786 = vmatpush1.msra.mxu0 0.0
    %6787 = vmatprep.subr.mxu0 0.0
    %6788 = vmatpush1.msra.mxu0 0.0
    %6789 = vmatprep.subr.mxu0 0.0
    %6790 = vmatpush1.msra.mxu0 0.0
    %6791 = vmatprep.subr.mxu0 0.0
    %6792 = vmatpush1.msra.mxu0 0.0
    %6793 = vmatprep.subr.mxu0 0.0
    %6794 = vmatpush1.msra.mxu0 0.0
    %6795 = vmatprep.subr.mxu0 0.0
    %6796 = vmatpush1.msra.mxu0 0.0
    %6797 = vmatprep.subr.mxu0 0.0
    %6798 = vmatpush1.msra.mxu0 0.0
    %6799 = vmatprep.subr.mxu0 0.0
    %6800 = vmatpush1.msra.mxu0 0.0
    %6801 = vmatprep.subr.mxu0 0.0
    %6802 = vmatpush1.msra.mxu0 0.0
    %6803 = vmatprep.subr.mxu0 0.0
    %6804 = vmatpush1.msra.mxu0 0.0
    %6805 = vmatprep.subr.mxu0 0.0
    %6806 = vmatpush1.msra.mxu0 0.0
    %6807 = vmatprep.subr.mxu0 0.0
    %6808 = vmatpush1.msra.mxu0 0.0
    %6809 = vmatprep.subr.mxu0 0.0
    %6810 = vmatpush1.msra.mxu0 0.0
    %6811 = vmatprep.mubr.f32.mxu0 0.0
    %v6812 = vand.u32 %v6406, 4294901760
    %6813 = vmatmul.mubr.f32.gmra.mrb[0].mxu0 %v6812
    %v6814 = vpop.f32.mrb[0].mxu0
    %v6815 = vadd.f32 %v6732, %v6814
    %v6816 = vpop.f32.mrb[0].mxu0
    %6817 = vdwg.mxu0
    %6818 = vmatprep.subr.mxu0 0.0
    %v6819 = vand.u32 %v59, 4294901760
    %6820 = vmatpush1.msra.mxu0 %v6819
    %6821 = vmatprep.subr.mxu0 0.0
    %v6822 = vand.u32 %v60, 4294901760
    %6823 = vmatpush1.msra.mxu0 %v6822
    %6824 = vmatprep.subr.mxu0 0.0
    %v6825 = vand.u32 %v61, 4294901760
    %6826 = vmatpush1.msra.mxu0 %v6825
    %6827 = vmatprep.subr.mxu0 0.0
    %v6828 = vand.u32 %v62, 4294901760
    %6829 = vmatpush1.msra.mxu0 %v6828
    %6830 = vmatprep.subr.mxu0 0.0
    %6831 = vmatpush1.msra.mxu0 0.0
    %6832 = vmatprep.subr.mxu0 0.0
    %6833 = vmatpush1.msra.mxu0 0.0
    %6834 = vmatprep.subr.mxu0 0.0
    %6835 = vmatpush1.msra.mxu0 0.0
    %6836 = vmatprep.subr.mxu0 0.0
    %6837 = vmatpush1.msra.mxu0 0.0
    %6838 = vmatprep.subr.mxu0 0.0
    %6839 = vmatpush1.msra.mxu0 0.0
    %6840 = vmatprep.subr.mxu0 0.0
    %6841 = vmatpush1.msra.mxu0 0.0
    %6842 = vmatprep.subr.mxu0 0.0
    %6843 = vmatpush1.msra.mxu0 0.0
    %6844 = vmatprep.subr.mxu0 0.0
    %6845 = vmatpush1.msra.mxu0 0.0
    %6846 = vmatprep.subr.mxu0 0.0
    %6847 = vmatpush1.msra.mxu0 0.0
    %6848 = vmatprep.subr.mxu0 0.0
    %6849 = vmatpush1.msra.mxu0 0.0
    %6850 = vmatprep.subr.mxu0 0.0
    %6851 = vmatpush1.msra.mxu0 0.0
    %6852 = vmatprep.subr.mxu0 0.0
    %6853 = vmatpush1.msra.mxu0 0.0
    %6854 = vmatprep.subr.mxu0 0.0
    %6855 = vmatpush1.msra.mxu0 0.0
    %6856 = vmatprep.subr.mxu0 0.0
    %6857 = vmatpush1.msra.mxu0 0.0
    %6858 = vmatprep.subr.mxu0 0.0
    %6859 = vmatpush1.msra.mxu0 0.0
    %6860 = vmatprep.subr.mxu0 0.0
    %6861 = vmatpush1.msra.mxu0 0.0
    %6862 = vmatprep.subr.mxu0 0.0
    %6863 = vmatpush1.msra.mxu0 0.0
    %6864 = vmatprep.subr.mxu0 0.0
    %6865 = vmatpush1.msra.mxu0 0.0
    %6866 = vmatprep.subr.mxu0 0.0
    %6867 = vmatpush1.msra.mxu0 0.0
    %6868 = vmatprep.subr.mxu0 0.0
    %6869 = vmatpush1.msra.mxu0 0.0
    %6870 = vmatprep.subr.mxu0 0.0
    %6871 = vmatpush1.msra.mxu0 0.0
    %6872 = vmatprep.subr.mxu0 0.0
    %6873 = vmatpush1.msra.mxu0 0.0
    %6874 = vmatprep.subr.mxu0 0.0
    %6875 = vmatpush1.msra.mxu0 0.0
    %6876 = vmatprep.subr.mxu0 0.0
    %6877 = vmatpush1.msra.mxu0 0.0
    %6878 = vmatprep.subr.mxu0 0.0
    %6879 = vmatpush1.msra.mxu0 0.0
    %6880 = vmatprep.subr.mxu0 0.0
    %6881 = vmatpush1.msra.mxu0 0.0
    %6882 = vmatprep.subr.mxu0 0.0
    %6883 = vmatpush1.msra.mxu0 0.0
    %6884 = vmatprep.subr.mxu0 0.0
    %6885 = vmatpush1.msra.mxu0 0.0
    %6886 = vmatprep.mubr.f32.mxu0 0.0
    %v6887 = vand.u32 %v6406, 4294901760
    %6888 = vmatmul.mubr.f32.gmra.mrb[0].mxu0 %v6887
    %v6889 = vpop.f32.mrb[0].mxu0
    %v6890 = vadd.f32 %v6815, %v6889
    %v6891 = vpop.f32.mrb[0].mxu0
    %6892 = vdwg.mxu0
    %v6893 = vadd.f32 %v6404, %v6890
    %v6894 = vxor.u32 %v6893, 2147483648
    %v6895 = vmul.f32 %v6894, 1.442695
    %v6896 = vpow.pop %v6895
    %v6897 = vadd.f32 %v6896, 1.0
    %v6898 = vrcp.pop %v6897
    %v6899 = vmul.f32 1.0, %v6898
    %v6900 = vtanh.pop %v6893
    %v6901 = vmul.f32 %v6899, %v5856
    %6903 = vrot.lane.b32.xlu0 %v6900, 64
    %v6904 = vpop.permute.xlu0 %6903
    %v6906 = vmul.f32 %v6899, %v6904
    %6908 = vrot.lane.b32.xlu0 %v6906, 32
    %v6909 = vpop.permute.xlu0 %6908
    %v6911 = vadd.f32 %v6901, %v6909
    %v6912 = vtanh.pop %v6911
    %6914 = vrot.lane.b32.xlu0 %v6912, 64
    %v6915 = vpop.permute.xlu0 %6914
    %v6917 = vmul.f32 %v6899, %v6915
    %v6918 = vsel %vm70, %v6400, 0
    %6920 = vmatprep.subr.mxu0 0.0
    %v6921 = vand.u32 %v63, 4294901760
    %6922 = vmatpush1.msra.mxu0 %v6921
    %6923 = vmatprep.subr.mxu0 0.0
    %v6924 = vand.u32 %v64, 4294901760
    %6925 = vmatpush1.msra.mxu0 %v6924
    %6926 = vmatprep.subr.mxu0 0.0
    %v6927 = vand.u32 %v65, 4294901760
    %6928 = vmatpush1.msra.mxu0 %v6927
    %6929 = vmatprep.subr.mxu0 0.0
    %v6930 = vand.u32 %v66, 4294901760
    %6931 = vmatpush1.msra.mxu0 %v6930
    %6932 = vmatprep.subr.mxu0 0.0
    %6933 = vmatpush1.msra.mxu0 0.0
    %6934 = vmatprep.subr.mxu0 0.0
    %6935 = vmatpush1.msra.mxu0 0.0
    %6936 = vmatprep.subr.mxu0 0.0
    %6937 = vmatpush1.msra.mxu0 0.0
    %6938 = vmatprep.subr.mxu0 0.0
    %6939 = vmatpush1.msra.mxu0 0.0
    %6940 = vmatprep.subr.mxu0 0.0
    %6941 = vmatpush1.msra.mxu0 0.0
    %6942 = vmatprep.subr.mxu0 0.0
    %6943 = vmatpush1.msra.mxu0 0.0
    %6944 = vmatprep.subr.mxu0 0.0
    %6945 = vmatpush1.msra.mxu0 0.0
    %6946 = vmatprep.subr.mxu0 0.0
    %6947 = vmatpush1.msra.mxu0 0.0
    %6948 = vmatprep.subr.mxu0 0.0
    %6949 = vmatpush1.msra.mxu0 0.0
    %6950 = vmatprep.subr.mxu0 0.0
    %6951 = vmatpush1.msra.mxu0 0.0
    %6952 = vmatprep.subr.mxu0 0.0
    %6953 = vmatpush1.msra.mxu0 0.0
    %6954 = vmatprep.subr.mxu0 0.0
    %6955 = vmatpush1.msra.mxu0 0.0
    %6956 = vmatprep.subr.mxu0 0.0
    %6957 = vmatpush1.msra.mxu0 0.0
    %6958 = vmatprep.subr.mxu0 0.0
    %6959 = vmatpush1.msra.mxu0 0.0
    %6960 = vmatprep.subr.mxu0 0.0
    %6961 = vmatpush1.msra.mxu0 0.0
    %6962 = vmatprep.subr.mxu0 0.0
    %6963 = vmatpush1.msra.mxu0 0.0
    %6964 = vmatprep.subr.mxu0 0.0
    %6965 = vmatpush1.msra.mxu0 0.0
    %6966 = vmatprep.subr.mxu0 0.0
    %6967 = vmatpush1.msra.mxu0 0.0
    %6968 = vmatprep.subr.mxu0 0.0
    %6969 = vmatpush1.msra.mxu0 0.0
    %6970 = vmatprep.subr.mxu0 0.0
    %6971 = vmatpush1.msra.mxu0 0.0
    %6972 = vmatprep.subr.mxu0 0.0
    %6973 = vmatpush1.msra.mxu0 0.0
    %6974 = vmatprep.subr.mxu0 0.0
    %6975 = vmatpush1.msra.mxu0 0.0
    %6976 = vmatprep.subr.mxu0 0.0
    %6977 = vmatpush1.msra.mxu0 0.0
    %6978 = vmatprep.subr.mxu0 0.0
    %6979 = vmatpush1.msra.mxu0 0.0
    %6980 = vmatprep.subr.mxu0 0.0
    %6981 = vmatpush1.msra.mxu0 0.0
    %6982 = vmatprep.subr.mxu0 0.0
    %6983 = vmatpush1.msra.mxu0 0.0
    %6984 = vmatprep.subr.mxu0 0.0
    %6985 = vmatpush1.msra.mxu0 0.0
    %6986 = vmatprep.subr.mxu0 0.0
    %6987 = vmatpush1.msra.mxu0 0.0
    %6988 = vmatprep.mubr.f32.mxu0 0.0
    %v6989 = vand.u32 %v6918, 4294901760
    %v6990 = vsub.f32 %v6918, %v6989
    %v6991 = vand.u32 %v6990, 4294901760
    %v6992 = vsub.f32 %v6990, %v6991
    %v6993 = vand.u32 %v6992, 4294901760
    %6994 = vmatmul.mubr.f32.gmra.mrb[0].mxu0 %v6993
    %v6995 = vpop.f32.mrb[0].mxu0
    %v6996 = vadd.f32 0.0, %v6995
    %v6997 = vpop.f32.mrb[0].mxu0
    %6998 = vdwg.mxu0
    %6999 = vmatprep.subr.mxu0 0.0
    %v7000 = vand.u32 %v63, 4294901760
    %v7001 = vsub.f32 %v63, %v7000
    %v7002 = vand.u32 %v7001, 4294901760
    %v7003 = vsub.f32 %v7001, %v7002
    %v7004 = vand.u32 %v7003, 4294901760
    %7005 = vmatpush1.msra.mxu0 %v7004
    %7006 = vmatprep.subr.mxu0 0.0
    %v7007 = vand.u32 %v64, 4294901760
    %v7008 = vsub.f32 %v64, %v7007
    %v7009 = vand.u32 %v7008, 4294901760
    %v7010 = vsub.f32 %v7008, %v7009
    %v7011 = vand.u32 %v7010, 4294901760
    %7012 = vmatpush1.msra.mxu0 %v7011
    %7013 = vmatprep.subr.mxu0 0.0
    %v7014 = vand.u32 %v65, 4294901760
    %v7015 = vsub.f32 %v65, %v7014
    %v7016 = vand.u32 %v7015, 4294901760
    %v7017 = vsub.f32 %v7015, %v7016
    %v7018 = vand.u32 %v7017, 4294901760
    %7019 = vmatpush1.msra.mxu0 %v7018
    %7020 = vmatprep.subr.mxu0 0.0
    %v7021 = vand.u32 %v66, 4294901760
    %v7022 = vsub.f32 %v66, %v7021
    %v7023 = vand.u32 %v7022, 4294901760
    %v7024 = vsub.f32 %v7022, %v7023
    %v7025 = vand.u32 %v7024, 4294901760
    %7026 = vmatpush1.msra.mxu0 %v7025
    %7027 = vmatprep.subr.mxu0 0.0
    %7028 = vmatpush1.msra.mxu0 0.0
    %7029 = vmatprep.subr.mxu0 0.0
    %7030 = vmatpush1.msra.mxu0 0.0
    %7031 = vmatprep.subr.mxu0 0.0
    %7032 = vmatpush1.msra.mxu0 0.0
    %7033 = vmatprep.subr.mxu0 0.0
    %7034 = vmatpush1.msra.mxu0 0.0
    %7035 = vmatprep.subr.mxu0 0.0
    %7036 = vmatpush1.msra.mxu0 0.0
    %7037 = vmatprep.subr.mxu0 0.0
    %7038 = vmatpush1.msra.mxu0 0.0
    %7039 = vmatprep.subr.mxu0 0.0
    %7040 = vmatpush1.msra.mxu0 0.0
    %7041 = vmatprep.subr.mxu0 0.0
    %7042 = vmatpush1.msra.mxu0 0.0
    %7043 = vmatprep.subr.mxu0 0.0
    %7044 = vmatpush1.msra.mxu0 0.0
    %7045 = vmatprep.subr.mxu0 0.0
    %7046 = vmatpush1.msra.mxu0 0.0
    %7047 = vmatprep.subr.mxu0 0.0
    %7048 = vmatpush1.msra.mxu0 0.0
    %7049 = vmatprep.subr.mxu0 0.0
    %7050 = vmatpush1.msra.mxu0 0.0
    %7051 = vmatprep.subr.mxu0 0.0
    %7052 = vmatpush1.msra.mxu0 0.0
    %7053 = vmatprep.subr.mxu0 0.0
    %7054 = vmatpush1.msra.mxu0 0.0
    %7055 = vmatprep.subr.mxu0 0.0
    %7056 = vmatpush1.msra.mxu0 0.0
    %7057 = vmatprep.subr.mxu0 0.0
    %7058 = vmatpush1.msra.mxu0 0.0
    %7059 = vmatprep.subr.mxu0 0.0
    %7060 = vmatpush1.msra.mxu0 0.0
    %7061 = vmatprep.subr.mxu0 0.0
    %7062 = vmatpush1.msra.mxu0 0.0
    %7063 = vmatprep.subr.mxu0 0.0
    %7064 = vmatpush1.msra.mxu0 0.0
    %7065 = vmatprep.subr.mxu0 0.0
    %7066 = vmatpush1.msra.mxu0 0.0
    %7067 = vmatprep.subr.mxu0 0.0
    %7068 = vmatpush1.msra.mxu0 0.0
    %7069 = vmatprep.subr.mxu0 0.0
    %7070 = vmatpush1.msra.mxu0 0.0
    %7071 = vmatprep.subr.mxu0 0.0
    %7072 = vmatpush1.msra.mxu0 0.0
    %7073 = vmatprep.subr.mxu0 0.0
    %7074 = vmatpush1.msra.mxu0 0.0
    %7075 = vmatprep.subr.mxu0 0.0
    %7076 = vmatpush1.msra.mxu0 0.0
    %7077 = vmatprep.subr.mxu0 0.0
    %7078 = vmatpush1.msra.mxu0 0.0
    %7079 = vmatprep.subr.mxu0 0.0
    %7080 = vmatpush1.msra.mxu0 0.0
    %7081 = vmatprep.subr.mxu0 0.0
    %7082 = vmatpush1.msra.mxu0 0.0
    %7083 = vmatprep.mubr.f32.mxu0 0.0
    %v7084 = vand.u32 %v6918, 4294901760
    %7085 = vmatmul.mubr.f32.gmra.mrb[0].mxu0 %v7084
    %v7086 = vpop.f32.mrb[0].mxu0
    %v7087 = vadd.f32 %v6996, %v7086
    %v7088 = vpop.f32.mrb[0].mxu0
    %7089 = vdwg.mxu0
    %7090 = vmatprep.subr.mxu0 0.0
    %v7091 = vand.u32 %v63, 4294901760
    %v7092 = vsub.f32 %v63, %v7091
    %7093 = vmatpush1.msra.mxu0 %v7092
    %7094 = vmatprep.subr.mxu0 0.0
    %v7095 = vand.u32 %v64, 4294901760
    %v7096 = vsub.f32 %v64, %v7095
    %7097 = vmatpush1.msra.mxu0 %v7096
    %7098 = vmatprep.subr.mxu0 0.0
    %v7099 = vand.u32 %v65, 4294901760
    %v7100 = vsub.f32 %v65, %v7099
    %7101 = vmatpush1.msra.mxu0 %v7100
    %7102 = vmatprep.subr.mxu0 0.0
    %v7103 = vand.u32 %v66, 4294901760
    %v7104 = vsub.f32 %v66, %v7103
    %7105 = vmatpush1.msra.mxu0 %v7104
    %7106 = vmatprep.subr.mxu0 0.0
    %7107 = vmatpush1.msra.mxu0 0.0
    %7108 = vmatprep.subr.mxu0 0.0
    %7109 = vmatpush1.msra.mxu0 0.0
    %7110 = vmatprep.subr.mxu0 0.0
    %7111 = vmatpush1.msra.mxu0 0.0
    %7112 = vmatprep.subr.mxu0 0.0
    %7113 = vmatpush1.msra.mxu0 0.0
    %7114 = vmatprep.subr.mxu0 0.0
    %7115 = vmatpush1.msra.mxu0 0.0
    %7116 = vmatprep.subr.mxu0 0.0
    %7117 = vmatpush1.msra.mxu0 0.0
    %7118 = vmatprep.subr.mxu0 0.0
    %7119 = vmatpush1.msra.mxu0 0.0
    %7120 = vmatprep.subr.mxu0 0.0
    %7121 = vmatpush1.msra.mxu0 0.0
    %7122 = vmatprep.subr.mxu0 0.0
    %7123 = vmatpush1.msra.mxu0 0.0
    %7124 = vmatprep.subr.mxu0 0.0
    %7125 = vmatpush1.msra.mxu0 0.0
    %7126 = vmatprep.subr.mxu0 0.0
    %7127 = vmatpush1.msra.mxu0 0.0
    %7128 = vmatprep.subr.mxu0 0.0
    %7129 = vmatpush1.msra.mxu0 0.0
    %7130 = vmatprep.subr.mxu0 0.0
    %7131 = vmatpush1.msra.mxu0 0.0
    %7132 = vmatprep.subr.mxu0 0.0
    %7133 = vmatpush1.msra.mxu0 0.0
    %7134 = vmatprep.subr.mxu0 0.0
    %7135 = vmatpush1.msra.mxu0 0.0
    %7136 = vmatprep.subr.mxu0 0.0
    %7137 = vmatpush1.msra.mxu0 0.0
    %7138 = vmatprep.subr.mxu0 0.0
    %7139 = vmatpush1.msra.mxu0 0.0
    %7140 = vmatprep.subr.mxu0 0.0
    %7141 = vmatpush1.msra.mxu0 0.0
    %7142 = vmatprep.subr.mxu0 0.0
    %7143 = vmatpush1.msra.mxu0 0.0
    %7144 = vmatprep.subr.mxu0 0.0
    %7145 = vmatpush1.msra.mxu0 0.0
    %7146 = vmatprep.subr.mxu0 0.0
    %7147 = vmatpush1.msra.mxu0 0.0
    %7148 = vmatprep.subr.mxu0 0.0
    %7149 = vmatpush1.msra.mxu0 0.0
    %7150 = vmatprep.subr.mxu0 0.0
    %7151 = vmatpush1.msra.mxu0 0.0
    %7152 = vmatprep.subr.mxu0 0.0
    %7153 = vmatpush1.msra.mxu0 0.0
    %7154 = vmatprep.subr.mxu0 0.0
    %7155 = vmatpush1.msra.mxu0 0.0
    %7156 = vmatprep.subr.mxu0 0.0
    %7157 = vmatpush1.msra.mxu0 0.0
    %7158 = vmatprep.subr.mxu0 0.0
    %7159 = vmatpush1.msra.mxu0 0.0
    %7160 = vmatprep.subr.mxu0 0.0
    %7161 = vmatpush1.msra.mxu0 0.0
    %7162 = vmatprep.mubr.f32.mxu0 0.0
    %v7163 = vand.u32 %v6918, 4294901760
    %v7164 = vsub.f32 %v6918, %v7163
    %7165 = vmatmul.mubr.f32.gmra.mrb[0].mxu0 %v7164
    %v7166 = vpop.f32.mrb[0].mxu0
    %v7167 = vadd.f32 %v7087, %v7166
    %v7168 = vpop.f32.mrb[0].mxu0
    %7169 = vdwg.mxu0
    %7170 = vmatprep.subr.mxu0 0.0
    %v7171 = vand.u32 %v63, 4294901760
    %7172 = vmatpush1.msra.mxu0 %v7171
    %7173 = vmatprep.subr.mxu0 0.0
    %v7174 = vand.u32 %v64, 4294901760
    %7175 = vmatpush1.msra.mxu0 %v7174
    %7176 = vmatprep.subr.mxu0 0.0
    %v7177 = vand.u32 %v65, 4294901760
    %7178 = vmatpush1.msra.mxu0 %v7177
    %7179 = vmatprep.subr.mxu0 0.0
    %v7180 = vand.u32 %v66, 4294901760
    %7181 = vmatpush1.msra.mxu0 %v7180
    %7182 = vmatprep.subr.mxu0 0.0
    %7183 = vmatpush1.msra.mxu0 0.0
    %7184 = vmatprep.subr.mxu0 0.0
    %7185 = vmatpush1.msra.mxu0 0.0
    %7186 = vmatprep.subr.mxu0 0.0
    %7187 = vmatpush1.msra.mxu0 0.0
    %7188 = vmatprep.subr.mxu0 0.0
    %7189 = vmatpush1.msra.mxu0 0.0
    %7190 = vmatprep.subr.mxu0 0.0
    %7191 = vmatpush1.msra.mxu0 0.0
    %7192 = vmatprep.subr.mxu0 0.0
    %7193 = vmatpush1.msra.mxu0 0.0
    %7194 = vmatprep.subr.mxu0 0.0
    %7195 = vmatpush1.msra.mxu0 0.0
    %7196 = vmatprep.subr.mxu0 0.0
    %7197 = vmatpush1.msra.mxu0 0.0
    %7198 = vmatprep.subr.mxu0 0.0
    %7199 = vmatpush1.msra.mxu0 0.0
    %7200 = vmatprep.subr.mxu0 0.0
    %7201 = vmatpush1.msra.mxu0 0.0
    %7202 = vmatprep.subr.mxu0 0.0
    %7203 = vmatpush1.msra.mxu0 0.0
    %7204 = vmatprep.subr.mxu0 0.0
    %7205 = vmatpush1.msra.mxu0 0.0
    %7206 = vmatprep.subr.mxu0 0.0
    %7207 = vmatpush1.msra.mxu0 0.0
    %7208 = vmatprep.subr.mxu0 0.0
    %7209 = vmatpush1.msra.mxu0 0.0
    %7210 = vmatprep.subr.mxu0 0.0
    %7211 = vmatpush1.msra.mxu0 0.0
    %7212 = vmatprep.subr.mxu0 0.0
    %7213 = vmatpush1.msra.mxu0 0.0
    %7214 = vmatprep.subr.mxu0 0.0
    %7215 = vmatpush1.msra.mxu0 0.0
    %7216 = vmatprep.subr.mxu0 0.0
    %7217 = vmatpush1.msra.mxu0 0.0
    %7218 = vmatprep.subr.mxu0 0.0
    %7219 = vmatpush1.msra.mxu0 0.0
    %7220 = vmatprep.subr.mxu0 0.0
    %7221 = vmatpush1.msra.mxu0 0.0
    %7222 = vmatprep.subr.mxu0 0.0
    %7223 = vmatpush1.msra.mxu0 0.0
    %7224 = vmatprep.subr.mxu0 0.0
    %7225 = vmatpush1.msra.mxu0 0.0
    %7226 = vmatprep.subr.mxu0 0.0
    %7227 = vmatpush1.msra.mxu0 0.0
    %7228 = vmatprep.subr.mxu0 0.0
    %7229 = vmatpush1.msra.mxu0 0.0
    %7230 = vmatprep.subr.mxu0 0.0
    %7231 = vmatpush1.msra.mxu0 0.0
    %7232 = vmatprep.subr.mxu0 0.0
    %7233 = vmatpush1.msra.mxu0 0.0
    %7234 = vmatprep.subr.mxu0 0.0
    %7235 = vmatpush1.msra.mxu0 0.0
    %7236 = vmatprep.subr.mxu0 0.0
    %7237 = vmatpush1.msra.mxu0 0.0
    %7238 = vmatprep.mubr.f32.mxu0 0.0
    %v7239 = vand.u32 %v6918, 4294901760
    %v7240 = vsub.f32 %v6918, %v7239
    %v7241 = vand.u32 %v7240, 4294901760
    %7242 = vmatmul.mubr.f32.gmra.mrb[0].mxu0 %v7241
    %v7243 = vpop.f32.mrb[0].mxu0
    %v7244 = vadd.f32 %v7167, %v7243
    %v7245 = vpop.f32.mrb[0].mxu0
    %7246 = vdwg.mxu0
    %7247 = vmatprep.subr.mxu0 0.0
    %v7248 = vand.u32 %v63, 4294901760
    %v7249 = vsub.f32 %v63, %v7248
    %v7250 = vand.u32 %v7249, 4294901760
    %7251 = vmatpush1.msra.mxu0 %v7250
    %7252 = vmatprep.subr.mxu0 0.0
    %v7253 = vand.u32 %v64, 4294901760
    %v7254 = vsub.f32 %v64, %v7253
    %v7255 = vand.u32 %v7254, 4294901760
    %7256 = vmatpush1.msra.mxu0 %v7255
    %7257 = vmatprep.subr.mxu0 0.0
    %v7258 = vand.u32 %v65, 4294901760
    %v7259 = vsub.f32 %v65, %v7258
    %v7260 = vand.u32 %v7259, 4294901760
    %7261 = vmatpush1.msra.mxu0 %v7260
    %7262 = vmatprep.subr.mxu0 0.0
    %v7263 = vand.u32 %v66, 4294901760
    %v7264 = vsub.f32 %v66, %v7263
    %v7265 = vand.u32 %v7264, 4294901760
    %7266 = vmatpush1.msra.mxu0 %v7265
    %7267 = vmatprep.subr.mxu0 0.0
    %7268 = vmatpush1.msra.mxu0 0.0
    %7269 = vmatprep.subr.mxu0 0.0
    %7270 = vmatpush1.msra.mxu0 0.0
    %7271 = vmatprep.subr.mxu0 0.0
    %7272 = vmatpush1.msra.mxu0 0.0
    %7273 = vmatprep.subr.mxu0 0.0
    %7274 = vmatpush1.msra.mxu0 0.0
    %7275 = vmatprep.subr.mxu0 0.0
    %7276 = vmatpush1.msra.mxu0 0.0
    %7277 = vmatprep.subr.mxu0 0.0
    %7278 = vmatpush1.msra.mxu0 0.0
    %7279 = vmatprep.subr.mxu0 0.0
    %7280 = vmatpush1.msra.mxu0 0.0
    %7281 = vmatprep.subr.mxu0 0.0
    %7282 = vmatpush1.msra.mxu0 0.0
    %7283 = vmatprep.subr.mxu0 0.0
    %7284 = vmatpush1.msra.mxu0 0.0
    %7285 = vmatprep.subr.mxu0 0.0
    %7286 = vmatpush1.msra.mxu0 0.0
    %7287 = vmatprep.subr.mxu0 0.0
    %7288 = vmatpush1.msra.mxu0 0.0
    %7289 = vmatprep.subr.mxu0 0.0
    %7290 = vmatpush1.msra.mxu0 0.0
    %7291 = vmatprep.subr.mxu0 0.0
    %7292 = vmatpush1.msra.mxu0 0.0
    %7293 = vmatprep.subr.mxu0 0.0
    %7294 = vmatpush1.msra.mxu0 0.0
    %7295 = vmatprep.subr.mxu0 0.0
    %7296 = vmatpush1.msra.mxu0 0.0
    %7297 = vmatprep.subr.mxu0 0.0
    %7298 = vmatpush1.msra.mxu0 0.0
    %7299 = vmatprep.subr.mxu0 0.0
    %7300 = vmatpush1.msra.mxu0 0.0
    %7301 = vmatprep.subr.mxu0 0.0
    %7302 = vmatpush1.msra.mxu0 0.0
    %7303 = vmatprep.subr.mxu0 0.0
    %7304 = vmatpush1.msra.mxu0 0.0
    %7305 = vmatprep.subr.mxu0 0.0
    %7306 = vmatpush1.msra.mxu0 0.0
    %7307 = vmatprep.subr.mxu0 0.0
    %7308 = vmatpush1.msra.mxu0 0.0
    %7309 = vmatprep.subr.mxu0 0.0
    %7310 = vmatpush1.msra.mxu0 0.0
    %7311 = vmatprep.subr.mxu0 0.0
    %7312 = vmatpush1.msra.mxu0 0.0
    %7313 = vmatprep.subr.mxu0 0.0
    %7314 = vmatpush1.msra.mxu0 0.0
    %7315 = vmatprep.subr.mxu0 0.0
    %7316 = vmatpush1.msra.mxu0 0.0
    %7317 = vmatprep.subr.mxu0 0.0
    %7318 = vmatpush1.msra.mxu0 0.0
    %7319 = vmatprep.subr.mxu0 0.0
    %7320 = vmatpush1.msra.mxu0 0.0
    %7321 = vmatprep.subr.mxu0 0.0
    %7322 = vmatpush1.msra.mxu0 0.0
    %7323 = vmatprep.mubr.f32.mxu0 0.0
    %v7324 = vand.u32 %v6918, 4294901760
    %7325 = vmatmul.mubr.f32.gmra.mrb[0].mxu0 %v7324
    %v7326 = vpop.f32.mrb[0].mxu0
    %v7327 = vadd.f32 %v7244, %v7326
    %v7328 = vpop.f32.mrb[0].mxu0
    %7329 = vdwg.mxu0
    %7330 = vmatprep.subr.mxu0 0.0
    %v7331 = vand.u32 %v63, 4294901760
    %7332 = vmatpush1.msra.mxu0 %v7331
    %7333 = vmatprep.subr.mxu0 0.0
    %v7334 = vand.u32 %v64, 4294901760
    %7335 = vmatpush1.msra.mxu0 %v7334
    %7336 = vmatprep.subr.mxu0 0.0
    %v7337 = vand.u32 %v65, 4294901760
    %7338 = vmatpush1.msra.mxu0 %v7337
    %7339 = vmatprep.subr.mxu0 0.0
    %v7340 = vand.u32 %v66, 4294901760
    %7341 = vmatpush1.msra.mxu0 %v7340
    %7342 = vmatprep.subr.mxu0 0.0
    %7343 = vmatpush1.msra.mxu0 0.0
    %7344 = vmatprep.subr.mxu0 0.0
    %7345 = vmatpush1.msra.mxu0 0.0
    %7346 = vmatprep.subr.mxu0 0.0
    %7347 = vmatpush1.msra.mxu0 0.0
    %7348 = vmatprep.subr.mxu0 0.0
    %7349 = vmatpush1.msra.mxu0 0.0
    %7350 = vmatprep.subr.mxu0 0.0
    %7351 = vmatpush1.msra.mxu0 0.0
    %7352 = vmatprep.subr.mxu0 0.0
    %7353 = vmatpush1.msra.mxu0 0.0
    %7354 = vmatprep.subr.mxu0 0.0
    %7355 = vmatpush1.msra.mxu0 0.0
    %7356 = vmatprep.subr.mxu0 0.0
    %7357 = vmatpush1.msra.mxu0 0.0
    %7358 = vmatprep.subr.mxu0 0.0
    %7359 = vmatpush1.msra.mxu0 0.0
    %7360 = vmatprep.subr.mxu0 0.0
    %7361 = vmatpush1.msra.mxu0 0.0
    %7362 = vmatprep.subr.mxu0 0.0
    %7363 = vmatpush1.msra.mxu0 0.0
    %7364 = vmatprep.subr.mxu0 0.0
    %7365 = vmatpush1.msra.mxu0 0.0
    %7366 = vmatprep.subr.mxu0 0.0
    %7367 = vmatpush1.msra.mxu0 0.0
    %7368 = vmatprep.subr.mxu0 0.0
    %7369 = vmatpush1.msra.mxu0 0.0
    %7370 = vmatprep.subr.mxu0 0.0
    %7371 = vmatpush1.msra.mxu0 0.0
    %7372 = vmatprep.subr.mxu0 0.0
    %7373 = vmatpush1.msra.mxu0 0.0
    %7374 = vmatprep.subr.mxu0 0.0
    %7375 = vmatpush1.msra.mxu0 0.0
    %7376 = vmatprep.subr.mxu0 0.0
    %7377 = vmatpush1.msra.mxu0 0.0
    %7378 = vmatprep.subr.mxu0 0.0
    %7379 = vmatpush1.msra.mxu0 0.0
    %7380 = vmatprep.subr.mxu0 0.0
    %7381 = vmatpush1.msra.mxu0 0.0
    %7382 = vmatprep.subr.mxu0 0.0
    %7383 = vmatpush1.msra.mxu0 0.0
    %7384 = vmatprep.subr.mxu0 0.0
    %7385 = vmatpush1.msra.mxu0 0.0
    %7386 = vmatprep.subr.mxu0 0.0
    %7387 = vmatpush1.msra.mxu0 0.0
    %7388 = vmatprep.subr.mxu0 0.0
    %7389 = vmatpush1.msra.mxu0 0.0
    %7390 = vmatprep.subr.mxu0 0.0
    %7391 = vmatpush1.msra.mxu0 0.0
    %7392 = vmatprep.subr.mxu0 0.0
    %7393 = vmatpush1.msra.mxu0 0.0
    %7394 = vmatprep.subr.mxu0 0.0
    %7395 = vmatpush1.msra.mxu0 0.0
    %7396 = vmatprep.subr.mxu0 0.0
    %7397 = vmatpush1.msra.mxu0 0.0
    %7398 = vmatprep.mubr.f32.mxu0 0.0
    %v7399 = vand.u32 %v6918, 4294901760
    %7400 = vmatmul.mubr.f32.gmra.mrb[0].mxu0 %v7399
    %v7401 = vpop.f32.mrb[0].mxu0
    %v7402 = vadd.f32 %v7327, %v7401
    %v7403 = vpop.f32.mrb[0].mxu0
    %7404 = vdwg.mxu0
    %v7406 = vrot.slane %v6405, 2
    %v7408 = vadd.f32 %v7406, %v7402
    %v7409 = vxor.u32 %v7408, 2147483648
    %v7410 = vmul.f32 %v7409, 1.442695
    %v7411 = vpow.pop %v7410
    %v7412 = vadd.f32 %v7411, 1.0
    %v7413 = vrcp.pop %v7412
    %v7414 = vmul.f32 1.0, %v7413
    %v7415 = vtanh.pop %v7408
    %v7416 = vmul.f32 %v7414, %v6371
    %7418 = vrot.lane.b32.xlu0 %v7415, 64
    %v7419 = vpop.permute.xlu0 %7418
    %v7421 = vmul.f32 %v7414, %v7419
    %7423 = vrot.lane.b32.xlu0 %v7421, 32
    %v7424 = vpop.permute.xlu0 %7423
    %v7426 = vadd.f32 %v7416, %v7424
    %v7427 = vtanh.pop %v7426
    %7429 = vrot.lane.b32.xlu0 %v7427, 64
    %v7430 = vpop.permute.xlu0 %7429
    %v7432 = vmul.f32 %v7414, %v7430
    %v7435 = vunpack.c.l.s4 1983009808
    %v7436 = vunpack.c.0.s8 %v7435
    %v7437 = vlaneseq
    %v7438 = vshrl.u32 %v7437, 7
    %v7439 = vsub.s32 %v7436, %v7438
    %v7440 = vrot.slane %v6917, %v7439
    %7441 = vrot.lane.b32.xlu0 %v7440, 32
    %v7442 = vpop.permute.xlu0 %7441
    %s7444 = scalar_lea.vmem [#allocation8], 12
    %7445 = vst.msk [vmem:[%s7444] sm:$0x3] %vm1108, %v7442
    %v7448 = vunpack.c.l.s4 1983009808
    %v7449 = vunpack.c.0.s8 %v7448
    %v7450 = vlaneseq
    %v7451 = vshrl.u32 %v7450, 7
    %v7452 = vsub.s32 %v7449, %v7451
    %v7453 = vrot.slane %v7432, %v7452
    %7454 = vrot.lane.b32.xlu0 %v7453, 32
    %v7455 = vpop.permute.xlu0 %7454
    %s7457 = scalar_lea.vmem [#allocation9], 2
    %7458 = vst.msk [vmem:[%s7457] sm:$0x3] %vm1108, %v7455
    %v7459 = vld [vmem:[%s68] sm:$0xf]
    %v7460 = vld [vmem:[#allocation2] sm:$0xf]
    %v7461 = vsel %vm70, %v7442, 0
    %7463 = vmatprep.subr.mxu0 0.0
    %v7464 = vand.u32 %v59, 4294901760
    %7465 = vmatpush1.msra.mxu0 %v7464
    %7466 = vmatprep.subr.mxu0 0.0
    %v7467 = vand.u32 %v60, 4294901760
    %7468 = vmatpush1.msra.mxu0 %v7467
    %7469 = vmatprep.subr.mxu0 0.0
    %v7470 = vand.u32 %v61, 4294901760
    %7471 = vmatpush1.msra.mxu0 %v7470
    %7472 = vmatprep.subr.mxu0 0.0
    %v7473 = vand.u32 %v62, 4294901760
    %7474 = vmatpush1.msra.mxu0 %v7473
    %7475 = vmatprep.subr.mxu0 0.0
    %7476 = vmatpush1.msra.mxu0 0.0
    %7477 = vmatprep.subr.mxu0 0.0
    %7478 = vmatpush1.msra.mxu0 0.0
    %7479 = vmatprep.subr.mxu0 0.0
    %7480 = vmatpush1.msra.mxu0 0.0
    %7481 = vmatprep.subr.mxu0 0.0
    %7482 = vmatpush1.msra.mxu0 0.0
    %7483 = vmatprep.subr.mxu0 0.0
    %7484 = vmatpush1.msra.mxu0 0.0
    %7485 = vmatprep.subr.mxu0 0.0
    %7486 = vmatpush1.msra.mxu0 0.0
    %7487 = vmatprep.subr.mxu0 0.0
    %7488 = vmatpush1.msra.mxu0 0.0
    %7489 = vmatprep.subr.mxu0 0.0
    %7490 = vmatpush1.msra.mxu0 0.0
    %7491 = vmatprep.subr.mxu0 0.0
    %7492 = vmatpush1.msra.mxu0 0.0
    %7493 = vmatprep.subr.mxu0 0.0
    %7494 = vmatpush1.msra.mxu0 0.0
    %7495 = vmatprep.subr.mxu0 0.0
    %7496 = vmatpush1.msra.mxu0 0.0
    %7497 = vmatprep.subr.mxu0 0.0
    %7498 = vmatpush1.msra.mxu0 0.0
    %7499 = vmatprep.subr.mxu0 0.0
    %7500 = vmatpush1.msra.mxu0 0.0
    %7501 = vmatprep.subr.mxu0 0.0
    %7502 = vmatpush1.msra.mxu0 0.0
    %7503 = vmatprep.subr.mxu0 0.0
    %7504 = vmatpush1.msra.mxu0 0.0
    %7505 = vmatprep.subr.mxu0 0.0
    %7506 = vmatpush1.msra.mxu0 0.0
    %7507 = vmatprep.subr.mxu0 0.0
    %7508 = vmatpush1.msra.mxu0 0.0
    %7509 = vmatprep.subr.mxu0 0.0
    %7510 = vmatpush1.msra.mxu0 0.0
    %7511 = vmatprep.subr.mxu0 0.0
    %7512 = vmatpush1.msra.mxu0 0.0
    %7513 = vmatprep.subr.mxu0 0.0
    %7514 = vmatpush1.msra.mxu0 0.0
    %7515 = vmatprep.subr.mxu0 0.0
    %7516 = vmatpush1.msra.mxu0 0.0
    %7517 = vmatprep.subr.mxu0 0.0
    %7518 = vmatpush1.msra.mxu0 0.0
    %7519 = vmatprep.subr.mxu0 0.0
    %7520 = vmatpush1.msra.mxu0 0.0
    %7521 = vmatprep.subr.mxu0 0.0
    %7522 = vmatpush1.msra.mxu0 0.0
    %7523 = vmatprep.subr.mxu0 0.0
    %7524 = vmatpush1.msra.mxu0 0.0
    %7525 = vmatprep.subr.mxu0 0.0
    %7526 = vmatpush1.msra.mxu0 0.0
    %7527 = vmatprep.subr.mxu0 0.0
    %7528 = vmatpush1.msra.mxu0 0.0
    %7529 = vmatprep.subr.mxu0 0.0
    %7530 = vmatpush1.msra.mxu0 0.0
    %7531 = vmatprep.mubr.f32.mxu0 0.0
    %v7532 = vand.u32 %v7461, 4294901760
    %v7533 = vsub.f32 %v7461, %v7532
    %v7534 = vand.u32 %v7533, 4294901760
    %v7535 = vsub.f32 %v7533, %v7534
    %v7536 = vand.u32 %v7535, 4294901760
    %7537 = vmatmul.mubr.f32.gmra.mrb[0].mxu0 %v7536
    %v7538 = vpop.f32.mrb[0].mxu0
    %v7539 = vadd.f32 0.0, %v7538
    %v7540 = vpop.f32.mrb[0].mxu0
    %7541 = vdwg.mxu0
    %7542 = vmatprep.subr.mxu0 0.0
    %v7543 = vand.u32 %v59, 4294901760
    %v7544 = vsub.f32 %v59, %v7543
    %v7545 = vand.u32 %v7544, 4294901760
    %v7546 = vsub.f32 %v7544, %v7545
    %v7547 = vand.u32 %v7546, 4294901760
    %7548 = vmatpush1.msra.mxu0 %v7547
    %7549 = vmatprep.subr.mxu0 0.0
    %v7550 = vand.u32 %v60, 4294901760
    %v7551 = vsub.f32 %v60, %v7550
    %v7552 = vand.u32 %v7551, 4294901760
    %v7553 = vsub.f32 %v7551, %v7552
    %v7554 = vand.u32 %v7553, 4294901760
    %7555 = vmatpush1.msra.mxu0 %v7554
    %7556 = vmatprep.subr.mxu0 0.0
    %v7557 = vand.u32 %v61, 4294901760
    %v7558 = vsub.f32 %v61, %v7557
    %v7559 = vand.u32 %v7558, 4294901760
    %v7560 = vsub.f32 %v7558, %v7559
    %v7561 = vand.u32 %v7560, 4294901760
    %7562 = vmatpush1.msra.mxu0 %v7561
    %7563 = vmatprep.subr.mxu0 0.0
    %v7564 = vand.u32 %v62, 4294901760
    %v7565 = vsub.f32 %v62, %v7564
    %v7566 = vand.u32 %v7565, 4294901760
    %v7567 = vsub.f32 %v7565, %v7566
    %v7568 = vand.u32 %v7567, 4294901760
    %7569 = vmatpush1.msra.mxu0 %v7568
    %7570 = vmatprep.subr.mxu0 0.0
    %7571 = vmatpush1.msra.mxu0 0.0
    %7572 = vmatprep.subr.mxu0 0.0
    %7573 = vmatpush1.msra.mxu0 0.0
    %7574 = vmatprep.subr.mxu0 0.0
    %7575 = vmatpush1.msra.mxu0 0.0
    %7576 = vmatprep.subr.mxu0 0.0
    %7577 = vmatpush1.msra.mxu0 0.0
    %7578 = vmatprep.subr.mxu0 0.0
    %7579 = vmatpush1.msra.mxu0 0.0
    %7580 = vmatprep.subr.mxu0 0.0
    %7581 = vmatpush1.msra.mxu0 0.0
    %7582 = vmatprep.subr.mxu0 0.0
    %7583 = vmatpush1.msra.mxu0 0.0
    %7584 = vmatprep.subr.mxu0 0.0
    %7585 = vmatpush1.msra.mxu0 0.0
    %7586 = vmatprep.subr.mxu0 0.0
    %7587 = vmatpush1.msra.mxu0 0.0
    %7588 = vmatprep.subr.mxu0 0.0
    %7589 = vmatpush1.msra.mxu0 0.0
    %7590 = vmatprep.subr.mxu0 0.0
    %7591 = vmatpush1.msra.mxu0 0.0
    %7592 = vmatprep.subr.mxu0 0.0
    %7593 = vmatpush1.msra.mxu0 0.0
    %7594 = vmatprep.subr.mxu0 0.0
    %7595 = vmatpush1.msra.mxu0 0.0
    %7596 = vmatprep.subr.mxu0 0.0
    %7597 = vmatpush1.msra.mxu0 0.0
    %7598 = vmatprep.subr.mxu0 0.0
    %7599 = vmatpush1.msra.mxu0 0.0
    %7600 = vmatprep.subr.mxu0 0.0
    %7601 = vmatpush1.msra.mxu0 0.0
    %7602 = vmatprep.subr.mxu0 0.0
    %7603 = vmatpush1.msra.mxu0 0.0
    %7604 = vmatprep.subr.mxu0 0.0
    %7605 = vmatpush1.msra.mxu0 0.0
    %7606 = vmatprep.subr.mxu0 0.0
    %7607 = vmatpush1.msra.mxu0 0.0
    %7608 = vmatprep.subr.mxu0 0.0
    %7609 = vmatpush1.msra.mxu0 0.0
    %7610 = vmatprep.subr.mxu0 0.0
    %7611 = vmatpush1.msra.mxu0 0.0
    %7612 = vmatprep.subr.mxu0 0.0
    %7613 = vmatpush1.msra.mxu0 0.0
    %7614 = vmatprep.subr.mxu0 0.0
    %7615 = vmatpush1.msra.mxu0 0.0
    %7616 = vmatprep.subr.mxu0 0.0
    %7617 = vmatpush1.msra.mxu0 0.0
    %7618 = vmatprep.subr.mxu0 0.0
    %7619 = vmatpush1.msra.mxu0 0.0
    %7620 = vmatprep.subr.mxu0 0.0
    %7621 = vmatpush1.msra.mxu0 0.0
    %7622 = vmatprep.subr.mxu0 0.0
    %7623 = vmatpush1.msra.mxu0 0.0
    %7624 = vmatprep.subr.mxu0 0.0
    %7625 = vmatpush1.msra.mxu0 0.0
    %7626 = vmatprep.mubr.f32.mxu0 0.0
    %v7627 = vand.u32 %v7461, 4294901760
    %7628 = vmatmul.mubr.f32.gmra.mrb[0].mxu0 %v7627
    %v7629 = vpop.f32.mrb[0].mxu0
    %v7630 = vadd.f32 %v7539, %v7629
    %v7631 = vpop.f32.mrb[0].mxu0
    %7632 = vdwg.mxu0
    %7633 = vmatprep.subr.mxu0 0.0
    %v7634 = vand.u32 %v59, 4294901760
    %v7635 = vsub.f32 %v59, %v7634
    %7636 = vmatpush1.msra.mxu0 %v7635
    %7637 = vmatprep.subr.mxu0 0.0
    %v7638 = vand.u32 %v60, 4294901760
    %v7639 = vsub.f32 %v60, %v7638
    %7640 = vmatpush1.msra.mxu0 %v7639
    %7641 = vmatprep.subr.mxu0 0.0
    %v7642 = vand.u32 %v61, 4294901760
    %v7643 = vsub.f32 %v61, %v7642
    %7644 = vmatpush1.msra.mxu0 %v7643
    %7645 = vmatprep.subr.mxu0 0.0
    %v7646 = vand.u32 %v62, 4294901760
    %v7647 = vsub.f32 %v62, %v7646
    %7648 = vmatpush1.msra.mxu0 %v7647
    %7649 = vmatprep.subr.mxu0 0.0
    %7650 = vmatpush1.msra.mxu0 0.0
    %7651 = vmatprep.subr.mxu0 0.0
    %7652 = vmatpush1.msra.mxu0 0.0
    %7653 = vmatprep.subr.mxu0 0.0
    %7654 = vmatpush1.msra.mxu0 0.0
    %7655 = vmatprep.subr.mxu0 0.0
    %7656 = vmatpush1.msra.mxu0 0.0
    %7657 = vmatprep.subr.mxu0 0.0
    %7658 = vmatpush1.msra.mxu0 0.0
    %7659 = vmatprep.subr.mxu0 0.0
    %7660 = vmatpush1.msra.mxu0 0.0
    %7661 = vmatprep.subr.mxu0 0.0
    %7662 = vmatpush1.msra.mxu0 0.0
    %7663 = vmatprep.subr.mxu0 0.0
    %7664 = vmatpush1.msra.mxu0 0.0
    %7665 = vmatprep.subr.mxu0 0.0
    %7666 = vmatpush1.msra.mxu0 0.0
    %7667 = vmatprep.subr.mxu0 0.0
    %7668 = vmatpush1.msra.mxu0 0.0
    %7669 = vmatprep.subr.mxu0 0.0
    %7670 = vmatpush1.msra.mxu0 0.0
    %7671 = vmatprep.subr.mxu0 0.0
    %7672 = vmatpush1.msra.mxu0 0.0
    %7673 = vmatprep.subr.mxu0 0.0
    %7674 = vmatpush1.msra.mxu0 0.0
    %7675 = vmatprep.subr.mxu0 0.0
    %7676 = vmatpush1.msra.mxu0 0.0
    %7677 = vmatprep.subr.mxu0 0.0
    %7678 = vmatpush1.msra.mxu0 0.0
    %7679 = vmatprep.subr.mxu0 0.0
    %7680 = vmatpush1.msra.mxu0 0.0
    %7681 = vmatprep.subr.mxu0 0.0
    %7682 = vmatpush1.msra.mxu0 0.0
    %7683 = vmatprep.subr.mxu0 0.0
    %7684 = vmatpush1.msra.mxu0 0.0
    %7685 = vmatprep.subr.mxu0 0.0
    %7686 = vmatpush1.msra.mxu0 0.0
    %7687 = vmatprep.subr.mxu0 0.0
    %7688 = vmatpush1.msra.mxu0 0.0
    %7689 = vmatprep.subr.mxu0 0.0
    %7690 = vmatpush1.msra.mxu0 0.0
    %7691 = vmatprep.subr.mxu0 0.0
    %7692 = vmatpush1.msra.mxu0 0.0
    %7693 = vmatprep.subr.mxu0 0.0
    %7694 = vmatpush1.msra.mxu0 0.0
    %7695 = vmatprep.subr.mxu0 0.0
    %7696 = vmatpush1.msra.mxu0 0.0
    %7697 = vmatprep.subr.mxu0 0.0
    %7698 = vmatpush1.msra.mxu0 0.0
    %7699 = vmatprep.subr.mxu0 0.0
    %7700 = vmatpush1.msra.mxu0 0.0
    %7701 = vmatprep.subr.mxu0 0.0
    %7702 = vmatpush1.msra.mxu0 0.0
    %7703 = vmatprep.subr.mxu0 0.0
    %7704 = vmatpush1.msra.mxu0 0.0
    %7705 = vmatprep.mubr.f32.mxu0 0.0
    %v7706 = vand.u32 %v7461, 4294901760
    %v7707 = vsub.f32 %v7461, %v7706
    %7708 = vmatmul.mubr.f32.gmra.mrb[0].mxu0 %v7707
    %v7709 = vpop.f32.mrb[0].mxu0
    %v7710 = vadd.f32 %v7630, %v7709
    %v7711 = vpop.f32.mrb[0].mxu0
    %7712 = vdwg.mxu0
    %7713 = vmatprep.subr.mxu0 0.0
    %v7714 = vand.u32 %v59, 4294901760
    %7715 = vmatpush1.msra.mxu0 %v7714
    %7716 = vmatprep.subr.mxu0 0.0
    %v7717 = vand.u32 %v60, 4294901760
    %7718 = vmatpush1.msra.mxu0 %v7717
    %7719 = vmatprep.subr.mxu0 0.0
    %v7720 = vand.u32 %v61, 4294901760
    %7721 = vmatpush1.msra.mxu0 %v7720
    %7722 = vmatprep.subr.mxu0 0.0
    %v7723 = vand.u32 %v62, 4294901760
    %7724 = vmatpush1.msra.mxu0 %v7723
    %7725 = vmatprep.subr.mxu0 0.0
    %7726 = vmatpush1.msra.mxu0 0.0
    %7727 = vmatprep.subr.mxu0 0.0
    %7728 = vmatpush1.msra.mxu0 0.0
    %7729 = vmatprep.subr.mxu0 0.0
    %7730 = vmatpush1.msra.mxu0 0.0
    %7731 = vmatprep.subr.mxu0 0.0
    %7732 = vmatpush1.msra.mxu0 0.0
    %7733 = vmatprep.subr.mxu0 0.0
    %7734 = vmatpush1.msra.mxu0 0.0
    %7735 = vmatprep.subr.mxu0 0.0
    %7736 = vmatpush1.msra.mxu0 0.0
    %7737 = vmatprep.subr.mxu0 0.0
    %7738 = vmatpush1.msra.mxu0 0.0
    %7739 = vmatprep.subr.mxu0 0.0
    %7740 = vmatpush1.msra.mxu0 0.0
    %7741 = vmatprep.subr.mxu0 0.0
    %7742 = vmatpush1.msra.mxu0 0.0
    %7743 = vmatprep.subr.mxu0 0.0
    %7744 = vmatpush1.msra.mxu0 0.0
    %7745 = vmatprep.subr.mxu0 0.0
    %7746 = vmatpush1.msra.mxu0 0.0
    %7747 = vmatprep.subr.mxu0 0.0
    %7748 = vmatpush1.msra.mxu0 0.0
    %7749 = vmatprep.subr.mxu0 0.0
    %7750 = vmatpush1.msra.mxu0 0.0
    %7751 = vmatprep.subr.mxu0 0.0
    %7752 = vmatpush1.msra.mxu0 0.0
    %7753 = vmatprep.subr.mxu0 0.0
    %7754 = vmatpush1.msra.mxu0 0.0
    %7755 = vmatprep.subr.mxu0 0.0
    %7756 = vmatpush1.msra.mxu0 0.0
    %7757 = vmatprep.subr.mxu0 0.0
    %7758 = vmatpush1.msra.mxu0 0.0
    %7759 = vmatprep.subr.mxu0 0.0
    %7760 = vmatpush1.msra.mxu0 0.0
    %7761 = vmatprep.subr.mxu0 0.0
    %7762 = vmatpush1.msra.mxu0 0.0
    %7763 = vmatprep.subr.mxu0 0.0
    %7764 = vmatpush1.msra.mxu0 0.0
    %7765 = vmatprep.subr.mxu0 0.0
    %7766 = vmatpush1.msra.mxu0 0.0
    %7767 = vmatprep.subr.mxu0 0.0
    %7768 = vmatpush1.msra.mxu0 0.0
    %7769 = vmatprep.subr.mxu0 0.0
    %7770 = vmatpush1.msra.mxu0 0.0
    %7771 = vmatprep.subr.mxu0 0.0
    %7772 = vmatpush1.msra.mxu0 0.0
    %7773 = vmatprep.subr.mxu0 0.0
    %7774 = vmatpush1.msra.mxu0 0.0
    %7775 = vmatprep.subr.mxu0 0.0
    %7776 = vmatpush1.msra.mxu0 0.0
    %7777 = vmatprep.subr.mxu0 0.0
    %7778 = vmatpush1.msra.mxu0 0.0
    %7779 = vmatprep.subr.mxu0 0.0
    %7780 = vmatpush1.msra.mxu0 0.0
    %7781 = vmatprep.mubr.f32.mxu0 0.0
    %v7782 = vand.u32 %v7461, 4294901760
    %v7783 = vsub.f32 %v7461, %v7782
    %v7784 = vand.u32 %v7783, 4294901760
    %7785 = vmatmul.mubr.f32.gmra.mrb[0].mxu0 %v7784
    %v7786 = vpop.f32.mrb[0].mxu0
    %v7787 = vadd.f32 %v7710, %v7786
    %v7788 = vpop.f32.mrb[0].mxu0
    %7789 = vdwg.mxu0
    %7790 = vmatprep.subr.mxu0 0.0
    %v7791 = vand.u32 %v59, 4294901760
    %v7792 = vsub.f32 %v59, %v7791
    %v7793 = vand.u32 %v7792, 4294901760
    %7794 = vmatpush1.msra.mxu0 %v7793
    %7795 = vmatprep.subr.mxu0 0.0
    %v7796 = vand.u32 %v60, 4294901760
    %v7797 = vsub.f32 %v60, %v7796
    %v7798 = vand.u32 %v7797, 4294901760
    %7799 = vmatpush1.msra.mxu0 %v7798
    %7800 = vmatprep.subr.mxu0 0.0
    %v7801 = vand.u32 %v61, 4294901760
    %v7802 = vsub.f32 %v61, %v7801
    %v7803 = vand.u32 %v7802, 4294901760
    %7804 = vmatpush1.msra.mxu0 %v7803
    %7805 = vmatprep.subr.mxu0 0.0
    %v7806 = vand.u32 %v62, 4294901760
    %v7807 = vsub.f32 %v62, %v7806
    %v7808 = vand.u32 %v7807, 4294901760
    %7809 = vmatpush1.msra.mxu0 %v7808
    %7810 = vmatprep.subr.mxu0 0.0
    %7811 = vmatpush1.msra.mxu0 0.0
    %7812 = vmatprep.subr.mxu0 0.0
    %7813 = vmatpush1.msra.mxu0 0.0
    %7814 = vmatprep.subr.mxu0 0.0
    %7815 = vmatpush1.msra.mxu0 0.0
    %7816 = vmatprep.subr.mxu0 0.0
    %7817 = vmatpush1.msra.mxu0 0.0
    %7818 = vmatprep.subr.mxu0 0.0
    %7819 = vmatpush1.msra.mxu0 0.0
    %7820 = vmatprep.subr.mxu0 0.0
    %7821 = vmatpush1.msra.mxu0 0.0
    %7822 = vmatprep.subr.mxu0 0.0
    %7823 = vmatpush1.msra.mxu0 0.0
    %7824 = vmatprep.subr.mxu0 0.0
    %7825 = vmatpush1.msra.mxu0 0.0
    %7826 = vmatprep.subr.mxu0 0.0
    %7827 = vmatpush1.msra.mxu0 0.0
    %7828 = vmatprep.subr.mxu0 0.0
    %7829 = vmatpush1.msra.mxu0 0.0
    %7830 = vmatprep.subr.mxu0 0.0
    %7831 = vmatpush1.msra.mxu0 0.0
    %7832 = vmatprep.subr.mxu0 0.0
    %7833 = vmatpush1.msra.mxu0 0.0
    %7834 = vmatprep.subr.mxu0 0.0
    %7835 = vmatpush1.msra.mxu0 0.0
    %7836 = vmatprep.subr.mxu0 0.0
    %7837 = vmatpush1.msra.mxu0 0.0
    %7838 = vmatprep.subr.mxu0 0.0
    %7839 = vmatpush1.msra.mxu0 0.0
    %7840 = vmatprep.subr.mxu0 0.0
    %7841 = vmatpush1.msra.mxu0 0.0
    %7842 = vmatprep.subr.mxu0 0.0
    %7843 = vmatpush1.msra.mxu0 0.0
    %7844 = vmatprep.subr.mxu0 0.0
    %7845 = vmatpush1.msra.mxu0 0.0
    %7846 = vmatprep.subr.mxu0 0.0
    %7847 = vmatpush1.msra.mxu0 0.0
    %7848 = vmatprep.subr.mxu0 0.0
    %7849 = vmatpush1.msra.mxu0 0.0
    %7850 = vmatprep.subr.mxu0 0.0
    %7851 = vmatpush1.msra.mxu0 0.0
    %7852 = vmatprep.subr.mxu0 0.0
    %7853 = vmatpush1.msra.mxu0 0.0
    %7854 = vmatprep.subr.mxu0 0.0
    %7855 = vmatpush1.msra.mxu0 0.0
    %7856 = vmatprep.subr.mxu0 0.0
    %7857 = vmatpush1.msra.mxu0 0.0
    %7858 = vmatprep.subr.mxu0 0.0
    %7859 = vmatpush1.msra.mxu0 0.0
    %7860 = vmatprep.subr.mxu0 0.0
    %7861 = vmatpush1.msra.mxu0 0.0
    %7862 = vmatprep.subr.mxu0 0.0
    %7863 = vmatpush1.msra.mxu0 0.0
    %7864 = vmatprep.subr.mxu0 0.0
    %7865 = vmatpush1.msra.mxu0 0.0
    %7866 = vmatprep.mubr.f32.mxu0 0.0
    %v7867 = vand.u32 %v7461, 4294901760
    %7868 = vmatmul.mubr.f32.gmra.mrb[0].mxu0 %v7867
    %v7869 = vpop.f32.mrb[0].mxu0
    %v7870 = vadd.f32 %v7787, %v7869
    %v7871 = vpop.f32.mrb[0].mxu0
    %7872 = vdwg.mxu0
    %7873 = vmatprep.subr.mxu0 0.0
    %v7874 = vand.u32 %v59, 4294901760
    %7875 = vmatpush1.msra.mxu0 %v7874
    %7876 = vmatprep.subr.mxu0 0.0
    %v7877 = vand.u32 %v60, 4294901760
    %7878 = vmatpush1.msra.mxu0 %v7877
    %7879 = vmatprep.subr.mxu0 0.0
    %v7880 = vand.u32 %v61, 4294901760
    %7881 = vmatpush1.msra.mxu0 %v7880
    %7882 = vmatprep.subr.mxu0 0.0
    %v7883 = vand.u32 %v62, 4294901760
    %7884 = vmatpush1.msra.mxu0 %v7883
    %7885 = vmatprep.subr.mxu0 0.0
    %7886 = vmatpush1.msra.mxu0 0.0
    %7887 = vmatprep.subr.mxu0 0.0
    %7888 = vmatpush1.msra.mxu0 0.0
    %7889 = vmatprep.subr.mxu0 0.0
    %7890 = vmatpush1.msra.mxu0 0.0
    %7891 = vmatprep.subr.mxu0 0.0
    %7892 = vmatpush1.msra.mxu0 0.0
    %7893 = vmatprep.subr.mxu0 0.0
    %7894 = vmatpush1.msra.mxu0 0.0
    %7895 = vmatprep.subr.mxu0 0.0
    %7896 = vmatpush1.msra.mxu0 0.0
    %7897 = vmatprep.subr.mxu0 0.0
    %7898 = vmatpush1.msra.mxu0 0.0
    %7899 = vmatprep.subr.mxu0 0.0
    %7900 = vmatpush1.msra.mxu0 0.0
    %7901 = vmatprep.subr.mxu0 0.0
    %7902 = vmatpush1.msra.mxu0 0.0
    %7903 = vmatprep.subr.mxu0 0.0
    %7904 = vmatpush1.msra.mxu0 0.0
    %7905 = vmatprep.subr.mxu0 0.0
    %7906 = vmatpush1.msra.mxu0 0.0
    %7907 = vmatprep.subr.mxu0 0.0
    %7908 = vmatpush1.msra.mxu0 0.0
    %7909 = vmatprep.subr.mxu0 0.0
    %7910 = vmatpush1.msra.mxu0 0.0
    %7911 = vmatprep.subr.mxu0 0.0
    %7912 = vmatpush1.msra.mxu0 0.0
    %7913 = vmatprep.subr.mxu0 0.0
    %7914 = vmatpush1.msra.mxu0 0.0
    %7915 = vmatprep.subr.mxu0 0.0
    %7916 = vmatpush1.msra.mxu0 0.0
    %7917 = vmatprep.subr.mxu0 0.0
    %7918 = vmatpush1.msra.mxu0 0.0
    %7919 = vmatprep.subr.mxu0 0.0
    %7920 = vmatpush1.msra.mxu0 0.0
    %7921 = vmatprep.subr.mxu0 0.0
    %7922 = vmatpush1.msra.mxu0 0.0
    %7923 = vmatprep.subr.mxu0 0.0
    %7924 = vmatpush1.msra.mxu0 0.0
    %7925 = vmatprep.subr.mxu0 0.0
    %7926 = vmatpush1.msra.mxu0 0.0
    %7927 = vmatprep.subr.mxu0 0.0
    %7928 = vmatpush1.msra.mxu0 0.0
    %7929 = vmatprep.subr.mxu0 0.0
    %7930 = vmatpush1.msra.mxu0 0.0
    %7931 = vmatprep.subr.mxu0 0.0
    %7932 = vmatpush1.msra.mxu0 0.0
    %7933 = vmatprep.subr.mxu0 0.0
    %7934 = vmatpush1.msra.mxu0 0.0
    %7935 = vmatprep.subr.mxu0 0.0
    %7936 = vmatpush1.msra.mxu0 0.0
    %7937 = vmatprep.subr.mxu0 0.0
    %7938 = vmatpush1.msra.mxu0 0.0
    %7939 = vmatprep.subr.mxu0 0.0
    %7940 = vmatpush1.msra.mxu0 0.0
    %7941 = vmatprep.mubr.f32.mxu0 0.0
    %v7942 = vand.u32 %v7461, 4294901760
    %7943 = vmatmul.mubr.f32.gmra.mrb[0].mxu0 %v7942
    %v7944 = vpop.f32.mrb[0].mxu0
    %v7945 = vadd.f32 %v7870, %v7944
    %v7946 = vpop.f32.mrb[0].mxu0
    %7947 = vdwg.mxu0
    %v7948 = vadd.f32 %v7459, %v7945
    %v7949 = vxor.u32 %v7948, 2147483648
    %v7950 = vmul.f32 %v7949, 1.442695
    %v7951 = vpow.pop %v7950
    %v7952 = vadd.f32 %v7951, 1.0
    %v7953 = vrcp.pop %v7952
    %v7954 = vmul.f32 1.0, %v7953
    %v7955 = vtanh.pop %v7948
    %v7956 = vmul.f32 %v7954, %v6911
    %7958 = vrot.lane.b32.xlu0 %v7955, 64
    %v7959 = vpop.permute.xlu0 %7958
    %v7961 = vmul.f32 %v7954, %v7959
    %7963 = vrot.lane.b32.xlu0 %v7961, 32
    %v7964 = vpop.permute.xlu0 %7963
    %v7966 = vadd.f32 %v7956, %v7964
    %v7967 = vtanh.pop %v7966
    %7969 = vrot.lane.b32.xlu0 %v7967, 64
    %v7970 = vpop.permute.xlu0 %7969
    %v7972 = vmul.f32 %v7954, %v7970
    %v7973 = vsel %vm70, %v7455, 0
    %7975 = vmatprep.subr.mxu0 0.0
    %v7976 = vand.u32 %v63, 4294901760
    %7977 = vmatpush1.msra.mxu0 %v7976
    %7978 = vmatprep.subr.mxu0 0.0
    %v7979 = vand.u32 %v64, 4294901760
    %7980 = vmatpush1.msra.mxu0 %v7979
    %7981 = vmatprep.subr.mxu0 0.0
    %v7982 = vand.u32 %v65, 4294901760
    %7983 = vmatpush1.msra.mxu0 %v7982
    %7984 = vmatprep.subr.mxu0 0.0
    %v7985 = vand.u32 %v66, 4294901760
    %7986 = vmatpush1.msra.mxu0 %v7985
    %7987 = vmatprep.subr.mxu0 0.0
    %7988 = vmatpush1.msra.mxu0 0.0
    %7989 = vmatprep.subr.mxu0 0.0
    %7990 = vmatpush1.msra.mxu0 0.0
    %7991 = vmatprep.subr.mxu0 0.0
    %7992 = vmatpush1.msra.mxu0 0.0
    %7993 = vmatprep.subr.mxu0 0.0
    %7994 = vmatpush1.msra.mxu0 0.0
    %7995 = vmatprep.subr.mxu0 0.0
    %7996 = vmatpush1.msra.mxu0 0.0
    %7997 = vmatprep.subr.mxu0 0.0
    %7998 = vmatpush1.msra.mxu0 0.0
    %7999 = vmatprep.subr.mxu0 0.0
    %8000 = vmatpush1.msra.mxu0 0.0
    %8001 = vmatprep.subr.mxu0 0.0
    %8002 = vmatpush1.msra.mxu0 0.0
    %8003 = vmatprep.subr.mxu0 0.0
    %8004 = vmatpush1.msra.mxu0 0.0
    %8005 = vmatprep.subr.mxu0 0.0
    %8006 = vmatpush1.msra.mxu0 0.0
    %8007 = vmatprep.subr.mxu0 0.0
    %8008 = vmatpush1.msra.mxu0 0.0
    %8009 = vmatprep.subr.mxu0 0.0
    %8010 = vmatpush1.msra.mxu0 0.0
    %8011 = vmatprep.subr.mxu0 0.0
    %8012 = vmatpush1.msra.mxu0 0.0
    %8013 = vmatprep.subr.mxu0 0.0
    %8014 = vmatpush1.msra.mxu0 0.0
    %8015 = vmatprep.subr.mxu0 0.0
    %8016 = vmatpush1.msra.mxu0 0.0
    %8017 = vmatprep.subr.mxu0 0.0
    %8018 = vmatpush1.msra.mxu0 0.0
    %8019 = vmatprep.subr.mxu0 0.0
    %8020 = vmatpush1.msra.mxu0 0.0
    %8021 = vmatprep.subr.mxu0 0.0
    %8022 = vmatpush1.msra.mxu0 0.0
    %8023 = vmatprep.subr.mxu0 0.0
    %8024 = vmatpush1.msra.mxu0 0.0
    %8025 = vmatprep.subr.mxu0 0.0
    %8026 = vmatpush1.msra.mxu0 0.0
    %8027 = vmatprep.subr.mxu0 0.0
    %8028 = vmatpush1.msra.mxu0 0.0
    %8029 = vmatprep.subr.mxu0 0.0
    %8030 = vmatpush1.msra.mxu0 0.0
    %8031 = vmatprep.subr.mxu0 0.0
    %8032 = vmatpush1.msra.mxu0 0.0
    %8033 = vmatprep.subr.mxu0 0.0
    %8034 = vmatpush1.msra.mxu0 0.0
    %8035 = vmatprep.subr.mxu0 0.0
    %8036 = vmatpush1.msra.mxu0 0.0
    %8037 = vmatprep.subr.mxu0 0.0
    %8038 = vmatpush1.msra.mxu0 0.0
    %8039 = vmatprep.subr.mxu0 0.0
    %8040 = vmatpush1.msra.mxu0 0.0
    %8041 = vmatprep.subr.mxu0 0.0
    %8042 = vmatpush1.msra.mxu0 0.0
    %8043 = vmatprep.mubr.f32.mxu0 0.0
    %v8044 = vand.u32 %v7973, 4294901760
    %v8045 = vsub.f32 %v7973, %v8044
    %v8046 = vand.u32 %v8045, 4294901760
    %v8047 = vsub.f32 %v8045, %v8046
    %v8048 = vand.u32 %v8047, 4294901760
    %8049 = vmatmul.mubr.f32.gmra.mrb[0].mxu0 %v8048
    %v8050 = vpop.f32.mrb[0].mxu0
    %v8051 = vadd.f32 0.0, %v8050
    %v8052 = vpop.f32.mrb[0].mxu0
    %8053 = vdwg.mxu0
    %8054 = vmatprep.subr.mxu0 0.0
    %v8055 = vand.u32 %v63, 4294901760
    %v8056 = vsub.f32 %v63, %v8055
    %v8057 = vand.u32 %v8056, 4294901760
    %v8058 = vsub.f32 %v8056, %v8057
    %v8059 = vand.u32 %v8058, 4294901760
    %8060 = vmatpush1.msra.mxu0 %v8059
    %8061 = vmatprep.subr.mxu0 0.0
    %v8062 = vand.u32 %v64, 4294901760
    %v8063 = vsub.f32 %v64, %v8062
    %v8064 = vand.u32 %v8063, 4294901760
    %v8065 = vsub.f32 %v8063, %v8064
    %v8066 = vand.u32 %v8065, 4294901760
    %8067 = vmatpush1.msra.mxu0 %v8066
    %8068 = vmatprep.subr.mxu0 0.0
    %v8069 = vand.u32 %v65, 4294901760
    %v8070 = vsub.f32 %v65, %v8069
    %v8071 = vand.u32 %v8070, 4294901760
    %v8072 = vsub.f32 %v8070, %v8071
    %v8073 = vand.u32 %v8072, 4294901760
    %8074 = vmatpush1.msra.mxu0 %v8073
    %8075 = vmatprep.subr.mxu0 0.0
    %v8076 = vand.u32 %v66, 4294901760
    %v8077 = vsub.f32 %v66, %v8076
    %v8078 = vand.u32 %v8077, 4294901760
    %v8079 = vsub.f32 %v8077, %v8078
    %v8080 = vand.u32 %v8079, 4294901760
    %8081 = vmatpush1.msra.mxu0 %v8080
    %8082 = vmatprep.subr.mxu0 0.0
    %8083 = vmatpush1.msra.mxu0 0.0
    %8084 = vmatprep.subr.mxu0 0.0
    %8085 = vmatpush1.msra.mxu0 0.0
    %8086 = vmatprep.subr.mxu0 0.0
    %8087 = vmatpush1.msra.mxu0 0.0
    %8088 = vmatprep.subr.mxu0 0.0
    %8089 = vmatpush1.msra.mxu0 0.0
    %8090 = vmatprep.subr.mxu0 0.0
    %8091 = vmatpush1.msra.mxu0 0.0
    %8092 = vmatprep.subr.mxu0 0.0
    %8093 = vmatpush1.msra.mxu0 0.0
    %8094 = vmatprep.subr.mxu0 0.0
    %8095 = vmatpush1.msra.mxu0 0.0
    %8096 = vmatprep.subr.mxu0 0.0
    %8097 = vmatpush1.msra.mxu0 0.0
    %8098 = vmatprep.subr.mxu0 0.0
    %8099 = vmatpush1.msra.mxu0 0.0
    %8100 = vmatprep.subr.mxu0 0.0
    %8101 = vmatpush1.msra.mxu0 0.0
    %8102 = vmatprep.subr.mxu0 0.0
    %8103 = vmatpush1.msra.mxu0 0.0
    %8104 = vmatprep.subr.mxu0 0.0
    %8105 = vmatpush1.msra.mxu0 0.0
    %8106 = vmatprep.subr.mxu0 0.0
    %8107 = vmatpush1.msra.mxu0 0.0
    %8108 = vmatprep.subr.mxu0 0.0
    %8109 = vmatpush1.msra.mxu0 0.0
    %8110 = vmatprep.subr.mxu0 0.0
    %8111 = vmatpush1.msra.mxu0 0.0
    %8112 = vmatprep.subr.mxu0 0.0
    %8113 = vmatpush1.msra.mxu0 0.0
    %8114 = vmatprep.subr.mxu0 0.0
    %8115 = vmatpush1.msra.mxu0 0.0
    %8116 = vmatprep.subr.mxu0 0.0
    %8117 = vmatpush1.msra.mxu0 0.0
    %8118 = vmatprep.subr.mxu0 0.0
    %8119 = vmatpush1.msra.mxu0 0.0
    %8120 = vmatprep.subr.mxu0 0.0
    %8121 = vmatpush1.msra.mxu0 0.0
    %8122 = vmatprep.subr.mxu0 0.0
    %8123 = vmatpush1.msra.mxu0 0.0
    %8124 = vmatprep.subr.mxu0 0.0
    %8125 = vmatpush1.msra.mxu0 0.0
    %8126 = vmatprep.subr.mxu0 0.0
    %8127 = vmatpush1.msra.mxu0 0.0
    %8128 = vmatprep.subr.mxu0 0.0
    %8129 = vmatpush1.msra.mxu0 0.0
    %8130 = vmatprep.subr.mxu0 0.0
    %8131 = vmatpush1.msra.mxu0 0.0
    %8132 = vmatprep.subr.mxu0 0.0
    %8133 = vmatpush1.msra.mxu0 0.0
    %8134 = vmatprep.subr.mxu0 0.0
    %8135 = vmatpush1.msra.mxu0 0.0
    %8136 = vmatprep.subr.mxu0 0.0
    %8137 = vmatpush1.msra.mxu0 0.0
    %8138 = vmatprep.mubr.f32.mxu0 0.0
    %v8139 = vand.u32 %v7973, 4294901760
    %8140 = vmatmul.mubr.f32.gmra.mrb[0].mxu0 %v8139
    %v8141 = vpop.f32.mrb[0].mxu0
    %v8142 = vadd.f32 %v8051, %v8141
    %v8143 = vpop.f32.mrb[0].mxu0
    %8144 = vdwg.mxu0
    %8145 = vmatprep.subr.mxu0 0.0
    %v8146 = vand.u32 %v63, 4294901760
    %v8147 = vsub.f32 %v63, %v8146
    %8148 = vmatpush1.msra.mxu0 %v8147
    %8149 = vmatprep.subr.mxu0 0.0
    %v8150 = vand.u32 %v64, 4294901760
    %v8151 = vsub.f32 %v64, %v8150
    %8152 = vmatpush1.msra.mxu0 %v8151
    %8153 = vmatprep.subr.mxu0 0.0
    %v8154 = vand.u32 %v65, 4294901760
    %v8155 = vsub.f32 %v65, %v8154
    %8156 = vmatpush1.msra.mxu0 %v8155
    %8157 = vmatprep.subr.mxu0 0.0
    %v8158 = vand.u32 %v66, 4294901760
    %v8159 = vsub.f32 %v66, %v8158
    %8160 = vmatpush1.msra.mxu0 %v8159
    %8161 = vmatprep.subr.mxu0 0.0
    %8162 = vmatpush1.msra.mxu0 0.0
    %8163 = vmatprep.subr.mxu0 0.0
    %8164 = vmatpush1.msra.mxu0 0.0
    %8165 = vmatprep.subr.mxu0 0.0
    %8166 = vmatpush1.msra.mxu0 0.0
    %8167 = vmatprep.subr.mxu0 0.0
    %8168 = vmatpush1.msra.mxu0 0.0
    %8169 = vmatprep.subr.mxu0 0.0
    %8170 = vmatpush1.msra.mxu0 0.0
    %8171 = vmatprep.subr.mxu0 0.0
    %8172 = vmatpush1.msra.mxu0 0.0
    %8173 = vmatprep.subr.mxu0 0.0
    %8174 = vmatpush1.msra.mxu0 0.0
    %8175 = vmatprep.subr.mxu0 0.0
    %8176 = vmatpush1.msra.mxu0 0.0
    %8177 = vmatprep.subr.mxu0 0.0
    %8178 = vmatpush1.msra.mxu0 0.0
    %8179 = vmatprep.subr.mxu0 0.0
    %8180 = vmatpush1.msra.mxu0 0.0
    %8181 = vmatprep.subr.mxu0 0.0
    %8182 = vmatpush1.msra.mxu0 0.0
    %8183 = vmatprep.subr.mxu0 0.0
    %8184 = vmatpush1.msra.mxu0 0.0
    %8185 = vmatprep.subr.mxu0 0.0
    %8186 = vmatpush1.msra.mxu0 0.0
    %8187 = vmatprep.subr.mxu0 0.0
    %8188 = vmatpush1.msra.mxu0 0.0
    %8189 = vmatprep.subr.mxu0 0.0
    %8190 = vmatpush1.msra.mxu0 0.0
    %8191 = vmatprep.subr.mxu0 0.0
    %8192 = vmatpush1.msra.mxu0 0.0
    %8193 = vmatprep.subr.mxu0 0.0
    %8194 = vmatpush1.msra.mxu0 0.0
    %8195 = vmatprep.subr.mxu0 0.0
    %8196 = vmatpush1.msra.mxu0 0.0
    %8197 = vmatprep.subr.mxu0 0.0
    %8198 = vmatpush1.msra.mxu0 0.0
    %8199 = vmatprep.subr.mxu0 0.0
    %8200 = vmatpush1.msra.mxu0 0.0
    %8201 = vmatprep.subr.mxu0 0.0
    %8202 = vmatpush1.msra.mxu0 0.0
    %8203 = vmatprep.subr.mxu0 0.0
    %8204 = vmatpush1.msra.mxu0 0.0
    %8205 = vmatprep.subr.mxu0 0.0
    %8206 = vmatpush1.msra.mxu0 0.0
    %8207 = vmatprep.subr.mxu0 0.0
    %8208 = vmatpush1.msra.mxu0 0.0
    %8209 = vmatprep.subr.mxu0 0.0
    %8210 = vmatpush1.msra.mxu0 0.0
    %8211 = vmatprep.subr.mxu0 0.0
    %8212 = vmatpush1.msra.mxu0 0.0
    %8213 = vmatprep.subr.mxu0 0.0
    %8214 = vmatpush1.msra.mxu0 0.0
    %8215 = vmatprep.subr.mxu0 0.0
    %8216 = vmatpush1.msra.mxu0 0.0
    %8217 = vmatprep.mubr.f32.mxu0 0.0
    %v8218 = vand.u32 %v7973, 4294901760
    %v8219 = vsub.f32 %v7973, %v8218
    %8220 = vmatmul.mubr.f32.gmra.mrb[0].mxu0 %v8219
    %v8221 = vpop.f32.mrb[0].mxu0
    %v8222 = vadd.f32 %v8142, %v8221
    %v8223 = vpop.f32.mrb[0].mxu0
    %8224 = vdwg.mxu0
    %8225 = vmatprep.subr.mxu0 0.0
    %v8226 = vand.u32 %v63, 4294901760
    %8227 = vmatpush1.msra.mxu0 %v8226
    %8228 = vmatprep.subr.mxu0 0.0
    %v8229 = vand.u32 %v64, 4294901760
    %8230 = vmatpush1.msra.mxu0 %v8229
    %8231 = vmatprep.subr.mxu0 0.0
    %v8232 = vand.u32 %v65, 4294901760
    %8233 = vmatpush1.msra.mxu0 %v8232
    %8234 = vmatprep.subr.mxu0 0.0
    %v8235 = vand.u32 %v66, 4294901760
    %8236 = vmatpush1.msra.mxu0 %v8235
    %8237 = vmatprep.subr.mxu0 0.0
    %8238 = vmatpush1.msra.mxu0 0.0
    %8239 = vmatprep.subr.mxu0 0.0
    %8240 = vmatpush1.msra.mxu0 0.0
    %8241 = vmatprep.subr.mxu0 0.0
    %8242 = vmatpush1.msra.mxu0 0.0
    %8243 = vmatprep.subr.mxu0 0.0
    %8244 = vmatpush1.msra.mxu0 0.0
    %8245 = vmatprep.subr.mxu0 0.0
    %8246 = vmatpush1.msra.mxu0 0.0
    %8247 = vmatprep.subr.mxu0 0.0
    %8248 = vmatpush1.msra.mxu0 0.0
    %8249 = vmatprep.subr.mxu0 0.0
    %8250 = vmatpush1.msra.mxu0 0.0
    %8251 = vmatprep.subr.mxu0 0.0
    %8252 = vmatpush1.msra.mxu0 0.0
    %8253 = vmatprep.subr.mxu0 0.0
    %8254 = vmatpush1.msra.mxu0 0.0
    %8255 = vmatprep.subr.mxu0 0.0
    %8256 = vmatpush1.msra.mxu0 0.0
    %8257 = vmatprep.subr.mxu0 0.0
    %8258 = vmatpush1.msra.mxu0 0.0
    %8259 = vmatprep.subr.mxu0 0.0
    %8260 = vmatpush1.msra.mxu0 0.0
    %8261 = vmatprep.subr.mxu0 0.0
    %8262 = vmatpush1.msra.mxu0 0.0
    %8263 = vmatprep.subr.mxu0 0.0
    %8264 = vmatpush1.msra.mxu0 0.0
    %8265 = vmatprep.subr.mxu0 0.0
    %8266 = vmatpush1.msra.mxu0 0.0
    %8267 = vmatprep.subr.mxu0 0.0
    %8268 = vmatpush1.msra.mxu0 0.0
    %8269 = vmatprep.subr.mxu0 0.0
    %8270 = vmatpush1.msra.mxu0 0.0
    %8271 = vmatprep.subr.mxu0 0.0
    %8272 = vmatpush1.msra.mxu0 0.0
    %8273 = vmatprep.subr.mxu0 0.0
    %8274 = vmatpush1.msra.mxu0 0.0
    %8275 = vmatprep.subr.mxu0 0.0
    %8276 = vmatpush1.msra.mxu0 0.0
    %8277 = vmatprep.subr.mxu0 0.0
    %8278 = vmatpush1.msra.mxu0 0.0
    %8279 = vmatprep.subr.mxu0 0.0
    %8280 = vmatpush1.msra.mxu0 0.0
    %8281 = vmatprep.subr.mxu0 0.0
    %8282 = vmatpush1.msra.mxu0 0.0
    %8283 = vmatprep.subr.mxu0 0.0
    %8284 = vmatpush1.msra.mxu0 0.0
    %8285 = vmatprep.subr.mxu0 0.0
    %8286 = vmatpush1.msra.mxu0 0.0
    %8287 = vmatprep.subr.mxu0 0.0
    %8288 = vmatpush1.msra.mxu0 0.0
    %8289 = vmatprep.subr.mxu0 0.0
    %8290 = vmatpush1.msra.mxu0 0.0
    %8291 = vmatprep.subr.mxu0 0.0
    %8292 = vmatpush1.msra.mxu0 0.0
    %8293 = vmatprep.mubr.f32.mxu0 0.0
    %v8294 = vand.u32 %v7973, 4294901760
    %v8295 = vsub.f32 %v7973, %v8294
    %v8296 = vand.u32 %v8295, 4294901760
    %8297 = vmatmul.mubr.f32.gmra.mrb[0].mxu0 %v8296
    %v8298 = vpop.f32.mrb[0].mxu0
    %v8299 = vadd.f32 %v8222, %v8298
    %v8300 = vpop.f32.mrb[0].mxu0
    %8301 = vdwg.mxu0
    %8302 = vmatprep.subr.mxu0 0.0
    %v8303 = vand.u32 %v63, 4294901760
    %v8304 = vsub.f32 %v63, %v8303
    %v8305 = vand.u32 %v8304, 4294901760
    %8306 = vmatpush1.msra.mxu0 %v8305
    %8307 = vmatprep.subr.mxu0 0.0
    %v8308 = vand.u32 %v64, 4294901760
    %v8309 = vsub.f32 %v64, %v8308
    %v8310 = vand.u32 %v8309, 4294901760
    %8311 = vmatpush1.msra.mxu0 %v8310
    %8312 = vmatprep.subr.mxu0 0.0
    %v8313 = vand.u32 %v65, 4294901760
    %v8314 = vsub.f32 %v65, %v8313
    %v8315 = vand.u32 %v8314, 4294901760
    %8316 = vmatpush1.msra.mxu0 %v8315
    %8317 = vmatprep.subr.mxu0 0.0
    %v8318 = vand.u32 %v66, 4294901760
    %v8319 = vsub.f32 %v66, %v8318
    %v8320 = vand.u32 %v8319, 4294901760
    %8321 = vmatpush1.msra.mxu0 %v8320
    %8322 = vmatprep.subr.mxu0 0.0
    %8323 = vmatpush1.msra.mxu0 0.0
    %8324 = vmatprep.subr.mxu0 0.0
    %8325 = vmatpush1.msra.mxu0 0.0
    %8326 = vmatprep.subr.mxu0 0.0
    %8327 = vmatpush1.msra.mxu0 0.0
    %8328 = vmatprep.subr.mxu0 0.0
    %8329 = vmatpush1.msra.mxu0 0.0
    %8330 = vmatprep.subr.mxu0 0.0
    %8331 = vmatpush1.msra.mxu0 0.0
    %8332 = vmatprep.subr.mxu0 0.0
    %8333 = vmatpush1.msra.mxu0 0.0
    %8334 = vmatprep.subr.mxu0 0.0
    %8335 = vmatpush1.msra.mxu0 0.0
    %8336 = vmatprep.subr.mxu0 0.0
    %8337 = vmatpush1.msra.mxu0 0.0
    %8338 = vmatprep.subr.mxu0 0.0
    %8339 = vmatpush1.msra.mxu0 0.0
    %8340 = vmatprep.subr.mxu0 0.0
    %8341 = vmatpush1.msra.mxu0 0.0
    %8342 = vmatprep.subr.mxu0 0.0
    %8343 = vmatpush1.msra.mxu0 0.0
    %8344 = vmatprep.subr.mxu0 0.0
    %8345 = vmatpush1.msra.mxu0 0.0
    %8346 = vmatprep.subr.mxu0 0.0
    %8347 = vmatpush1.msra.mxu0 0.0
    %8348 = vmatprep.subr.mxu0 0.0
    %8349 = vmatpush1.msra.mxu0 0.0
    %8350 = vmatprep.subr.mxu0 0.0
    %8351 = vmatpush1.msra.mxu0 0.0
    %8352 = vmatprep.subr.mxu0 0.0
    %8353 = vmatpush1.msra.mxu0 0.0
    %8354 = vmatprep.subr.mxu0 0.0
    %8355 = vmatpush1.msra.mxu0 0.0
    %8356 = vmatprep.subr.mxu0 0.0
    %8357 = vmatpush1.msra.mxu0 0.0
    %8358 = vmatprep.subr.mxu0 0.0
    %8359 = vmatpush1.msra.mxu0 0.0
    %8360 = vmatprep.subr.mxu0 0.0
    %8361 = vmatpush1.msra.mxu0 0.0
    %8362 = vmatprep.subr.mxu0 0.0
    %8363 = vmatpush1.msra.mxu0 0.0
    %8364 = vmatprep.subr.mxu0 0.0
    %8365 = vmatpush1.msra.mxu0 0.0
    %8366 = vmatprep.subr.mxu0 0.0
    %8367 = vmatpush1.msra.mxu0 0.0
    %8368 = vmatprep.subr.mxu0 0.0
    %8369 = vmatpush1.msra.mxu0 0.0
    %8370 = vmatprep.subr.mxu0 0.0
    %8371 = vmatpush1.msra.mxu0 0.0
    %8372 = vmatprep.subr.mxu0 0.0
    %8373 = vmatpush1.msra.mxu0 0.0
    %8374 = vmatprep.subr.mxu0 0.0
    %8375 = vmatpush1.msra.mxu0 0.0
    %8376 = vmatprep.subr.mxu0 0.0
    %8377 = vmatpush1.msra.mxu0 0.0
    %8378 = vmatprep.mubr.f32.mxu0 0.0
    %v8379 = vand.u32 %v7973, 4294901760
    %8380 = vmatmul.mubr.f32.gmra.mrb[0].mxu0 %v8379
    %v8381 = vpop.f32.mrb[0].mxu0
    %v8382 = vadd.f32 %v8299, %v8381
    %v8383 = vpop.f32.mrb[0].mxu0
    %8384 = vdwg.mxu0
    %8385 = vmatprep.subr.mxu0 0.0
    %v8386 = vand.u32 %v63, 4294901760
    %8387 = vmatpush1.msra.mxu0 %v8386
    %8388 = vmatprep.subr.mxu0 0.0
    %v8389 = vand.u32 %v64, 4294901760
    %8390 = vmatpush1.msra.mxu0 %v8389
    %8391 = vmatprep.subr.mxu0 0.0
    %v8392 = vand.u32 %v65, 4294901760
    %8393 = vmatpush1.msra.mxu0 %v8392
    %8394 = vmatprep.subr.mxu0 0.0
    %v8395 = vand.u32 %v66, 4294901760
    %8396 = vmatpush1.msra.mxu0 %v8395
    %8397 = vmatprep.subr.mxu0 0.0
    %8398 = vmatpush1.msra.mxu0 0.0
    %8399 = vmatprep.subr.mxu0 0.0
    %8400 = vmatpush1.msra.mxu0 0.0
    %8401 = vmatprep.subr.mxu0 0.0
    %8402 = vmatpush1.msra.mxu0 0.0
    %8403 = vmatprep.subr.mxu0 0.0
    %8404 = vmatpush1.msra.mxu0 0.0
    %8405 = vmatprep.subr.mxu0 0.0
    %8406 = vmatpush1.msra.mxu0 0.0
    %8407 = vmatprep.subr.mxu0 0.0
    %8408 = vmatpush1.msra.mxu0 0.0
    %8409 = vmatprep.subr.mxu0 0.0
    %8410 = vmatpush1.msra.mxu0 0.0
    %8411 = vmatprep.subr.mxu0 0.0
    %8412 = vmatpush1.msra.mxu0 0.0
    %8413 = vmatprep.subr.mxu0 0.0
    %8414 = vmatpush1.msra.mxu0 0.0
    %8415 = vmatprep.subr.mxu0 0.0
    %8416 = vmatpush1.msra.mxu0 0.0
    %8417 = vmatprep.subr.mxu0 0.0
    %8418 = vmatpush1.msra.mxu0 0.0
    %8419 = vmatprep.subr.mxu0 0.0
    %8420 = vmatpush1.msra.mxu0 0.0
    %8421 = vmatprep.subr.mxu0 0.0
    %8422 = vmatpush1.msra.mxu0 0.0
    %8423 = vmatprep.subr.mxu0 0.0
    %8424 = vmatpush1.msra.mxu0 0.0
    %8425 = vmatprep.subr.mxu0 0.0
    %8426 = vmatpush1.msra.mxu0 0.0
    %8427 = vmatprep.subr.mxu0 0.0
    %8428 = vmatpush1.msra.mxu0 0.0
    %8429 = vmatprep.subr.mxu0 0.0
    %8430 = vmatpush1.msra.mxu0 0.0
    %8431 = vmatprep.subr.mxu0 0.0
    %8432 = vmatpush1.msra.mxu0 0.0
    %8433 = vmatprep.subr.mxu0 0.0
    %8434 = vmatpush1.msra.mxu0 0.0
    %8435 = vmatprep.subr.mxu0 0.0
    %8436 = vmatpush1.msra.mxu0 0.0
    %8437 = vmatprep.subr.mxu0 0.0
    %8438 = vmatpush1.msra.mxu0 0.0
    %8439 = vmatprep.subr.mxu0 0.0
    %8440 = vmatpush1.msra.mxu0 0.0
    %8441 = vmatprep.subr.mxu0 0.0
    %8442 = vmatpush1.msra.mxu0 0.0
    %8443 = vmatprep.subr.mxu0 0.0
    %8444 = vmatpush1.msra.mxu0 0.0
    %8445 = vmatprep.subr.mxu0 0.0
    %8446 = vmatpush1.msra.mxu0 0.0
    %8447 = vmatprep.subr.mxu0 0.0
    %8448 = vmatpush1.msra.mxu0 0.0
    %8449 = vmatprep.subr.mxu0 0.0
    %8450 = vmatpush1.msra.mxu0 0.0
    %8451 = vmatprep.subr.mxu0 0.0
    %8452 = vmatpush1.msra.mxu0 0.0
    %8453 = vmatprep.mubr.f32.mxu0 0.0
    %v8454 = vand.u32 %v7973, 4294901760
    %8455 = vmatmul.mubr.f32.gmra.mrb[0].mxu0 %v8454
    %v8456 = vpop.f32.mrb[0].mxu0
    %v8457 = vadd.f32 %v8382, %v8456
    %v8458 = vpop.f32.mrb[0].mxu0
    %8459 = vdwg.mxu0
    %v8461 = vrot.slane %v7460, 2
    %v8463 = vadd.f32 %v8461, %v8457
    %v8464 = vxor.u32 %v8463, 2147483648
    %v8465 = vmul.f32 %v8464, 1.442695
    %v8466 = vpow.pop %v8465
    %v8467 = vadd.f32 %v8466, 1.0
    %v8468 = vrcp.pop %v8467
    %v8469 = vmul.f32 1.0, %v8468
    %v8470 = vtanh.pop %v8463
    %v8471 = vmul.f32 %v8469, %v7426
    %8473 = vrot.lane.b32.xlu0 %v8470, 64
    %v8474 = vpop.permute.xlu0 %8473
    %v8476 = vmul.f32 %v8469, %v8474
    %8478 = vrot.lane.b32.xlu0 %v8476, 32
    %v8479 = vpop.permute.xlu0 %8478
    %v8481 = vadd.f32 %v8471, %v8479
    %v8482 = vtanh.pop %v8481
    %8484 = vrot.lane.b32.xlu0 %v8482, 64
    %v8485 = vpop.permute.xlu0 %8484
    %v8487 = vmul.f32 %v8469, %v8485
    %v8490 = vunpack.c.l.s4 1983009808
    %v8491 = vunpack.c.0.s8 %v8490
    %v8492 = vlaneseq
    %v8493 = vshrl.u32 %v8492, 7
    %v8494 = vsub.s32 %v8491, %v8493
    %v8495 = vrot.slane %v7972, %v8494
    %8496 = vrot.lane.b32.xlu0 %v8495, 32
    %v8497 = vpop.permute.xlu0 %8496
    %s8499 = scalar_lea.vmem [#allocation8], 14
    %8500 = vst.msk [vmem:[%s8499] sm:$0x3] %vm1108, %v8497
    %v8503 = vunpack.c.l.s4 1983009808
    %v8504 = vunpack.c.0.s8 %v8503
    %v8505 = vlaneseq
    %v8506 = vshrl.u32 %v8505, 7
    %v8507 = vsub.s32 %v8504, %v8506
    %v8508 = vrot.slane %v8487, %v8507
    %8509 = vrot.lane.b32.xlu0 %v8508, 32
    %v8510 = vpop.permute.xlu0 %8509
    %8512 = vst.msk [vmem:[#allocation9] sm:$0x3] %vm1108, %v8510
    // Predicated region
    $region26: #{stacked_brnn_forward.5} parent=1 // pred_check
      _
    $region27: #{stacked_brnn_forward.5} parent=1 // pred_check_branch
      %8514 = sbr.rel (0) target = $region29
    $region28: #{stacked_brnn_forward.5} parent=1 // pred_region
      %s8516 = ssub.s32 256, 256
      %8517 = vsyncadd [#allocation4], %s8516
      %s8518 = sshll.u32 [#allocation8], 4
      %s8519 = int_to_ptr.vmem [resolvable:$true] %s8518
      %8524 = dma.vmem_to_hbm [thread:$0]  %s8519, 256, %s3, [#allocation4], 32, 32, 2
    $region29: #{stacked_brnn_forward.5} parent=1 // pred_fallthru
      _
    // Predicated region
    $region30: #{stacked_brnn_forward.5} parent=1 // pred_check
      _
    $region31: #{stacked_brnn_forward.5} parent=1 // pred_check_branch
      %8526 = sbr.rel (0) target = $region33
    $region32: #{stacked_brnn_forward.5} parent=1 // pred_region
      %s8528 = ssub.s32 256, 256
      %8529 = vsyncadd [#allocation10], %s8528
      %s8530 = sshll.u32 [#allocation9], 4
      %s8531 = int_to_ptr.vmem [resolvable:$true] %s8530
      %8536 = dma.vmem_to_hbm [thread:$0]  %s8531, 256, %s4, [#allocation10], 32, 32, 2
    $region33: #{stacked_brnn_forward.5} parent=1 // pred_fallthru
      _
    // Predicated region
    $region34: #{stacked_brnn_forward.5} parent=1 // pred_check
      _
    $region35: #{stacked_brnn_forward.5} parent=1 // pred_check_branch
      %8538 = sbr.rel (0) target = $region37
    $region36: #{stacked_brnn_forward.5} parent=1 // pred_region
      %8539 = dma.done [#allocation4], 256
    $region37: #{stacked_brnn_forward.5} parent=1 // pred_fallthru
      _
    // Predicated region
    $region38: #{stacked_brnn_forward.5} parent=1 // pred_check
      _
    $region39: #{stacked_brnn_forward.5} parent=1 // pred_check_branch
      %8541 = sbr.rel (0) target = $region41
    $region40: #{stacked_brnn_forward.5} parent=1 // pred_region
      %8542 = dma.done [#allocation10], 256
    $region41: #{stacked_brnn_forward.5} parent=1 // pred_fallthru
      _
    %8543 = vsyncpa [#allocation3], 1
    %8544 = vsyncpa [#allocation6], 1
    %8545 = vsyncpa [#allocation4], 1
    %8546 = vsyncpa [#allocation10], 1

</llo_original>
